<compile_context>
chip_gen: v7x
topology: tpu7x:2x2x1
jax: 0.10.0
libtpu: 0.0.40
codegen_flags: <defaults>
</compile_context>

<pallas_src>
import functools
import math

import jax
import jax.numpy as jnp
from jax.experimental import pallas as pl
from jax.experimental.pallas import tpu as pltpu

LEAKY_SLOPE = 0.01
NEG_INF = -1e30

# MXU input dtype (f32 accumulation everywhere). All VPU/EUP math (LeakyReLU,
# exp, online-softmax state, residuals) stays f32, which v5e also requires.
MXU_DTYPE = jnp.bfloat16

# Attention tiles. TILE_N: node-row tile (multiple of 8). TILE_E: edge tile
# (multiple of 128 so the [1, E] dst row stays lane-blocked). On v7x (64 MiB
# VMEM) halve TILE_E first if a large D makes the kernel VMEM-bound.
TILE_N = 128
TILE_E = 256
# Row tiles for the mem-bound linear / pooling kernels (bigger tiles amortize
# the ~0.35us per-grid-step overhead).
LIN_TILE_CANDIDATES = (512, 256, 128)
VMEM_LIMIT = 32 * 1024 * 1024


def _round_up(x, m):
    return ((x + m - 1) // m) * m


def _pick_tile(total, minimum):
    for c in LIN_TILE_CANDIDATES:
        if c >= minimum and total % c == 0:
            return c
    return minimum


def _leaky(v):
    return jnp.where(v >= 0.0, v, LEAKY_SLOPE * v)


# --------------------- row-tiled fused linear (X @ W + b) ---------------------

def _linear_kernel(x_ref, w_ref, b_ref, o_ref, *, pre_act):
    x = x_ref[...]
    if pre_act:                       # fused DeepGCN 'res+' pre-activation
        x = _leaky(x)
    y = jnp.dot(x.astype(MXU_DTYPE), w_ref[...],
                preferred_element_type=jnp.float32)
    o_ref[...] = y + b_ref[...]


def linear_rows(x, w, b, *, tile, pre_act=False):
    n, din = x.shape
    dout = w.shape[1]
    assert n % tile == 0
    return pl.pallas_call(
        functools.partial(_linear_kernel, pre_act=pre_act),
        out_shape=jax.ShapeDtypeStruct((n, dout), jnp.float32),
        grid_spec=pltpu.PrefetchScalarGridSpec(
            num_scalar_prefetch=0,
            grid=(n // tile,),
            in_specs=[pl.BlockSpec((tile, din), lambda i: (i, 0)),
                      pl.BlockSpec((din, dout), lambda i: (0, 0)),
                      pl.BlockSpec((1, dout), lambda i: (0, 0))],
            out_specs=pl.BlockSpec((tile, dout), lambda i: (i, 0))),
        compiler_params=pltpu.CompilerParams(
            dimension_semantics=("parallel",),
            vmem_limit_bytes=VMEM_LIMIT),
    )(x, w.astype(MXU_DTYPE), b.reshape(1, dout))


# ------------- TransformerConv attention (flash-style, per target) -----------

def _edge_attn_kernel(st_ref, nt_ref, proj_ref, k_ref, v_ref, dst_ref, *rest,
                      heads, out_ch, scale, tn, has_resid):
    if has_resid:
        resid_ref, o_ref, m_sc, l_sc, acc_sc = rest
    else:
        resid_ref = None
        o_ref, m_sc, l_sc, acc_sc = rest

    d = heads * out_ch
    i = pl.program_id(0)
    je = pl.program_id(1)

    @pl.when(je == 0)
    def _():
        m_sc[...] = jnp.full_like(m_sc, NEG_INF)
        l_sc[...] = jnp.zeros_like(l_sc)
        acc_sc[...] = jnp.zeros_like(acc_sc)

    # Only accumulate over edge tiles that can contain this node tile's targets
    # (edges are pre-sorted by dst; skipped steps are correct even without the
    # guard because the mask is empty — the guard just skips the MXU/EUP work).
    @pl.when(je < nt_ref[i])
    def _():
        # mask[n, e] = (dst[e] == global node id of row n). Padded edges carry
        # dst = n_pad, so they never match.
        node_ids = i * tn + jax.lax.broadcasted_iota(jnp.int32, (tn, 1), 0)
        mask = dst_ref[...] == node_ids                    # [tn, te]

        acc_cols, m_cols, l_cols = [], [], []
        for h in range(heads):                             # static unroll
            lo, hi = h * out_ch, (h + 1) * out_ch
            qh = proj_ref[:, lo:hi].astype(MXU_DTYPE)      # [tn, C]
            kh = k_ref[:, lo:hi]                           # [te, C] (bf16)
            vh = v_ref[:, lo:hi]                           # [te, C] (bf16)
            s = jax.lax.dot_general(
                qh, kh, (((1,), (1,)), ((), ())),
                preferred_element_type=jnp.float32) * scale  # [tn, te]
            s = jnp.where(mask, s, NEG_INF)                # mask BEFORE exp
            m_prev = m_sc[:, h:h + 1]
            m_new = jnp.maximum(m_prev, jnp.max(s, axis=1, keepdims=True))
            p = jnp.where(mask, jnp.exp(s - m_new), 0.0)   # keep this select!
            corr = jnp.exp(m_prev - m_new)                 # finite: -1e30 sentinel
            l_cols.append(corr * l_sc[:, h:h + 1]
                          + jnp.sum(p, axis=1, keepdims=True))
            pv = jnp.dot(p.astype(MXU_DTYPE), vh,
                         preferred_element_type=jnp.float32)   # [tn, C]
            acc_cols.append(corr * acc_sc[:, lo:hi] + pv)
            m_cols.append(m_new)

        # full-width scratch updates (no narrow masked stores)
        acc_sc[...] = jnp.concatenate(acc_cols, axis=1)
        m_sc[...] = jnp.concatenate(m_cols, axis=1)
        l_sc[...] = jnp.concatenate(l_cols, axis=1)

    @pl.when(je == pl.num_programs(1) - 1)
    def _():
        out_cols = []
        for h in range(heads):
            lo, hi = h * out_ch, (h + 1) * out_ch
            lh = l_sc[:, h:h + 1]
            inv = pl.reciprocal(jnp.where(lh == 0.0, 1.0, lh), approx=True)
            out_cols.append(acc_sc[:, lo:hi] * inv)        # isolated targets -> 0
        out = jnp.concatenate(out_cols, axis=1) + proj_ref[:, 3 * d:4 * d]
        if has_resid:
            out = out + resid_ref[...]                     # res+ residual
        # single lane-dense store: attention out + root skip (+ residual)
        o_ref[...] = out


def edge_attention(start_tile, num_tile, proj, k_e, v_e, dst_row, resid, *,
                   heads, out_ch, tn, te):
    n_pad = proj.shape[0]
    e_pad = k_e.shape[0]
    d = heads * out_ch
    assert proj.shape[1] == 4 * d and n_pad % tn == 0 and e_pad % te == 0
    has_resid = resid is not None

    def _edge_tile(i, j, st, nt):
        nt_i = nt[i]
        return jnp.where(nt_i > 0, st[i] + jnp.minimum(j, nt_i - 1), 0)

    in_specs = [
        pl.BlockSpec((tn, 4 * d), lambda i, j, st, nt: (i, 0)),   # [q|k|v|skip]
        pl.BlockSpec((te, d), lambda i, j, st, nt: (_edge_tile(i, j, st, nt), 0)),
        pl.BlockSpec((te, d), lambda i, j, st, nt: (_edge_tile(i, j, st, nt), 0)),
        pl.BlockSpec((1, te), lambda i, j, st, nt: (0, _edge_tile(i, j, st, nt))),
    ]
    args = [proj, k_e, v_e, dst_row]
    if has_resid:
        in_specs.append(pl.BlockSpec((tn, d), lambda i, j, st, nt: (i, 0)))
        args.append(resid)

    kern = functools.partial(_edge_attn_kernel, heads=heads, out_ch=out_ch,
                             scale=1.0 / math.sqrt(out_ch), tn=tn,
                             has_resid=has_resid)
    return pl.pallas_call(
        kern,
        out_shape=jax.ShapeDtypeStruct((n_pad, d), jnp.float32),
        grid_spec=pltpu.PrefetchScalarGridSpec(
            num_scalar_prefetch=2,
            grid=(n_pad // tn, e_pad // te),
            in_specs=in_specs,
            out_specs=pl.BlockSpec((tn, d), lambda i, j, st, nt: (i, 0)),
            scratch_shapes=[
                pltpu.VMEM((tn, heads), jnp.float32),   # running max
                pltpu.VMEM((tn, heads), jnp.float32),   # running denom
                pltpu.VMEM((tn, d), jnp.float32),       # running numerator
            ]),
        compiler_params=pltpu.CompilerParams(
            dimension_semantics=("parallel", "arbitrary"),
            vmem_limit_bytes=VMEM_LIMIT),
    )(start_tile, num_tile, *args)


# --------- gridded gate MLP + GlobalAttention pooling (online softmax) --------

def _gate_pool_kernel(x_ref, batch_ref, w0_ref, b0_ref, w1_ref, b1_ref,
                      w2_ref, b2_ref, w3_ref, b3_ref, o_ref,
                      m_sc, l_sc, acc_sc, *, num_graphs):
    i = pl.program_id(0)

    @pl.when(i == 0)
    def _():
        m_sc[...] = jnp.full_like(m_sc, NEG_INF)
        l_sc[...] = jnp.zeros_like(l_sc)
        acc_sc[...] = jnp.zeros_like(acc_sc)

    x = x_ref[...]                                          # [T, D] f32
    h = _leaky(jnp.dot(x.astype(MXU_DTYPE), w0_ref[...],
                       preferred_element_type=jnp.float32) + b0_ref[...])
    h = _leaky(jnp.dot(h.astype(MXU_DTYPE), w1_ref[...],
                       preferred_element_type=jnp.float32) + b1_ref[...])
    h = _leaky(jnp.dot(h.astype(MXU_DTYPE), w2_ref[...],
                       preferred_element_type=jnp.float32) + b2_ref[...])
    # final D -> 1 projection as a VPU reduce (avoids a 1-column matmul)
    gate = jnp.sum(h * w3_ref[...], axis=1, keepdims=True) + b3_ref[...]  # [T,1]

    t = x.shape[0]
    gids = jax.lax.broadcasted_iota(jnp.int32, (t, num_graphs), 1)
    member = batch_ref[...] == gids                         # [T, G]; pad rows: -1
    s = jnp.where(member, gate, NEG_INF)                    # [T, G]
    m_prev = m_sc[...]                                      # [1, G]
    m_new = jnp.maximum(m_prev, jnp.max(s, axis=0, keepdims=True))
    w = jnp.where(member, jnp.exp(s - m_new), 0.0)          # keep this select!
    corr = jnp.exp(m_prev - m_new)                          # [1, G]
    l_sc[...] = corr * l_sc[...] + jnp.sum(w, axis=0, keepdims=True)
    # acc[D, G] += x^T @ w   (contraction over the node axis, on the MXU)
    wx = jax.lax.dot_general(x.astype(MXU_DTYPE), w.astype(MXU_DTYPE),
                             (((0,), (0,)), ((), ())),
                             preferred_element_type=jnp.float32)   # [D, G]
    acc_sc[...] = corr * acc_sc[...] + wx
    m_sc[...] = m_new

    @pl.when(i == pl.num_programs(0) - 1)
    def _():
        l = l_sc[...]
        inv = pl.reciprocal(jnp.where(l == 0.0, 1.0, l), approx=True)  # [1, G]
        o_ref[...] = acc_sc[...] * inv                       # [D, G]


def gate_pool(x_full, batch_col, gp, *, num_graphs, tile):
    n_pad, d = x_full.shape
    assert n_pad % tile == 0
    kern = functools.partial(_gate_pool_kernel, num_graphs=num_graphs)
    y_dg = pl.pallas_call(
        kern,
        out_shape=jax.ShapeDtypeStruct((d, num_graphs), jnp.float32),
        grid_spec=pltpu.PrefetchScalarGridSpec(
            num_scalar_prefetch=0,
            grid=(n_pad // tile,),
            in_specs=[
                pl.BlockSpec((tile, d), lambda i: (i, 0)),
                pl.BlockSpec((tile, 1), lambda i: (i, 0)),
                pl.BlockSpec((d, d), lambda i: (0, 0)),
                pl.BlockSpec((1, d), lambda i: (0, 0)),
                pl.BlockSpec((d, d), lambda i: (0, 0)),
                pl.BlockSpec((1, d), lambda i: (0, 0)),
                pl.BlockSpec((d, d), lambda i: (0, 0)),
                pl.BlockSpec((1, d), lambda i: (0, 0)),
                pl.BlockSpec((1, d), lambda i: (0, 0)),   # w3 as a row vector
                pl.BlockSpec((1, 1), lambda i: (0, 0)),   # b3
            ],
            out_specs=pl.BlockSpec((d, num_graphs), lambda i: (0, 0)),
            scratch_shapes=[pltpu.VMEM((1, num_graphs), jnp.float32),
                            pltpu.VMEM((1, num_graphs), jnp.float32),
                            pltpu.VMEM((d, num_graphs), jnp.float32)]),
        compiler_params=pltpu.CompilerParams(
            dimension_semantics=("arbitrary",),
            vmem_limit_bytes=VMEM_LIMIT),
    )(x_full, batch_col,
      gp['w0'].astype(MXU_DTYPE), gp['b0'].reshape(1, d),
      gp['w1'].astype(MXU_DTYPE), gp['b1'].reshape(1, d),
      gp['w2'].astype(MXU_DTYPE), gp['b2'].reshape(1, d),
      gp['w3'], gp['b3'])
    return jnp.transpose(y_dg)                               # [G, D]


# --------------------------------- forward -----------------------------------

def backbone_forward(params, x, edge_index, edge_attr, batch, *,
                     num_graphs, heads, hidden, num_layers):
    n = x.shape[0]
    e = edge_attr.shape[0]
    d = heads * hidden

    n_pad = _round_up(n, TILE_N)
    e_pad = _round_up(e, TILE_E)
    lin_tile_n = _pick_tile(n_pad, TILE_N)
    lin_tile_e = _pick_tile(e_pad, TILE_E)

    # Sort edges by destination so each node tile only touches a contiguous
    # range of edge tiles (softmax/sum aggregation are permutation invariant).
    src = edge_index[0].astype(jnp.int32)
    dst = edge_index[1].astype(jnp.int32)
    order = jnp.argsort(dst)
    src = jnp.take(src, order)
    dst = jnp.take(dst, order)
    ea = jnp.take(edge_attr.astype(jnp.float32), order, axis=0)

    # Pad once: padded edges carry dst = n_pad (sorted sentinel, never matches a
    # node row); padded nodes carry batch = -1 (never pooled).
    x_p = jnp.pad(x.astype(jnp.float32), ((0, n_pad - n), (0, 0)))
    ea_p = jnp.pad(ea, ((0, e_pad - e), (0, 0)))
    src_p = jnp.pad(src, (0, e_pad - e))
    dst_p = jnp.pad(dst, (0, e_pad - e), constant_values=n_pad)
    dst_row = dst_p.reshape(1, e_pad)
    batch_col = jnp.pad(batch.astype(jnp.int32), (0, n_pad - n),
                        constant_values=-1).reshape(n_pad, 1)

    # Per node tile: edge-tile range that can contain its incoming edges.
    n_tiles = n_pad // TILE_N
    tile_lo = jnp.arange(n_tiles, dtype=jnp.int32) * TILE_N
    lo = jnp.searchsorted(dst_p, tile_lo, side='left').astype(jnp.int32)
    hi = jnp.searchsorted(dst_p, tile_lo + TILE_N, side='left').astype(jnp.int32)
    start_tile = (lo // TILE_E).astype(jnp.int32)
    num_tile = jnp.where(hi > lo,
                         (hi + TILE_E - 1) // TILE_E - lo // TILE_E,
                         0).astype(jnp.int32)

    zeros_bias = jnp.zeros((d,), jnp.float32)

    x_cur = linear_rows(x_p, params['node_w'], params['node_b'], tile=lin_tile_n)
    ea_enc = linear_rows(ea_p, params['edge_w'], params['edge_b'], tile=lin_tile_e)

    for l in range(num_layers):
        p = params['layers'][l]
        # Fused [q|k|v|skip] projection; the DeepGCN 'res+' LeakyReLU
        # pre-activation (this Backbone has no norm) is fused for l >= 1.
        # Layer 0 is the raw conv (Backbone calls .conv directly).
        proj = linear_rows(x_cur, p['w_qkvs'], p['b_qkvs'],
                           tile=lin_tile_n, pre_act=(l >= 1))
        ee = linear_rows(ea_enc, p['we'], zeros_bias, tile=lin_tile_e)
        # Per-edge key/value = gathered source projection + lin_edge(edge_attr).
        # TODO(synk): fuse this gather + add into the attention kernel via
        # scalar-prefetched src ids + manual row DMA to drop the HBM round trip.
        k_e = (jnp.take(proj[:, d:2 * d], src_p, axis=0) + ee).astype(MXU_DTYPE)
        v_e = (jnp.take(proj[:, 2 * d:3 * d], src_p, axis=0) + ee).astype(MXU_DTYPE)
        resid = x_cur if l >= 1 else None                    # res+ residual
        x_cur = edge_attention(start_tile, num_tile, proj, k_e, v_e, dst_row,
                               resid, heads=heads, out_ch=hidden,
                               tn=TILE_N, te=TILE_E)

    y = gate_pool(x_cur, batch_col, params['gate'],
                  num_graphs=num_graphs, tile=lin_tile_n)
    return y, x_cur[:n]


# ------------------------------ parameter init --------------------------------

def init_params(key, node_features, edge_features, hidden, heads, num_layers):
    d = heads * hidden
    keys = iter(jax.random.split(key, 32 + 16 * num_layers))

    def lin(kin, kout):
        w = jax.random.normal(next(keys), (kin, kout), jnp.float32) / math.sqrt(kin)
        b = jax.random.normal(next(keys), (kout,), jnp.float32) * 0.01
        return w, b

    params = {}
    params['node_w'], params['node_b'] = lin(node_features, d)
    params['edge_w'], params['edge_b'] = lin(edge_features, d)

    layers = []
    for _ in range(num_layers):
        wq, bq = lin(d, d)
        wk, bk = lin(d, d)
        wv, bv = lin(d, d)
        ws, bs = lin(d, d)            # lin_skip (root weight, carries the bias)
        we, _ = lin(d, d)             # lin_edge: bias=False in PyG
        layers.append({
            'w_qkvs': jnp.concatenate([wq, wk, wv, ws], axis=1),  # [D, 4D]
            'b_qkvs': jnp.concatenate([bq, bk, bv, bs], axis=0),  # [4D]
            'we': we,
        })
    params['layers'] = layers

    g0w, g0b = lin(d, d)
    g1w, g1b = lin(d, d)
    g2w, g2b = lin(d, d)
    g3w, g3b = lin(d, 1)
    params['gate'] = {
        'w0': g0w, 'b0': g0b, 'w1': g1w, 'b1': g1b, 'w2': g2w, 'b2': g2b,
        'w3': g3w.reshape(1, d),          # row vector for VPU reduce
        'b3': g3b.reshape(1, 1),
    }
    return params


# ----------------------------------- main --------------------------------------

if __name__ == "__main__":
    node_features, edge_features = 6, 4
    hidden_channels, heads, num_layers = 8, 2, 3
    N, E, G = 8, 16, 2

    key = jax.random.PRNGKey(0)
    kx, ke, ksrc, kdst, kp = jax.random.split(key, 5)

    x = jax.random.normal(kx, (N, node_features), jnp.float32)
    edge_attr = jax.random.normal(ke, (E, edge_features), jnp.float32)
    src = jax.random.randint(ksrc, (E,), 0, N, dtype=jnp.int32)
    dst = jax.random.randint(kdst, (E,), 0, N, dtype=jnp.int32)
    edge_index = jnp.stack([src, dst], axis=0)                  # [2, E]
    batch = jnp.array([0, 0, 0, 0, 1, 1, 1, 1], jnp.int32)      # 2 graphs

    params = init_params(kp, node_features, edge_features,
                         hidden_channels, heads, num_layers)

    fwd = jax.jit(functools.partial(
        backbone_forward, num_graphs=G, heads=heads,
        hidden=hidden_channels, num_layers=num_layers))

    y, x_out = fwd(params, x, edge_index, edge_attr, batch)
    jax.block_until_ready((y, x_out))

    assert y.shape == (G, heads * hidden_channels)
    assert x_out.shape == (N, heads * hidden_channels)
    assert bool(jnp.all(jnp.isfinite(y))) and bool(jnp.all(jnp.isfinite(x_out)))
    print("KERNEL_OK")
</pallas_src>

<mosaic_0001>
module attributes {stable_mosaic.version = 11 : i64} {
  func.func @_linear_kernel(%arg0: i32, %arg1: memref<128x16xf32, #tpu.memory_space<vmem>>, %arg2: memref<16x64xbf16, #tpu.memory_space<vmem>>, %arg3: memref<1x64xf32, #tpu.memory_space<vmem>>, %arg4: memref<128x64xf32, #tpu.memory_space<vmem>>) attributes {dimension_semantics = [#tpu.dimension_semantics<parallel>], iteration_bounds = array<i64: 1>, scalar_prefetch = 0 : i64, scratch_operands = 0 : i64, tpu.core_type = #tpu.core_type<tc>, window_params = [{transform_indices = @transform_0, window_bounds = array<i64: 128, 16>}, {pipeline_mode = #tpu.pipeline_mode<synchronous>, transform_indices = @transform_1, window_bounds = array<i64: 16, 64>}, {pipeline_mode = #tpu.pipeline_mode<synchronous>, transform_indices = @transform_2, window_bounds = array<i64: 1, 64>}, {transform_indices = @transform_3, window_bounds = array<i64: 128, 64>}]} {
    %c0 = arith.constant 0 : index
    %c0_0 = arith.constant 0 : index
    %0 = vector.load %arg1[%c0, %c0_0] : memref<128x16xf32, #tpu.memory_space<vmem>>, vector<128x16xf32>
    %1 = arith.truncf %0 : vector<128x16xf32> to vector<128x16xbf16>
    %c0_1 = arith.constant 0 : index
    %c0_2 = arith.constant 0 : index
    %2 = vector.load %arg2[%c0_1, %c0_2] : memref<16x64xbf16, #tpu.memory_space<vmem>>, vector<16x64xbf16>
    %cst = arith.constant dense<0.000000e+00> : vector<128x64xf32>
    %3 = tpu.matmul %1, %2, %cst {dimension_numbers = #tpu.dot_dimension_numbers<[1], [0], [0], [1], [0, 0, 1, 1], [], []>} : vector<128x16xbf16>, vector<16x64xbf16>, vector<128x64xf32> -> vector<128x64xf32>
    %c0_3 = arith.constant 0 : index
    %c0_4 = arith.constant 0 : index
    %4 = vector.load %arg3[%c0_3, %c0_4] : memref<1x64xf32, #tpu.memory_space<vmem>>, vector<1x64xf32>
    %5 = vector.broadcast %4 : vector<1x64xf32> to vector<128x64xf32>
    %6 = arith.addf %3, %5 : vector<128x64xf32>
    %c0_5 = arith.constant 0 : index
    %c0_6 = arith.constant 0 : index
    %7 = vector.load %arg4[%c0_5, %c0_6] : memref<128x64xf32, #tpu.memory_space<vmem>>, vector<128x64xf32>
    tpu.vector_store %arg4[%c0_5, %c0_6], %6 {strides = array<i32>} : memref<128x64xf32, #tpu.memory_space<vmem>>, vector<128x64xf32>,
    return
  }
  func.func @transform_0(%arg0: i32) -> (i32, i32) {
    %c0_i32 = arith.constant 0 : i32
    %c0_i32_0 = arith.constant 0 : i32
    return %arg0, %c0_i32 : i32, i32
  }
  func.func @transform_1(%arg0: i32) -> (i32, i32) {
    %c0_i32 = arith.constant 0 : i32
    %c0_i32_0 = arith.constant 0 : i32
    %c0_i32_1 = arith.constant 0 : i32
    return %c0_i32, %c0_i32_0 : i32, i32
  }
  func.func @transform_2(%arg0: i32) -> (i32, i32) {
    %c0_i32 = arith.constant 0 : i32
    %c0_i32_0 = arith.constant 0 : i32
    %c0_i32_1 = arith.constant 0 : i32
    return %c0_i32, %c0_i32_0 : i32, i32
  }
  func.func @transform_3(%arg0: i32) -> (i32, i32) {
    %c0_i32 = arith.constant 0 : i32
    %c0_i32_0 = arith.constant 0 : i32
    return %arg0, %c0_i32 : i32, i32
  }
}

module attributes {stable_mosaic.version = 11 : i64} {
  func.func @_linear_kernel(%arg0: i32, %arg1: memref<256x4xf32, #tpu.memory_space<vmem>>, %arg2: memref<4x16xbf16, #tpu.memory_space<vmem>>, %arg3: memref<1x16xf32, #tpu.memory_space<vmem>>, %arg4: memref<256x16xf32, #tpu.memory_space<vmem>>) attributes {dimension_semantics = [#tpu.dimension_semantics<parallel>], iteration_bounds = array<i64: 1>, scalar_prefetch = 0 : i64, scratch_operands = 0 : i64, tpu.core_type = #tpu.core_type<tc>, window_params = [{transform_indices = @transform_0, window_bounds = array<i64: 256, 4>}, {pipeline_mode = #tpu.pipeline_mode<synchronous>, transform_indices = @transform_1, window_bounds = array<i64: 4, 16>}, {pipeline_mode = #tpu.pipeline_mode<synchronous>, transform_indices = @transform_2, window_bounds = array<i64: 1, 16>}, {transform_indices = @transform_3, window_bounds = array<i64: 256, 16>}]} {
    %c0 = arith.constant 0 : index
    %c0_0 = arith.constant 0 : index
    %0 = vector.load %arg1[%c0, %c0_0] : memref<256x4xf32, #tpu.memory_space<vmem>>, vector<256x4xf32>
    %1 = arith.truncf %0 : vector<256x4xf32> to vector<256x4xbf16>
    %c0_1 = arith.constant 0 : index
    %c0_2 = arith.constant 0 : index
    %2 = vector.load %arg2[%c0_1, %c0_2] : memref<4x16xbf16, #tpu.memory_space<vmem>>, vector<4x16xbf16>
    %cst = arith.constant dense<0.000000e+00> : vector<256x16xf32>
    %3 = tpu.matmul %1, %2, %cst {dimension_numbers = #tpu.dot_dimension_numbers<[1], [0], [0], [1], [0, 0, 1, 1], [], []>} : vector<256x4xbf16>, vector<4x16xbf16>, vector<256x16xf32> -> vector<256x16xf32>
    %c0_3 = arith.constant 0 : index
    %c0_4 = arith.constant 0 : index
    %4 = vector.load %arg3[%c0_3, %c0_4] : memref<1x16xf32, #tpu.memory_space<vmem>>, vector<1x16xf32>
    %5 = vector.broadcast %4 : vector<1x16xf32> to vector<256x16xf32>
    %6 = arith.addf %3, %5 : vector<256x16xf32>
    %c0_5 = arith.constant 0 : index
    %c0_6 = arith.constant 0 : index
    %7 = vector.load %arg4[%c0_5, %c0_6] : memref<256x16xf32, #tpu.memory_space<vmem>>, vector<256x16xf32>
    tpu.vector_store %arg4[%c0_5, %c0_6], %6 {strides = array<i32>} : memref<256x16xf32, #tpu.memory_space<vmem>>, vector<256x16xf32>,
    return
  }
  func.func @transform_0(%arg0: i32) -> (i32, i32) {
    %c0_i32 = arith.constant 0 : i32
    %c0_i32_0 = arith.constant 0 : i32
    return %arg0, %c0_i32 : i32, i32
  }
  func.func @transform_1(%arg0: i32) -> (i32, i32) {
    %c0_i32 = arith.constant 0 : i32
    %c0_i32_0 = arith.constant 0 : i32
    %c0_i32_1 = arith.constant 0 : i32
    return %c0_i32, %c0_i32_0 : i32, i32
  }
  func.func @transform_2(%arg0: i32) -> (i32, i32) {
    %c0_i32 = arith.constant 0 : i32
    %c0_i32_0 = arith.constant 0 : i32
    %c0_i32_1 = arith.constant 0 : i32
    return %c0_i32, %c0_i32_0 : i32, i32
  }
  func.func @transform_3(%arg0: i32) -> (i32, i32) {
    %c0_i32 = arith.constant 0 : i32
    %c0_i32_0 = arith.constant 0 : i32
    return %arg0, %c0_i32 : i32, i32
  }
}

module attributes {stable_mosaic.version = 11 : i64} {
  func.func @_linear_kernel(%arg0: i32, %arg1: memref<256x16xf32, #tpu.memory_space<vmem>>, %arg2: memref<16x16xbf16, #tpu.memory_space<vmem>>, %arg3: memref<1x16xf32, #tpu.memory_space<vmem>>, %arg4: memref<256x16xf32, #tpu.memory_space<vmem>>) attributes {dimension_semantics = [#tpu.dimension_semantics<parallel>], iteration_bounds = array<i64: 1>, scalar_prefetch = 0 : i64, scratch_operands = 0 : i64, tpu.core_type = #tpu.core_type<tc>, window_params = [{transform_indices = @transform_0, window_bounds = array<i64: 256, 16>}, {pipeline_mode = #tpu.pipeline_mode<synchronous>, transform_indices = @transform_1, window_bounds = array<i64: 16, 16>}, {pipeline_mode = #tpu.pipeline_mode<synchronous>, transform_indices = @transform_2, window_bounds = array<i64: 1, 16>}, {transform_indices = @transform_3, window_bounds = array<i64: 256, 16>}]} {
    %c0 = arith.constant 0 : index
    %c0_0 = arith.constant 0 : index
    %0 = vector.load %arg1[%c0, %c0_0] : memref<256x16xf32, #tpu.memory_space<vmem>>, vector<256x16xf32>
    %1 = arith.truncf %0 : vector<256x16xf32> to vector<256x16xbf16>
    %c0_1 = arith.constant 0 : index
    %c0_2 = arith.constant 0 : index
    %2 = vector.load %arg2[%c0_1, %c0_2] : memref<16x16xbf16, #tpu.memory_space<vmem>>, vector<16x16xbf16>
    %cst = arith.constant dense<0.000000e+00> : vector<256x16xf32>
    %3 = tpu.matmul %1, %2, %cst {dimension_numbers = #tpu.dot_dimension_numbers<[1], [0], [0], [1], [0, 0, 1, 1], [], []>} : vector<256x16xbf16>, vector<16x16xbf16>, vector<256x16xf32> -> vector<256x16xf32>
    %c0_3 = arith.constant 0 : index
    %c0_4 = arith.constant 0 : index
    %4 = vector.load %arg3[%c0_3, %c0_4] : memref<1x16xf32, #tpu.memory_space<vmem>>, vector<1x16xf32>
    %5 = vector.broadcast %4 : vector<1x16xf32> to vector<256x16xf32>
    %6 = arith.addf %3, %5 : vector<256x16xf32>
    %c0_5 = arith.constant 0 : index
    %c0_6 = arith.constant 0 : index
    %7 = vector.load %arg4[%c0_5, %c0_6] : memref<256x16xf32, #tpu.memory_space<vmem>>, vector<256x16xf32>
    tpu.vector_store %arg4[%c0_5, %c0_6], %6 {strides = array<i32>} : memref<256x16xf32, #tpu.memory_space<vmem>>, vector<256x16xf32>,
    return
  }
  func.func @transform_0(%arg0: i32) -> (i32, i32) {
    %c0_i32 = arith.constant 0 : i32
    %c0_i32_0 = arith.constant 0 : i32
    return %arg0, %c0_i32 : i32, i32
  }
  func.func @transform_1(%arg0: i32) -> (i32, i32) {
    %c0_i32 = arith.constant 0 : i32
    %c0_i32_0 = arith.constant 0 : i32
    %c0_i32_1 = arith.constant 0 : i32
    return %c0_i32, %c0_i32_0 : i32, i32
  }
  func.func @transform_2(%arg0: i32) -> (i32, i32) {
    %c0_i32 = arith.constant 0 : i32
    %c0_i32_0 = arith.constant 0 : i32
    %c0_i32_1 = arith.constant 0 : i32
    return %c0_i32, %c0_i32_0 : i32, i32
  }
  func.func @transform_3(%arg0: i32) -> (i32, i32) {
    %c0_i32 = arith.constant 0 : i32
    %c0_i32_0 = arith.constant 0 : i32
    return %arg0, %c0_i32 : i32, i32
  }
}

module attributes {stable_mosaic.version = 11 : i64} {
  func.func @_linear_kernel(%arg0: i32, %arg1: memref<128x6xf32, #tpu.memory_space<vmem>>, %arg2: memref<6x16xbf16, #tpu.memory_space<vmem>>, %arg3: memref<1x16xf32, #tpu.memory_space<vmem>>, %arg4: memref<128x16xf32, #tpu.memory_space<vmem>>) attributes {dimension_semantics = [#tpu.dimension_semantics<parallel>], iteration_bounds = array<i64: 1>, scalar_prefetch = 0 : i64, scratch_operands = 0 : i64, tpu.core_type = #tpu.core_type<tc>, window_params = [{transform_indices = @transform_0, window_bounds = array<i64: 128, 6>}, {pipeline_mode = #tpu.pipeline_mode<synchronous>, transform_indices = @transform_1, window_bounds = array<i64: 6, 16>}, {pipeline_mode = #tpu.pipeline_mode<synchronous>, transform_indices = @transform_2, window_bounds = array<i64: 1, 16>}, {transform_indices = @transform_3, window_bounds = array<i64: 128, 16>}]} {
    %c0 = arith.constant 0 : index
    %c0_0 = arith.constant 0 : index
    %0 = vector.load %arg1[%c0, %c0_0] : memref<128x6xf32, #tpu.memory_space<vmem>>, vector<128x6xf32>
    %1 = arith.truncf %0 : vector<128x6xf32> to vector<128x6xbf16>
    %c0_1 = arith.constant 0 : index
    %c0_2 = arith.constant 0 : index
    %2 = vector.load %arg2[%c0_1, %c0_2] : memref<6x16xbf16, #tpu.memory_space<vmem>>, vector<6x16xbf16>
    %cst = arith.constant dense<0.000000e+00> : vector<128x16xf32>
    %3 = tpu.matmul %1, %2, %cst {dimension_numbers = #tpu.dot_dimension_numbers<[1], [0], [0], [1], [0, 0, 1, 1], [], []>} : vector<128x6xbf16>, vector<6x16xbf16>, vector<128x16xf32> -> vector<128x16xf32>
    %c0_3 = arith.constant 0 : index
    %c0_4 = arith.constant 0 : index
    %4 = vector.load %arg3[%c0_3, %c0_4] : memref<1x16xf32, #tpu.memory_space<vmem>>, vector<1x16xf32>
    %5 = vector.broadcast %4 : vector<1x16xf32> to vector<128x16xf32>
    %6 = arith.addf %3, %5 : vector<128x16xf32>
    %c0_5 = arith.constant 0 : index
    %c0_6 = arith.constant 0 : index
    %7 = vector.load %arg4[%c0_5, %c0_6] : memref<128x16xf32, #tpu.memory_space<vmem>>, vector<128x16xf32>
    tpu.vector_store %arg4[%c0_5, %c0_6], %6 {strides = array<i32>} : memref<128x16xf32, #tpu.memory_space<vmem>>, vector<128x16xf32>,
    return
  }
  func.func @transform_0(%arg0: i32) -> (i32, i32) {
    %c0_i32 = arith.constant 0 : i32
    %c0_i32_0 = arith.constant 0 : i32
    return %arg0, %c0_i32 : i32, i32
  }
  func.func @transform_1(%arg0: i32) -> (i32, i32) {
    %c0_i32 = arith.constant 0 : i32
    %c0_i32_0 = arith.constant 0 : i32
    %c0_i32_1 = arith.constant 0 : i32
    return %c0_i32, %c0_i32_0 : i32, i32
  }
  func.func @transform_2(%arg0: i32) -> (i32, i32) {
    %c0_i32 = arith.constant 0 : i32
    %c0_i32_0 = arith.constant 0 : i32
    %c0_i32_1 = arith.constant 0 : i32
    return %c0_i32, %c0_i32_0 : i32, i32
  }
  func.func @transform_3(%arg0: i32) -> (i32, i32) {
    %c0_i32 = arith.constant 0 : i32
    %c0_i32_0 = arith.constant 0 : i32
    return %arg0, %c0_i32 : i32, i32
  }
}

module attributes {stable_mosaic.version = 11 : i64} {
  func.func @_edge_attn_kernel(%arg0: i32, %arg1: i32, %arg2: memref<1xi32, #tpu.memory_space<smem>>, %arg3: memref<1xi32, #tpu.memory_space<smem>>, %arg4: memref<128x64xf32, #tpu.memory_space<vmem>>, %arg5: memref<256x16xbf16, #tpu.memory_space<vmem>>, %arg6: memref<256x16xbf16, #tpu.memory_space<vmem>>, %arg7: memref<1x256xi32, #tpu.memory_space<vmem>>, %arg8: memref<128x16xf32, #tpu.memory_space<vmem>>, %arg9: memref<128x2xf32, #tpu.memory_space<vmem>>, %arg10: memref<128x2xf32, #tpu.memory_space<vmem>>, %arg11: memref<128x16xf32, #tpu.memory_space<vmem>>) attributes {dimension_semantics = [#tpu.dimension_semantics<parallel>, #tpu.dimension_semantics<arbitrary>], iteration_bounds = array<i64: 1, 1>, scalar_prefetch = 2 : i64, scratch_operands = 3 : i64, tpu.core_type = #tpu.core_type<tc>, window_params = [{transform_indices = @transform_0, window_bounds = array<i64: 128, 64>}, {transform_indices = @transform_1, window_bounds = array<i64: 256, 16>}, {transform_indices = @transform_2, window_bounds = array<i64: 256, 16>}, {transform_indices = @transform_3, window_bounds = array<i64: 1, 256>}, {transform_indices = @transform_4, window_bounds = array<i64: 128, 16>}]} {
    %c0_i32 = arith.constant 0 : i32
    %0 = arith.cmpi eq, %arg1, %c0_i32 : i32
    %1 = arith.extui %0 : i1 to i32
    %c0_i32_0 = arith.constant 0 : i32
    %2 = arith.cmpi ne, %1, %c0_i32_0 : i32
    scf.if %2 {
      %cst = arith.constant -1.000000e+30 : f32
      %11 = vector.broadcast %cst : f32 to vector<128x2xf32>
      %c0 = arith.constant 0 : index
      %c0_4 = arith.constant 0 : index
      %12 = vector.load %arg9[%c0, %c0_4] : memref<128x2xf32, #tpu.memory_space<vmem>>, vector<128x2xf32>
      tpu.vector_store %arg9[%c0, %c0_4], %11 {strides = array<i32>} : memref<128x2xf32, #tpu.memory_space<vmem>>, vector<128x2xf32>,
      %cst_5 = arith.constant 0.000000e+00 : f32
      %13 = vector.broadcast %cst_5 : f32 to vector<128x2xf32>
      %c0_6 = arith.constant 0 : index
      %c0_7 = arith.constant 0 : index
      %14 = vector.load %arg10[%c0_6, %c0_7] : memref<128x2xf32, #tpu.memory_space<vmem>>, vector<128x2xf32>
      tpu.vector_store %arg10[%c0_6, %c0_7], %13 {strides = array<i32>} : memref<128x2xf32, #tpu.memory_space<vmem>>, vector<128x2xf32>,
      %cst_8 = arith.constant 0.000000e+00 : f32
      %15 = vector.broadcast %cst_8 : f32 to vector<128x16xf32>
      %c0_9 = arith.constant 0 : index
      %c0_10 = arith.constant 0 : index
      %16 = vector.load %arg11[%c0_9, %c0_10] : memref<128x16xf32, #tpu.memory_space<vmem>>, vector<128x16xf32>
      tpu.vector_store %arg11[%c0_9, %c0_10], %15 {strides = array<i32>} : memref<128x16xf32, #tpu.memory_space<vmem>>, vector<128x16xf32>,
    } else {
    }
    %3 = arith.index_cast %arg0 : i32 to index
    %4 = memref.load %arg3[%3] : memref<1xi32, #tpu.memory_space<smem>>
    %5 = arith.cmpi slt, %arg1, %4 : i32
    %6 = arith.extui %5 : i1 to i32
    %c0_i32_1 = arith.constant 0 : i32
    %7 = arith.cmpi ne, %6, %c0_i32_1 : i32
    scf.if %7 {
      %c128_i32 = arith.constant 128 : i32
      %11 = arith.muli %arg0, %c128_i32 : i32
      %12 = tpu.iota {dimensions = array<i32: 0>} : vector<128x1xi32>
      %13 = vector.broadcast %11 : i32 to vector<128x1xi32>
      %14 = arith.addi %13, %12 : vector<128x1xi32>
      %c0 = arith.constant 0 : index
      %c0_4 = arith.constant 0 : index
      %15 = vector.load %arg7[%c0, %c0_4] : memref<1x256xi32, #tpu.memory_space<vmem>>, vector<1x256xi32>
      %16 = vector.broadcast %15 : vector<1x256xi32> to vector<128x256xi32>
      %17 = vector.broadcast %14 : vector<128x1xi32> to vector<128x256xi32>
      %18 = arith.cmpi eq, %16, %17 : vector<128x256xi32>
      %c0_5 = arith.constant 0 : index
      %c0_6 = arith.constant 0 : index
      %19 = vector.load %arg4[%c0_5, %c0_6] : memref<128x64xf32, #tpu.memory_space<vmem>>, vector<128x8xf32>
      %20 = arith.truncf %19 : vector<128x8xf32> to vector<128x8xbf16>
      %c0_7 = arith.constant 0 : index
      %c0_8 = arith.constant 0 : index
      %21 = vector.load %arg5[%c0_7, %c0_8] : memref<256x16xbf16, #tpu.memory_space<vmem>>, vector<256x8xbf16>
      %c0_9 = arith.constant 0 : index
      %c0_10 = arith.constant 0 : index
      %22 = vector.load %arg6[%c0_9, %c0_10] : memref<256x16xbf16, #tpu.memory_space<vmem>>, vector<256x8xbf16>
      %cst = arith.constant dense<0.000000e+00> : vector<128x256xf32>
      %23 = tpu.matmul %20, %21, %cst {dimension_numbers = #tpu.dot_dimension_numbers<[1], [1], [0], [0], [0, 0, 1, 0], [], []>} : vector<128x8xbf16>, vector<256x8xbf16>, vector<128x256xf32> -> vector<128x256xf32>
      %cst_11 = arith.constant 0.353553385 : f32
      %24 = vector.broadcast %cst_11 : f32 to vector<128x256xf32>
      %25 = arith.mulf %23, %24 : vector<128x256xf32>
      %cst_12 = arith.constant -1.000000e+30 : f32
      %26 = vector.broadcast %cst_12 : f32 to vector<128x256xf32>
      %27 = arith.select %18, %25, %26 : vector<128x256xi1>, vector<128x256xf32>
      %c0_13 = arith.constant 0 : index
      %c0_14 = arith.constant 0 : index
      %28 = vector.load %arg9[%c0_13, %c0_14] : memref<128x2xf32, #tpu.memory_space<vmem>>, vector<128x1xf32>
      %cst_15 = arith.constant dense<0xFF800000> : vector<128xf32>
      %29 = vector.multi_reduction <maximumf>, %27, %cst_15 [1] : vector<128x256xf32> to vector<128xf32>
      %30 = vector.shape_cast %29 : vector<128xf32> to vector<128x1xf32>
      %31 = arith.maximumf %28, %30 : vector<128x1xf32>
      %32 = vector.broadcast %31 : vector<128x1xf32> to vector<128x256xf32>
      %33 = arith.subf %27, %32 : vector<128x256xf32>
      %34 = math.exp %33 : vector<128x256xf32>
      %cst_16 = arith.constant 0.000000e+00 : f32
      %35 = vector.broadcast %cst_16 : f32 to vector<128x256xf32>
      %36 = arith.select %18, %34, %35 : vector<128x256xi1>, vector<128x256xf32>
      %37 = arith.subf %28, %31 : vector<128x1xf32>
      %38 = math.exp %37 : vector<128x1xf32>
      %c0_17 = arith.constant 0 : index
      %c0_18 = arith.constant 0 : index
      %39 = vector.load %arg10[%c0_17, %c0_18] : memref<128x2xf32, #tpu.memory_space<vmem>>, vector<128x1xf32>
      %40 = arith.mulf %38, %39 : vector<128x1xf32>
      %cst_19 = arith.constant dense<0.000000e+00> : vector<128xf32>
      %41 = vector.multi_reduction <add>, %36, %cst_19 [1] : vector<128x256xf32> to vector<128xf32>
      %42 = vector.shape_cast %41 : vector<128xf32> to vector<128x1xf32>
      %43 = arith.addf %40, %42 : vector<128x1xf32>
      %44 = arith.truncf %36 : vector<128x256xf32> to vector<128x256xbf16>
      %cst_20 = arith.constant dense<0.000000e+00> : vector<128x8xf32>
      %45 = tpu.matmul %44, %22, %cst_20 {dimension_numbers = #tpu.dot_dimension_numbers<[1], [0], [0], [1], [0, 0, 1, 1], [], []>} : vector<128x256xbf16>, vector<256x8xbf16>, vector<128x8xf32> -> vector<128x8xf32>
      %c0_21 = arith.constant 0 : index
      %c0_22 = arith.constant 0 : index
      %46 = vector.load %arg11[%c0_21, %c0_22] : memref<128x16xf32, #tpu.memory_space<vmem>>, vector<128x8xf32>
      %47 = vector.broadcast %38 : vector<128x1xf32> to vector<128x8xf32>
      %48 = arith.mulf %47, %46 : vector<128x8xf32>
      %49 = arith.addf %48, %45 : vector<128x8xf32>
      %c0_23 = arith.constant 0 : index
      %c8 = arith.constant 8 : index
      %50 = vector.load %arg4[%c0_23, %c8] : memref<128x64xf32, #tpu.memory_space<vmem>>, vector<128x8xf32>
      %51 = arith.truncf %50 : vector<128x8xf32> to vector<128x8xbf16>
      %c0_24 = arith.constant 0 : index
      %c8_25 = arith.constant 8 : index
      %52 = vector.load %arg5[%c0_24, %c8_25] : memref<256x16xbf16, #tpu.memory_space<vmem>>, vector<256x8xbf16>
      %c0_26 = arith.constant 0 : index
      %c8_27 = arith.constant 8 : index
      %53 = vector.load %arg6[%c0_26, %c8_27] : memref<256x16xbf16, #tpu.memory_space<vmem>>, vector<256x8xbf16>
      %cst_28 = arith.constant dense<0.000000e+00> : vector<128x256xf32>
      %54 = tpu.matmul %51, %52, %cst_28 {dimension_numbers = #tpu.dot_dimension_numbers<[1], [1], [0], [0], [0, 0, 1, 0], [], []>} : vector<128x8xbf16>, vector<256x8xbf16>, vector<128x256xf32> -> vector<128x256xf32>
      %cst_29 = arith.constant 0.353553385 : f32
      %55 = vector.broadcast %cst_29 : f32 to vector<128x256xf32>
      %56 = arith.mulf %54, %55 : vector<128x256xf32>
      %cst_30 = arith.constant -1.000000e+30 : f32
      %57 = vector.broadcast %cst_30 : f32 to vector<128x256xf32>
      %58 = arith.select %18, %56, %57 : vector<128x256xi1>, vector<128x256xf32>
      %c0_31 = arith.constant 0 : index
      %c1 = arith.constant 1 : index
      %59 = vector.load %arg9[%c0_31, %c1] : memref<128x2xf32, #tpu.memory_space<vmem>>, vector<128x1xf32>
      %cst_32 = arith.constant dense<0xFF800000> : vector<128xf32>
      %60 = vector.multi_reduction <maximumf>, %58, %cst_32 [1] : vector<128x256xf32> to vector<128xf32>
      %61 = vector.shape_cast %60 : vector<128xf32> to vector<128x1xf32>
      %62 = arith.maximumf %59, %61 : vector<128x1xf32>
      %63 = vector.broadcast %62 : vector<128x1xf32> to vector<128x256xf32>
      %64 = arith.subf %58, %63 : vector<128x256xf32>
      %65 = math.exp %64 : vector<128x256xf32>
      %cst_33 = arith.constant 0.000000e+00 : f32
      %66 = vector.broadcast %cst_33 : f32 to vector<128x256xf32>
      %67 = arith.select %18, %65, %66 : vector<128x256xi1>, vector<128x256xf32>
      %68 = arith.subf %59, %62 : vector<128x1xf32>
      %69 = math.exp %68 : vector<128x1xf32>
      %c0_34 = arith.constant 0 : index
      %c1_35 = arith.constant 1 : index
      %70 = vector.load %arg10[%c0_34, %c1_35] : memref<128x2xf32, #tpu.memory_space<vmem>>, vector<128x1xf32>
      %71 = arith.mulf %69, %70 : vector<128x1xf32>
      %cst_36 = arith.constant dense<0.000000e+00> : vector<128xf32>
      %72 = vector.multi_reduction <add>, %67, %cst_36 [1] : vector<128x256xf32> to vector<128xf32>
      %73 = vector.shape_cast %72 : vector<128xf32> to vector<128x1xf32>
      %74 = arith.addf %71, %73 : vector<128x1xf32>
      %75 = arith.truncf %67 : vector<128x256xf32> to vector<128x256xbf16>
      %cst_37 = arith.constant dense<0.000000e+00> : vector<128x8xf32>
      %76 = tpu.matmul %75, %53, %cst_37 {dimension_numbers = #tpu.dot_dimension_numbers<[1], [0], [0], [1], [0, 0, 1, 1], [], []>} : vector<128x256xbf16>, vector<256x8xbf16>, vector<128x8xf32> -> vector<128x8xf32>
      %c0_38 = arith.constant 0 : index
      %c8_39 = arith.constant 8 : index
      %77 = vector.load %arg11[%c0_38, %c8_39] : memref<128x16xf32, #tpu.memory_space<vmem>>, vector<128x8xf32>
      %78 = vector.broadcast %69 : vector<128x1xf32> to vector<128x8xf32>
      %79 = arith.mulf %78, %77 : vector<128x8xf32>
      %80 = arith.addf %79, %76 : vector<128x8xf32>
      %81 = tpu.concatenate %49, %80 in 1 : vector<128x8xf32>, vector<128x8xf32> -> vector<128x16xf32>
      %c0_40 = arith.constant 0 : index
      %c0_41 = arith.constant 0 : index
      %82 = vector.load %arg11[%c0_40, %c0_41] : memref<128x16xf32, #tpu.memory_space<vmem>>, vector<128x16xf32>
      tpu.vector_store %arg11[%c0_40, %c0_41], %81 {strides = array<i32>} : memref<128x16xf32, #tpu.memory_space<vmem>>, vector<128x16xf32>,
      %83 = tpu.concatenate %31, %62 in 1 : vector<128x1xf32>, vector<128x1xf32> -> vector<128x2xf32>
      %c0_42 = arith.constant 0 : index
      %c0_43 = arith.constant 0 : index
      %84 = vector.load %arg9[%c0_42, %c0_43] : memref<128x2xf32, #tpu.memory_space<vmem>>, vector<128x2xf32>
      tpu.vector_store %arg9[%c0_42, %c0_43], %83 {strides = array<i32>} : memref<128x2xf32, #tpu.memory_space<vmem>>, vector<128x2xf32>,
      %85 = tpu.concatenate %43, %74 in 1 : vector<128x1xf32>, vector<128x1xf32> -> vector<128x2xf32>
      %c0_44 = arith.constant 0 : index
      %c0_45 = arith.constant 0 : index
      %86 = vector.load %arg10[%c0_44, %c0_45] : memref<128x2xf32, #tpu.memory_space<vmem>>, vector<128x2xf32>
      tpu.vector_store %arg10[%c0_44, %c0_45], %85 {strides = array<i32>} : memref<128x2xf32, #tpu.memory_space<vmem>>, vector<128x2xf32>,
    } else {
    }
    %c0_i32_2 = arith.constant 0 : i32
    %8 = arith.cmpi eq, %arg1, %c0_i32_2 : i32
    %9 = arith.extui %8 : i1 to i32
    %c0_i32_3 = arith.constant 0 : i32
    %10 = arith.cmpi ne, %9, %c0_i32_3 : i32
    scf.if %10 {
      %c0 = arith.constant 0 : index
      %c0_4 = arith.constant 0 : index
      %11 = vector.load %arg10[%c0, %c0_4] : memref<128x2xf32, #tpu.memory_space<vmem>>, vector<128x1xf32>
      %cst = arith.constant 0.000000e+00 : f32
      %12 = vector.broadcast %cst : f32 to vector<128x1xf32>
      %13 = arith.cmpf oeq, %11, %12 : vector<128x1xf32>
      %cst_5 = arith.constant 1.000000e+00 : f32
      %14 = vector.broadcast %cst_5 : f32 to vector<128x1xf32>
      %15 = arith.select %13, %14, %11 : vector<128x1xi1>, vector<128x1xf32>
      %16 = tpu.reciprocal %15 {approx = true} : vector<128x1xf32> -> vector<128x1xf32>
      %c0_6 = arith.constant 0 : index
      %c0_7 = arith.constant 0 : index
      %17 = vector.load %arg11[%c0_6, %c0_7] : memref<128x16xf32, #tpu.memory_space<vmem>>, vector<128x8xf32>
      %18 = vector.broadcast %16 : vector<128x1xf32> to vector<128x8xf32>
      %19 = arith.mulf %17, %18 : vector<128x8xf32>
      %c0_8 = arith.constant 0 : index
      %c1 = arith.constant 1 : index
      %20 = vector.load %arg10[%c0_8, %c1] : memref<128x2xf32, #tpu.memory_space<vmem>>, vector<128x1xf32>
      %cst_9 = arith.constant 0.000000e+00 : f32
      %21 = vector.broadcast %cst_9 : f32 to vector<128x1xf32>
      %22 = arith.cmpf oeq, %20, %21 : vector<128x1xf32>
      %cst_10 = arith.constant 1.000000e+00 : f32
      %23 = vector.broadcast %cst_10 : f32 to vector<128x1xf32>
      %24 = arith.select %22, %23, %20 : vector<128x1xi1>, vector<128x1xf32>
      %25 = tpu.reciprocal %24 {approx = true} : vector<128x1xf32> -> vector<128x1xf32>
      %c0_11 = arith.constant 0 : index
      %c8 = arith.constant 8 : index
      %26 = vector.load %arg11[%c0_11, %c8] : memref<128x16xf32, #tpu.memory_space<vmem>>, vector<128x8xf32>
      %27 = vector.broadcast %25 : vector<128x1xf32> to vector<128x8xf32>
      %28 = arith.mulf %26, %27 : vector<128x8xf32>
      %29 = tpu.concatenate %19, %28 in 1 : vector<128x8xf32>, vector<128x8xf32> -> vector<128x16xf32>
      %c0_12 = arith.constant 0 : index
      %c48 = arith.constant 48 : index
      %30 = vector.load %arg4[%c0_12, %c48] : memref<128x64xf32, #tpu.memory_space<vmem>>, vector<128x16xf32>
      %31 = arith.addf %29, %30 : vector<128x16xf32>
      %c0_13 = arith.constant 0 : index
      %c0_14 = arith.constant 0 : index
      %32 = vector.load %arg8[%c0_13, %c0_14] : memref<128x16xf32, #tpu.memory_space<vmem>>, vector<128x16xf32>
      tpu.vector_store %arg8[%c0_13, %c0_14], %31 {strides = array<i32>} : memref<128x16xf32, #tpu.memory_space<vmem>>, vector<128x16xf32>,
    } else {
    }
    return
  }
  func.func @transform_0(%arg0: i32, %arg1: i32, %arg2: memref<1xi32, #tpu.memory_space<smem>>, %arg3: memref<1xi32, #tpu.memory_space<smem>>) -> (i32, i32) {
    %c0_i32 = arith.constant 0 : i32
    %c0_i32_0 = arith.constant 0 : i32
    return %arg0, %c0_i32 : i32, i32
  }
  func.func @transform_1(%arg0: i32, %arg1: i32, %arg2: memref<1xi32, #tpu.memory_space<smem>>, %arg3: memref<1xi32, #tpu.memory_space<smem>>) -> (i32, i32) {
    %0 = arith.index_cast %arg0 : i32 to index
    %1 = memref.load %arg3[%0] : memref<1xi32, #tpu.memory_space<smem>>
    %c0_i32 = arith.constant 0 : i32
    %2 = arith.cmpi sgt, %1, %c0_i32 : i32
    %3 = arith.index_cast %arg0 : i32 to index
    %4 = memref.load %arg2[%3] : memref<1xi32, #tpu.memory_space<smem>>
    %c1_i32 = arith.constant 1 : i32
    %5 = arith.subi %1, %c1_i32 : i32
    %6 = arith.minsi %arg1, %5 : i32
    %7 = arith.addi %4, %6 : i32
    %c0_i32_0 = arith.constant 0 : i32
    %8 = arith.select %2, %7, %c0_i32_0 : i32
    %c0_i32_1 = arith.constant 0 : i32
    %c0_i32_2 = arith.constant 0 : i32
    return %8, %c0_i32_1 : i32, i32
  }
  func.func @transform_2(%arg0: i32, %arg1: i32, %arg2: memref<1xi32, #tpu.memory_space<smem>>, %arg3: memref<1xi32, #tpu.memory_space<smem>>) -> (i32, i32) {
    %0 = arith.index_cast %arg0 : i32 to index
    %1 = memref.load %arg3[%0] : memref<1xi32, #tpu.memory_space<smem>>
    %c0_i32 = arith.constant 0 : i32
    %2 = arith.cmpi sgt, %1, %c0_i32 : i32
    %3 = arith.index_cast %arg0 : i32 to index
    %4 = memref.load %arg2[%3] : memref<1xi32, #tpu.memory_space<smem>>
    %c1_i32 = arith.constant 1 : i32
    %5 = arith.subi %1, %c1_i32 : i32
    %6 = arith.minsi %arg1, %5 : i32
    %7 = arith.addi %4, %6 : i32
    %c0_i32_0 = arith.constant 0 : i32
    %8 = arith.select %2, %7, %c0_i32_0 : i32
    %c0_i32_1 = arith.constant 0 : i32
    %c0_i32_2 = arith.constant 0 : i32
    return %8, %c0_i32_1 : i32, i32
  }
  func.func @transform_3(%arg0: i32, %arg1: i32, %arg2: memref<1xi32, #tpu.memory_space<smem>>, %arg3: memref<1xi32, #tpu.memory_space<smem>>) -> (i32, i32) {
    %0 = arith.index_cast %arg0 : i32 to index
    %1 = memref.load %arg3[%0] : memref<1xi32, #tpu.memory_space<smem>>
    %c0_i32 = arith.constant 0 : i32
    %2 = arith.cmpi sgt, %1, %c0_i32 : i32
    %3 = arith.index_cast %arg0 : i32 to index
    %4 = memref.load %arg2[%3] : memref<1xi32, #tpu.memory_space<smem>>
    %c1_i32 = arith.constant 1 : i32
    %5 = arith.subi %1, %c1_i32 : i32
    %6 = arith.minsi %arg1, %5 : i32
    %7 = arith.addi %4, %6 : i32
    %c0_i32_0 = arith.constant 0 : i32
    %8 = arith.select %2, %7, %c0_i32_0 : i32
    %c0_i32_1 = arith.constant 0 : i32
    %c0_i32_2 = arith.constant 0 : i32
    return %c0_i32_1, %8 : i32, i32
  }
  func.func @transform_4(%arg0: i32, %arg1: i32, %arg2: memref<1xi32, #tpu.memory_space<smem>>, %arg3: memref<1xi32, #tpu.memory_space<smem>>) -> (i32, i32) {
    %c0_i32 = arith.constant 0 : i32
    %c0_i32_0 = arith.constant 0 : i32
    return %arg0, %c0_i32 : i32, i32
  }
}

module attributes {stable_mosaic.version = 11 : i64} {
  func.func @_edge_attn_kernel(%arg0: i32, %arg1: i32, %arg2: memref<1xi32, #tpu.memory_space<smem>>, %arg3: memref<1xi32, #tpu.memory_space<smem>>, %arg4: memref<128x64xf32, #tpu.memory_space<vmem>>, %arg5: memref<256x16xbf16, #tpu.memory_space<vmem>>, %arg6: memref<256x16xbf16, #tpu.memory_space<vmem>>, %arg7: memref<1x256xi32, #tpu.memory_space<vmem>>, %arg8: memref<128x16xf32, #tpu.memory_space<vmem>>, %arg9: memref<128x16xf32, #tpu.memory_space<vmem>>, %arg10: memref<128x2xf32, #tpu.memory_space<vmem>>, %arg11: memref<128x2xf32, #tpu.memory_space<vmem>>, %arg12: memref<128x16xf32, #tpu.memory_space<vmem>>) attributes {dimension_semantics = [#tpu.dimension_semantics<parallel>, #tpu.dimension_semantics<arbitrary>], iteration_bounds = array<i64: 1, 1>, scalar_prefetch = 2 : i64, scratch_operands = 3 : i64, tpu.core_type = #tpu.core_type<tc>, window_params = [{transform_indices = @transform_0, window_bounds = array<i64: 128, 64>}, {transform_indices = @transform_1, window_bounds = array<i64: 256, 16>}, {transform_indices = @transform_2, window_bounds = array<i64: 256, 16>}, {transform_indices = @transform_3, window_bounds = array<i64: 1, 256>}, {transform_indices = @transform_4, window_bounds = array<i64: 128, 16>}, {transform_indices = @transform_5, window_bounds = array<i64: 128, 16>}]} {
    %c0_i32 = arith.constant 0 : i32
    %0 = arith.cmpi eq, %arg1, %c0_i32 : i32
    %1 = arith.extui %0 : i1 to i32
    %c0_i32_0 = arith.constant 0 : i32
    %2 = arith.cmpi ne, %1, %c0_i32_0 : i32
    scf.if %2 {
      %cst = arith.constant -1.000000e+30 : f32
      %11 = vector.broadcast %cst : f32 to vector<128x2xf32>
      %c0 = arith.constant 0 : index
      %c0_4 = arith.constant 0 : index
      %12 = vector.load %arg10[%c0, %c0_4] : memref<128x2xf32, #tpu.memory_space<vmem>>, vector<128x2xf32>
      tpu.vector_store %arg10[%c0, %c0_4], %11 {strides = array<i32>} : memref<128x2xf32, #tpu.memory_space<vmem>>, vector<128x2xf32>,
      %cst_5 = arith.constant 0.000000e+00 : f32
      %13 = vector.broadcast %cst_5 : f32 to vector<128x2xf32>
      %c0_6 = arith.constant 0 : index
      %c0_7 = arith.constant 0 : index
      %14 = vector.load %arg11[%c0_6, %c0_7] : memref<128x2xf32, #tpu.memory_space<vmem>>, vector<128x2xf32>
      tpu.vector_store %arg11[%c0_6, %c0_7], %13 {strides = array<i32>} : memref<128x2xf32, #tpu.memory_space<vmem>>, vector<128x2xf32>,
      %cst_8 = arith.constant 0.000000e+00 : f32
      %15 = vector.broadcast %cst_8 : f32 to vector<128x16xf32>
      %c0_9 = arith.constant 0 : index
      %c0_10 = arith.constant 0 : index
      %16 = vector.load %arg12[%c0_9, %c0_10] : memref<128x16xf32, #tpu.memory_space<vmem>>, vector<128x16xf32>
      tpu.vector_store %arg12[%c0_9, %c0_10], %15 {strides = array<i32>} : memref<128x16xf32, #tpu.memory_space<vmem>>, vector<128x16xf32>,
    } else {
    }
    %3 = arith.index_cast %arg0 : i32 to index
    %4 = memref.load %arg3[%3] : memref<1xi32, #tpu.memory_space<smem>>
    %5 = arith.cmpi slt, %arg1, %4 : i32
    %6 = arith.extui %5 : i1 to i32
    %c0_i32_1 = arith.constant 0 : i32
    %7 = arith.cmpi ne, %6, %c0_i32_1 : i32
    scf.if %7 {
      %c128_i32 = arith.constant 128 : i32
      %11 = arith.muli %arg0, %c128_i32 : i32
      %12 = tpu.iota {dimensions = array<i32: 0>} : vector<128x1xi32>
      %13 = vector.broadcast %11 : i32 to vector<128x1xi32>
      %14 = arith.addi %13, %12 : vector<128x1xi32>
      %c0 = arith.constant 0 : index
      %c0_4 = arith.constant 0 : index
      %15 = vector.load %arg7[%c0, %c0_4] : memref<1x256xi32, #tpu.memory_space<vmem>>, vector<1x256xi32>
      %16 = vector.broadcast %15 : vector<1x256xi32> to vector<128x256xi32>
      %17 = vector.broadcast %14 : vector<128x1xi32> to vector<128x256xi32>
      %18 = arith.cmpi eq, %16, %17 : vector<128x256xi32>
      %c0_5 = arith.constant 0 : index
      %c0_6 = arith.constant 0 : index
      %19 = vector.load %arg4[%c0_5, %c0_6] : memref<128x64xf32, #tpu.memory_space<vmem>>, vector<128x8xf32>
      %20 = arith.truncf %19 : vector<128x8xf32> to vector<128x8xbf16>
      %c0_7 = arith.constant 0 : index
      %c0_8 = arith.constant 0 : index
      %21 = vector.load %arg5[%c0_7, %c0_8] : memref<256x16xbf16, #tpu.memory_space<vmem>>, vector<256x8xbf16>
      %c0_9 = arith.constant 0 : index
      %c0_10 = arith.constant 0 : index
      %22 = vector.load %arg6[%c0_9, %c0_10] : memref<256x16xbf16, #tpu.memory_space<vmem>>, vector<256x8xbf16>
      %cst = arith.constant dense<0.000000e+00> : vector<128x256xf32>
      %23 = tpu.matmul %20, %21, %cst {dimension_numbers = #tpu.dot_dimension_numbers<[1], [1], [0], [0], [0, 0, 1, 0], [], []>} : vector<128x8xbf16>, vector<256x8xbf16>, vector<128x256xf32> -> vector<128x256xf32>
      %cst_11 = arith.constant 0.353553385 : f32
      %24 = vector.broadcast %cst_11 : f32 to vector<128x256xf32>
      %25 = arith.mulf %23, %24 : vector<128x256xf32>
      %cst_12 = arith.constant -1.000000e+30 : f32
      %26 = vector.broadcast %cst_12 : f32 to vector<128x256xf32>
      %27 = arith.select %18, %25, %26 : vector<128x256xi1>, vector<128x256xf32>
      %c0_13 = arith.constant 0 : index
      %c0_14 = arith.constant 0 : index
      %28 = vector.load %arg10[%c0_13, %c0_14] : memref<128x2xf32, #tpu.memory_space<vmem>>, vector<128x1xf32>
      %cst_15 = arith.constant dense<0xFF800000> : vector<128xf32>
      %29 = vector.multi_reduction <maximumf>, %27, %cst_15 [1] : vector<128x256xf32> to vector<128xf32>
      %30 = vector.shape_cast %29 : vector<128xf32> to vector<128x1xf32>
      %31 = arith.maximumf %28, %30 : vector<128x1xf32>
      %32 = vector.broadcast %31 : vector<128x1xf32> to vector<128x256xf32>
      %33 = arith.subf %27, %32 : vector<128x256xf32>
      %34 = math.exp %33 : vector<128x256xf32>
      %cst_16 = arith.constant 0.000000e+00 : f32
      %35 = vector.broadcast %cst_16 : f32 to vector<128x256xf32>
      %36 = arith.select %18, %34, %35 : vector<128x256xi1>, vector<128x256xf32>
      %37 = arith.subf %28, %31 : vector<128x1xf32>
      %38 = math.exp %37 : vector<128x1xf32>
      %c0_17 = arith.constant 0 : index
      %c0_18 = arith.constant 0 : index
      %39 = vector.load %arg11[%c0_17, %c0_18] : memref<128x2xf32, #tpu.memory_space<vmem>>, vector<128x1xf32>
      %40 = arith.mulf %38, %39 : vector<128x1xf32>
      %cst_19 = arith.constant dense<0.000000e+00> : vector<128xf32>
      %41 = vector.multi_reduction <add>, %36, %cst_19 [1] : vector<128x256xf32> to vector<128xf32>
      %42 = vector.shape_cast %41 : vector<128xf32> to vector<128x1xf32>
      %43 = arith.addf %40, %42 : vector<128x1xf32>
      %44 = arith.truncf %36 : vector<128x256xf32> to vector<128x256xbf16>
      %cst_20 = arith.constant dense<0.000000e+00> : vector<128x8xf32>
      %45 = tpu.matmul %44, %22, %cst_20 {dimension_numbers = #tpu.dot_dimension_numbers<[1], [0], [0], [1], [0, 0, 1, 1], [], []>} : vector<128x256xbf16>, vector<256x8xbf16>, vector<128x8xf32> -> vector<128x8xf32>
      %c0_21 = arith.constant 0 : index
      %c0_22 = arith.constant 0 : index
      %46 = vector.load %arg12[%c0_21, %c0_22] : memref<128x16xf32, #tpu.memory_space<vmem>>, vector<128x8xf32>
      %47 = vector.broadcast %38 : vector<128x1xf32> to vector<128x8xf32>
      %48 = arith.mulf %47, %46 : vector<128x8xf32>
      %49 = arith.addf %48, %45 : vector<128x8xf32>
      %c0_23 = arith.constant 0 : index
      %c8 = arith.constant 8 : index
      %50 = vector.load %arg4[%c0_23, %c8] : memref<128x64xf32, #tpu.memory_space<vmem>>, vector<128x8xf32>
      %51 = arith.truncf %50 : vector<128x8xf32> to vector<128x8xbf16>
      %c0_24 = arith.constant 0 : index
      %c8_25 = arith.constant 8 : index
      %52 = vector.load %arg5[%c0_24, %c8_25] : memref<256x16xbf16, #tpu.memory_space<vmem>>, vector<256x8xbf16>
      %c0_26 = arith.constant 0 : index
      %c8_27 = arith.constant 8 : index
      %53 = vector.load %arg6[%c0_26, %c8_27] : memref<256x16xbf16, #tpu.memory_space<vmem>>, vector<256x8xbf16>
      %cst_28 = arith.constant dense<0.000000e+00> : vector<128x256xf32>
      %54 = tpu.matmul %51, %52, %cst_28 {dimension_numbers = #tpu.dot_dimension_numbers<[1], [1], [0], [0], [0, 0, 1, 0], [], []>} : vector<128x8xbf16>, vector<256x8xbf16>, vector<128x256xf32> -> vector<128x256xf32>
      %cst_29 = arith.constant 0.353553385 : f32
      %55 = vector.broadcast %cst_29 : f32 to vector<128x256xf32>
      %56 = arith.mulf %54, %55 : vector<128x256xf32>
      %cst_30 = arith.constant -1.000000e+30 : f32
      %57 = vector.broadcast %cst_30 : f32 to vector<128x256xf32>
      %58 = arith.select %18, %56, %57 : vector<128x256xi1>, vector<128x256xf32>
      %c0_31 = arith.constant 0 : index
      %c1 = arith.constant 1 : index
      %59 = vector.load %arg10[%c0_31, %c1] : memref<128x2xf32, #tpu.memory_space<vmem>>, vector<128x1xf32>
      %cst_32 = arith.constant dense<0xFF800000> : vector<128xf32>
      %60 = vector.multi_reduction <maximumf>, %58, %cst_32 [1] : vector<128x256xf32> to vector<128xf32>
      %61 = vector.shape_cast %60 : vector<128xf32> to vector<128x1xf32>
      %62 = arith.maximumf %59, %61 : vector<128x1xf32>
      %63 = vector.broadcast %62 : vector<128x1xf32> to vector<128x256xf32>
      %64 = arith.subf %58, %63 : vector<128x256xf32>
      %65 = math.exp %64 : vector<128x256xf32>
      %cst_33 = arith.constant 0.000000e+00 : f32
      %66 = vector.broadcast %cst_33 : f32 to vector<128x256xf32>
      %67 = arith.select %18, %65, %66 : vector<128x256xi1>, vector<128x256xf32>
      %68 = arith.subf %59, %62 : vector<128x1xf32>
      %69 = math.exp %68 : vector<128x1xf32>
      %c0_34 = arith.constant 0 : index
      %c1_35 = arith.constant 1 : index
      %70 = vector.load %arg11[%c0_34, %c1_35] : memref<128x2xf32, #tpu.memory_space<vmem>>, vector<128x1xf32>
      %71 = arith.mulf %69, %70 : vector<128x1xf32>
      %cst_36 = arith.constant dense<0.000000e+00> : vector<128xf32>
      %72 = vector.multi_reduction <add>, %67, %cst_36 [1] : vector<128x256xf32> to vector<128xf32>
      %73 = vector.shape_cast %72 : vector<128xf32> to vector<128x1xf32>
      %74 = arith.addf %71, %73 : vector<128x1xf32>
      %75 = arith.truncf %67 : vector<128x256xf32> to vector<128x256xbf16>
      %cst_37 = arith.constant dense<0.000000e+00> : vector<128x8xf32>
      %76 = tpu.matmul %75, %53, %cst_37 {dimension_numbers = #tpu.dot_dimension_numbers<[1], [0], [0], [1], [0, 0, 1, 1], [], []>} : vector<128x256xbf16>, vector<256x8xbf16>, vector<128x8xf32> -> vector<128x8xf32>
      %c0_38 = arith.constant 0 : index
      %c8_39 = arith.constant 8 : index
      %77 = vector.load %arg12[%c0_38, %c8_39] : memref<128x16xf32, #tpu.memory_space<vmem>>, vector<128x8xf32>
      %78 = vector.broadcast %69 : vector<128x1xf32> to vector<128x8xf32>
      %79 = arith.mulf %78, %77 : vector<128x8xf32>
      %80 = arith.addf %79, %76 : vector<128x8xf32>
      %81 = tpu.concatenate %49, %80 in 1 : vector<128x8xf32>, vector<128x8xf32> -> vector<128x16xf32>
      %c0_40 = arith.constant 0 : index
      %c0_41 = arith.constant 0 : index
      %82 = vector.load %arg12[%c0_40, %c0_41] : memref<128x16xf32, #tpu.memory_space<vmem>>, vector<128x16xf32>
      tpu.vector_store %arg12[%c0_40, %c0_41], %81 {strides = array<i32>} : memref<128x16xf32, #tpu.memory_space<vmem>>, vector<128x16xf32>,
      %83 = tpu.concatenate %31, %62 in 1 : vector<128x1xf32>, vector<128x1xf32> -> vector<128x2xf32>
      %c0_42 = arith.constant 0 : index
      %c0_43 = arith.constant 0 : index
      %84 = vector.load %arg10[%c0_42, %c0_43] : memref<128x2xf32, #tpu.memory_space<vmem>>, vector<128x2xf32>
      tpu.vector_store %arg10[%c0_42, %c0_43], %83 {strides = array<i32>} : memref<128x2xf32, #tpu.memory_space<vmem>>, vector<128x2xf32>,
      %85 = tpu.concatenate %43, %74 in 1 : vector<128x1xf32>, vector<128x1xf32> -> vector<128x2xf32>
      %c0_44 = arith.constant 0 : index
      %c0_45 = arith.constant 0 : index
      %86 = vector.load %arg11[%c0_44, %c0_45] : memref<128x2xf32, #tpu.memory_space<vmem>>, vector<128x2xf32>
      tpu.vector_store %arg11[%c0_44, %c0_45], %85 {strides = array<i32>} : memref<128x2xf32, #tpu.memory_space<vmem>>, vector<128x2xf32>,
    } else {
    }
    %c0_i32_2 = arith.constant 0 : i32
    %8 = arith.cmpi eq, %arg1, %c0_i32_2 : i32
    %9 = arith.extui %8 : i1 to i32
    %c0_i32_3 = arith.constant 0 : i32
    %10 = arith.cmpi ne, %9, %c0_i32_3 : i32
    scf.if %10 {
      %c0 = arith.constant 0 : index
      %c0_4 = arith.constant 0 : index
      %11 = vector.load %arg11[%c0, %c0_4] : memref<128x2xf32, #tpu.memory_space<vmem>>, vector<128x1xf32>
      %cst = arith.constant 0.000000e+00 : f32
      %12 = vector.broadcast %cst : f32 to vector<128x1xf32>
      %13 = arith.cmpf oeq, %11, %12 : vector<128x1xf32>
      %cst_5 = arith.constant 1.000000e+00 : f32
      %14 = vector.broadcast %cst_5 : f32 to vector<128x1xf32>
      %15 = arith.select %13, %14, %11 : vector<128x1xi1>, vector<128x1xf32>
      %16 = tpu.reciprocal %15 {approx = true} : vector<128x1xf32> -> vector<128x1xf32>
      %c0_6 = arith.constant 0 : index
      %c0_7 = arith.constant 0 : index
      %17 = vector.load %arg12[%c0_6, %c0_7] : memref<128x16xf32, #tpu.memory_space<vmem>>, vector<128x8xf32>
      %18 = vector.broadcast %16 : vector<128x1xf32> to vector<128x8xf32>
      %19 = arith.mulf %17, %18 : vector<128x8xf32>
      %c0_8 = arith.constant 0 : index
      %c1 = arith.constant 1 : index
      %20 = vector.load %arg11[%c0_8, %c1] : memref<128x2xf32, #tpu.memory_space<vmem>>, vector<128x1xf32>
      %cst_9 = arith.constant 0.000000e+00 : f32
      %21 = vector.broadcast %cst_9 : f32 to vector<128x1xf32>
      %22 = arith.cmpf oeq, %20, %21 : vector<128x1xf32>
      %cst_10 = arith.constant 1.000000e+00 : f32
      %23 = vector.broadcast %cst_10 : f32 to vector<128x1xf32>
      %24 = arith.select %22, %23, %20 : vector<128x1xi1>, vector<128x1xf32>
      %25 = tpu.reciprocal %24 {approx = true} : vector<128x1xf32> -> vector<128x1xf32>
      %c0_11 = arith.constant 0 : index
      %c8 = arith.constant 8 : index
      %26 = vector.load %arg12[%c0_11, %c8] : memref<128x16xf32, #tpu.memory_space<vmem>>, vector<128x8xf32>
      %27 = vector.broadcast %25 : vector<128x1xf32> to vector<128x8xf32>
      %28 = arith.mulf %26, %27 : vector<128x8xf32>
      %29 = tpu.concatenate %19, %28 in 1 : vector<128x8xf32>, vector<128x8xf32> -> vector<128x16xf32>
      %c0_12 = arith.constant 0 : index
      %c48 = arith.constant 48 : index
      %30 = vector.load %arg4[%c0_12, %c48] : memref<128x64xf32, #tpu.memory_space<vmem>>, vector<128x16xf32>
      %31 = arith.addf %29, %30 : vector<128x16xf32>
      %c0_13 = arith.constant 0 : index
      %c0_14 = arith.constant 0 : index
      %32 = vector.load %arg8[%c0_13, %c0_14] : memref<128x16xf32, #tpu.memory_space<vmem>>, vector<128x16xf32>
      %33 = arith.addf %31, %32 : vector<128x16xf32>
      %c0_15 = arith.constant 0 : index
      %c0_16 = arith.constant 0 : index
      %34 = vector.load %arg9[%c0_15, %c0_16] : memref<128x16xf32, #tpu.memory_space<vmem>>, vector<128x16xf32>
      tpu.vector_store %arg9[%c0_15, %c0_16], %33 {strides = array<i32>} : memref<128x16xf32, #tpu.memory_space<vmem>>, vector<128x16xf32>,
    } else {
    }
    return
  }
  func.func @transform_0(%arg0: i32, %arg1: i32, %arg2: memref<1xi32, #tpu.memory_space<smem>>, %arg3: memref<1xi32, #tpu.memory_space<smem>>) -> (i32, i32) {
    %c0_i32 = arith.constant 0 : i32
    %c0_i32_0 = arith.constant 0 : i32
    return %arg0, %c0_i32 : i32, i32
  }
  func.func @transform_1(%arg0: i32, %arg1: i32, %arg2: memref<1xi32, #tpu.memory_space<smem>>, %arg3: memref<1xi32, #tpu.memory_space<smem>>) -> (i32, i32) {
    %0 = arith.index_cast %arg0 : i32 to index
    %1 = memref.load %arg3[%0] : memref<1xi32, #tpu.memory_space<smem>>
    %c0_i32 = arith.constant 0 : i32
    %2 = arith.cmpi sgt, %1, %c0_i32 : i32
    %3 = arith.index_cast %arg0 : i32 to index
    %4 = memref.load %arg2[%3] : memref<1xi32, #tpu.memory_space<smem>>
    %c1_i32 = arith.constant 1 : i32
    %5 = arith.subi %1, %c1_i32 : i32
    %6 = arith.minsi %arg1, %5 : i32
    %7 = arith.addi %4, %6 : i32
    %c0_i32_0 = arith.constant 0 : i32
    %8 = arith.select %2, %7, %c0_i32_0 : i32
    %c0_i32_1 = arith.constant 0 : i32
    %c0_i32_2 = arith.constant 0 : i32
    return %8, %c0_i32_1 : i32, i32
  }
  func.func @transform_2(%arg0: i32, %arg1: i32, %arg2: memref<1xi32, #tpu.memory_space<smem>>, %arg3: memref<1xi32, #tpu.memory_space<smem>>) -> (i32, i32) {
    %0 = arith.index_cast %arg0 : i32 to index
    %1 = memref.load %arg3[%0] : memref<1xi32, #tpu.memory_space<smem>>
    %c0_i32 = arith.constant 0 : i32
    %2 = arith.cmpi sgt, %1, %c0_i32 : i32
    %3 = arith.index_cast %arg0 : i32 to index
    %4 = memref.load %arg2[%3] : memref<1xi32, #tpu.memory_space<smem>>
    %c1_i32 = arith.constant 1 : i32
    %5 = arith.subi %1, %c1_i32 : i32
    %6 = arith.minsi %arg1, %5 : i32
    %7 = arith.addi %4, %6 : i32
    %c0_i32_0 = arith.constant 0 : i32
    %8 = arith.select %2, %7, %c0_i32_0 : i32
    %c0_i32_1 = arith.constant 0 : i32
    %c0_i32_2 = arith.constant 0 : i32
    return %8, %c0_i32_1 : i32, i32
  }
  func.func @transform_3(%arg0: i32, %arg1: i32, %arg2: memref<1xi32, #tpu.memory_space<smem>>, %arg3: memref<1xi32, #tpu.memory_space<smem>>) -> (i32, i32) {
    %0 = arith.index_cast %arg0 : i32 to index
    %1 = memref.load %arg3[%0] : memref<1xi32, #tpu.memory_space<smem>>
    %c0_i32 = arith.constant 0 : i32
    %2 = arith.cmpi sgt, %1, %c0_i32 : i32
    %3 = arith.index_cast %arg0 : i32 to index
    %4 = memref.load %arg2[%3] : memref<1xi32, #tpu.memory_space<smem>>
    %c1_i32 = arith.constant 1 : i32
    %5 = arith.subi %1, %c1_i32 : i32
    %6 = arith.minsi %arg1, %5 : i32
    %7 = arith.addi %4, %6 : i32
    %c0_i32_0 = arith.constant 0 : i32
    %8 = arith.select %2, %7, %c0_i32_0 : i32
    %c0_i32_1 = arith.constant 0 : i32
    %c0_i32_2 = arith.constant 0 : i32
    return %c0_i32_1, %8 : i32, i32
  }
  func.func @transform_4(%arg0: i32, %arg1: i32, %arg2: memref<1xi32, #tpu.memory_space<smem>>, %arg3: memref<1xi32, #tpu.memory_space<smem>>) -> (i32, i32) {
    %c0_i32 = arith.constant 0 : i32
    %c0_i32_0 = arith.constant 0 : i32
    return %arg0, %c0_i32 : i32, i32
  }
  func.func @transform_5(%arg0: i32, %arg1: i32, %arg2: memref<1xi32, #tpu.memory_space<smem>>, %arg3: memref<1xi32, #tpu.memory_space<smem>>) -> (i32, i32) {
    %c0_i32 = arith.constant 0 : i32
    %c0_i32_0 = arith.constant 0 : i32
    return %arg0, %c0_i32 : i32, i32
  }
}

module attributes {stable_mosaic.version = 11 : i64} {
  func.func @_linear_kernel(%arg0: i32, %arg1: memref<128x16xf32, #tpu.memory_space<vmem>>, %arg2: memref<16x64xbf16, #tpu.memory_space<vmem>>, %arg3: memref<1x64xf32, #tpu.memory_space<vmem>>, %arg4: memref<128x64xf32, #tpu.memory_space<vmem>>) attributes {dimension_semantics = [#tpu.dimension_semantics<parallel>], iteration_bounds = array<i64: 1>, scalar_prefetch = 0 : i64, scratch_operands = 0 : i64, tpu.core_type = #tpu.core_type<tc>, window_params = [{transform_indices = @transform_0, window_bounds = array<i64: 128, 16>}, {pipeline_mode = #tpu.pipeline_mode<synchronous>, transform_indices = @transform_1, window_bounds = array<i64: 16, 64>}, {pipeline_mode = #tpu.pipeline_mode<synchronous>, transform_indices = @transform_2, window_bounds = array<i64: 1, 64>}, {transform_indices = @transform_3, window_bounds = array<i64: 128, 64>}]} {
    %c0 = arith.constant 0 : index
    %c0_0 = arith.constant 0 : index
    %0 = vector.load %arg1[%c0, %c0_0] : memref<128x16xf32, #tpu.memory_space<vmem>>, vector<128x16xf32>
    %cst = arith.constant 0.000000e+00 : f32
    %1 = vector.broadcast %cst : f32 to vector<128x16xf32>
    %2 = arith.cmpf oge, %0, %1 : vector<128x16xf32>
    %cst_1 = arith.constant 0.00999999977 : f32
    %3 = vector.broadcast %cst_1 : f32 to vector<128x16xf32>
    %4 = arith.mulf %3, %0 : vector<128x16xf32>
    %5 = arith.select %2, %0, %4 : vector<128x16xi1>, vector<128x16xf32>
    %6 = arith.truncf %5 : vector<128x16xf32> to vector<128x16xbf16>
    %c0_2 = arith.constant 0 : index
    %c0_3 = arith.constant 0 : index
    %7 = vector.load %arg2[%c0_2, %c0_3] : memref<16x64xbf16, #tpu.memory_space<vmem>>, vector<16x64xbf16>
    %cst_4 = arith.constant dense<0.000000e+00> : vector<128x64xf32>
    %8 = tpu.matmul %6, %7, %cst_4 {dimension_numbers = #tpu.dot_dimension_numbers<[1], [0], [0], [1], [0, 0, 1, 1], [], []>} : vector<128x16xbf16>, vector<16x64xbf16>, vector<128x64xf32> -> vector<128x64xf32>
    %c0_5 = arith.constant 0 : index
    %c0_6 = arith.constant 0 : index
    %9 = vector.load %arg3[%c0_5, %c0_6] : memref<1x64xf32, #tpu.memory_space<vmem>>, vector<1x64xf32>
    %10 = vector.broadcast %9 : vector<1x64xf32> to vector<128x64xf32>
    %11 = arith.addf %8, %10 : vector<128x64xf32>
    %c0_7 = arith.constant 0 : index
    %c0_8 = arith.constant 0 : index
    %12 = vector.load %arg4[%c0_7, %c0_8] : memref<128x64xf32, #tpu.memory_space<vmem>>, vector<128x64xf32>
    tpu.vector_store %arg4[%c0_7, %c0_8], %11 {strides = array<i32>} : memref<128x64xf32, #tpu.memory_space<vmem>>, vector<128x64xf32>,
    return
  }
  func.func @transform_0(%arg0: i32) -> (i32, i32) {
    %c0_i32 = arith.constant 0 : i32
    %c0_i32_0 = arith.constant 0 : i32
    return %arg0, %c0_i32 : i32, i32
  }
  func.func @transform_1(%arg0: i32) -> (i32, i32) {
    %c0_i32 = arith.constant 0 : i32
    %c0_i32_0 = arith.constant 0 : i32
    %c0_i32_1 = arith.constant 0 : i32
    return %c0_i32, %c0_i32_0 : i32, i32
  }
  func.func @transform_2(%arg0: i32) -> (i32, i32) {
    %c0_i32 = arith.constant 0 : i32
    %c0_i32_0 = arith.constant 0 : i32
    %c0_i32_1 = arith.constant 0 : i32
    return %c0_i32, %c0_i32_0 : i32, i32
  }
  func.func @transform_3(%arg0: i32) -> (i32, i32) {
    %c0_i32 = arith.constant 0 : i32
    %c0_i32_0 = arith.constant 0 : i32
    return %arg0, %c0_i32 : i32, i32
  }
}

module attributes {stable_mosaic.version = 11 : i64} {
  func.func @_gate_pool_kernel(%arg0: i32, %arg1: memref<128x16xf32, #tpu.memory_space<vmem>>, %arg2: memref<128x1xi32, #tpu.memory_space<vmem>>, %arg3: memref<16x16xbf16, #tpu.memory_space<vmem>>, %arg4: memref<1x16xf32, #tpu.memory_space<vmem>>, %arg5: memref<16x16xbf16, #tpu.memory_space<vmem>>, %arg6: memref<1x16xf32, #tpu.memory_space<vmem>>, %arg7: memref<16x16xbf16, #tpu.memory_space<vmem>>, %arg8: memref<1x16xf32, #tpu.memory_space<vmem>>, %arg9: memref<1x16xf32, #tpu.memory_space<vmem>>, %arg10: memref<1x1xf32, #tpu.memory_space<vmem>>, %arg11: memref<16x2xf32, #tpu.memory_space<vmem>>, %arg12: memref<1x2xf32, #tpu.memory_space<vmem>>, %arg13: memref<1x2xf32, #tpu.memory_space<vmem>>, %arg14: memref<16x2xf32, #tpu.memory_space<vmem>>) attributes {dimension_semantics = [#tpu.dimension_semantics<arbitrary>], iteration_bounds = array<i64: 1>, scalar_prefetch = 0 : i64, scratch_operands = 3 : i64, tpu.core_type = #tpu.core_type<tc>, window_params = [{transform_indices = @transform_0, window_bounds = array<i64: 128, 16>}, {transform_indices = @transform_1, window_bounds = array<i64: 128, 1>}, {pipeline_mode = #tpu.pipeline_mode<synchronous>, transform_indices = @transform_2, window_bounds = array<i64: 16, 16>}, {pipeline_mode = #tpu.pipeline_mode<synchronous>, transform_indices = @transform_3, window_bounds = array<i64: 1, 16>}, {pipeline_mode = #tpu.pipeline_mode<synchronous>, transform_indices = @transform_4, window_bounds = array<i64: 16, 16>}, {pipeline_mode = #tpu.pipeline_mode<synchronous>, transform_indices = @transform_5, window_bounds = array<i64: 1, 16>}, {pipeline_mode = #tpu.pipeline_mode<synchronous>, transform_indices = @transform_6, window_bounds = array<i64: 16, 16>}, {pipeline_mode = #tpu.pipeline_mode<synchronous>, transform_indices = @transform_7, window_bounds = array<i64: 1, 16>}, {pipeline_mode = #tpu.pipeline_mode<synchronous>, transform_indices = @transform_8, window_bounds = array<i64: 1, 16>}, {pipeline_mode = #tpu.pipeline_mode<synchronous>, transform_indices = @transform_9, window_bounds = array<i64: 1, 1>}, {pipeline_mode = #tpu.pipeline_mode<synchronous>, transform_indices = @transform_10, window_bounds = array<i64: 16, 2>}]} {
    %c0_i32 = arith.constant 0 : i32
    %0 = arith.cmpi eq, %arg0, %c0_i32 : i32
    %1 = arith.extui %0 : i1 to i32
    %c0_i32_0 = arith.constant 0 : i32
    %2 = arith.cmpi ne, %1, %c0_i32_0 : i32
    scf.if %2 {
      %cst_48 = arith.constant -1.000000e+30 : f32
      %82 = vector.broadcast %cst_48 : f32 to vector<1x2xf32>
      %c0_49 = arith.constant 0 : index
      %c0_50 = arith.constant 0 : index
      %83 = vector.load %arg12[%c0_49, %c0_50] : memref<1x2xf32, #tpu.memory_space<vmem>>, vector<1x2xf32>
      tpu.vector_store %arg12[%c0_49, %c0_50], %82 {strides = array<i32>} : memref<1x2xf32, #tpu.memory_space<vmem>>, vector<1x2xf32>,
      %cst_51 = arith.constant 0.000000e+00 : f32
      %84 = vector.broadcast %cst_51 : f32 to vector<1x2xf32>
      %c0_52 = arith.constant 0 : index
      %c0_53 = arith.constant 0 : index
      %85 = vector.load %arg13[%c0_52, %c0_53] : memref<1x2xf32, #tpu.memory_space<vmem>>, vector<1x2xf32>
      tpu.vector_store %arg13[%c0_52, %c0_53], %84 {strides = array<i32>} : memref<1x2xf32, #tpu.memory_space<vmem>>, vector<1x2xf32>,
      %cst_54 = arith.constant 0.000000e+00 : f32
      %86 = vector.broadcast %cst_54 : f32 to vector<16x2xf32>
      %c0_55 = arith.constant 0 : index
      %c0_56 = arith.constant 0 : index
      %87 = vector.load %arg14[%c0_55, %c0_56] : memref<16x2xf32, #tpu.memory_space<vmem>>, vector<16x2xf32>
      tpu.vector_store %arg14[%c0_55, %c0_56], %86 {strides = array<i32>} : memref<16x2xf32, #tpu.memory_space<vmem>>, vector<16x2xf32>,
    } else {
    }
    %c0 = arith.constant 0 : index
    %c0_1 = arith.constant 0 : index
    %3 = vector.load %arg1[%c0, %c0_1] : memref<128x16xf32, #tpu.memory_space<vmem>>, vector<128x16xf32>
    %4 = arith.truncf %3 : vector<128x16xf32> to vector<128x16xbf16>
    %c0_2 = arith.constant 0 : index
    %c0_3 = arith.constant 0 : index
    %5 = vector.load %arg3[%c0_2, %c0_3] : memref<16x16xbf16, #tpu.memory_space<vmem>>, vector<16x16xbf16>
    %cst = arith.constant dense<0.000000e+00> : vector<128x16xf32>
    %6 = tpu.matmul %4, %5, %cst {dimension_numbers = #tpu.dot_dimension_numbers<[1], [0], [0], [1], [0, 0, 1, 1], [], []>} : vector<128x16xbf16>, vector<16x16xbf16>, vector<128x16xf32> -> vector<128x16xf32>
    %c0_4 = arith.constant 0 : index
    %c0_5 = arith.constant 0 : index
    %7 = vector.load %arg4[%c0_4, %c0_5] : memref<1x16xf32, #tpu.memory_space<vmem>>, vector<1x16xf32>
    %8 = vector.broadcast %7 : vector<1x16xf32> to vector<128x16xf32>
    %9 = arith.addf %6, %8 : vector<128x16xf32>
    %cst_6 = arith.constant 0.000000e+00 : f32
    %10 = vector.broadcast %cst_6 : f32 to vector<128x16xf32>
    %11 = arith.cmpf oge, %9, %10 : vector<128x16xf32>
    %cst_7 = arith.constant 0.00999999977 : f32
    %12 = vector.broadcast %cst_7 : f32 to vector<128x16xf32>
    %13 = arith.mulf %12, %9 : vector<128x16xf32>
    %14 = arith.select %11, %9, %13 : vector<128x16xi1>, vector<128x16xf32>
    %15 = arith.truncf %14 : vector<128x16xf32> to vector<128x16xbf16>
    %c0_8 = arith.constant 0 : index
    %c0_9 = arith.constant 0 : index
    %16 = vector.load %arg5[%c0_8, %c0_9] : memref<16x16xbf16, #tpu.memory_space<vmem>>, vector<16x16xbf16>
    %cst_10 = arith.constant dense<0.000000e+00> : vector<128x16xf32>
    %17 = tpu.matmul %15, %16, %cst_10 {dimension_numbers = #tpu.dot_dimension_numbers<[1], [0], [0], [1], [0, 0, 1, 1], [], []>} : vector<128x16xbf16>, vector<16x16xbf16>, vector<128x16xf32> -> vector<128x16xf32>
    %c0_11 = arith.constant 0 : index
    %c0_12 = arith.constant 0 : index
    %18 = vector.load %arg6[%c0_11, %c0_12] : memref<1x16xf32, #tpu.memory_space<vmem>>, vector<1x16xf32>
    %19 = vector.broadcast %18 : vector<1x16xf32> to vector<128x16xf32>
    %20 = arith.addf %17, %19 : vector<128x16xf32>
    %cst_13 = arith.constant 0.000000e+00 : f32
    %21 = vector.broadcast %cst_13 : f32 to vector<128x16xf32>
    %22 = arith.cmpf oge, %20, %21 : vector<128x16xf32>
    %cst_14 = arith.constant 0.00999999977 : f32
    %23 = vector.broadcast %cst_14 : f32 to vector<128x16xf32>
    %24 = arith.mulf %23, %20 : vector<128x16xf32>
    %25 = arith.select %22, %20, %24 : vector<128x16xi1>, vector<128x16xf32>
    %26 = arith.truncf %25 : vector<128x16xf32> to vector<128x16xbf16>
    %c0_15 = arith.constant 0 : index
    %c0_16 = arith.constant 0 : index
    %27 = vector.load %arg7[%c0_15, %c0_16] : memref<16x16xbf16, #tpu.memory_space<vmem>>, vector<16x16xbf16>
    %cst_17 = arith.constant dense<0.000000e+00> : vector<128x16xf32>
    %28 = tpu.matmul %26, %27, %cst_17 {dimension_numbers = #tpu.dot_dimension_numbers<[1], [0], [0], [1], [0, 0, 1, 1], [], []>} : vector<128x16xbf16>, vector<16x16xbf16>, vector<128x16xf32> -> vector<128x16xf32>
    %c0_18 = arith.constant 0 : index
    %c0_19 = arith.constant 0 : index
    %29 = vector.load %arg8[%c0_18, %c0_19] : memref<1x16xf32, #tpu.memory_space<vmem>>, vector<1x16xf32>
    %30 = vector.broadcast %29 : vector<1x16xf32> to vector<128x16xf32>
    %31 = arith.addf %28, %30 : vector<128x16xf32>
    %cst_20 = arith.constant 0.000000e+00 : f32
    %32 = vector.broadcast %cst_20 : f32 to vector<128x16xf32>
    %33 = arith.cmpf oge, %31, %32 : vector<128x16xf32>
    %cst_21 = arith.constant 0.00999999977 : f32
    %34 = vector.broadcast %cst_21 : f32 to vector<128x16xf32>
    %35 = arith.mulf %34, %31 : vector<128x16xf32>
    %36 = arith.select %33, %31, %35 : vector<128x16xi1>, vector<128x16xf32>
    %c0_22 = arith.constant 0 : index
    %c0_23 = arith.constant 0 : index
    %37 = vector.load %arg9[%c0_22, %c0_23] : memref<1x16xf32, #tpu.memory_space<vmem>>, vector<1x16xf32>
    %38 = vector.broadcast %37 : vector<1x16xf32> to vector<128x16xf32>
    %39 = arith.mulf %36, %38 : vector<128x16xf32>
    %cst_24 = arith.constant dense<0.000000e+00> : vector<128xf32>
    %40 = vector.multi_reduction <add>, %39, %cst_24 [1] : vector<128x16xf32> to vector<128xf32>
    %41 = vector.shape_cast %40 : vector<128xf32> to vector<128x1xf32>
    %c0_25 = arith.constant 0 : index
    %c0_26 = arith.constant 0 : index
    %42 = vector.load %arg10[%c0_25, %c0_26] : memref<1x1xf32, #tpu.memory_space<vmem>>, vector<1x1xf32>
    %43 = vector.broadcast %42 : vector<1x1xf32> to vector<128x1xf32>
    %44 = arith.addf %41, %43 : vector<128x1xf32>
    %45 = tpu.iota {dimensions = array<i32: 1>} : vector<128x2xi32>
    %c0_27 = arith.constant 0 : index
    %c0_28 = arith.constant 0 : index
    %46 = vector.load %arg2[%c0_27, %c0_28] : memref<128x1xi32, #tpu.memory_space<vmem>>, vector<128x1xi32>
    %47 = vector.broadcast %46 : vector<128x1xi32> to vector<128x2xi32>
    %48 = arith.cmpi eq, %47, %45 : vector<128x2xi32>
    %cst_29 = arith.constant -1.000000e+30 : f32
    %49 = vector.shape_cast %44 : vector<128x1xf32> to vector<128x1xf32>
    %50 = vector.broadcast %49 : vector<128x1xf32> to vector<128x2xf32>
    %51 = vector.broadcast %cst_29 : f32 to vector<128x2xf32>
    %52 = arith.select %48, %50, %51 : vector<128x2xi1>, vector<128x2xf32>
    %c0_30 = arith.constant 0 : index
    %c0_31 = arith.constant 0 : index
    %53 = vector.load %arg12[%c0_30, %c0_31] : memref<1x2xf32, #tpu.memory_space<vmem>>, vector<1x2xf32>
    %cst_32 = arith.constant dense<0xFF800000> : vector<2xf32>
    %54 = vector.multi_reduction <maximumf>, %52, %cst_32 [0] : vector<128x2xf32> to vector<2xf32>
    %55 = vector.shape_cast %54 : vector<2xf32> to vector<1x2xf32>
    %56 = arith.maximumf %53, %55 : vector<1x2xf32>
    %57 = vector.broadcast %56 : vector<1x2xf32> to vector<128x2xf32>
    %58 = arith.subf %52, %57 : vector<128x2xf32>
    %59 = math.exp %58 : vector<128x2xf32>
    %cst_33 = arith.constant 0.000000e+00 : f32
    %60 = vector.broadcast %cst_33 : f32 to vector<128x2xf32>
    %61 = arith.select %48, %59, %60 : vector<128x2xi1>, vector<128x2xf32>
    %62 = arith.subf %53, %56 : vector<1x2xf32>
    %63 = math.exp %62 : vector<1x2xf32>
    %c0_34 = arith.constant 0 : index
    %c0_35 = arith.constant 0 : index
    %64 = vector.load %arg13[%c0_34, %c0_35] : memref<1x2xf32, #tpu.memory_space<vmem>>, vector<1x2xf32>
    %65 = arith.mulf %63, %64 : vector<1x2xf32>
    %cst_36 = arith.constant dense<0.000000e+00> : vector<2xf32>
    %66 = vector.multi_reduction <add>, %61, %cst_36 [0] : vector<128x2xf32> to vector<2xf32>
    %67 = vector.shape_cast %66 : vector<2xf32> to vector<1x2xf32>
    %68 = arith.addf %65, %67 : vector<1x2xf32>
    %c0_37 = arith.constant 0 : index
    %c0_38 = arith.constant 0 : index
    %69 = vector.load %arg13[%c0_37, %c0_38] : memref<1x2xf32, #tpu.memory_space<vmem>>, vector<1x2xf32>
    tpu.vector_store %arg13[%c0_37, %c0_38], %68 {strides = array<i32>} : memref<1x2xf32, #tpu.memory_space<vmem>>, vector<1x2xf32>,
    %70 = arith.truncf %3 : vector<128x16xf32> to vector<128x16xbf16>
    %71 = arith.truncf %61 : vector<128x2xf32> to vector<128x2xbf16>
    %cst_39 = arith.constant dense<0.000000e+00> : vector<16x2xf32>
    %72 = tpu.matmul %70, %71, %cst_39 {dimension_numbers = #tpu.dot_dimension_numbers<[0], [0], [1], [1], [0, 1, 1, 1], [], []>} : vector<128x16xbf16>, vector<128x2xbf16>, vector<16x2xf32> -> vector<16x2xf32>
    %c0_40 = arith.constant 0 : index
    %c0_41 = arith.constant 0 : index
    %73 = vector.load %arg14[%c0_40, %c0_41] : memref<16x2xf32, #tpu.memory_space<vmem>>, vector<16x2xf32>
    %74 = vector.broadcast %63 : vector<1x2xf32> to vector<16x2xf32>
    %75 = arith.mulf %74, %73 : vector<16x2xf32>
    %76 = arith.addf %75, %72 : vector<16x2xf32>
    %c0_42 = arith.constant 0 : index
    %c0_43 = arith.constant 0 : index
    %77 = vector.load %arg14[%c0_42, %c0_43] : memref<16x2xf32, #tpu.memory_space<vmem>>, vector<16x2xf32>
    tpu.vector_store %arg14[%c0_42, %c0_43], %76 {strides = array<i32>} : memref<16x2xf32, #tpu.memory_space<vmem>>, vector<16x2xf32>,
    %c0_44 = arith.constant 0 : index
    %c0_45 = arith.constant 0 : index
    %78 = vector.load %arg12[%c0_44, %c0_45] : memref<1x2xf32, #tpu.memory_space<vmem>>, vector<1x2xf32>
    tpu.vector_store %arg12[%c0_44, %c0_45], %56 {strides = array<i32>} : memref<1x2xf32, #tpu.memory_space<vmem>>, vector<1x2xf32>,
    %c0_i32_46 = arith.constant 0 : i32
    %79 = arith.cmpi eq, %arg0, %c0_i32_46 : i32
    %80 = arith.extui %79 : i1 to i32
    %c0_i32_47 = arith.constant 0 : i32
    %81 = arith.cmpi ne, %80, %c0_i32_47 : i32
    scf.if %81 {
      %c0_48 = arith.constant 0 : index
      %c0_49 = arith.constant 0 : index
      %82 = vector.load %arg13[%c0_48, %c0_49] : memref<1x2xf32, #tpu.memory_space<vmem>>, vector<1x2xf32>
      %cst_50 = arith.constant 0.000000e+00 : f32
      %83 = vector.broadcast %cst_50 : f32 to vector<1x2xf32>
      %84 = arith.cmpf oeq, %82, %83 : vector<1x2xf32>
      %cst_51 = arith.constant 1.000000e+00 : f32
      %85 = vector.broadcast %cst_51 : f32 to vector<1x2xf32>
      %86 = arith.select %84, %85, %82 : vector<1x2xi1>, vector<1x2xf32>
      %87 = tpu.reciprocal %86 {approx = true} : vector<1x2xf32> -> vector<1x2xf32>
      %c0_52 = arith.constant 0 : index
      %c0_53 = arith.constant 0 : index
      %88 = vector.load %arg14[%c0_52, %c0_53] : memref<16x2xf32, #tpu.memory_space<vmem>>, vector<16x2xf32>
      %89 = vector.broadcast %87 : vector<1x2xf32> to vector<16x2xf32>
      %90 = arith.mulf %88, %89 : vector<16x2xf32>
      %c0_54 = arith.constant 0 : index
      %c0_55 = arith.constant 0 : index
      %91 = vector.load %arg11[%c0_54, %c0_55] : memref<16x2xf32, #tpu.memory_space<vmem>>, vector<16x2xf32>
      tpu.vector_store %arg11[%c0_54, %c0_55], %90 {strides = array<i32>} : memref<16x2xf32, #tpu.memory_space<vmem>>, vector<16x2xf32>,
    } else {
    }
    return
  }
  func.func @transform_0(%arg0: i32) -> (i32, i32) {
    %c0_i32 = arith.constant 0 : i32
    %c0_i32_0 = arith.constant 0 : i32
    return %arg0, %c0_i32 : i32, i32
  }
  func.func @transform_1(%arg0: i32) -> (i32, i32) {
    %c0_i32 = arith.constant 0 : i32
    %c0_i32_0 = arith.constant 0 : i32
    return %arg0, %c0_i32 : i32, i32
  }
  func.func @transform_2(%arg0: i32) -> (i32, i32) {
    %c0_i32 = arith.constant 0 : i32
    %c0_i32_0 = arith.constant 0 : i32
    %c0_i32_1 = arith.constant 0 : i32
    return %c0_i32, %c0_i32_0 : i32, i32
  }
  func.func @transform_3(%arg0: i32) -> (i32, i32) {
    %c0_i32 = arith.constant 0 : i32
    %c0_i32_0 = arith.constant 0 : i32
    %c0_i32_1 = arith.constant 0 : i32
    return %c0_i32, %c0_i32_0 : i32, i32
  }
  func.func @transform_4(%arg0: i32) -> (i32, i32) {
    %c0_i32 = arith.constant 0 : i32
    %c0_i32_0 = arith.constant 0 : i32
    %c0_i32_1 = arith.constant 0 : i32
    return %c0_i32, %c0_i32_0 : i32, i32
  }
  func.func @transform_5(%arg0: i32) -> (i32, i32) {
    %c0_i32 = arith.constant 0 : i32
    %c0_i32_0 = arith.constant 0 : i32
    %c0_i32_1 = arith.constant 0 : i32
    return %c0_i32, %c0_i32_0 : i32, i32
  }
  func.func @transform_6(%arg0: i32) -> (i32, i32) {
    %c0_i32 = arith.constant 0 : i32
    %c0_i32_0 = arith.constant 0 : i32
    %c0_i32_1 = arith.constant 0 : i32
    return %c0_i32, %c0_i32_0 : i32, i32
  }
  func.func @transform_7(%arg0: i32) -> (i32, i32) {
    %c0_i32 = arith.constant 0 : i32
    %c0_i32_0 = arith.constant 0 : i32
    %c0_i32_1 = arith.constant 0 : i32
    return %c0_i32, %c0_i32_0 : i32, i32
  }
  func.func @transform_8(%arg0: i32) -> (i32, i32) {
    %c0_i32 = arith.constant 0 : i32
    %c0_i32_0 = arith.constant 0 : i32
    %c0_i32_1 = arith.constant 0 : i32
    return %c0_i32, %c0_i32_0 : i32, i32
  }
  func.func @transform_9(%arg0: i32) -> (i32, i32) {
    %c0_i32 = arith.constant 0 : i32
    %c0_i32_0 = arith.constant 0 : i32
    %c0_i32_1 = arith.constant 0 : i32
    return %c0_i32, %c0_i32_0 : i32, i32
  }
  func.func @transform_10(%arg0: i32) -> (i32, i32) {
    %c0_i32 = arith.constant 0 : i32
    %c0_i32_0 = arith.constant 0 : i32
    %c0_i32_1 = arith.constant 0 : i32
    return %c0_i32, %c0_i32_0 : i32, i32
  }
}

</mosaic_0001>

<llo_original>
// kernel: backbone_forward.13
$region0: #{backbone_forward.13}
  #allocation0 [shape = 'u32[]', space=smem, size = 0x4, offset = 0x4, fixed_abs, tag = 'smem constant byte address 0x4 - core index']
  #allocation1 [shape = 'u32[144,128]{1,0:T(1,128)}', space=vmem, size = 0x12000, scoped, tag = 'internal scratch']
  %s0 = inlined_call_operand.vmem [shape: f32[256,4], index: 0, kind: input, shape index: {}]
  %s1 = inlined_call_operand.vmem [shape: bf16[4,16], index: 1, kind: input, shape index: {}]
  %s2 = inlined_call_operand.vmem [shape: f32[1,16], index: 2, kind: input, shape index: {}]
  %s3 = inlined_call_operand.vmem [shape: f32[256,16], index: 3, kind: output, shape index: {}]
  %s4 = sld [smem:[#allocation0]]
  $region22: #{backbone_forward.13} parent=0
    _
  %s6 = ssub.s32 1, %s4
  %s7 = scalar_select 0, %s6, %s4
  // Predicated region
  $region2: #{backbone_forward.13} parent=0 // pred_check
    _
  $region3: #{backbone_forward.13} parent=0 // pred_check_branch
    %9 = sbr.rel (0) target = $region5
  $region4: #{backbone_forward.13} parent=0 // pred_region
    _
  $region5: #{backbone_forward.13} parent=0 // pred_fallthru
    _
  // Predicated region
  $region6: #{backbone_forward.13} parent=0 // pred_check
    _
  $region7: #{backbone_forward.13} parent=0 // pred_check_branch
    %11 = sbr.rel (0) target = $region9
  $region8: #{backbone_forward.13} parent=0 // pred_region
    _
  $region9: #{backbone_forward.13} parent=0 // pred_fallthru
    _
  // Predicated region
  $region10: #{backbone_forward.13} parent=0 // pred_check
    _
  $region11: #{backbone_forward.13} parent=0 // pred_check_branch
    %13 = sbr.rel (0) target = $region13
  $region12: #{backbone_forward.13} parent=0 // pred_region
    _
  $region13: #{backbone_forward.13} parent=0 // pred_fallthru
    _
  %v15 = vld [vmem:[%s0] sm:$0xff]
  %v16 = vld [vmem:[%s0 + $0x8] sm:$0xff]
  %v17 = vld [vmem:[%s0 + $0x10] sm:$0xff]
  %v18 = vld [vmem:[%s0 + $0x18] sm:$0xff]
  %v19 = vld [vmem:[%s0 + $0x20] sm:$0xff]
  %v20 = vld [vmem:[%s0 + $0x28] sm:$0xff]
  %v21 = vld [vmem:[%s0 + $0x30] sm:$0xff]
  %v22 = vld [vmem:[%s0 + $0x38] sm:$0xff]
  %v23 = vld [vmem:[%s0 + $0x40] sm:$0xff]
  %v24 = vld [vmem:[%s0 + $0x48] sm:$0xff]
  %v25 = vld [vmem:[%s0 + $0x50] sm:$0xff]
  %v26 = vld [vmem:[%s0 + $0x58] sm:$0xff]
  %v27 = vld [vmem:[%s0 + $0x60] sm:$0xff]
  %v28 = vld [vmem:[%s0 + $0x68] sm:$0xff]
  %v29 = vld [vmem:[%s0 + $0x70] sm:$0xff]
  %v30 = vld [vmem:[%s0 + $0x78] sm:$0xff]
  %v31 = vld [vmem:[%s0 + $0x80] sm:$0xff]
  %v32 = vld [vmem:[%s0 + $0x88] sm:$0xff]
  %v33 = vld [vmem:[%s0 + $0x90] sm:$0xff]
  %v34 = vld [vmem:[%s0 + $0x98] sm:$0xff]
  %v35 = vld [vmem:[%s0 + $0xa0] sm:$0xff]
  %v36 = vld [vmem:[%s0 + $0xa8] sm:$0xff]
  %v37 = vld [vmem:[%s0 + $0xb0] sm:$0xff]
  %v38 = vld [vmem:[%s0 + $0xb8] sm:$0xff]
  %v39 = vld [vmem:[%s0 + $0xc0] sm:$0xff]
  %v40 = vld [vmem:[%s0 + $0xc8] sm:$0xff]
  %v41 = vld [vmem:[%s0 + $0xd0] sm:$0xff]
  %v42 = vld [vmem:[%s0 + $0xd8] sm:$0xff]
  %v43 = vld [vmem:[%s0 + $0xe0] sm:$0xff]
  %v44 = vld [vmem:[%s0 + $0xe8] sm:$0xff]
  %v45 = vld [vmem:[%s0 + $0xf0] sm:$0xff]
  %v46 = vld [vmem:[%s0 + $0xf8] sm:$0xff]
  %v47 = vpack.c.bf16 %v16, %v15
  %v48 = vpack.c.bf16 %v18, %v17
  %v49 = vpack.c.bf16 %v20, %v19
  %v50 = vpack.c.bf16 %v22, %v21
  %v51 = vpack.c.bf16 %v24, %v23
  %v52 = vpack.c.bf16 %v26, %v25
  %v53 = vpack.c.bf16 %v28, %v27
  %v54 = vpack.c.bf16 %v30, %v29
  %v55 = vpack.c.bf16 %v32, %v31
  %v56 = vpack.c.bf16 %v34, %v33
  %v57 = vpack.c.bf16 %v36, %v35
  %v58 = vpack.c.bf16 %v38, %v37
  %v59 = vpack.c.bf16 %v40, %v39
  %v60 = vpack.c.bf16 %v42, %v41
  %v61 = vpack.c.bf16 %v44, %v43
  %v62 = vpack.c.bf16 %v46, %v45
  %v63 = vld [vmem:[%s1] sm:$0x3]
  %v64 = vld [vmem:[%s2] sm:$0x1]
  %v66 = vlaneseq
  %v67 = vshrl.u32 %v66, 7
  %v68 = vsub.s32 0, %v67
  %v69 = vrot.slane %v64, %v68
  %vm71 = vcmask 31744
  %v73 = vsel %vm71, %v47, 0
  %v76 = vsel %vm71, %v48, 0
  %v79 = vsel %vm71, %v49, 0
  %v82 = vsel %vm71, %v50, 0
  %v85 = vsel %vm71, %v51, 0
  %v88 = vsel %vm71, %v52, 0
  %v91 = vsel %vm71, %v53, 0
  %v94 = vsel %vm71, %v54, 0
  %v97 = vsel %vm71, %v55, 0
  %v100 = vsel %vm71, %v56, 0
  %v103 = vsel %vm71, %v57, 0
  %v106 = vsel %vm71, %v58, 0
  %v109 = vsel %vm71, %v59, 0
  %v112 = vsel %vm71, %v60, 0
  %v115 = vsel %vm71, %v61, 0
  %v118 = vsel %vm71, %v62, 0
  %vm120 = vcmask 1041408
  %v122 = vsel %vm120, %v63, 0
  %124 = vmatprep.subr.bf16.mxu0 0
  %125 = vmatpush1.bf16.msra.mxu0 %v122
  %126 = vmatprep.subr.bf16.mxu0 0
  %127 = vmatpush1.bf16.msra.mxu0 0
  %128 = vmatprep.subr.bf16.mxu0 0
  %129 = vmatpush1.bf16.msra.mxu0 0
  %130 = vmatprep.subr.bf16.mxu0 0
  %131 = vmatpush1.bf16.msra.mxu0 0
  %132 = vmatprep.subr.bf16.mxu0 0
  %133 = vmatpush1.bf16.msra.mxu0 0
  %134 = vmatprep.subr.bf16.mxu0 0
  %135 = vmatpush1.bf16.msra.mxu0 0
  %136 = vmatprep.subr.bf16.mxu0 0
  %137 = vmatpush1.bf16.msra.mxu0 0
  %138 = vmatprep.subr.bf16.mxu0 0
  %139 = vmatpush1.bf16.msra.mxu0 0
  %140 = vmatprep.subr.bf16.mxu0 0
  %141 = vmatpush1.bf16.msra.mxu0 0
  %142 = vmatprep.subr.bf16.mxu0 0
  %143 = vmatpush1.bf16.msra.mxu0 0
  %144 = vmatprep.subr.bf16.mxu0 0
  %145 = vmatpush1.bf16.msra.mxu0 0
  %146 = vmatprep.subr.bf16.mxu0 0
  %147 = vmatpush1.bf16.msra.mxu0 0
  %148 = vmatprep.subr.bf16.mxu0 0
  %149 = vmatpush1.bf16.msra.mxu0 0
  %150 = vmatprep.subr.bf16.mxu0 0
  %151 = vmatpush1.bf16.msra.mxu0 0
  %152 = vmatprep.subr.bf16.mxu0 0
  %153 = vmatpush1.bf16.msra.mxu0 0
  %154 = vmatprep.subr.bf16.mxu0 0
  %155 = vmatpush1.bf16.msra.mxu0 0
  %156 = vmatprep.mubr.bf16.mxu0 0
  %157 = vmatmul.mubr.bf16.gmra.mrb[0].mxu0 %v73
  %v158 = vpop.f32.mrb[0].mxu0
  %v159 = vadd.f32 %v69, %v158
  %v160 = vpop.f32.mrb[0].mxu0
  %v161 = vpop.f32.mrb[0].mxu0
  %v162 = vadd.f32 %v69, %v161
  %v163 = vpop.f32.mrb[0].mxu0
  %164 = vmatprep.mubr.bf16.mxu0 0
  %165 = vmatmul.mubr.bf16.gmra.mrb[0].mxu0 %v76
  %v166 = vpop.f32.mrb[0].mxu0
  %v167 = vadd.f32 %v69, %v166
  %v168 = vpop.f32.mrb[0].mxu0
  %v169 = vpop.f32.mrb[0].mxu0
  %v170 = vadd.f32 %v69, %v169
  %v171 = vpop.f32.mrb[0].mxu0
  %172 = vmatprep.mubr.bf16.mxu0 0
  %173 = vmatmul.mubr.bf16.gmra.mrb[0].mxu0 %v79
  %v174 = vpop.f32.mrb[0].mxu0
  %v175 = vadd.f32 %v69, %v174
  %v176 = vpop.f32.mrb[0].mxu0
  %v177 = vpop.f32.mrb[0].mxu0
  %v178 = vadd.f32 %v69, %v177
  %v179 = vpop.f32.mrb[0].mxu0
  %180 = vmatprep.mubr.bf16.mxu0 0
  %181 = vmatmul.mubr.bf16.gmra.mrb[0].mxu0 %v82
  %v182 = vpop.f32.mrb[0].mxu0
  %v183 = vadd.f32 %v69, %v182
  %v184 = vpop.f32.mrb[0].mxu0
  %v185 = vpop.f32.mrb[0].mxu0
  %v186 = vadd.f32 %v69, %v185
  %v187 = vpop.f32.mrb[0].mxu0
  %188 = vmatprep.mubr.bf16.mxu0 0
  %189 = vmatmul.mubr.bf16.gmra.mrb[0].mxu0 %v85
  %v190 = vpop.f32.mrb[0].mxu0
  %v191 = vadd.f32 %v69, %v190
  %v192 = vpop.f32.mrb[0].mxu0
  %v193 = vpop.f32.mrb[0].mxu0
  %v194 = vadd.f32 %v69, %v193
  %v195 = vpop.f32.mrb[0].mxu0
  %196 = vmatprep.mubr.bf16.mxu0 0
  %197 = vmatmul.mubr.bf16.gmra.mrb[0].mxu0 %v88
  %v198 = vpop.f32.mrb[0].mxu0
  %v199 = vadd.f32 %v69, %v198
  %v200 = vpop.f32.mrb[0].mxu0
  %v201 = vpop.f32.mrb[0].mxu0
  %v202 = vadd.f32 %v69, %v201
  %v203 = vpop.f32.mrb[0].mxu0
  %204 = vmatprep.mubr.bf16.mxu0 0
  %205 = vmatmul.mubr.bf16.gmra.mrb[0].mxu0 %v91
  %v206 = vpop.f32.mrb[0].mxu0
  %v207 = vadd.f32 %v69, %v206
  %v208 = vpop.f32.mrb[0].mxu0
  %v209 = vpop.f32.mrb[0].mxu0
  %v210 = vadd.f32 %v69, %v209
  %v211 = vpop.f32.mrb[0].mxu0
  %212 = vmatprep.mubr.bf16.mxu0 0
  %213 = vmatmul.mubr.bf16.gmra.mrb[0].mxu0 %v94
  %v214 = vpop.f32.mrb[0].mxu0
  %v215 = vadd.f32 %v69, %v214
  %v216 = vpop.f32.mrb[0].mxu0
  %v217 = vpop.f32.mrb[0].mxu0
  %v218 = vadd.f32 %v69, %v217
  %v219 = vpop.f32.mrb[0].mxu0
  %220 = vmatprep.mubr.bf16.mxu0 0
  %221 = vmatmul.mubr.bf16.gmra.mrb[0].mxu0 %v97
  %v222 = vpop.f32.mrb[0].mxu0
  %v223 = vadd.f32 %v69, %v222
  %v224 = vpop.f32.mrb[0].mxu0
  %v225 = vpop.f32.mrb[0].mxu0
  %v226 = vadd.f32 %v69, %v225
  %v227 = vpop.f32.mrb[0].mxu0
  %228 = vmatprep.mubr.bf16.mxu0 0
  %229 = vmatmul.mubr.bf16.gmra.mrb[0].mxu0 %v100
  %v230 = vpop.f32.mrb[0].mxu0
  %v231 = vadd.f32 %v69, %v230
  %v232 = vpop.f32.mrb[0].mxu0
  %v233 = vpop.f32.mrb[0].mxu0
  %v234 = vadd.f32 %v69, %v233
  %v235 = vpop.f32.mrb[0].mxu0
  %236 = vmatprep.mubr.bf16.mxu0 0
  %237 = vmatmul.mubr.bf16.gmra.mrb[0].mxu0 %v103
  %v238 = vpop.f32.mrb[0].mxu0
  %v239 = vadd.f32 %v69, %v238
  %v240 = vpop.f32.mrb[0].mxu0
  %v241 = vpop.f32.mrb[0].mxu0
  %v242 = vadd.f32 %v69, %v241
  %v243 = vpop.f32.mrb[0].mxu0
  %244 = vmatprep.mubr.bf16.mxu0 0
  %245 = vmatmul.mubr.bf16.gmra.mrb[0].mxu0 %v106
  %v246 = vpop.f32.mrb[0].mxu0
  %v247 = vadd.f32 %v69, %v246
  %v248 = vpop.f32.mrb[0].mxu0
  %v249 = vpop.f32.mrb[0].mxu0
  %v250 = vadd.f32 %v69, %v249
  %v251 = vpop.f32.mrb[0].mxu0
  %252 = vmatprep.mubr.bf16.mxu0 0
  %253 = vmatmul.mubr.bf16.gmra.mrb[0].mxu0 %v109
  %v254 = vpop.f32.mrb[0].mxu0
  %v255 = vadd.f32 %v69, %v254
  %v256 = vpop.f32.mrb[0].mxu0
  %v257 = vpop.f32.mrb[0].mxu0
  %v258 = vadd.f32 %v69, %v257
  %v259 = vpop.f32.mrb[0].mxu0
  %260 = vmatprep.mubr.bf16.mxu0 0
  %261 = vmatmul.mubr.bf16.gmra.mrb[0].mxu0 %v112
  %v262 = vpop.f32.mrb[0].mxu0
  %v263 = vadd.f32 %v69, %v262
  %v264 = vpop.f32.mrb[0].mxu0
  %v265 = vpop.f32.mrb[0].mxu0
  %v266 = vadd.f32 %v69, %v265
  %v267 = vpop.f32.mrb[0].mxu0
  %268 = vmatprep.mubr.bf16.mxu0 0
  %269 = vmatmul.mubr.bf16.gmra.mrb[0].mxu0 %v115
  %v270 = vpop.f32.mrb[0].mxu0
  %v271 = vadd.f32 %v69, %v270
  %v272 = vpop.f32.mrb[0].mxu0
  %v273 = vpop.f32.mrb[0].mxu0
  %v274 = vadd.f32 %v69, %v273
  %v275 = vpop.f32.mrb[0].mxu0
  %276 = vmatprep.mubr.bf16.mxu0 0
  %277 = vmatmul.mubr.bf16.gmra.mrb[0].mxu0 %v118
  %v278 = vpop.f32.mrb[0].mxu0
  %v279 = vadd.f32 %v69, %v278
  %v280 = vpop.f32.mrb[0].mxu0
  %v281 = vpop.f32.mrb[0].mxu0
  %v282 = vadd.f32 %v69, %v281
  %v283 = vpop.f32.mrb[0].mxu0
  %284 = vdwg.mxu0
  %vm285 = vcmask 130048
  %286 = vst.msk [vmem:[%s3] sm:$0xff] %vm285, %v159
  %287 = vst.msk [vmem:[%s3 + $0x8] sm:$0xff] %vm285, %v162
  %288 = vst.msk [vmem:[%s3 + $0x10] sm:$0xff] %vm285, %v167
  %289 = vst.msk [vmem:[%s3 + $0x18] sm:$0xff] %vm285, %v170
  %290 = vst.msk [vmem:[%s3 + $0x20] sm:$0xff] %vm285, %v175
  %291 = vst.msk [vmem:[%s3 + $0x28] sm:$0xff] %vm285, %v178
  %292 = vst.msk [vmem:[%s3 + $0x30] sm:$0xff] %vm285, %v183
  %293 = vst.msk [vmem:[%s3 + $0x38] sm:$0xff] %vm285, %v186
  %294 = vst.msk [vmem:[%s3 + $0x40] sm:$0xff] %vm285, %v191
  %295 = vst.msk [vmem:[%s3 + $0x48] sm:$0xff] %vm285, %v194
  %296 = vst.msk [vmem:[%s3 + $0x50] sm:$0xff] %vm285, %v199
  %297 = vst.msk [vmem:[%s3 + $0x58] sm:$0xff] %vm285, %v202
  %298 = vst.msk [vmem:[%s3 + $0x60] sm:$0xff] %vm285, %v207
  %299 = vst.msk [vmem:[%s3 + $0x68] sm:$0xff] %vm285, %v210
  %300 = vst.msk [vmem:[%s3 + $0x70] sm:$0xff] %vm285, %v215
  %301 = vst.msk [vmem:[%s3 + $0x78] sm:$0xff] %vm285, %v218
  %302 = vst.msk [vmem:[%s3 + $0x80] sm:$0xff] %vm285, %v223
  %303 = vst.msk [vmem:[%s3 + $0x88] sm:$0xff] %vm285, %v226
  %304 = vst.msk [vmem:[%s3 + $0x90] sm:$0xff] %vm285, %v231
  %305 = vst.msk [vmem:[%s3 + $0x98] sm:$0xff] %vm285, %v234
  %306 = vst.msk [vmem:[%s3 + $0xa0] sm:$0xff] %vm285, %v239
  %307 = vst.msk [vmem:[%s3 + $0xa8] sm:$0xff] %vm285, %v242
  %308 = vst.msk [vmem:[%s3 + $0xb0] sm:$0xff] %vm285, %v247
  %309 = vst.msk [vmem:[%s3 + $0xb8] sm:$0xff] %vm285, %v250
  %310 = vst.msk [vmem:[%s3 + $0xc0] sm:$0xff] %vm285, %v255
  %311 = vst.msk [vmem:[%s3 + $0xc8] sm:$0xff] %vm285, %v258
  %312 = vst.msk [vmem:[%s3 + $0xd0] sm:$0xff] %vm285, %v263
  %313 = vst.msk [vmem:[%s3 + $0xd8] sm:$0xff] %vm285, %v266
  %314 = vst.msk [vmem:[%s3 + $0xe0] sm:$0xff] %vm285, %v271
  %315 = vst.msk [vmem:[%s3 + $0xe8] sm:$0xff] %vm285, %v274
  %316 = vst.msk [vmem:[%s3 + $0xf0] sm:$0xff] %vm285, %v279
  %317 = vst.msk [vmem:[%s3 + $0xf8] sm:$0xff] %vm285, %v282
  // Predicated region
  $region14: #{backbone_forward.13} parent=0 // pred_check
    _
  $region15: #{backbone_forward.13} parent=0 // pred_check_branch
    %319 = sbr.rel (0) target = $region17
  $region16: #{backbone_forward.13} parent=0 // pred_region
    _
  $region17: #{backbone_forward.13} parent=0 // pred_fallthru
    _
  // Predicated region
  $region18: #{backbone_forward.13} parent=0 // pred_check
    _
  $region19: #{backbone_forward.13} parent=0 // pred_check_branch
    %321 = sbr.rel (0) target = $region21
  $region20: #{backbone_forward.13} parent=0 // pred_region
    _
  $region21: #{backbone_forward.13} parent=0 // pred_fallthru
    _

// kernel: backbone_forward.14
$region0: #{backbone_forward.14}
  #allocation0 [shape = 'u32[]', space=smem, size = 0x4, offset = 0x4, fixed_abs, tag = 'smem constant byte address 0x4 - core index']
  #allocation1 [shape = 'u32[144,128]{1,0:T(1,128)}', space=vmem, size = 0x12000, scoped, tag = 'internal scratch']
  %s0 = inlined_call_operand.vmem [shape: f32[128,16], index: 0, kind: input, shape index: {}]
  %s1 = inlined_call_operand.vmem [shape: bf16[16,64], index: 1, kind: input, shape index: {}]
  %s2 = inlined_call_operand.vmem [shape: f32[1,64], index: 2, kind: input, shape index: {}]
  %s3 = inlined_call_operand.vmem [shape: f32[128,64], index: 3, kind: output, shape index: {}]
  %s4 = sld [smem:[#allocation0]]
  $region22: #{backbone_forward.14} parent=0
    _
  %s6 = ssub.s32 1, %s4
  %s7 = scalar_select 0, %s6, %s4
  // Predicated region
  $region2: #{backbone_forward.14} parent=0 // pred_check
    _
  $region3: #{backbone_forward.14} parent=0 // pred_check_branch
    %9 = sbr.rel (0) target = $region5
  $region4: #{backbone_forward.14} parent=0 // pred_region
    _
  $region5: #{backbone_forward.14} parent=0 // pred_fallthru
    _
  // Predicated region
  $region6: #{backbone_forward.14} parent=0 // pred_check
    _
  $region7: #{backbone_forward.14} parent=0 // pred_check_branch
    %11 = sbr.rel (0) target = $region9
  $region8: #{backbone_forward.14} parent=0 // pred_region
    _
  $region9: #{backbone_forward.14} parent=0 // pred_fallthru
    _
  // Predicated region
  $region10: #{backbone_forward.14} parent=0 // pred_check
    _
  $region11: #{backbone_forward.14} parent=0 // pred_check_branch
    %13 = sbr.rel (0) target = $region13
  $region12: #{backbone_forward.14} parent=0 // pred_region
    _
  $region13: #{backbone_forward.14} parent=0 // pred_fallthru
    _
  %v15 = vld [vmem:[%s0] sm:$0xff]
  %v16 = vld [vmem:[%s0 + $0x8] sm:$0xff]
  %v17 = vld [vmem:[%s0 + $0x10] sm:$0xff]
  %v18 = vld [vmem:[%s0 + $0x18] sm:$0xff]
  %v19 = vld [vmem:[%s0 + $0x20] sm:$0xff]
  %v20 = vld [vmem:[%s0 + $0x28] sm:$0xff]
  %v21 = vld [vmem:[%s0 + $0x30] sm:$0xff]
  %v22 = vld [vmem:[%s0 + $0x38] sm:$0xff]
  %v23 = vld [vmem:[%s0 + $0x40] sm:$0xff]
  %v24 = vld [vmem:[%s0 + $0x48] sm:$0xff]
  %v25 = vld [vmem:[%s0 + $0x50] sm:$0xff]
  %v26 = vld [vmem:[%s0 + $0x58] sm:$0xff]
  %v27 = vld [vmem:[%s0 + $0x60] sm:$0xff]
  %v28 = vld [vmem:[%s0 + $0x68] sm:$0xff]
  %v29 = vld [vmem:[%s0 + $0x70] sm:$0xff]
  %v30 = vld [vmem:[%s0 + $0x78] sm:$0xff]
  %v31 = vpack.c.bf16 %v16, %v15
  %v32 = vpack.c.bf16 %v18, %v17
  %v33 = vpack.c.bf16 %v20, %v19
  %v34 = vpack.c.bf16 %v22, %v21
  %v35 = vpack.c.bf16 %v24, %v23
  %v36 = vpack.c.bf16 %v26, %v25
  %v37 = vpack.c.bf16 %v28, %v27
  %v38 = vpack.c.bf16 %v30, %v29
  %v39 = vld [vmem:[%s1] sm:$0xf]
  %v40 = vld [vmem:[%s1 + $0x4] sm:$0xf]
  %v41 = vld [vmem:[%s2] sm:$0x1]
  %v43 = vlaneseq
  %v44 = vshrl.u32 %v43, 7
  %v45 = vsub.s32 0, %v44
  %v46 = vrot.slane %v41, %v45
  %v50 = vunpack.c.l.b16 %v39
  %v51 = vunpack.c.l.b16 %v40
  %v52 = vpack.c.b16 %v51, %v50
  %vm54 = vcmask 130048
  %v56 = vsel %vm54, %v31, 0
  %v59 = vsel %vm54, %v32, 0
  %v62 = vsel %vm54, %v33, 0
  %v65 = vsel %vm54, %v34, 0
  %v68 = vsel %vm54, %v35, 0
  %v71 = vsel %vm54, %v36, 0
  %v74 = vsel %vm54, %v37, 0
  %v77 = vsel %vm54, %v38, 0
  %79 = vmatprep.subr.bf16.mxu0 0
  %80 = vmatpush1.bf16.msra.mxu0 %v52
  %81 = vmatprep.subr.bf16.mxu0 0
  %82 = vmatpush1.bf16.msra.mxu0 0
  %83 = vmatprep.subr.bf16.mxu0 0
  %84 = vmatpush1.bf16.msra.mxu0 0
  %85 = vmatprep.subr.bf16.mxu0 0
  %86 = vmatpush1.bf16.msra.mxu0 0
  %87 = vmatprep.subr.bf16.mxu0 0
  %88 = vmatpush1.bf16.msra.mxu0 0
  %89 = vmatprep.subr.bf16.mxu0 0
  %90 = vmatpush1.bf16.msra.mxu0 0
  %91 = vmatprep.subr.bf16.mxu0 0
  %92 = vmatpush1.bf16.msra.mxu0 0
  %93 = vmatprep.subr.bf16.mxu0 0
  %94 = vmatpush1.bf16.msra.mxu0 0
  %95 = vmatprep.subr.bf16.mxu0 0
  %96 = vmatpush1.bf16.msra.mxu0 0
  %97 = vmatprep.subr.bf16.mxu0 0
  %98 = vmatpush1.bf16.msra.mxu0 0
  %99 = vmatprep.subr.bf16.mxu0 0
  %100 = vmatpush1.bf16.msra.mxu0 0
  %101 = vmatprep.subr.bf16.mxu0 0
  %102 = vmatpush1.bf16.msra.mxu0 0
  %103 = vmatprep.subr.bf16.mxu0 0
  %104 = vmatpush1.bf16.msra.mxu0 0
  %105 = vmatprep.subr.bf16.mxu0 0
  %106 = vmatpush1.bf16.msra.mxu0 0
  %107 = vmatprep.subr.bf16.mxu0 0
  %108 = vmatpush1.bf16.msra.mxu0 0
  %109 = vmatprep.subr.bf16.mxu0 0
  %110 = vmatpush1.bf16.msra.mxu0 0
  %111 = vmatprep.mubr.bf16.mxu0 0
  %112 = vmatmul.mubr.bf16.gmra.mrb[0].mxu0 %v56
  %v113 = vpop.f32.mrb[0].mxu0
  %v114 = vadd.f32 %v46, %v113
  %v115 = vpop.f32.mrb[0].mxu0
  %v116 = vpop.f32.mrb[0].mxu0
  %v117 = vadd.f32 %v46, %v116
  %v118 = vpop.f32.mrb[0].mxu0
  %119 = vmatprep.mubr.bf16.mxu0 0
  %120 = vmatmul.mubr.bf16.gmra.mrb[0].mxu0 %v59
  %v121 = vpop.f32.mrb[0].mxu0
  %v122 = vadd.f32 %v46, %v121
  %v123 = vpop.f32.mrb[0].mxu0
  %v124 = vpop.f32.mrb[0].mxu0
  %v125 = vadd.f32 %v46, %v124
  %v126 = vpop.f32.mrb[0].mxu0
  %127 = vmatprep.mubr.bf16.mxu0 0
  %128 = vmatmul.mubr.bf16.gmra.mrb[0].mxu0 %v62
  %v129 = vpop.f32.mrb[0].mxu0
  %v130 = vadd.f32 %v46, %v129
  %v131 = vpop.f32.mrb[0].mxu0
  %v132 = vpop.f32.mrb[0].mxu0
  %v133 = vadd.f32 %v46, %v132
  %v134 = vpop.f32.mrb[0].mxu0
  %135 = vmatprep.mubr.bf16.mxu0 0
  %136 = vmatmul.mubr.bf16.gmra.mrb[0].mxu0 %v65
  %v137 = vpop.f32.mrb[0].mxu0
  %v138 = vadd.f32 %v46, %v137
  %v139 = vpop.f32.mrb[0].mxu0
  %v140 = vpop.f32.mrb[0].mxu0
  %v141 = vadd.f32 %v46, %v140
  %v142 = vpop.f32.mrb[0].mxu0
  %143 = vmatprep.mubr.bf16.mxu0 0
  %144 = vmatmul.mubr.bf16.gmra.mrb[0].mxu0 %v68
  %v145 = vpop.f32.mrb[0].mxu0
  %v146 = vadd.f32 %v46, %v145
  %v147 = vpop.f32.mrb[0].mxu0
  %v148 = vpop.f32.mrb[0].mxu0
  %v149 = vadd.f32 %v46, %v148
  %v150 = vpop.f32.mrb[0].mxu0
  %151 = vmatprep.mubr.bf16.mxu0 0
  %152 = vmatmul.mubr.bf16.gmra.mrb[0].mxu0 %v71
  %v153 = vpop.f32.mrb[0].mxu0
  %v154 = vadd.f32 %v46, %v153
  %v155 = vpop.f32.mrb[0].mxu0
  %v156 = vpop.f32.mrb[0].mxu0
  %v157 = vadd.f32 %v46, %v156
  %v158 = vpop.f32.mrb[0].mxu0
  %159 = vmatprep.mubr.bf16.mxu0 0
  %160 = vmatmul.mubr.bf16.gmra.mrb[0].mxu0 %v74
  %v161 = vpop.f32.mrb[0].mxu0
  %v162 = vadd.f32 %v46, %v161
  %v163 = vpop.f32.mrb[0].mxu0
  %v164 = vpop.f32.mrb[0].mxu0
  %v165 = vadd.f32 %v46, %v164
  %v166 = vpop.f32.mrb[0].mxu0
  %167 = vmatprep.mubr.bf16.mxu0 0
  %168 = vmatmul.mubr.bf16.gmra.mrb[0].mxu0 %v77
  %v169 = vpop.f32.mrb[0].mxu0
  %v170 = vadd.f32 %v46, %v169
  %v171 = vpop.f32.mrb[0].mxu0
  %v172 = vpop.f32.mrb[0].mxu0
  %v173 = vadd.f32 %v46, %v172
  %v174 = vpop.f32.mrb[0].mxu0
  %175 = vdwg.mxu0
  %vm176 = vcmask 523264
  %177 = vst.msk [vmem:[%s3] sm:$0xff] %vm176, %v114
  %178 = vst.msk [vmem:[%s3 + $0x8] sm:$0xff] %vm176, %v117
  %179 = vst.msk [vmem:[%s3 + $0x10] sm:$0xff] %vm176, %v122
  %180 = vst.msk [vmem:[%s3 + $0x18] sm:$0xff] %vm176, %v125
  %181 = vst.msk [vmem:[%s3 + $0x20] sm:$0xff] %vm176, %v130
  %182 = vst.msk [vmem:[%s3 + $0x28] sm:$0xff] %vm176, %v133
  %183 = vst.msk [vmem:[%s3 + $0x30] sm:$0xff] %vm176, %v138
  %184 = vst.msk [vmem:[%s3 + $0x38] sm:$0xff] %vm176, %v141
  %185 = vst.msk [vmem:[%s3 + $0x40] sm:$0xff] %vm176, %v146
  %186 = vst.msk [vmem:[%s3 + $0x48] sm:$0xff] %vm176, %v149
  %187 = vst.msk [vmem:[%s3 + $0x50] sm:$0xff] %vm176, %v154
  %188 = vst.msk [vmem:[%s3 + $0x58] sm:$0xff] %vm176, %v157
  %189 = vst.msk [vmem:[%s3 + $0x60] sm:$0xff] %vm176, %v162
  %190 = vst.msk [vmem:[%s3 + $0x68] sm:$0xff] %vm176, %v165
  %191 = vst.msk [vmem:[%s3 + $0x70] sm:$0xff] %vm176, %v170
  %192 = vst.msk [vmem:[%s3 + $0x78] sm:$0xff] %vm176, %v173
  // Predicated region
  $region14: #{backbone_forward.14} parent=0 // pred_check
    _
  $region15: #{backbone_forward.14} parent=0 // pred_check_branch
    %194 = sbr.rel (0) target = $region17
  $region16: #{backbone_forward.14} parent=0 // pred_region
    _
  $region17: #{backbone_forward.14} parent=0 // pred_fallthru
    _
  // Predicated region
  $region18: #{backbone_forward.14} parent=0 // pred_check
    _
  $region19: #{backbone_forward.14} parent=0 // pred_check_branch
    %196 = sbr.rel (0) target = $region21
  $region20: #{backbone_forward.14} parent=0 // pred_region
    _
  $region21: #{backbone_forward.14} parent=0 // pred_fallthru
    _

// kernel: backbone_forward.15
$region0: #{backbone_forward.15}
  #allocation0 [shape = 'u32[]', space=smem, size = 0x4, offset = 0x4, fixed_abs, tag = 'smem constant byte address 0x4 - core index']
  #allocation1 [shape = 'u32[144,128]{1,0:T(1,128)}', space=vmem, size = 0x12000, scoped, tag = 'internal scratch']
  %s0 = inlined_call_operand.vmem [shape: f32[256,16], index: 0, kind: input, shape index: {}]
  %s1 = inlined_call_operand.vmem [shape: bf16[16,16], index: 1, kind: input, shape index: {}]
  %s2 = inlined_call_operand.vmem [shape: f32[1,16], index: 2, kind: input, shape index: {}]
  %s3 = inlined_call_operand.vmem [shape: f32[256,16], index: 3, kind: output, shape index: {}]
  %s4 = sld [smem:[#allocation0]]
  $region22: #{backbone_forward.15} parent=0
    _
  %s6 = ssub.s32 1, %s4
  %s7 = scalar_select 0, %s6, %s4
  // Predicated region
  $region2: #{backbone_forward.15} parent=0 // pred_check
    _
  $region3: #{backbone_forward.15} parent=0 // pred_check_branch
    %9 = sbr.rel (0) target = $region5
  $region4: #{backbone_forward.15} parent=0 // pred_region
    _
  $region5: #{backbone_forward.15} parent=0 // pred_fallthru
    _
  // Predicated region
  $region6: #{backbone_forward.15} parent=0 // pred_check
    _
  $region7: #{backbone_forward.15} parent=0 // pred_check_branch
    %11 = sbr.rel (0) target = $region9
  $region8: #{backbone_forward.15} parent=0 // pred_region
    _
  $region9: #{backbone_forward.15} parent=0 // pred_fallthru
    _
  // Predicated region
  $region10: #{backbone_forward.15} parent=0 // pred_check
    _
  $region11: #{backbone_forward.15} parent=0 // pred_check_branch
    %13 = sbr.rel (0) target = $region13
  $region12: #{backbone_forward.15} parent=0 // pred_region
    _
  $region13: #{backbone_forward.15} parent=0 // pred_fallthru
    _
  %v15 = vld [vmem:[%s0] sm:$0xff]
  %v16 = vld [vmem:[%s0 + $0x8] sm:$0xff]
  %v17 = vld [vmem:[%s0 + $0x10] sm:$0xff]
  %v18 = vld [vmem:[%s0 + $0x18] sm:$0xff]
  %v19 = vld [vmem:[%s0 + $0x20] sm:$0xff]
  %v20 = vld [vmem:[%s0 + $0x28] sm:$0xff]
  %v21 = vld [vmem:[%s0 + $0x30] sm:$0xff]
  %v22 = vld [vmem:[%s0 + $0x38] sm:$0xff]
  %v23 = vld [vmem:[%s0 + $0x40] sm:$0xff]
  %v24 = vld [vmem:[%s0 + $0x48] sm:$0xff]
  %v25 = vld [vmem:[%s0 + $0x50] sm:$0xff]
  %v26 = vld [vmem:[%s0 + $0x58] sm:$0xff]
  %v27 = vld [vmem:[%s0 + $0x60] sm:$0xff]
  %v28 = vld [vmem:[%s0 + $0x68] sm:$0xff]
  %v29 = vld [vmem:[%s0 + $0x70] sm:$0xff]
  %v30 = vld [vmem:[%s0 + $0x78] sm:$0xff]
  %v31 = vld [vmem:[%s0 + $0x80] sm:$0xff]
  %v32 = vld [vmem:[%s0 + $0x88] sm:$0xff]
  %v33 = vld [vmem:[%s0 + $0x90] sm:$0xff]
  %v34 = vld [vmem:[%s0 + $0x98] sm:$0xff]
  %v35 = vld [vmem:[%s0 + $0xa0] sm:$0xff]
  %v36 = vld [vmem:[%s0 + $0xa8] sm:$0xff]
  %v37 = vld [vmem:[%s0 + $0xb0] sm:$0xff]
  %v38 = vld [vmem:[%s0 + $0xb8] sm:$0xff]
  %v39 = vld [vmem:[%s0 + $0xc0] sm:$0xff]
  %v40 = vld [vmem:[%s0 + $0xc8] sm:$0xff]
  %v41 = vld [vmem:[%s0 + $0xd0] sm:$0xff]
  %v42 = vld [vmem:[%s0 + $0xd8] sm:$0xff]
  %v43 = vld [vmem:[%s0 + $0xe0] sm:$0xff]
  %v44 = vld [vmem:[%s0 + $0xe8] sm:$0xff]
  %v45 = vld [vmem:[%s0 + $0xf0] sm:$0xff]
  %v46 = vld [vmem:[%s0 + $0xf8] sm:$0xff]
  %v47 = vpack.c.bf16 %v16, %v15
  %v48 = vpack.c.bf16 %v18, %v17
  %v49 = vpack.c.bf16 %v20, %v19
  %v50 = vpack.c.bf16 %v22, %v21
  %v51 = vpack.c.bf16 %v24, %v23
  %v52 = vpack.c.bf16 %v26, %v25
  %v53 = vpack.c.bf16 %v28, %v27
  %v54 = vpack.c.bf16 %v30, %v29
  %v55 = vpack.c.bf16 %v32, %v31
  %v56 = vpack.c.bf16 %v34, %v33
  %v57 = vpack.c.bf16 %v36, %v35
  %v58 = vpack.c.bf16 %v38, %v37
  %v59 = vpack.c.bf16 %v40, %v39
  %v60 = vpack.c.bf16 %v42, %v41
  %v61 = vpack.c.bf16 %v44, %v43
  %v62 = vpack.c.bf16 %v46, %v45
  %v63 = vld [vmem:[%s1] sm:$0xf]
  %v64 = vld [vmem:[%s1 + $0x4] sm:$0xf]
  %v65 = vld [vmem:[%s2] sm:$0x1]
  %v67 = vlaneseq
  %v68 = vshrl.u32 %v67, 7
  %v69 = vsub.s32 0, %v68
  %v70 = vrot.slane %v65, %v69
  %v74 = vunpack.c.l.b16 %v63
  %v75 = vunpack.c.l.b16 %v64
  %v76 = vpack.c.b16 %v75, %v74
  %vm78 = vcmask 130048
  %v80 = vsel %vm78, %v47, 0
  %v83 = vsel %vm78, %v48, 0
  %v86 = vsel %vm78, %v49, 0
  %v89 = vsel %vm78, %v50, 0
  %v92 = vsel %vm78, %v51, 0
  %v95 = vsel %vm78, %v52, 0
  %v98 = vsel %vm78, %v53, 0
  %v101 = vsel %vm78, %v54, 0
  %v104 = vsel %vm78, %v55, 0
  %v107 = vsel %vm78, %v56, 0
  %v110 = vsel %vm78, %v57, 0
  %v113 = vsel %vm78, %v58, 0
  %v116 = vsel %vm78, %v59, 0
  %v119 = vsel %vm78, %v60, 0
  %v122 = vsel %vm78, %v61, 0
  %v125 = vsel %vm78, %v62, 0
  %127 = vmatprep.subr.bf16.mxu0 0
  %128 = vmatpush1.bf16.msra.mxu0 %v76
  %129 = vmatprep.subr.bf16.mxu0 0
  %130 = vmatpush1.bf16.msra.mxu0 0
  %131 = vmatprep.subr.bf16.mxu0 0
  %132 = vmatpush1.bf16.msra.mxu0 0
  %133 = vmatprep.subr.bf16.mxu0 0
  %134 = vmatpush1.bf16.msra.mxu0 0
  %135 = vmatprep.subr.bf16.mxu0 0
  %136 = vmatpush1.bf16.msra.mxu0 0
  %137 = vmatprep.subr.bf16.mxu0 0
  %138 = vmatpush1.bf16.msra.mxu0 0
  %139 = vmatprep.subr.bf16.mxu0 0
  %140 = vmatpush1.bf16.msra.mxu0 0
  %141 = vmatprep.subr.bf16.mxu0 0
  %142 = vmatpush1.bf16.msra.mxu0 0
  %143 = vmatprep.subr.bf16.mxu0 0
  %144 = vmatpush1.bf16.msra.mxu0 0
  %145 = vmatprep.subr.bf16.mxu0 0
  %146 = vmatpush1.bf16.msra.mxu0 0
  %147 = vmatprep.subr.bf16.mxu0 0
  %148 = vmatpush1.bf16.msra.mxu0 0
  %149 = vmatprep.subr.bf16.mxu0 0
  %150 = vmatpush1.bf16.msra.mxu0 0
  %151 = vmatprep.subr.bf16.mxu0 0
  %152 = vmatpush1.bf16.msra.mxu0 0
  %153 = vmatprep.subr.bf16.mxu0 0
  %154 = vmatpush1.bf16.msra.mxu0 0
  %155 = vmatprep.subr.bf16.mxu0 0
  %156 = vmatpush1.bf16.msra.mxu0 0
  %157 = vmatprep.subr.bf16.mxu0 0
  %158 = vmatpush1.bf16.msra.mxu0 0
  %159 = vmatprep.mubr.bf16.mxu0 0
  %160 = vmatmul.mubr.bf16.gmra.mrb[0].mxu0 %v80
  %v161 = vpop.f32.mrb[0].mxu0
  %v162 = vadd.f32 %v70, %v161
  %v163 = vpop.f32.mrb[0].mxu0
  %v164 = vpop.f32.mrb[0].mxu0
  %v165 = vadd.f32 %v70, %v164
  %v166 = vpop.f32.mrb[0].mxu0
  %167 = vmatprep.mubr.bf16.mxu0 0
  %168 = vmatmul.mubr.bf16.gmra.mrb[0].mxu0 %v83
  %v169 = vpop.f32.mrb[0].mxu0
  %v170 = vadd.f32 %v70, %v169
  %v171 = vpop.f32.mrb[0].mxu0
  %v172 = vpop.f32.mrb[0].mxu0
  %v173 = vadd.f32 %v70, %v172
  %v174 = vpop.f32.mrb[0].mxu0
  %175 = vmatprep.mubr.bf16.mxu0 0
  %176 = vmatmul.mubr.bf16.gmra.mrb[0].mxu0 %v86
  %v177 = vpop.f32.mrb[0].mxu0
  %v178 = vadd.f32 %v70, %v177
  %v179 = vpop.f32.mrb[0].mxu0
  %v180 = vpop.f32.mrb[0].mxu0
  %v181 = vadd.f32 %v70, %v180
  %v182 = vpop.f32.mrb[0].mxu0
  %183 = vmatprep.mubr.bf16.mxu0 0
  %184 = vmatmul.mubr.bf16.gmra.mrb[0].mxu0 %v89
  %v185 = vpop.f32.mrb[0].mxu0
  %v186 = vadd.f32 %v70, %v185
  %v187 = vpop.f32.mrb[0].mxu0
  %v188 = vpop.f32.mrb[0].mxu0
  %v189 = vadd.f32 %v70, %v188
  %v190 = vpop.f32.mrb[0].mxu0
  %191 = vmatprep.mubr.bf16.mxu0 0
  %192 = vmatmul.mubr.bf16.gmra.mrb[0].mxu0 %v92
  %v193 = vpop.f32.mrb[0].mxu0
  %v194 = vadd.f32 %v70, %v193
  %v195 = vpop.f32.mrb[0].mxu0
  %v196 = vpop.f32.mrb[0].mxu0
  %v197 = vadd.f32 %v70, %v196
  %v198 = vpop.f32.mrb[0].mxu0
  %199 = vmatprep.mubr.bf16.mxu0 0
  %200 = vmatmul.mubr.bf16.gmra.mrb[0].mxu0 %v95
  %v201 = vpop.f32.mrb[0].mxu0
  %v202 = vadd.f32 %v70, %v201
  %v203 = vpop.f32.mrb[0].mxu0
  %v204 = vpop.f32.mrb[0].mxu0
  %v205 = vadd.f32 %v70, %v204
  %v206 = vpop.f32.mrb[0].mxu0
  %207 = vmatprep.mubr.bf16.mxu0 0
  %208 = vmatmul.mubr.bf16.gmra.mrb[0].mxu0 %v98
  %v209 = vpop.f32.mrb[0].mxu0
  %v210 = vadd.f32 %v70, %v209
  %v211 = vpop.f32.mrb[0].mxu0
  %v212 = vpop.f32.mrb[0].mxu0
  %v213 = vadd.f32 %v70, %v212
  %v214 = vpop.f32.mrb[0].mxu0
  %215 = vmatprep.mubr.bf16.mxu0 0
  %216 = vmatmul.mubr.bf16.gmra.mrb[0].mxu0 %v101
  %v217 = vpop.f32.mrb[0].mxu0
  %v218 = vadd.f32 %v70, %v217
  %v219 = vpop.f32.mrb[0].mxu0
  %v220 = vpop.f32.mrb[0].mxu0
  %v221 = vadd.f32 %v70, %v220
  %v222 = vpop.f32.mrb[0].mxu0
  %223 = vmatprep.mubr.bf16.mxu0 0
  %224 = vmatmul.mubr.bf16.gmra.mrb[0].mxu0 %v104
  %v225 = vpop.f32.mrb[0].mxu0
  %v226 = vadd.f32 %v70, %v225
  %v227 = vpop.f32.mrb[0].mxu0
  %v228 = vpop.f32.mrb[0].mxu0
  %v229 = vadd.f32 %v70, %v228
  %v230 = vpop.f32.mrb[0].mxu0
  %231 = vmatprep.mubr.bf16.mxu0 0
  %232 = vmatmul.mubr.bf16.gmra.mrb[0].mxu0 %v107
  %v233 = vpop.f32.mrb[0].mxu0
  %v234 = vadd.f32 %v70, %v233
  %v235 = vpop.f32.mrb[0].mxu0
  %v236 = vpop.f32.mrb[0].mxu0
  %v237 = vadd.f32 %v70, %v236
  %v238 = vpop.f32.mrb[0].mxu0
  %239 = vmatprep.mubr.bf16.mxu0 0
  %240 = vmatmul.mubr.bf16.gmra.mrb[0].mxu0 %v110
  %v241 = vpop.f32.mrb[0].mxu0
  %v242 = vadd.f32 %v70, %v241
  %v243 = vpop.f32.mrb[0].mxu0
  %v244 = vpop.f32.mrb[0].mxu0
  %v245 = vadd.f32 %v70, %v244
  %v246 = vpop.f32.mrb[0].mxu0
  %247 = vmatprep.mubr.bf16.mxu0 0
  %248 = vmatmul.mubr.bf16.gmra.mrb[0].mxu0 %v113
  %v249 = vpop.f32.mrb[0].mxu0
  %v250 = vadd.f32 %v70, %v249
  %v251 = vpop.f32.mrb[0].mxu0
  %v252 = vpop.f32.mrb[0].mxu0
  %v253 = vadd.f32 %v70, %v252
  %v254 = vpop.f32.mrb[0].mxu0
  %255 = vmatprep.mubr.bf16.mxu0 0
  %256 = vmatmul.mubr.bf16.gmra.mrb[0].mxu0 %v116
  %v257 = vpop.f32.mrb[0].mxu0
  %v258 = vadd.f32 %v70, %v257
  %v259 = vpop.f32.mrb[0].mxu0
  %v260 = vpop.f32.mrb[0].mxu0
  %v261 = vadd.f32 %v70, %v260
  %v262 = vpop.f32.mrb[0].mxu0
  %263 = vmatprep.mubr.bf16.mxu0 0
  %264 = vmatmul.mubr.bf16.gmra.mrb[0].mxu0 %v119
  %v265 = vpop.f32.mrb[0].mxu0
  %v266 = vadd.f32 %v70, %v265
  %v267 = vpop.f32.mrb[0].mxu0
  %v268 = vpop.f32.mrb[0].mxu0
  %v269 = vadd.f32 %v70, %v268
  %v270 = vpop.f32.mrb[0].mxu0
  %271 = vmatprep.mubr.bf16.mxu0 0
  %272 = vmatmul.mubr.bf16.gmra.mrb[0].mxu0 %v122
  %v273 = vpop.f32.mrb[0].mxu0
  %v274 = vadd.f32 %v70, %v273
  %v275 = vpop.f32.mrb[0].mxu0
  %v276 = vpop.f32.mrb[0].mxu0
  %v277 = vadd.f32 %v70, %v276
  %v278 = vpop.f32.mrb[0].mxu0
  %279 = vmatprep.mubr.bf16.mxu0 0
  %280 = vmatmul.mubr.bf16.gmra.mrb[0].mxu0 %v125
  %v281 = vpop.f32.mrb[0].mxu0
  %v282 = vadd.f32 %v70, %v281
  %v283 = vpop.f32.mrb[0].mxu0
  %v284 = vpop.f32.mrb[0].mxu0
  %v285 = vadd.f32 %v70, %v284
  %v286 = vpop.f32.mrb[0].mxu0
  %287 = vdwg.mxu0
  %288 = vst.msk [vmem:[%s3] sm:$0xff] %vm78, %v162
  %289 = vst.msk [vmem:[%s3 + $0x8] sm:$0xff] %vm78, %v165
  %290 = vst.msk [vmem:[%s3 + $0x10] sm:$0xff] %vm78, %v170
  %291 = vst.msk [vmem:[%s3 + $0x18] sm:$0xff] %vm78, %v173
  %292 = vst.msk [vmem:[%s3 + $0x20] sm:$0xff] %vm78, %v178
  %293 = vst.msk [vmem:[%s3 + $0x28] sm:$0xff] %vm78, %v181
  %294 = vst.msk [vmem:[%s3 + $0x30] sm:$0xff] %vm78, %v186
  %295 = vst.msk [vmem:[%s3 + $0x38] sm:$0xff] %vm78, %v189
  %296 = vst.msk [vmem:[%s3 + $0x40] sm:$0xff] %vm78, %v194
  %297 = vst.msk [vmem:[%s3 + $0x48] sm:$0xff] %vm78, %v197
  %298 = vst.msk [vmem:[%s3 + $0x50] sm:$0xff] %vm78, %v202
  %299 = vst.msk [vmem:[%s3 + $0x58] sm:$0xff] %vm78, %v205
  %300 = vst.msk [vmem:[%s3 + $0x60] sm:$0xff] %vm78, %v210
  %301 = vst.msk [vmem:[%s3 + $0x68] sm:$0xff] %vm78, %v213
  %302 = vst.msk [vmem:[%s3 + $0x70] sm:$0xff] %vm78, %v218
  %303 = vst.msk [vmem:[%s3 + $0x78] sm:$0xff] %vm78, %v221
  %304 = vst.msk [vmem:[%s3 + $0x80] sm:$0xff] %vm78, %v226
  %305 = vst.msk [vmem:[%s3 + $0x88] sm:$0xff] %vm78, %v229
  %306 = vst.msk [vmem:[%s3 + $0x90] sm:$0xff] %vm78, %v234
  %307 = vst.msk [vmem:[%s3 + $0x98] sm:$0xff] %vm78, %v237
  %308 = vst.msk [vmem:[%s3 + $0xa0] sm:$0xff] %vm78, %v242
  %309 = vst.msk [vmem:[%s3 + $0xa8] sm:$0xff] %vm78, %v245
  %310 = vst.msk [vmem:[%s3 + $0xb0] sm:$0xff] %vm78, %v250
  %311 = vst.msk [vmem:[%s3 + $0xb8] sm:$0xff] %vm78, %v253
  %312 = vst.msk [vmem:[%s3 + $0xc0] sm:$0xff] %vm78, %v258
  %313 = vst.msk [vmem:[%s3 + $0xc8] sm:$0xff] %vm78, %v261
  %314 = vst.msk [vmem:[%s3 + $0xd0] sm:$0xff] %vm78, %v266
  %315 = vst.msk [vmem:[%s3 + $0xd8] sm:$0xff] %vm78, %v269
  %316 = vst.msk [vmem:[%s3 + $0xe0] sm:$0xff] %vm78, %v274
  %317 = vst.msk [vmem:[%s3 + $0xe8] sm:$0xff] %vm78, %v277
  %318 = vst.msk [vmem:[%s3 + $0xf0] sm:$0xff] %vm78, %v282
  %319 = vst.msk [vmem:[%s3 + $0xf8] sm:$0xff] %vm78, %v285
  // Predicated region
  $region14: #{backbone_forward.15} parent=0 // pred_check
    _
  $region15: #{backbone_forward.15} parent=0 // pred_check_branch
    %321 = sbr.rel (0) target = $region17
  $region16: #{backbone_forward.15} parent=0 // pred_region
    _
  $region17: #{backbone_forward.15} parent=0 // pred_fallthru
    _
  // Predicated region
  $region18: #{backbone_forward.15} parent=0 // pred_check
    _
  $region19: #{backbone_forward.15} parent=0 // pred_check_branch
    %323 = sbr.rel (0) target = $region21
  $region20: #{backbone_forward.15} parent=0 // pred_region
    _
  $region21: #{backbone_forward.15} parent=0 // pred_fallthru
    _

// kernel: backbone_forward.12
$region0: #{backbone_forward.12}
  #allocation0 [shape = 'u32[]', space=smem, size = 0x4, offset = 0x4, fixed_abs, tag = 'smem constant byte address 0x4 - core index']
  #allocation1 [shape = 'u32[144,128]{1,0:T(1,128)}', space=vmem, size = 0x12000, scoped, tag = 'internal scratch']
  %s0 = inlined_call_operand.vmem [shape: f32[128,6], index: 0, kind: input, shape index: {}]
  %s1 = inlined_call_operand.vmem [shape: bf16[6,16], index: 1, kind: input, shape index: {}]
  %s2 = inlined_call_operand.vmem [shape: f32[1,16], index: 2, kind: input, shape index: {}]
  %s3 = inlined_call_operand.vmem [shape: f32[128,16], index: 3, kind: output, shape index: {}]
  %s4 = sld [smem:[#allocation0]]
  $region22: #{backbone_forward.12} parent=0
    _
  %s6 = ssub.s32 1, %s4
  %s7 = scalar_select 0, %s6, %s4
  // Predicated region
  $region2: #{backbone_forward.12} parent=0 // pred_check
    _
  $region3: #{backbone_forward.12} parent=0 // pred_check_branch
    %9 = sbr.rel (0) target = $region5
  $region4: #{backbone_forward.12} parent=0 // pred_region
    _
  $region5: #{backbone_forward.12} parent=0 // pred_fallthru
    _
  // Predicated region
  $region6: #{backbone_forward.12} parent=0 // pred_check
    _
  $region7: #{backbone_forward.12} parent=0 // pred_check_branch
    %11 = sbr.rel (0) target = $region9
  $region8: #{backbone_forward.12} parent=0 // pred_region
    _
  $region9: #{backbone_forward.12} parent=0 // pred_fallthru
    _
  // Predicated region
  $region10: #{backbone_forward.12} parent=0 // pred_check
    _
  $region11: #{backbone_forward.12} parent=0 // pred_check_branch
    %13 = sbr.rel (0) target = $region13
  $region12: #{backbone_forward.12} parent=0 // pred_region
    _
  $region13: #{backbone_forward.12} parent=0 // pred_fallthru
    _
  %v15 = vld [vmem:[%s0] sm:$0xff]
  %v16 = vld [vmem:[%s0 + $0x8] sm:$0xff]
  %v17 = vld [vmem:[%s0 + $0x10] sm:$0xff]
  %v18 = vld [vmem:[%s0 + $0x18] sm:$0xff]
  %v19 = vld [vmem:[%s0 + $0x20] sm:$0xff]
  %v20 = vld [vmem:[%s0 + $0x28] sm:$0xff]
  %v21 = vld [vmem:[%s0 + $0x30] sm:$0xff]
  %v22 = vld [vmem:[%s0 + $0x38] sm:$0xff]
  %v23 = vld [vmem:[%s0 + $0x40] sm:$0xff]
  %v24 = vld [vmem:[%s0 + $0x48] sm:$0xff]
  %v25 = vld [vmem:[%s0 + $0x50] sm:$0xff]
  %v26 = vld [vmem:[%s0 + $0x58] sm:$0xff]
  %v27 = vld [vmem:[%s0 + $0x60] sm:$0xff]
  %v28 = vld [vmem:[%s0 + $0x68] sm:$0xff]
  %v29 = vld [vmem:[%s0 + $0x70] sm:$0xff]
  %v30 = vld [vmem:[%s0 + $0x78] sm:$0xff]
  %v31 = vpack.c.bf16 %v16, %v15
  %v32 = vpack.c.bf16 %v18, %v17
  %v33 = vpack.c.bf16 %v20, %v19
  %v34 = vpack.c.bf16 %v22, %v21
  %v35 = vpack.c.bf16 %v24, %v23
  %v36 = vpack.c.bf16 %v26, %v25
  %v37 = vpack.c.bf16 %v28, %v27
  %v38 = vpack.c.bf16 %v30, %v29
  %v39 = vld [vmem:[%s1] sm:$0x7]
  %v40 = vld [vmem:[%s2] sm:$0x1]
  %v42 = vlaneseq
  %v43 = vshrl.u32 %v42, 7
  %v44 = vsub.s32 0, %v43
  %v45 = vrot.slane %v40, %v44
  %vm47 = vcmask 48128
  %v49 = vsel %vm47, %v31, 0
  %v52 = vsel %vm47, %v32, 0
  %v55 = vsel %vm47, %v33, 0
  %v58 = vsel %vm47, %v34, 0
  %v61 = vsel %vm47, %v35, 0
  %v64 = vsel %vm47, %v36, 0
  %v67 = vsel %vm47, %v37, 0
  %v70 = vsel %vm47, %v38, 0
  %vm72 = vcmask 1042432
  %v74 = vsel %vm72, %v39, 0
  %76 = vmatprep.subr.bf16.mxu0 0
  %77 = vmatpush1.bf16.msra.mxu0 %v74
  %78 = vmatprep.subr.bf16.mxu0 0
  %79 = vmatpush1.bf16.msra.mxu0 0
  %80 = vmatprep.subr.bf16.mxu0 0
  %81 = vmatpush1.bf16.msra.mxu0 0
  %82 = vmatprep.subr.bf16.mxu0 0
  %83 = vmatpush1.bf16.msra.mxu0 0
  %84 = vmatprep.subr.bf16.mxu0 0
  %85 = vmatpush1.bf16.msra.mxu0 0
  %86 = vmatprep.subr.bf16.mxu0 0
  %87 = vmatpush1.bf16.msra.mxu0 0
  %88 = vmatprep.subr.bf16.mxu0 0
  %89 = vmatpush1.bf16.msra.mxu0 0
  %90 = vmatprep.subr.bf16.mxu0 0
  %91 = vmatpush1.bf16.msra.mxu0 0
  %92 = vmatprep.subr.bf16.mxu0 0
  %93 = vmatpush1.bf16.msra.mxu0 0
  %94 = vmatprep.subr.bf16.mxu0 0
  %95 = vmatpush1.bf16.msra.mxu0 0
  %96 = vmatprep.subr.bf16.mxu0 0
  %97 = vmatpush1.bf16.msra.mxu0 0
  %98 = vmatprep.subr.bf16.mxu0 0
  %99 = vmatpush1.bf16.msra.mxu0 0
  %100 = vmatprep.subr.bf16.mxu0 0
  %101 = vmatpush1.bf16.msra.mxu0 0
  %102 = vmatprep.subr.bf16.mxu0 0
  %103 = vmatpush1.bf16.msra.mxu0 0
  %104 = vmatprep.subr.bf16.mxu0 0
  %105 = vmatpush1.bf16.msra.mxu0 0
  %106 = vmatprep.subr.bf16.mxu0 0
  %107 = vmatpush1.bf16.msra.mxu0 0
  %108 = vmatprep.mubr.bf16.mxu0 0
  %109 = vmatmul.mubr.bf16.gmra.mrb[0].mxu0 %v49
  %v110 = vpop.f32.mrb[0].mxu0
  %v111 = vadd.f32 %v45, %v110
  %v112 = vpop.f32.mrb[0].mxu0
  %v113 = vpop.f32.mrb[0].mxu0
  %v114 = vadd.f32 %v45, %v113
  %v115 = vpop.f32.mrb[0].mxu0
  %116 = vmatprep.mubr.bf16.mxu0 0
  %117 = vmatmul.mubr.bf16.gmra.mrb[0].mxu0 %v52
  %v118 = vpop.f32.mrb[0].mxu0
  %v119 = vadd.f32 %v45, %v118
  %v120 = vpop.f32.mrb[0].mxu0
  %v121 = vpop.f32.mrb[0].mxu0
  %v122 = vadd.f32 %v45, %v121
  %v123 = vpop.f32.mrb[0].mxu0
  %124 = vmatprep.mubr.bf16.mxu0 0
  %125 = vmatmul.mubr.bf16.gmra.mrb[0].mxu0 %v55
  %v126 = vpop.f32.mrb[0].mxu0
  %v127 = vadd.f32 %v45, %v126
  %v128 = vpop.f32.mrb[0].mxu0
  %v129 = vpop.f32.mrb[0].mxu0
  %v130 = vadd.f32 %v45, %v129
  %v131 = vpop.f32.mrb[0].mxu0
  %132 = vmatprep.mubr.bf16.mxu0 0
  %133 = vmatmul.mubr.bf16.gmra.mrb[0].mxu0 %v58
  %v134 = vpop.f32.mrb[0].mxu0
  %v135 = vadd.f32 %v45, %v134
  %v136 = vpop.f32.mrb[0].mxu0
  %v137 = vpop.f32.mrb[0].mxu0
  %v138 = vadd.f32 %v45, %v137
  %v139 = vpop.f32.mrb[0].mxu0
  %140 = vmatprep.mubr.bf16.mxu0 0
  %141 = vmatmul.mubr.bf16.gmra.mrb[0].mxu0 %v61
  %v142 = vpop.f32.mrb[0].mxu0
  %v143 = vadd.f32 %v45, %v142
  %v144 = vpop.f32.mrb[0].mxu0
  %v145 = vpop.f32.mrb[0].mxu0
  %v146 = vadd.f32 %v45, %v145
  %v147 = vpop.f32.mrb[0].mxu0
  %148 = vmatprep.mubr.bf16.mxu0 0
  %149 = vmatmul.mubr.bf16.gmra.mrb[0].mxu0 %v64
  %v150 = vpop.f32.mrb[0].mxu0
  %v151 = vadd.f32 %v45, %v150
  %v152 = vpop.f32.mrb[0].mxu0
  %v153 = vpop.f32.mrb[0].mxu0
  %v154 = vadd.f32 %v45, %v153
  %v155 = vpop.f32.mrb[0].mxu0
  %156 = vmatprep.mubr.bf16.mxu0 0
  %157 = vmatmul.mubr.bf16.gmra.mrb[0].mxu0 %v67
  %v158 = vpop.f32.mrb[0].mxu0
  %v159 = vadd.f32 %v45, %v158
  %v160 = vpop.f32.mrb[0].mxu0
  %v161 = vpop.f32.mrb[0].mxu0
  %v162 = vadd.f32 %v45, %v161
  %v163 = vpop.f32.mrb[0].mxu0
  %164 = vmatprep.mubr.bf16.mxu0 0
  %165 = vmatmul.mubr.bf16.gmra.mrb[0].mxu0 %v70
  %v166 = vpop.f32.mrb[0].mxu0
  %v167 = vadd.f32 %v45, %v166
  %v168 = vpop.f32.mrb[0].mxu0
  %v169 = vpop.f32.mrb[0].mxu0
  %v170 = vadd.f32 %v45, %v169
  %v171 = vpop.f32.mrb[0].mxu0
  %172 = vdwg.mxu0
  %vm173 = vcmask 130048
  %174 = vst.msk [vmem:[%s3] sm:$0xff] %vm173, %v111
  %175 = vst.msk [vmem:[%s3 + $0x8] sm:$0xff] %vm173, %v114
  %176 = vst.msk [vmem:[%s3 + $0x10] sm:$0xff] %vm173, %v119
  %177 = vst.msk [vmem:[%s3 + $0x18] sm:$0xff] %vm173, %v122
  %178 = vst.msk [vmem:[%s3 + $0x20] sm:$0xff] %vm173, %v127
  %179 = vst.msk [vmem:[%s3 + $0x28] sm:$0xff] %vm173, %v130
  %180 = vst.msk [vmem:[%s3 + $0x30] sm:$0xff] %vm173, %v135
  %181 = vst.msk [vmem:[%s3 + $0x38] sm:$0xff] %vm173, %v138
  %182 = vst.msk [vmem:[%s3 + $0x40] sm:$0xff] %vm173, %v143
  %183 = vst.msk [vmem:[%s3 + $0x48] sm:$0xff] %vm173, %v146
  %184 = vst.msk [vmem:[%s3 + $0x50] sm:$0xff] %vm173, %v151
  %185 = vst.msk [vmem:[%s3 + $0x58] sm:$0xff] %vm173, %v154
  %186 = vst.msk [vmem:[%s3 + $0x60] sm:$0xff] %vm173, %v159
  %187 = vst.msk [vmem:[%s3 + $0x68] sm:$0xff] %vm173, %v162
  %188 = vst.msk [vmem:[%s3 + $0x70] sm:$0xff] %vm173, %v167
  %189 = vst.msk [vmem:[%s3 + $0x78] sm:$0xff] %vm173, %v170
  // Predicated region
  $region14: #{backbone_forward.12} parent=0 // pred_check
    _
  $region15: #{backbone_forward.12} parent=0 // pred_check_branch
    %191 = sbr.rel (0) target = $region17
  $region16: #{backbone_forward.12} parent=0 // pred_region
    _
  $region17: #{backbone_forward.12} parent=0 // pred_fallthru
    _
  // Predicated region
  $region18: #{backbone_forward.12} parent=0 // pred_check
    _
  $region19: #{backbone_forward.12} parent=0 // pred_check_branch
    %193 = sbr.rel (0) target = $region21
  $region20: #{backbone_forward.12} parent=0 // pred_region
    _
  $region21: #{backbone_forward.12} parent=0 // pred_fallthru
    _

// kernel: backbone_forward.17
$region0: #{backbone_forward.17}
  #allocation0 [shape = 'u32[]', space=smem, size = 0x4, offset = 0x4, fixed_abs, tag = 'smem constant byte address 0x4 - core index']
  #allocation1 [shape = 'u32[144,128]{1,0:T(1,128)}', space=vmem, size = 0x12000, scoped, tag = 'internal scratch']
  %s0 = inlined_call_operand.vmem [shape: f32[128,16], index: 0, kind: input, shape index: {}]
  %s1 = inlined_call_operand.vmem [shape: bf16[16,64], index: 1, kind: input, shape index: {}]
  %s2 = inlined_call_operand.vmem [shape: f32[1,64], index: 2, kind: input, shape index: {}]
  %s3 = inlined_call_operand.vmem [shape: f32[128,64], index: 3, kind: output, shape index: {}]
  %s4 = sld [smem:[#allocation0]]
  $region22: #{backbone_forward.17} parent=0
    _
  %s6 = ssub.s32 1, %s4
  %s7 = scalar_select 0, %s6, %s4
  // Predicated region
  $region2: #{backbone_forward.17} parent=0 // pred_check
    _
  $region3: #{backbone_forward.17} parent=0 // pred_check_branch
    %9 = sbr.rel (0) target = $region5
  $region4: #{backbone_forward.17} parent=0 // pred_region
    _
  $region5: #{backbone_forward.17} parent=0 // pred_fallthru
    _
  // Predicated region
  $region6: #{backbone_forward.17} parent=0 // pred_check
    _
  $region7: #{backbone_forward.17} parent=0 // pred_check_branch
    %11 = sbr.rel (0) target = $region9
  $region8: #{backbone_forward.17} parent=0 // pred_region
    _
  $region9: #{backbone_forward.17} parent=0 // pred_fallthru
    _
  // Predicated region
  $region10: #{backbone_forward.17} parent=0 // pred_check
    _
  $region11: #{backbone_forward.17} parent=0 // pred_check_branch
    %13 = sbr.rel (0) target = $region13
  $region12: #{backbone_forward.17} parent=0 // pred_region
    _
  $region13: #{backbone_forward.17} parent=0 // pred_fallthru
    _
  %v15 = vld [vmem:[%s0] sm:$0xff]
  %v16 = vld [vmem:[%s0 + $0x8] sm:$0xff]
  %v17 = vld [vmem:[%s0 + $0x10] sm:$0xff]
  %v18 = vld [vmem:[%s0 + $0x18] sm:$0xff]
  %v19 = vld [vmem:[%s0 + $0x20] sm:$0xff]
  %v20 = vld [vmem:[%s0 + $0x28] sm:$0xff]
  %v21 = vld [vmem:[%s0 + $0x30] sm:$0xff]
  %v22 = vld [vmem:[%s0 + $0x38] sm:$0xff]
  %v23 = vld [vmem:[%s0 + $0x40] sm:$0xff]
  %v24 = vld [vmem:[%s0 + $0x48] sm:$0xff]
  %v25 = vld [vmem:[%s0 + $0x50] sm:$0xff]
  %v26 = vld [vmem:[%s0 + $0x58] sm:$0xff]
  %v27 = vld [vmem:[%s0 + $0x60] sm:$0xff]
  %v28 = vld [vmem:[%s0 + $0x68] sm:$0xff]
  %v29 = vld [vmem:[%s0 + $0x70] sm:$0xff]
  %v30 = vld [vmem:[%s0 + $0x78] sm:$0xff]
  %vm31 = vcmp.ge.f32.partialorder %v15, 0.0
  %vm32 = vcmp.ge.f32.partialorder %v16, 0.0
  %vm33 = vcmp.ge.f32.partialorder %v17, 0.0
  %vm34 = vcmp.ge.f32.partialorder %v18, 0.0
  %vm35 = vcmp.ge.f32.partialorder %v19, 0.0
  %vm36 = vcmp.ge.f32.partialorder %v20, 0.0
  %vm37 = vcmp.ge.f32.partialorder %v21, 0.0
  %vm38 = vcmp.ge.f32.partialorder %v22, 0.0
  %vm39 = vcmp.ge.f32.partialorder %v23, 0.0
  %vm40 = vcmp.ge.f32.partialorder %v24, 0.0
  %vm41 = vcmp.ge.f32.partialorder %v25, 0.0
  %vm42 = vcmp.ge.f32.partialorder %v26, 0.0
  %vm43 = vcmp.ge.f32.partialorder %v27, 0.0
  %vm44 = vcmp.ge.f32.partialorder %v28, 0.0
  %vm45 = vcmp.ge.f32.partialorder %v29, 0.0
  %vm46 = vcmp.ge.f32.partialorder %v30, 0.0
  %v47 = vmul.f32 %v15, 0.01
  %v48 = vmul.f32 %v16, 0.01
  %v49 = vmul.f32 %v17, 0.01
  %v50 = vmul.f32 %v18, 0.01
  %v51 = vmul.f32 %v19, 0.01
  %v52 = vmul.f32 %v20, 0.01
  %v53 = vmul.f32 %v21, 0.01
  %v54 = vmul.f32 %v22, 0.01
  %v55 = vmul.f32 %v23, 0.01
  %v56 = vmul.f32 %v24, 0.01
  %v57 = vmul.f32 %v25, 0.01
  %v58 = vmul.f32 %v26, 0.01
  %v59 = vmul.f32 %v27, 0.01
  %v60 = vmul.f32 %v28, 0.01
  %v61 = vmul.f32 %v29, 0.01
  %v62 = vmul.f32 %v30, 0.01
  %v63 = vsel %vm31, %v15, %v47
  %v64 = vsel %vm32, %v16, %v48
  %v65 = vsel %vm33, %v17, %v49
  %v66 = vsel %vm34, %v18, %v50
  %v67 = vsel %vm35, %v19, %v51
  %v68 = vsel %vm36, %v20, %v52
  %v69 = vsel %vm37, %v21, %v53
  %v70 = vsel %vm38, %v22, %v54
  %v71 = vsel %vm39, %v23, %v55
  %v72 = vsel %vm40, %v24, %v56
  %v73 = vsel %vm41, %v25, %v57
  %v74 = vsel %vm42, %v26, %v58
  %v75 = vsel %vm43, %v27, %v59
  %v76 = vsel %vm44, %v28, %v60
  %v77 = vsel %vm45, %v29, %v61
  %v78 = vsel %vm46, %v30, %v62
  %v79 = vpack.c.bf16 %v64, %v63
  %v80 = vpack.c.bf16 %v66, %v65
  %v81 = vpack.c.bf16 %v68, %v67
  %v82 = vpack.c.bf16 %v70, %v69
  %v83 = vpack.c.bf16 %v72, %v71
  %v84 = vpack.c.bf16 %v74, %v73
  %v85 = vpack.c.bf16 %v76, %v75
  %v86 = vpack.c.bf16 %v78, %v77
  %v87 = vld [vmem:[%s1] sm:$0xf]
  %v88 = vld [vmem:[%s1 + $0x4] sm:$0xf]
  %v89 = vld [vmem:[%s2] sm:$0x1]
  %v91 = vlaneseq
  %v92 = vshrl.u32 %v91, 7
  %v93 = vsub.s32 0, %v92
  %v94 = vrot.slane %v89, %v93
  %v98 = vunpack.c.l.b16 %v87
  %v99 = vunpack.c.l.b16 %v88
  %v100 = vpack.c.b16 %v99, %v98
  %vm102 = vcmask 130048
  %v104 = vsel %vm102, %v79, 0
  %v107 = vsel %vm102, %v80, 0
  %v110 = vsel %vm102, %v81, 0
  %v113 = vsel %vm102, %v82, 0
  %v116 = vsel %vm102, %v83, 0
  %v119 = vsel %vm102, %v84, 0
  %v122 = vsel %vm102, %v85, 0
  %v125 = vsel %vm102, %v86, 0
  %127 = vmatprep.subr.bf16.mxu0 0
  %128 = vmatpush1.bf16.msra.mxu0 %v100
  %129 = vmatprep.subr.bf16.mxu0 0
  %130 = vmatpush1.bf16.msra.mxu0 0
  %131 = vmatprep.subr.bf16.mxu0 0
  %132 = vmatpush1.bf16.msra.mxu0 0
  %133 = vmatprep.subr.bf16.mxu0 0
  %134 = vmatpush1.bf16.msra.mxu0 0
  %135 = vmatprep.subr.bf16.mxu0 0
  %136 = vmatpush1.bf16.msra.mxu0 0
  %137 = vmatprep.subr.bf16.mxu0 0
  %138 = vmatpush1.bf16.msra.mxu0 0
  %139 = vmatprep.subr.bf16.mxu0 0
  %140 = vmatpush1.bf16.msra.mxu0 0
  %141 = vmatprep.subr.bf16.mxu0 0
  %142 = vmatpush1.bf16.msra.mxu0 0
  %143 = vmatprep.subr.bf16.mxu0 0
  %144 = vmatpush1.bf16.msra.mxu0 0
  %145 = vmatprep.subr.bf16.mxu0 0
  %146 = vmatpush1.bf16.msra.mxu0 0
  %147 = vmatprep.subr.bf16.mxu0 0
  %148 = vmatpush1.bf16.msra.mxu0 0
  %149 = vmatprep.subr.bf16.mxu0 0
  %150 = vmatpush1.bf16.msra.mxu0 0
  %151 = vmatprep.subr.bf16.mxu0 0
  %152 = vmatpush1.bf16.msra.mxu0 0
  %153 = vmatprep.subr.bf16.mxu0 0
  %154 = vmatpush1.bf16.msra.mxu0 0
  %155 = vmatprep.subr.bf16.mxu0 0
  %156 = vmatpush1.bf16.msra.mxu0 0
  %157 = vmatprep.subr.bf16.mxu0 0
  %158 = vmatpush1.bf16.msra.mxu0 0
  %159 = vmatprep.mubr.bf16.mxu0 0
  %160 = vmatmul.mubr.bf16.gmra.mrb[0].mxu0 %v104
  %v161 = vpop.f32.mrb[0].mxu0
  %v162 = vadd.f32 %v94, %v161
  %v163 = vpop.f32.mrb[0].mxu0
  %v164 = vpop.f32.mrb[0].mxu0
  %v165 = vadd.f32 %v94, %v164
  %v166 = vpop.f32.mrb[0].mxu0
  %167 = vmatprep.mubr.bf16.mxu0 0
  %168 = vmatmul.mubr.bf16.gmra.mrb[0].mxu0 %v107
  %v169 = vpop.f32.mrb[0].mxu0
  %v170 = vadd.f32 %v94, %v169
  %v171 = vpop.f32.mrb[0].mxu0
  %v172 = vpop.f32.mrb[0].mxu0
  %v173 = vadd.f32 %v94, %v172
  %v174 = vpop.f32.mrb[0].mxu0
  %175 = vmatprep.mubr.bf16.mxu0 0
  %176 = vmatmul.mubr.bf16.gmra.mrb[0].mxu0 %v110
  %v177 = vpop.f32.mrb[0].mxu0
  %v178 = vadd.f32 %v94, %v177
  %v179 = vpop.f32.mrb[0].mxu0
  %v180 = vpop.f32.mrb[0].mxu0
  %v181 = vadd.f32 %v94, %v180
  %v182 = vpop.f32.mrb[0].mxu0
  %183 = vmatprep.mubr.bf16.mxu0 0
  %184 = vmatmul.mubr.bf16.gmra.mrb[0].mxu0 %v113
  %v185 = vpop.f32.mrb[0].mxu0
  %v186 = vadd.f32 %v94, %v185
  %v187 = vpop.f32.mrb[0].mxu0
  %v188 = vpop.f32.mrb[0].mxu0
  %v189 = vadd.f32 %v94, %v188
  %v190 = vpop.f32.mrb[0].mxu0
  %191 = vmatprep.mubr.bf16.mxu0 0
  %192 = vmatmul.mubr.bf16.gmra.mrb[0].mxu0 %v116
  %v193 = vpop.f32.mrb[0].mxu0
  %v194 = vadd.f32 %v94, %v193
  %v195 = vpop.f32.mrb[0].mxu0
  %v196 = vpop.f32.mrb[0].mxu0
  %v197 = vadd.f32 %v94, %v196
  %v198 = vpop.f32.mrb[0].mxu0
  %199 = vmatprep.mubr.bf16.mxu0 0
  %200 = vmatmul.mubr.bf16.gmra.mrb[0].mxu0 %v119
  %v201 = vpop.f32.mrb[0].mxu0
  %v202 = vadd.f32 %v94, %v201
  %v203 = vpop.f32.mrb[0].mxu0
  %v204 = vpop.f32.mrb[0].mxu0
  %v205 = vadd.f32 %v94, %v204
  %v206 = vpop.f32.mrb[0].mxu0
  %207 = vmatprep.mubr.bf16.mxu0 0
  %208 = vmatmul.mubr.bf16.gmra.mrb[0].mxu0 %v122
  %v209 = vpop.f32.mrb[0].mxu0
  %v210 = vadd.f32 %v94, %v209
  %v211 = vpop.f32.mrb[0].mxu0
  %v212 = vpop.f32.mrb[0].mxu0
  %v213 = vadd.f32 %v94, %v212
  %v214 = vpop.f32.mrb[0].mxu0
  %215 = vmatprep.mubr.bf16.mxu0 0
  %216 = vmatmul.mubr.bf16.gmra.mrb[0].mxu0 %v125
  %v217 = vpop.f32.mrb[0].mxu0
  %v218 = vadd.f32 %v94, %v217
  %v219 = vpop.f32.mrb[0].mxu0
  %v220 = vpop.f32.mrb[0].mxu0
  %v221 = vadd.f32 %v94, %v220
  %v222 = vpop.f32.mrb[0].mxu0
  %223 = vdwg.mxu0
  %vm224 = vcmask 523264
  %225 = vst.msk [vmem:[%s3] sm:$0xff] %vm224, %v162
  %226 = vst.msk [vmem:[%s3 + $0x8] sm:$0xff] %vm224, %v165
  %227 = vst.msk [vmem:[%s3 + $0x10] sm:$0xff] %vm224, %v170
  %228 = vst.msk [vmem:[%s3 + $0x18] sm:$0xff] %vm224, %v173
  %229 = vst.msk [vmem:[%s3 + $0x20] sm:$0xff] %vm224, %v178
  %230 = vst.msk [vmem:[%s3 + $0x28] sm:$0xff] %vm224, %v181
  %231 = vst.msk [vmem:[%s3 + $0x30] sm:$0xff] %vm224, %v186
  %232 = vst.msk [vmem:[%s3 + $0x38] sm:$0xff] %vm224, %v189
  %233 = vst.msk [vmem:[%s3 + $0x40] sm:$0xff] %vm224, %v194
  %234 = vst.msk [vmem:[%s3 + $0x48] sm:$0xff] %vm224, %v197
  %235 = vst.msk [vmem:[%s3 + $0x50] sm:$0xff] %vm224, %v202
  %236 = vst.msk [vmem:[%s3 + $0x58] sm:$0xff] %vm224, %v205
  %237 = vst.msk [vmem:[%s3 + $0x60] sm:$0xff] %vm224, %v210
  %238 = vst.msk [vmem:[%s3 + $0x68] sm:$0xff] %vm224, %v213
  %239 = vst.msk [vmem:[%s3 + $0x70] sm:$0xff] %vm224, %v218
  %240 = vst.msk [vmem:[%s3 + $0x78] sm:$0xff] %vm224, %v221
  // Predicated region
  $region14: #{backbone_forward.17} parent=0 // pred_check
    _
  $region15: #{backbone_forward.17} parent=0 // pred_check_branch
    %242 = sbr.rel (0) target = $region17
  $region16: #{backbone_forward.17} parent=0 // pred_region
    _
  $region17: #{backbone_forward.17} parent=0 // pred_fallthru
    _
  // Predicated region
  $region18: #{backbone_forward.17} parent=0 // pred_check
    _
  $region19: #{backbone_forward.17} parent=0 // pred_check_branch
    %244 = sbr.rel (0) target = $region21
  $region20: #{backbone_forward.17} parent=0 // pred_region
    _
  $region21: #{backbone_forward.17} parent=0 // pred_fallthru
    _

// kernel: backbone_forward.16
$region0: #{backbone_forward.16}
  #allocation0 [shape = 'u32[]', space=smem, size = 0x4, offset = 0x4, fixed_abs, tag = 'smem constant byte address 0x4 - core index']
  #allocation1 [shape = 'u32[144,128]{1,0:T(1,128)}', space=vmem, size = 0x12000, scoped, tag = 'internal scratch']
  #allocation2 [shape = 'f32[128,2]{1,0:T(8,128)}', space=vmem, size = 0x10000, scoped, tag = 'scratch operand']
  #allocation3 [shape = 'f32[128,2]{1,0:T(8,128)}', space=vmem, size = 0x10000, scoped, tag = 'scratch operand']
  #allocation4 [shape = 'f32[128,16]{1,0:T(8,128)}', space=vmem, size = 0x10000, scoped, tag = 'scratch operand']
  #allocation5 [shape = 's32[1]{0}', space=sflag, size = 0x4, scoped, tag = 'scoped memory for backbone_forward.16']
  #allocation6 [shape = 's32[1]{0:T(128)S(6)}', space=smem, size = 0x200, scoped, tag = 'prefetched SMEM operand 0']
  #allocation7 [shape = 's32[1]{0:T(128)S(6)}', space=smem, size = 0x200, scoped, tag = 'prefetched SMEM operand 1']
  %s0 = inlined_call_operand.<no memory space> [shape: s32[1], index: 0, kind: input, shape index: {}]
  %s1 = inlined_call_operand.<no memory space> [shape: s32[1], index: 1, kind: input, shape index: {}]
  %s2 = inlined_call_operand.vmem [shape: f32[128,64], index: 2, kind: input, shape index: {}]
  %s3 = inlined_call_operand.vmem [shape: bf16[256,16], index: 3, kind: input, shape index: {}]
  %s4 = inlined_call_operand.vmem [shape: bf16[256,16], index: 4, kind: input, shape index: {}]
  %s5 = inlined_call_operand.vmem [shape: s32[1,256], index: 5, kind: input, shape index: {}]
  %s6 = inlined_call_operand.vmem [shape: f32[128,16], index: 6, kind: output, shape index: {}]
  %s7 = sld [smem:[#allocation0]]
  $region38: #{backbone_forward.16} parent=0
    _
  %s9 = ssub.s32 1, %s7
  %s10 = scalar_select 0, %s9, %s7
  %11 = sst [smem:[#allocation6]] %s0
  %12 = sst [smem:[#allocation7]] %s1
  // Predicated region
  $region2: #{backbone_forward.16} parent=0 // pred_check
    _
  $region3: #{backbone_forward.16} parent=0 // pred_check_branch
    %14 = sbr.rel (0) target = $region5
  $region4: #{backbone_forward.16} parent=0 // pred_region
    _
  $region5: #{backbone_forward.16} parent=0 // pred_fallthru
    _
  // Predicated region
  $region6: #{backbone_forward.16} parent=0 // pred_check
    _
  $region7: #{backbone_forward.16} parent=0 // pred_check_branch
    %16 = sbr.rel (0) target = $region9
  $region8: #{backbone_forward.16} parent=0 // pred_region
    %s17 = sld [smem:[#allocation7]]
    %p18 = scmp.gt.s32.totalorder %s17, 0
    %s19 = sld [smem:[#allocation6]]
    %s20 = ssub.s32 %s17, 1
    %p21 = scmp.lt.s32.totalorder 0, %s20
    %s22 = scalar_select %p21, 0, %s20
    %s23 = sadd.s32 %s19, %s22
    %s24 = scalar_select %p18, %s23, 0
    %s25 = smul.u32 32, %s24
    %p26 = scmp.lt.s32.totalorder %s25, 31
    %s27 = scalar_select %p26, %s25, 31
    %s28 = smul.addr %s27, 4
    %s29 = scalar_lea.vmem %s3, %s28
    %s30 = sld [smem:[#allocation7]]
    %p31 = scmp.gt.s32.totalorder %s30, 0
    %s32 = sld [smem:[#allocation6]]
    %s33 = ssub.s32 %s30, 1
    %p34 = scmp.lt.s32.totalorder 0, %s33
    %s35 = scalar_select %p34, 0, %s33
    %s36 = sadd.s32 %s32, %s35
    %s37 = scalar_select %p31, %s36, 0
    %s38 = smul.u32 32, %s37
  $region9: #{backbone_forward.16} parent=0 // pred_fallthru
    _
  // Predicated region
  $region10: #{backbone_forward.16} parent=0 // pred_check
    _
  $region11: #{backbone_forward.16} parent=0 // pred_check_branch
    %40 = sbr.rel (0) target = $region13
  $region12: #{backbone_forward.16} parent=0 // pred_region
    %s41 = sld [smem:[#allocation7]]
    %p42 = scmp.gt.s32.totalorder %s41, 0
    %s43 = sld [smem:[#allocation6]]
    %s44 = ssub.s32 %s41, 1
    %p45 = scmp.lt.s32.totalorder 0, %s44
    %s46 = scalar_select %p45, 0, %s44
    %s47 = sadd.s32 %s43, %s46
    %s48 = scalar_select %p42, %s47, 0
    %s49 = smul.u32 32, %s48
    %p50 = scmp.lt.s32.totalorder %s49, 31
    %s51 = scalar_select %p50, %s49, 31
    %s52 = smul.addr %s51, 4
    %s53 = scalar_lea.vmem %s4, %s52
    %s54 = sld [smem:[#allocation7]]
    %p55 = scmp.gt.s32.totalorder %s54, 0
    %s56 = sld [smem:[#allocation6]]
    %s57 = ssub.s32 %s54, 1
    %p58 = scmp.lt.s32.totalorder 0, %s57
    %s59 = scalar_select %p58, 0, %s57
    %s60 = sadd.s32 %s56, %s59
    %s61 = scalar_select %p55, %s60, 0
    %s62 = smul.u32 32, %s61
  $region13: #{backbone_forward.16} parent=0 // pred_fallthru
    _
  // Predicated region
  $region14: #{backbone_forward.16} parent=0 // pred_check
    _
  $region15: #{backbone_forward.16} parent=0 // pred_check_branch
    %64 = sbr.rel (0) target = $region17
  $region16: #{backbone_forward.16} parent=0 // pred_region
    %s65 = sld [smem:[#allocation7]]
    %p66 = scmp.gt.s32.totalorder %s65, 0
    %s67 = sld [smem:[#allocation6]]
    %s68 = ssub.s32 %s65, 1
    %p69 = scmp.lt.s32.totalorder 0, %s68
    %s70 = scalar_select %p69, 0, %s68
    %s71 = sadd.s32 %s67, %s70
    %s72 = scalar_select %p66, %s71, 0
    %s73 = smul.u32 2, %s72
    %p74 = scmp.lt.s32.totalorder %s73, 1
    %s75 = scalar_select %p74, %s73, 1
    %s76 = scalar_lea.vmem %s5, %s75
    %s77 = sld [smem:[#allocation7]]
    %p78 = scmp.gt.s32.totalorder %s77, 0
    %s79 = sld [smem:[#allocation6]]
    %s80 = ssub.s32 %s77, 1
    %p81 = scmp.lt.s32.totalorder 0, %s80
    %s82 = scalar_select %p81, 0, %s80
    %s83 = sadd.s32 %s79, %s82
    %s84 = scalar_select %p78, %s83, 0
    %s85 = smul.u32 2, %s84
  $region17: #{backbone_forward.16} parent=0 // pred_fallthru
    _
  %s86 = sld [smem:[#allocation7]]
  %p87 = scmp.gt.s32.totalorder %s86, 0
  %s88 = sld [smem:[#allocation6]]
  %s89 = ssub.s32 %s86, 1
  %p90 = scmp.lt.s32.totalorder 0, %s89
  %s91 = scalar_select %p90, 0, %s89
  %s92 = sadd.s32 %s88, %s91
  %s93 = scalar_select %p87, %s92, 0
  %s94 = smul.u32 32, %s93
  %p95 = scmp.lt.s32.totalorder %s94, 31
  %s96 = scalar_select %p95, %s94, 31
  %s97 = smul.addr %s96, 4
  %s98 = scalar_lea.vmem %s3, %s97
  %s99 = sld [smem:[#allocation7]]
  %p100 = scmp.gt.s32.totalorder %s99, 0
  %s101 = sld [smem:[#allocation6]]
  %s102 = ssub.s32 %s99, 1
  %p103 = scmp.lt.s32.totalorder 0, %s102
  %s104 = scalar_select %p103, 0, %s102
  %s105 = sadd.s32 %s101, %s104
  %s106 = scalar_select %p100, %s105, 0
  %s107 = smul.u32 32, %s106
  %p108 = scmp.lt.s32.totalorder %s107, 31
  %s109 = scalar_select %p108, %s107, 31
  %s110 = smul.addr %s109, 4
  %s111 = scalar_lea.vmem %s4, %s110
  %s112 = sld [smem:[#allocation7]]
  %p113 = scmp.gt.s32.totalorder %s112, 0
  %s114 = sld [smem:[#allocation6]]
  %s115 = ssub.s32 %s112, 1
  %p116 = scmp.lt.s32.totalorder 0, %s115
  %s117 = scalar_select %p116, 0, %s115
  %s118 = sadd.s32 %s114, %s117
  %s119 = scalar_select %p113, %s118, 0
  %s120 = smul.u32 2, %s119
  %p121 = scmp.lt.s32.totalorder %s120, 1
  %s122 = scalar_select %p121, %s120, 1
  %s123 = scalar_lea.vmem %s5, %s122
  %s124 = sld [smem:[#allocation7]]
  %p125 = scmp.gt.s32.totalorder %s124, 0
  %s126 = sld [smem:[#allocation6]]
  %s127 = ssub.s32 %s124, 1
  %p128 = scmp.lt.s32.totalorder 0, %s127
  %s129 = scalar_select %p128, 0, %s127
  %s130 = sadd.s32 %s126, %s129
  %s131 = scalar_select %p125, %s130, 0
  %s132 = smul.u32 32, %s131
  %p133 = scmp.lt.s32.totalorder %s132, 31
  %s134 = scalar_select %p133, %s132, 31
  %s135 = smul.addr %s134, 4
  %s136 = scalar_lea.vmem %s3, %s135
  %s137 = sld [smem:[#allocation7]]
  %p138 = scmp.gt.s32.totalorder %s137, 0
  %s139 = sld [smem:[#allocation6]]
  %s140 = ssub.s32 %s137, 1
  %p141 = scmp.lt.s32.totalorder 0, %s140
  %s142 = scalar_select %p141, 0, %s140
  %s143 = sadd.s32 %s139, %s142
  %s144 = scalar_select %p138, %s143, 0
  %s145 = smul.u32 32, %s144
  %s146 = sld [smem:[#allocation7]]
  %p147 = scmp.gt.s32.totalorder %s146, 0
  %s148 = sld [smem:[#allocation6]]
  %s149 = ssub.s32 %s146, 1
  %p150 = scmp.lt.s32.totalorder 0, %s149
  %s151 = scalar_select %p150, 0, %s149
  %s152 = sadd.s32 %s148, %s151
  %s153 = scalar_select %p147, %s152, 0
  %s154 = smul.u32 32, %s153
  %p155 = scmp.lt.s32.totalorder %s154, 31
  %s156 = scalar_select %p155, %s154, 31
  %s157 = smul.addr %s156, 4
  %s158 = scalar_lea.vmem %s4, %s157
  %s159 = sld [smem:[#allocation7]]
  %p160 = scmp.gt.s32.totalorder %s159, 0
  %s161 = sld [smem:[#allocation6]]
  %s162 = ssub.s32 %s159, 1
  %p163 = scmp.lt.s32.totalorder 0, %s162
  %s164 = scalar_select %p163, 0, %s162
  %s165 = sadd.s32 %s161, %s164
  %s166 = scalar_select %p160, %s165, 0
  %s167 = smul.u32 32, %s166
  %s168 = sld [smem:[#allocation7]]
  %p169 = scmp.gt.s32.totalorder %s168, 0
  %s170 = sld [smem:[#allocation6]]
  %s171 = ssub.s32 %s168, 1
  %p172 = scmp.lt.s32.totalorder 0, %s171
  %s173 = scalar_select %p172, 0, %s171
  %s174 = sadd.s32 %s170, %s173
  %s175 = scalar_select %p169, %s174, 0
  %s176 = smul.u32 2, %s175
  %p177 = scmp.lt.s32.totalorder %s176, 1
  %s178 = scalar_select %p177, %s176, 1
  %s179 = scalar_lea.vmem %s5, %s178
  %s180 = sld [smem:[#allocation7]]
  %p181 = scmp.gt.s32.totalorder %s180, 0
  %s182 = sld [smem:[#allocation6]]
  %s183 = ssub.s32 %s180, 1
  %p184 = scmp.lt.s32.totalorder 0, %s183
  %s185 = scalar_select %p184, 0, %s183
  %s186 = sadd.s32 %s182, %s185
  %s187 = scalar_select %p181, %s186, 0
  %s188 = smul.u32 2, %s187
  %p190 = scmp.eq.s32.totalorder 0, 0
  // Predicated region
  $region18: #{backbone_forward.16} parent=0 // pred_check
    %p191 = pneg %p190
  $region19: #{backbone_forward.16} parent=0 // pred_check_branch
    %193 = sbr.rel (%p191) target = $region21
  $region20: #{backbone_forward.16} parent=0 // pred_region
    %vm194 = vcmask 15360
    %195 = vst.msk [vmem:[#allocation2] sm:$0xff] %vm194, -1e+30
    %196 = vst.msk [vmem:[#allocation2 + $0x8] sm:$0xff] %vm194, -1e+30
    %197 = vst.msk [vmem:[#allocation2 + $0x10] sm:$0xff] %vm194, -1e+30
    %198 = vst.msk [vmem:[#allocation2 + $0x18] sm:$0xff] %vm194, -1e+30
    %199 = vst.msk [vmem:[#allocation2 + $0x20] sm:$0xff] %vm194, -1e+30
    %200 = vst.msk [vmem:[#allocation2 + $0x28] sm:$0xff] %vm194, -1e+30
    %201 = vst.msk [vmem:[#allocation2 + $0x30] sm:$0xff] %vm194, -1e+30
    %202 = vst.msk [vmem:[#allocation2 + $0x38] sm:$0xff] %vm194, -1e+30
    %203 = vst.msk [vmem:[#allocation2 + $0x40] sm:$0xff] %vm194, -1e+30
    %204 = vst.msk [vmem:[#allocation2 + $0x48] sm:$0xff] %vm194, -1e+30
    %205 = vst.msk [vmem:[#allocation2 + $0x50] sm:$0xff] %vm194, -1e+30
    %206 = vst.msk [vmem:[#allocation2 + $0x58] sm:$0xff] %vm194, -1e+30
    %207 = vst.msk [vmem:[#allocation2 + $0x60] sm:$0xff] %vm194, -1e+30
    %208 = vst.msk [vmem:[#allocation2 + $0x68] sm:$0xff] %vm194, -1e+30
    %209 = vst.msk [vmem:[#allocation2 + $0x70] sm:$0xff] %vm194, -1e+30
    %210 = vst.msk [vmem:[#allocation2 + $0x78] sm:$0xff] %vm194, -1e+30
    %211 = vst.msk [vmem:[#allocation3] sm:$0xff] %vm194, 0.0
    %212 = vst.msk [vmem:[#allocation3 + $0x8] sm:$0xff] %vm194, 0.0
    %213 = vst.msk [vmem:[#allocation3 + $0x10] sm:$0xff] %vm194, 0.0
    %214 = vst.msk [vmem:[#allocation3 + $0x18] sm:$0xff] %vm194, 0.0
    %215 = vst.msk [vmem:[#allocation3 + $0x20] sm:$0xff] %vm194, 0.0
    %216 = vst.msk [vmem:[#allocation3 + $0x28] sm:$0xff] %vm194, 0.0
    %217 = vst.msk [vmem:[#allocation3 + $0x30] sm:$0xff] %vm194, 0.0
    %218 = vst.msk [vmem:[#allocation3 + $0x38] sm:$0xff] %vm194, 0.0
    %219 = vst.msk [vmem:[#allocation3 + $0x40] sm:$0xff] %vm194, 0.0
    %220 = vst.msk [vmem:[#allocation3 + $0x48] sm:$0xff] %vm194, 0.0
    %221 = vst.msk [vmem:[#allocation3 + $0x50] sm:$0xff] %vm194, 0.0
    %222 = vst.msk [vmem:[#allocation3 + $0x58] sm:$0xff] %vm194, 0.0
    %223 = vst.msk [vmem:[#allocation3 + $0x60] sm:$0xff] %vm194, 0.0
    %224 = vst.msk [vmem:[#allocation3 + $0x68] sm:$0xff] %vm194, 0.0
    %225 = vst.msk [vmem:[#allocation3 + $0x70] sm:$0xff] %vm194, 0.0
    %226 = vst.msk [vmem:[#allocation3 + $0x78] sm:$0xff] %vm194, 0.0
    %vm227 = vcmask 130048
    %228 = vst.msk [vmem:[#allocation4] sm:$0xff] %vm227, 0.0
    %229 = vst.msk [vmem:[#allocation4 + $0x8] sm:$0xff] %vm227, 0.0
    %230 = vst.msk [vmem:[#allocation4 + $0x10] sm:$0xff] %vm227, 0.0
    %231 = vst.msk [vmem:[#allocation4 + $0x18] sm:$0xff] %vm227, 0.0
    %232 = vst.msk [vmem:[#allocation4 + $0x20] sm:$0xff] %vm227, 0.0
    %233 = vst.msk [vmem:[#allocation4 + $0x28] sm:$0xff] %vm227, 0.0
    %234 = vst.msk [vmem:[#allocation4 + $0x30] sm:$0xff] %vm227, 0.0
    %235 = vst.msk [vmem:[#allocation4 + $0x38] sm:$0xff] %vm227, 0.0
    %236 = vst.msk [vmem:[#allocation4 + $0x40] sm:$0xff] %vm227, 0.0
    %237 = vst.msk [vmem:[#allocation4 + $0x48] sm:$0xff] %vm227, 0.0
    %238 = vst.msk [vmem:[#allocation4 + $0x50] sm:$0xff] %vm227, 0.0
    %239 = vst.msk [vmem:[#allocation4 + $0x58] sm:$0xff] %vm227, 0.0
    %240 = vst.msk [vmem:[#allocation4 + $0x60] sm:$0xff] %vm227, 0.0
    %241 = vst.msk [vmem:[#allocation4 + $0x68] sm:$0xff] %vm227, 0.0
    %242 = vst.msk [vmem:[#allocation4 + $0x70] sm:$0xff] %vm227, 0.0
    %243 = vst.msk [vmem:[#allocation4 + $0x78] sm:$0xff] %vm227, 0.0
  $region21: #{backbone_forward.16} parent=0 // pred_fallthru
    _
  %s244 = sld [smem:[#allocation7]]
  %p245 = scmp.lt.s32.totalorder 0, %s244
  // Predicated region
  $region22: #{backbone_forward.16} parent=0 // pred_check
    %p246 = pneg %p245
  $region23: #{backbone_forward.16} parent=0 // pred_check_branch
    %248 = sbr.rel (%p246) target = $region25
  $region24: #{backbone_forward.16} parent=0 // pred_region
    %s249 = smul.u32 0, 128
    %v250 = vlaneseq
    %v251 = vshrl.u32 %v250, 7
    %v252 = vadd.s32 %v251, 8
    %v253 = vadd.s32 %v251, 16
    %v254 = vadd.s32 %v251, 24
    %v255 = vadd.s32 %v251, 32
    %v256 = vadd.s32 %v251, 40
    %v257 = vadd.s32 %v251, 48
    %v258 = vadd.s32 %v251, 56
    %v259 = vadd.s32 %v251, 64
    %v260 = vadd.s32 %v251, 72
    %v261 = vadd.s32 %v251, 80
    %v262 = vadd.s32 %v251, 88
    %v263 = vadd.s32 %v251, 96
    %v264 = vadd.s32 %v251, 104
    %v265 = vadd.s32 %v251, 112
    %v266 = vadd.s32 %v251, 120
    %v267 = vstv %s249
    %v268 = vadd.s32 %v267, %v251
    %v269 = vadd.s32 %v267, %v252
    %v270 = vadd.s32 %v267, %v253
    %v271 = vadd.s32 %v267, %v254
    %v272 = vadd.s32 %v267, %v255
    %v273 = vadd.s32 %v267, %v256
    %v274 = vadd.s32 %v267, %v257
    %v275 = vadd.s32 %v267, %v258
    %v276 = vadd.s32 %v267, %v259
    %v277 = vadd.s32 %v267, %v260
    %v278 = vadd.s32 %v267, %v261
    %v279 = vadd.s32 %v267, %v262
    %v280 = vadd.s32 %v267, %v263
    %v281 = vadd.s32 %v267, %v264
    %v282 = vadd.s32 %v267, %v265
    %v283 = vadd.s32 %v267, %v266
    %v284 = vld [vmem:[%s179] sm:$0x3]
    %v285 = vlaneseq
    %v286 = vshrl.u32 %v285, 7
    %v287 = vsub.s32 0, %v286
    %v288 = vrot.slane %v284, %v287
    %v289 = vlaneseq
    %v290 = vshrl.u32 %v289, 7
    %v291 = vsub.s32 1, %v290
    %v292 = vrot.slane %v284, %v291
    %vm293 = vcmp.eq.s32.totalorder %v288, %v268
    %vm294 = vcmp.eq.s32.totalorder %v292, %v268
    %vm295 = vcmp.eq.s32.totalorder %v288, %v269
    %vm296 = vcmp.eq.s32.totalorder %v292, %v269
    %vm297 = vcmp.eq.s32.totalorder %v288, %v270
    %vm298 = vcmp.eq.s32.totalorder %v292, %v270
    %vm299 = vcmp.eq.s32.totalorder %v288, %v271
    %vm300 = vcmp.eq.s32.totalorder %v292, %v271
    %vm301 = vcmp.eq.s32.totalorder %v288, %v272
    %vm302 = vcmp.eq.s32.totalorder %v292, %v272
    %vm303 = vcmp.eq.s32.totalorder %v288, %v273
    %vm304 = vcmp.eq.s32.totalorder %v292, %v273
    %vm305 = vcmp.eq.s32.totalorder %v288, %v274
    %vm306 = vcmp.eq.s32.totalorder %v292, %v274
    %vm307 = vcmp.eq.s32.totalorder %v288, %v275
    %vm308 = vcmp.eq.s32.totalorder %v292, %v275
    %vm309 = vcmp.eq.s32.totalorder %v288, %v276
    %vm310 = vcmp.eq.s32.totalorder %v292, %v276
    %vm311 = vcmp.eq.s32.totalorder %v288, %v277
    %vm312 = vcmp.eq.s32.totalorder %v292, %v277
    %vm313 = vcmp.eq.s32.totalorder %v288, %v278
    %vm314 = vcmp.eq.s32.totalorder %v292, %v278
    %vm315 = vcmp.eq.s32.totalorder %v288, %v279
    %vm316 = vcmp.eq.s32.totalorder %v292, %v279
    %vm317 = vcmp.eq.s32.totalorder %v288, %v280
    %vm318 = vcmp.eq.s32.totalorder %v292, %v280
    %vm319 = vcmp.eq.s32.totalorder %v288, %v281
    %vm320 = vcmp.eq.s32.totalorder %v292, %v281
    %vm321 = vcmp.eq.s32.totalorder %v288, %v282
    %vm322 = vcmp.eq.s32.totalorder %v292, %v282
    %vm323 = vcmp.eq.s32.totalorder %v288, %v283
    %vm324 = vcmp.eq.s32.totalorder %v292, %v283
    %v325 = vld [vmem:[%s2] sm:$0xff]
    %v326 = vld [vmem:[%s2 + $0x8] sm:$0xff]
    %v327 = vld [vmem:[%s2 + $0x10] sm:$0xff]
    %v328 = vld [vmem:[%s2 + $0x18] sm:$0xff]
    %v329 = vld [vmem:[%s2 + $0x20] sm:$0xff]
    %v330 = vld [vmem:[%s2 + $0x28] sm:$0xff]
    %v331 = vld [vmem:[%s2 + $0x30] sm:$0xff]
    %v332 = vld [vmem:[%s2 + $0x38] sm:$0xff]
    %v333 = vld [vmem:[%s2 + $0x40] sm:$0xff]
    %v334 = vld [vmem:[%s2 + $0x48] sm:$0xff]
    %v335 = vld [vmem:[%s2 + $0x50] sm:$0xff]
    %v336 = vld [vmem:[%s2 + $0x58] sm:$0xff]
    %v337 = vld [vmem:[%s2 + $0x60] sm:$0xff]
    %v338 = vld [vmem:[%s2 + $0x68] sm:$0xff]
    %v339 = vld [vmem:[%s2 + $0x70] sm:$0xff]
    %v340 = vld [vmem:[%s2 + $0x78] sm:$0xff]
    %v341 = vpack.c.bf16 %v326, %v325
    %v342 = vpack.c.bf16 %v328, %v327
    %v343 = vpack.c.bf16 %v330, %v329
    %v344 = vpack.c.bf16 %v332, %v331
    %v345 = vpack.c.bf16 %v334, %v333
    %v346 = vpack.c.bf16 %v336, %v335
    %v347 = vpack.c.bf16 %v338, %v337
    %v348 = vpack.c.bf16 %v340, %v339
    %v349 = vld [vmem:[%s136] sm:$0xf]
    %v350 = vld [vmem:[%s136 + $0x4] sm:$0xf]
    %v351 = vld [vmem:[%s136 + $0x8] sm:$0xf]
    %v352 = vld [vmem:[%s136 + $0xc] sm:$0xf]
    %v353 = vld [vmem:[%s136 + $0x10] sm:$0xf]
    %v354 = vld [vmem:[%s136 + $0x14] sm:$0xf]
    %v355 = vld [vmem:[%s136 + $0x18] sm:$0xf]
    %v356 = vld [vmem:[%s136 + $0x1c] sm:$0xf]
    %v357 = vld [vmem:[%s136 + $0x20] sm:$0xf]
    %v358 = vld [vmem:[%s136 + $0x24] sm:$0xf]
    %v359 = vld [vmem:[%s136 + $0x28] sm:$0xf]
    %v360 = vld [vmem:[%s136 + $0x2c] sm:$0xf]
    %v361 = vld [vmem:[%s136 + $0x30] sm:$0xf]
    %v362 = vld [vmem:[%s136 + $0x34] sm:$0xf]
    %v363 = vld [vmem:[%s136 + $0x38] sm:$0xf]
    %v364 = vld [vmem:[%s136 + $0x3c] sm:$0xf]
    %v365 = vld [vmem:[%s136 + $0x40] sm:$0xf]
    %v366 = vld [vmem:[%s136 + $0x44] sm:$0xf]
    %v367 = vld [vmem:[%s136 + $0x48] sm:$0xf]
    %v368 = vld [vmem:[%s136 + $0x4c] sm:$0xf]
    %v369 = vld [vmem:[%s136 + $0x50] sm:$0xf]
    %v370 = vld [vmem:[%s136 + $0x54] sm:$0xf]
    %v371 = vld [vmem:[%s136 + $0x58] sm:$0xf]
    %v372 = vld [vmem:[%s136 + $0x5c] sm:$0xf]
    %v373 = vld [vmem:[%s136 + $0x60] sm:$0xf]
    %v374 = vld [vmem:[%s136 + $0x64] sm:$0xf]
    %v375 = vld [vmem:[%s136 + $0x68] sm:$0xf]
    %v376 = vld [vmem:[%s136 + $0x6c] sm:$0xf]
    %v377 = vld [vmem:[%s136 + $0x70] sm:$0xf]
    %v378 = vld [vmem:[%s136 + $0x74] sm:$0xf]
    %v379 = vld [vmem:[%s136 + $0x78] sm:$0xf]
    %v380 = vld [vmem:[%s136 + $0x7c] sm:$0xf]
    %v381 = vld [vmem:[%s158] sm:$0xf]
    %v382 = vld [vmem:[%s158 + $0x4] sm:$0xf]
    %v383 = vld [vmem:[%s158 + $0x8] sm:$0xf]
    %v384 = vld [vmem:[%s158 + $0xc] sm:$0xf]
    %v385 = vld [vmem:[%s158 + $0x10] sm:$0xf]
    %v386 = vld [vmem:[%s158 + $0x14] sm:$0xf]
    %v387 = vld [vmem:[%s158 + $0x18] sm:$0xf]
    %v388 = vld [vmem:[%s158 + $0x1c] sm:$0xf]
    %v389 = vld [vmem:[%s158 + $0x20] sm:$0xf]
    %v390 = vld [vmem:[%s158 + $0x24] sm:$0xf]
    %v391 = vld [vmem:[%s158 + $0x28] sm:$0xf]
    %v392 = vld [vmem:[%s158 + $0x2c] sm:$0xf]
    %v393 = vld [vmem:[%s158 + $0x30] sm:$0xf]
    %v394 = vld [vmem:[%s158 + $0x34] sm:$0xf]
    %v395 = vld [vmem:[%s158 + $0x38] sm:$0xf]
    %v396 = vld [vmem:[%s158 + $0x3c] sm:$0xf]
    %v397 = vld [vmem:[%s158 + $0x40] sm:$0xf]
    %v398 = vld [vmem:[%s158 + $0x44] sm:$0xf]
    %v399 = vld [vmem:[%s158 + $0x48] sm:$0xf]
    %v400 = vld [vmem:[%s158 + $0x4c] sm:$0xf]
    %v401 = vld [vmem:[%s158 + $0x50] sm:$0xf]
    %v402 = vld [vmem:[%s158 + $0x54] sm:$0xf]
    %v403 = vld [vmem:[%s158 + $0x58] sm:$0xf]
    %v404 = vld [vmem:[%s158 + $0x5c] sm:$0xf]
    %v405 = vld [vmem:[%s158 + $0x60] sm:$0xf]
    %v406 = vld [vmem:[%s158 + $0x64] sm:$0xf]
    %v407 = vld [vmem:[%s158 + $0x68] sm:$0xf]
    %v408 = vld [vmem:[%s158 + $0x6c] sm:$0xf]
    %v409 = vld [vmem:[%s158 + $0x70] sm:$0xf]
    %v410 = vld [vmem:[%s158 + $0x74] sm:$0xf]
    %v411 = vld [vmem:[%s158 + $0x78] sm:$0xf]
    %v412 = vld [vmem:[%s158 + $0x7c] sm:$0xf]
    %v445 = vunpack.c.l.b16 %v349
    %v446 = vunpack.c.l.b16 %v350
    %v447 = vunpack.c.l.b16 %v351
    %v448 = vunpack.c.l.b16 %v352
    %v449 = vunpack.c.l.b16 %v353
    %v450 = vunpack.c.l.b16 %v354
    %v451 = vunpack.c.l.b16 %v355
    %v452 = vunpack.c.l.b16 %v356
    %v453 = vunpack.c.l.b16 %v357
    %v454 = vunpack.c.l.b16 %v358
    %v455 = vunpack.c.l.b16 %v359
    %v456 = vunpack.c.l.b16 %v360
    %v457 = vunpack.c.l.b16 %v361
    %v458 = vunpack.c.l.b16 %v362
    %v459 = vunpack.c.l.b16 %v363
    %v460 = vunpack.c.l.b16 %v364
    %v461 = vunpack.c.l.b16 %v365
    %v462 = vunpack.c.l.b16 %v366
    %v463 = vunpack.c.l.b16 %v367
    %v464 = vunpack.c.l.b16 %v368
    %v465 = vunpack.c.l.b16 %v369
    %v466 = vunpack.c.l.b16 %v370
    %v467 = vunpack.c.l.b16 %v371
    %v468 = vunpack.c.l.b16 %v372
    %v469 = vunpack.c.l.b16 %v373
    %v470 = vunpack.c.l.b16 %v374
    %v471 = vunpack.c.l.b16 %v375
    %v472 = vunpack.c.l.b16 %v376
    %v473 = vunpack.c.l.b16 %v377
    %v474 = vunpack.c.l.b16 %v378
    %v475 = vunpack.c.l.b16 %v379
    %v476 = vunpack.c.l.b16 %v380
    %v477 = vpack.c.b16 %v446, %v445
    %v478 = vpack.c.b16 %v448, %v447
    %v479 = vpack.c.b16 %v450, %v449
    %v480 = vpack.c.b16 %v452, %v451
    %v481 = vpack.c.b16 %v454, %v453
    %v482 = vpack.c.b16 %v456, %v455
    %v483 = vpack.c.b16 %v458, %v457
    %v484 = vpack.c.b16 %v460, %v459
    %v485 = vpack.c.b16 %v462, %v461
    %v486 = vpack.c.b16 %v464, %v463
    %v487 = vpack.c.b16 %v466, %v465
    %v488 = vpack.c.b16 %v468, %v467
    %v489 = vpack.c.b16 %v470, %v469
    %v490 = vpack.c.b16 %v472, %v471
    %v491 = vpack.c.b16 %v474, %v473
    %v492 = vpack.c.b16 %v476, %v475
    %vm493 = vcmask 64512
    %v495 = vsel %vm493, %v341, 0
    %v498 = vsel %vm493, %v342, 0
    %v501 = vsel %vm493, %v343, 0
    %v504 = vsel %vm493, %v344, 0
    %v507 = vsel %vm493, %v345, 0
    %v510 = vsel %vm493, %v346, 0
    %v513 = vsel %vm493, %v347, 0
    %v516 = vsel %vm493, %v348, 0
    %v519 = vsel %vm493, %v477, 0
    %v522 = vsel %vm493, %v478, 0
    %v525 = vsel %vm493, %v479, 0
    %v528 = vsel %vm493, %v480, 0
    %v531 = vsel %vm493, %v481, 0
    %v534 = vsel %vm493, %v482, 0
    %v537 = vsel %vm493, %v483, 0
    %v540 = vsel %vm493, %v484, 0
    %v543 = vsel %vm493, %v485, 0
    %v546 = vsel %vm493, %v486, 0
    %v549 = vsel %vm493, %v487, 0
    %v552 = vsel %vm493, %v488, 0
    %v555 = vsel %vm493, %v489, 0
    %v558 = vsel %vm493, %v490, 0
    %v561 = vsel %vm493, %v491, 0
    %v564 = vsel %vm493, %v492, 0
    %566 = vmatprep.subr.bf16.mxu0 0
    %567 = vmatpush1.bf16.xpose.msra.mxu0 %v519
    %568 = vmatprep.subr.bf16.mxu0 0
    %569 = vmatpush1.bf16.xpose.msra.mxu0 %v522
    %570 = vmatprep.subr.bf16.mxu0 0
    %571 = vmatpush1.bf16.xpose.msra.mxu0 %v525
    %572 = vmatprep.subr.bf16.mxu0 0
    %573 = vmatpush1.bf16.xpose.msra.mxu0 %v528
    %574 = vmatprep.subr.bf16.mxu0 0
    %575 = vmatpush1.bf16.xpose.msra.mxu0 %v531
    %576 = vmatprep.subr.bf16.mxu0 0
    %577 = vmatpush1.bf16.xpose.msra.mxu0 %v534
    %578 = vmatprep.subr.bf16.mxu0 0
    %579 = vmatpush1.bf16.xpose.msra.mxu0 %v537
    %580 = vmatprep.subr.bf16.mxu0 0
    %581 = vmatpush1.bf16.xpose.msra.mxu0 %v540
    %582 = vmatprep.subr.bf16.mxu0 0
    %583 = vmatpush1.bf16.xpose.msra.mxu0 %v543
    %584 = vmatprep.subr.bf16.mxu0 0
    %585 = vmatpush1.bf16.xpose.msra.mxu0 %v546
    %586 = vmatprep.subr.bf16.mxu0 0
    %587 = vmatpush1.bf16.xpose.msra.mxu0 %v549
    %588 = vmatprep.subr.bf16.mxu0 0
    %589 = vmatpush1.bf16.xpose.msra.mxu0 %v552
    %590 = vmatprep.subr.bf16.mxu0 0
    %591 = vmatpush1.bf16.xpose.msra.mxu0 %v555
    %592 = vmatprep.subr.bf16.mxu0 0
    %593 = vmatpush1.bf16.xpose.msra.mxu0 %v558
    %594 = vmatprep.subr.bf16.mxu0 0
    %595 = vmatpush1.bf16.xpose.msra.mxu0 %v561
    %596 = vmatprep.subr.bf16.mxu0 0
    %597 = vmatpush1.bf16.xpose.msra.mxu0 %v564
    %598 = vmatprep.mubr.bf16.mxu0 0
    %599 = vmatmul.mubr.bf16.gmra.mrb[0].mxu0 %v495
    %v600 = vpop.f32.mrb[0].mxu0
    %v601 = vadd.f32 0.0, %v600
    %v602 = vpop.f32.mrb[0].mxu0
    %v603 = vadd.f32 0.0, %v602
    %v604 = vpop.f32.mrb[0].mxu0
    %v605 = vadd.f32 0.0, %v604
    %v606 = vpop.f32.mrb[0].mxu0
    %v607 = vadd.f32 0.0, %v606
    %608 = vmatprep.mubr.bf16.mxu0 0
    %609 = vmatmul.mubr.bf16.gmra.mrb[0].mxu0 %v498
    %v610 = vpop.f32.mrb[0].mxu0
    %v611 = vadd.f32 0.0, %v610
    %v612 = vpop.f32.mrb[0].mxu0
    %v613 = vadd.f32 0.0, %v612
    %v614 = vpop.f32.mrb[0].mxu0
    %v615 = vadd.f32 0.0, %v614
    %v616 = vpop.f32.mrb[0].mxu0
    %v617 = vadd.f32 0.0, %v616
    %618 = vmatprep.mubr.bf16.mxu0 0
    %619 = vmatmul.mubr.bf16.gmra.mrb[0].mxu0 %v501
    %v620 = vpop.f32.mrb[0].mxu0
    %v621 = vadd.f32 0.0, %v620
    %v622 = vpop.f32.mrb[0].mxu0
    %v623 = vadd.f32 0.0, %v622
    %v624 = vpop.f32.mrb[0].mxu0
    %v625 = vadd.f32 0.0, %v624
    %v626 = vpop.f32.mrb[0].mxu0
    %v627 = vadd.f32 0.0, %v626
    %628 = vmatprep.mubr.bf16.mxu0 0
    %629 = vmatmul.mubr.bf16.gmra.mrb[0].mxu0 %v504
    %v630 = vpop.f32.mrb[0].mxu0
    %v631 = vadd.f32 0.0, %v630
    %v632 = vpop.f32.mrb[0].mxu0
    %v633 = vadd.f32 0.0, %v632
    %v634 = vpop.f32.mrb[0].mxu0
    %v635 = vadd.f32 0.0, %v634
    %v636 = vpop.f32.mrb[0].mxu0
    %v637 = vadd.f32 0.0, %v636
    %638 = vmatprep.mubr.bf16.mxu0 0
    %639 = vmatmul.mubr.bf16.gmra.mrb[0].mxu0 %v507
    %v640 = vpop.f32.mrb[0].mxu0
    %v641 = vadd.f32 0.0, %v640
    %v642 = vpop.f32.mrb[0].mxu0
    %v643 = vadd.f32 0.0, %v642
    %v644 = vpop.f32.mrb[0].mxu0
    %v645 = vadd.f32 0.0, %v644
    %v646 = vpop.f32.mrb[0].mxu0
    %v647 = vadd.f32 0.0, %v646
    %648 = vmatprep.mubr.bf16.mxu0 0
    %649 = vmatmul.mubr.bf16.gmra.mrb[0].mxu0 %v510
    %v650 = vpop.f32.mrb[0].mxu0
    %v651 = vadd.f32 0.0, %v650
    %v652 = vpop.f32.mrb[0].mxu0
    %v653 = vadd.f32 0.0, %v652
    %v654 = vpop.f32.mrb[0].mxu0
    %v655 = vadd.f32 0.0, %v654
    %v656 = vpop.f32.mrb[0].mxu0
    %v657 = vadd.f32 0.0, %v656
    %658 = vmatprep.mubr.bf16.mxu0 0
    %659 = vmatmul.mubr.bf16.gmra.mrb[0].mxu0 %v513
    %v660 = vpop.f32.mrb[0].mxu0
    %v661 = vadd.f32 0.0, %v660
    %v662 = vpop.f32.mrb[0].mxu0
    %v663 = vadd.f32 0.0, %v662
    %v664 = vpop.f32.mrb[0].mxu0
    %v665 = vadd.f32 0.0, %v664
    %v666 = vpop.f32.mrb[0].mxu0
    %v667 = vadd.f32 0.0, %v666
    %668 = vmatprep.mubr.bf16.mxu0 0
    %669 = vmatmul.mubr.bf16.gmra.mrb[0].mxu0 %v516
    %v670 = vpop.f32.mrb[0].mxu0
    %v671 = vadd.f32 0.0, %v670
    %v672 = vpop.f32.mrb[0].mxu0
    %v673 = vadd.f32 0.0, %v672
    %v674 = vpop.f32.mrb[0].mxu0
    %v675 = vadd.f32 0.0, %v674
    %v676 = vpop.f32.mrb[0].mxu0
    %v677 = vadd.f32 0.0, %v676
    %678 = vdwg.mxu0
    %v679 = vmul.f32 %v601, 0.35355338
    %v680 = vmul.f32 %v603, 0.35355338
    %v681 = vmul.f32 %v605, 0.35355338
    %v682 = vmul.f32 %v607, 0.35355338
    %v683 = vmul.f32 %v611, 0.35355338
    %v684 = vmul.f32 %v613, 0.35355338
    %v685 = vmul.f32 %v615, 0.35355338
    %v686 = vmul.f32 %v617, 0.35355338
    %v687 = vmul.f32 %v621, 0.35355338
    %v688 = vmul.f32 %v623, 0.35355338
    %v689 = vmul.f32 %v625, 0.35355338
    %v690 = vmul.f32 %v627, 0.35355338
    %v691 = vmul.f32 %v631, 0.35355338
    %v692 = vmul.f32 %v633, 0.35355338
    %v693 = vmul.f32 %v635, 0.35355338
    %v694 = vmul.f32 %v637, 0.35355338
    %v695 = vmul.f32 %v641, 0.35355338
    %v696 = vmul.f32 %v643, 0.35355338
    %v697 = vmul.f32 %v645, 0.35355338
    %v698 = vmul.f32 %v647, 0.35355338
    %v699 = vmul.f32 %v651, 0.35355338
    %v700 = vmul.f32 %v653, 0.35355338
    %v701 = vmul.f32 %v655, 0.35355338
    %v702 = vmul.f32 %v657, 0.35355338
    %v703 = vmul.f32 %v661, 0.35355338
    %v704 = vmul.f32 %v663, 0.35355338
    %v705 = vmul.f32 %v665, 0.35355338
    %v706 = vmul.f32 %v667, 0.35355338
    %v707 = vmul.f32 %v671, 0.35355338
    %v708 = vmul.f32 %v673, 0.35355338
    %v709 = vmul.f32 %v675, 0.35355338
    %v710 = vmul.f32 %v677, 0.35355338
    %v711 = vsel %vm293, %v679, -1e+30
    %v712 = vsel %vm294, %v680, -1e+30
    %v713 = vsel %vm295, %v681, -1e+30
    %v714 = vsel %vm296, %v682, -1e+30
    %v715 = vsel %vm297, %v683, -1e+30
    %v716 = vsel %vm298, %v684, -1e+30
    %v717 = vsel %vm299, %v685, -1e+30
    %v718 = vsel %vm300, %v686, -1e+30
    %v719 = vsel %vm301, %v687, -1e+30
    %v720 = vsel %vm302, %v688, -1e+30
    %v721 = vsel %vm303, %v689, -1e+30
    %v722 = vsel %vm304, %v690, -1e+30
    %v723 = vsel %vm305, %v691, -1e+30
    %v724 = vsel %vm306, %v692, -1e+30
    %v725 = vsel %vm307, %v693, -1e+30
    %v726 = vsel %vm308, %v694, -1e+30
    %v727 = vsel %vm309, %v695, -1e+30
    %v728 = vsel %vm310, %v696, -1e+30
    %v729 = vsel %vm311, %v697, -1e+30
    %v730 = vsel %vm312, %v698, -1e+30
    %v731 = vsel %vm313, %v699, -1e+30
    %v732 = vsel %vm314, %v700, -1e+30
    %v733 = vsel %vm315, %v701, -1e+30
    %v734 = vsel %vm316, %v702, -1e+30
    %v735 = vsel %vm317, %v703, -1e+30
    %v736 = vsel %vm318, %v704, -1e+30
    %v737 = vsel %vm319, %v705, -1e+30
    %v738 = vsel %vm320, %v706, -1e+30
    %v739 = vsel %vm321, %v707, -1e+30
    %v740 = vsel %vm322, %v708, -1e+30
    %v741 = vsel %vm323, %v709, -1e+30
    %v742 = vsel %vm324, %v710, -1e+30
    %v743 = vld [vmem:[#allocation2] sm:$0xff]
    %v744 = vld [vmem:[#allocation2 + $0x8] sm:$0xff]
    %v745 = vld [vmem:[#allocation2 + $0x10] sm:$0xff]
    %v746 = vld [vmem:[#allocation2 + $0x18] sm:$0xff]
    %v747 = vld [vmem:[#allocation2 + $0x20] sm:$0xff]
    %v748 = vld [vmem:[#allocation2 + $0x28] sm:$0xff]
    %v749 = vld [vmem:[#allocation2 + $0x30] sm:$0xff]
    %v750 = vld [vmem:[#allocation2 + $0x38] sm:$0xff]
    %v751 = vld [vmem:[#allocation2 + $0x40] sm:$0xff]
    %v752 = vld [vmem:[#allocation2 + $0x48] sm:$0xff]
    %v753 = vld [vmem:[#allocation2 + $0x50] sm:$0xff]
    %v754 = vld [vmem:[#allocation2 + $0x58] sm:$0xff]
    %v755 = vld [vmem:[#allocation2 + $0x60] sm:$0xff]
    %v756 = vld [vmem:[#allocation2 + $0x68] sm:$0xff]
    %v757 = vld [vmem:[#allocation2 + $0x70] sm:$0xff]
    %v758 = vld [vmem:[#allocation2 + $0x78] sm:$0xff]
    %v759 = vmax.f32 %v711, %v712
    %760 = vmax.xlane.f32.xlu0 %v759
    %v761 = vpop.xlane.xlu0 %760
    %v762 = vmax.f32 %v713, %v714
    %763 = vmax.xlane.f32.xlu0 %v762
    %v764 = vpop.xlane.xlu0 %763
    %v765 = vmax.f32 %v715, %v716
    %766 = vmax.xlane.f32.xlu0 %v765
    %v767 = vpop.xlane.xlu0 %766
    %v768 = vmax.f32 %v717, %v718
    %769 = vmax.xlane.f32.xlu0 %v768
    %v770 = vpop.xlane.xlu0 %769
    %v771 = vmax.f32 %v719, %v720
    %772 = vmax.xlane.f32.xlu0 %v771
    %v773 = vpop.xlane.xlu0 %772
    %v774 = vmax.f32 %v721, %v722
    %775 = vmax.xlane.f32.xlu0 %v774
    %v776 = vpop.xlane.xlu0 %775
    %v777 = vmax.f32 %v723, %v724
    %778 = vmax.xlane.f32.xlu0 %v777
    %v779 = vpop.xlane.xlu0 %778
    %v780 = vmax.f32 %v725, %v726
    %781 = vmax.xlane.f32.xlu0 %v780
    %v782 = vpop.xlane.xlu0 %781
    %v783 = vmax.f32 %v727, %v728
    %784 = vmax.xlane.f32.xlu0 %v783
    %v785 = vpop.xlane.xlu0 %784
    %v786 = vmax.f32 %v729, %v730
    %787 = vmax.xlane.f32.xlu0 %v786
    %v788 = vpop.xlane.xlu0 %787
    %v789 = vmax.f32 %v731, %v732
    %790 = vmax.xlane.f32.xlu0 %v789
    %v791 = vpop.xlane.xlu0 %790
    %v792 = vmax.f32 %v733, %v734
    %793 = vmax.xlane.f32.xlu0 %v792
    %v794 = vpop.xlane.xlu0 %793
    %v795 = vmax.f32 %v735, %v736
    %796 = vmax.xlane.f32.xlu0 %v795
    %v797 = vpop.xlane.xlu0 %796
    %v798 = vmax.f32 %v737, %v738
    %799 = vmax.xlane.f32.xlu0 %v798
    %v800 = vpop.xlane.xlu0 %799
    %v801 = vmax.f32 %v739, %v740
    %802 = vmax.xlane.f32.xlu0 %v801
    %v803 = vpop.xlane.xlu0 %802
    %v804 = vmax.f32 %v741, %v742
    %805 = vmax.xlane.f32.xlu0 %v804
    %v806 = vpop.xlane.xlu0 %805
    %v807 = vmax.f32 %v743, %v761
    %v808 = vmax.f32 %v744, %v764
    %v809 = vmax.f32 %v745, %v767
    %v810 = vmax.f32 %v746, %v770
    %v811 = vmax.f32 %v747, %v773
    %v812 = vmax.f32 %v748, %v776
    %v813 = vmax.f32 %v749, %v779
    %v814 = vmax.f32 %v750, %v782
    %v815 = vmax.f32 %v751, %v785
    %v816 = vmax.f32 %v752, %v788
    %v817 = vmax.f32 %v753, %v791
    %v818 = vmax.f32 %v754, %v794
    %v819 = vmax.f32 %v755, %v797
    %v820 = vmax.f32 %v756, %v800
    %v821 = vmax.f32 %v757, %v803
    %v822 = vmax.f32 %v758, %v806
    %824 = vset.pattern.permute.xlu0 0
    %825 = vperm.xlu0 %824, %v807
    %v826 = vpop.permute.xlu0 %825
    %829 = vset.pattern.permute.xlu0 0
    %830 = vperm.xlu0 %829, %v808
    %v831 = vpop.permute.xlu0 %830
    %834 = vset.pattern.permute.xlu0 0
    %835 = vperm.xlu0 %834, %v809
    %v836 = vpop.permute.xlu0 %835
    %839 = vset.pattern.permute.xlu0 0
    %840 = vperm.xlu0 %839, %v810
    %v841 = vpop.permute.xlu0 %840
    %844 = vset.pattern.permute.xlu0 0
    %845 = vperm.xlu0 %844, %v811
    %v846 = vpop.permute.xlu0 %845
    %849 = vset.pattern.permute.xlu0 0
    %850 = vperm.xlu0 %849, %v812
    %v851 = vpop.permute.xlu0 %850
    %854 = vset.pattern.permute.xlu0 0
    %855 = vperm.xlu0 %854, %v813
    %v856 = vpop.permute.xlu0 %855
    %859 = vset.pattern.permute.xlu0 0
    %860 = vperm.xlu0 %859, %v814
    %v861 = vpop.permute.xlu0 %860
    %864 = vset.pattern.permute.xlu0 0
    %865 = vperm.xlu0 %864, %v815
    %v866 = vpop.permute.xlu0 %865
    %869 = vset.pattern.permute.xlu0 0
    %870 = vperm.xlu0 %869, %v816
    %v871 = vpop.permute.xlu0 %870
    %874 = vset.pattern.permute.xlu0 0
    %875 = vperm.xlu0 %874, %v817
    %v876 = vpop.permute.xlu0 %875
    %879 = vset.pattern.permute.xlu0 0
    %880 = vperm.xlu0 %879, %v818
    %v881 = vpop.permute.xlu0 %880
    %884 = vset.pattern.permute.xlu0 0
    %885 = vperm.xlu0 %884, %v819
    %v886 = vpop.permute.xlu0 %885
    %889 = vset.pattern.permute.xlu0 0
    %890 = vperm.xlu0 %889, %v820
    %v891 = vpop.permute.xlu0 %890
    %894 = vset.pattern.permute.xlu0 0
    %895 = vperm.xlu0 %894, %v821
    %v896 = vpop.permute.xlu0 %895
    %899 = vset.pattern.permute.xlu0 0
    %900 = vperm.xlu0 %899, %v822
    %v901 = vpop.permute.xlu0 %900
    %v903 = vsub.f32 %v711, %v826
    %v904 = vsub.f32 %v712, %v826
    %v905 = vsub.f32 %v713, %v831
    %v906 = vsub.f32 %v714, %v831
    %v907 = vsub.f32 %v715, %v836
    %v908 = vsub.f32 %v716, %v836
    %v909 = vsub.f32 %v717, %v841
    %v910 = vsub.f32 %v718, %v841
    %v911 = vsub.f32 %v719, %v846
    %v912 = vsub.f32 %v720, %v846
    %v913 = vsub.f32 %v721, %v851
    %v914 = vsub.f32 %v722, %v851
    %v915 = vsub.f32 %v723, %v856
    %v916 = vsub.f32 %v724, %v856
    %v917 = vsub.f32 %v725, %v861
    %v918 = vsub.f32 %v726, %v861
    %v919 = vsub.f32 %v727, %v866
    %v920 = vsub.f32 %v728, %v866
    %v921 = vsub.f32 %v729, %v871
    %v922 = vsub.f32 %v730, %v871
    %v923 = vsub.f32 %v731, %v876
    %v924 = vsub.f32 %v732, %v876
    %v925 = vsub.f32 %v733, %v881
    %v926 = vsub.f32 %v734, %v881
    %v927 = vsub.f32 %v735, %v886
    %v928 = vsub.f32 %v736, %v886
    %v929 = vsub.f32 %v737, %v891
    %v930 = vsub.f32 %v738, %v891
    %v931 = vsub.f32 %v739, %v896
    %v932 = vsub.f32 %v740, %v896
    %v933 = vsub.f32 %v741, %v901
    %v934 = vsub.f32 %v742, %v901
    %v935 = vmul.f32 %v903, 1.442695
    %v936 = vpow.pop %v935
    %v937 = vmul.f32 %v904, 1.442695
    %v938 = vpow.pop %v937
    %v939 = vmul.f32 %v905, 1.442695
    %v940 = vpow.pop %v939
    %v941 = vmul.f32 %v906, 1.442695
    %v942 = vpow.pop %v941
    %v943 = vmul.f32 %v907, 1.442695
    %v944 = vpow.pop %v943
    %v945 = vmul.f32 %v908, 1.442695
    %v946 = vpow.pop %v945
    %v947 = vmul.f32 %v909, 1.442695
    %v948 = vpow.pop %v947
    %v949 = vmul.f32 %v910, 1.442695
    %v950 = vpow.pop %v949
    %v951 = vmul.f32 %v911, 1.442695
    %v952 = vpow.pop %v951
    %v953 = vmul.f32 %v912, 1.442695
    %v954 = vpow.pop %v953
    %v955 = vmul.f32 %v913, 1.442695
    %v956 = vpow.pop %v955
    %v957 = vmul.f32 %v914, 1.442695
    %v958 = vpow.pop %v957
    %v959 = vmul.f32 %v915, 1.442695
    %v960 = vpow.pop %v959
    %v961 = vmul.f32 %v916, 1.442695
    %v962 = vpow.pop %v961
    %v963 = vmul.f32 %v917, 1.442695
    %v964 = vpow.pop %v963
    %v965 = vmul.f32 %v918, 1.442695
    %v966 = vpow.pop %v965
    %v967 = vmul.f32 %v919, 1.442695
    %v968 = vpow.pop %v967
    %v969 = vmul.f32 %v920, 1.442695
    %v970 = vpow.pop %v969
    %v971 = vmul.f32 %v921, 1.442695
    %v972 = vpow.pop %v971
    %v973 = vmul.f32 %v922, 1.442695
    %v974 = vpow.pop %v973
    %v975 = vmul.f32 %v923, 1.442695
    %v976 = vpow.pop %v975
    %v977 = vmul.f32 %v924, 1.442695
    %v978 = vpow.pop %v977
    %v979 = vmul.f32 %v925, 1.442695
    %v980 = vpow.pop %v979
    %v981 = vmul.f32 %v926, 1.442695
    %v982 = vpow.pop %v981
    %v983 = vmul.f32 %v927, 1.442695
    %v984 = vpow.pop %v983
    %v985 = vmul.f32 %v928, 1.442695
    %v986 = vpow.pop %v985
    %v987 = vmul.f32 %v929, 1.442695
    %v988 = vpow.pop %v987
    %v989 = vmul.f32 %v930, 1.442695
    %v990 = vpow.pop %v989
    %v991 = vmul.f32 %v931, 1.442695
    %v992 = vpow.pop %v991
    %v993 = vmul.f32 %v932, 1.442695
    %v994 = vpow.pop %v993
    %v995 = vmul.f32 %v933, 1.442695
    %v996 = vpow.pop %v995
    %v997 = vmul.f32 %v934, 1.442695
    %v998 = vpow.pop %v997
    %v999 = vsel %vm293, %v936, 0.0
    %v1000 = vsel %vm294, %v938, 0.0
    %v1001 = vsel %vm295, %v940, 0.0
    %v1002 = vsel %vm296, %v942, 0.0
    %v1003 = vsel %vm297, %v944, 0.0
    %v1004 = vsel %vm298, %v946, 0.0
    %v1005 = vsel %vm299, %v948, 0.0
    %v1006 = vsel %vm300, %v950, 0.0
    %v1007 = vsel %vm301, %v952, 0.0
    %v1008 = vsel %vm302, %v954, 0.0
    %v1009 = vsel %vm303, %v956, 0.0
    %v1010 = vsel %vm304, %v958, 0.0
    %v1011 = vsel %vm305, %v960, 0.0
    %v1012 = vsel %vm306, %v962, 0.0
    %v1013 = vsel %vm307, %v964, 0.0
    %v1014 = vsel %vm308, %v966, 0.0
    %v1015 = vsel %vm309, %v968, 0.0
    %v1016 = vsel %vm310, %v970, 0.0
    %v1017 = vsel %vm311, %v972, 0.0
    %v1018 = vsel %vm312, %v974, 0.0
    %v1019 = vsel %vm313, %v976, 0.0
    %v1020 = vsel %vm314, %v978, 0.0
    %v1021 = vsel %vm315, %v980, 0.0
    %v1022 = vsel %vm316, %v982, 0.0
    %v1023 = vsel %vm317, %v984, 0.0
    %v1024 = vsel %vm318, %v986, 0.0
    %v1025 = vsel %vm319, %v988, 0.0
    %v1026 = vsel %vm320, %v990, 0.0
    %v1027 = vsel %vm321, %v992, 0.0
    %v1028 = vsel %vm322, %v994, 0.0
    %v1029 = vsel %vm323, %v996, 0.0
    %v1030 = vsel %vm324, %v998, 0.0
    %v1031 = vsub.f32 %v743, %v807
    %v1032 = vsub.f32 %v744, %v808
    %v1033 = vsub.f32 %v745, %v809
    %v1034 = vsub.f32 %v746, %v810
    %v1035 = vsub.f32 %v747, %v811
    %v1036 = vsub.f32 %v748, %v812
    %v1037 = vsub.f32 %v749, %v813
    %v1038 = vsub.f32 %v750, %v814
    %v1039 = vsub.f32 %v751, %v815
    %v1040 = vsub.f32 %v752, %v816
    %v1041 = vsub.f32 %v753, %v817
    %v1042 = vsub.f32 %v754, %v818
    %v1043 = vsub.f32 %v755, %v819
    %v1044 = vsub.f32 %v756, %v820
    %v1045 = vsub.f32 %v757, %v821
    %v1046 = vsub.f32 %v758, %v822
    %v1047 = vmul.f32 %v1031, 1.442695
    %v1048 = vpow.pop %v1047
    %v1049 = vmul.f32 %v1032, 1.442695
    %v1050 = vpow.pop %v1049
    %v1051 = vmul.f32 %v1033, 1.442695
    %v1052 = vpow.pop %v1051
    %v1053 = vmul.f32 %v1034, 1.442695
    %v1054 = vpow.pop %v1053
    %v1055 = vmul.f32 %v1035, 1.442695
    %v1056 = vpow.pop %v1055
    %v1057 = vmul.f32 %v1036, 1.442695
    %v1058 = vpow.pop %v1057
    %v1059 = vmul.f32 %v1037, 1.442695
    %v1060 = vpow.pop %v1059
    %v1061 = vmul.f32 %v1038, 1.442695
    %v1062 = vpow.pop %v1061
    %v1063 = vmul.f32 %v1039, 1.442695
    %v1064 = vpow.pop %v1063
    %v1065 = vmul.f32 %v1040, 1.442695
    %v1066 = vpow.pop %v1065
    %v1067 = vmul.f32 %v1041, 1.442695
    %v1068 = vpow.pop %v1067
    %v1069 = vmul.f32 %v1042, 1.442695
    %v1070 = vpow.pop %v1069
    %v1071 = vmul.f32 %v1043, 1.442695
    %v1072 = vpow.pop %v1071
    %v1073 = vmul.f32 %v1044, 1.442695
    %v1074 = vpow.pop %v1073
    %v1075 = vmul.f32 %v1045, 1.442695
    %v1076 = vpow.pop %v1075
    %v1077 = vmul.f32 %v1046, 1.442695
    %v1078 = vpow.pop %v1077
    %v1079 = vld [vmem:[#allocation3] sm:$0xff]
    %v1080 = vld [vmem:[#allocation3 + $0x8] sm:$0xff]
    %v1081 = vld [vmem:[#allocation3 + $0x10] sm:$0xff]
    %v1082 = vld [vmem:[#allocation3 + $0x18] sm:$0xff]
    %v1083 = vld [vmem:[#allocation3 + $0x20] sm:$0xff]
    %v1084 = vld [vmem:[#allocation3 + $0x28] sm:$0xff]
    %v1085 = vld [vmem:[#allocation3 + $0x30] sm:$0xff]
    %v1086 = vld [vmem:[#allocation3 + $0x38] sm:$0xff]
    %v1087 = vld [vmem:[#allocation3 + $0x40] sm:$0xff]
    %v1088 = vld [vmem:[#allocation3 + $0x48] sm:$0xff]
    %v1089 = vld [vmem:[#allocation3 + $0x50] sm:$0xff]
    %v1090 = vld [vmem:[#allocation3 + $0x58] sm:$0xff]
    %v1091 = vld [vmem:[#allocation3 + $0x60] sm:$0xff]
    %v1092 = vld [vmem:[#allocation3 + $0x68] sm:$0xff]
    %v1093 = vld [vmem:[#allocation3 + $0x70] sm:$0xff]
    %v1094 = vld [vmem:[#allocation3 + $0x78] sm:$0xff]
    %v1095 = vmul.f32 %v1048, %v1079
    %v1096 = vmul.f32 %v1050, %v1080
    %v1097 = vmul.f32 %v1052, %v1081
    %v1098 = vmul.f32 %v1054, %v1082
    %v1099 = vmul.f32 %v1056, %v1083
    %v1100 = vmul.f32 %v1058, %v1084
    %v1101 = vmul.f32 %v1060, %v1085
    %v1102 = vmul.f32 %v1062, %v1086
    %v1103 = vmul.f32 %v1064, %v1087
    %v1104 = vmul.f32 %v1066, %v1088
    %v1105 = vmul.f32 %v1068, %v1089
    %v1106 = vmul.f32 %v1070, %v1090
    %v1107 = vmul.f32 %v1072, %v1091
    %v1108 = vmul.f32 %v1074, %v1092
    %v1109 = vmul.f32 %v1076, %v1093
    %v1110 = vmul.f32 %v1078, %v1094
    %v1111 = vadd.f32 %v999, %v1000
    %1112 = vadd.xlane.f32.xlu0 %v1111
    %v1113 = vpop.xlane.xlu0 %1112
    %v1114 = vadd.f32 %v1001, %v1002
    %1115 = vadd.xlane.f32.xlu0 %v1114
    %v1116 = vpop.xlane.xlu0 %1115
    %v1117 = vadd.f32 %v1003, %v1004
    %1118 = vadd.xlane.f32.xlu0 %v1117
    %v1119 = vpop.xlane.xlu0 %1118
    %v1120 = vadd.f32 %v1005, %v1006
    %1121 = vadd.xlane.f32.xlu0 %v1120
    %v1122 = vpop.xlane.xlu0 %1121
    %v1123 = vadd.f32 %v1007, %v1008
    %1124 = vadd.xlane.f32.xlu0 %v1123
    %v1125 = vpop.xlane.xlu0 %1124
    %v1126 = vadd.f32 %v1009, %v1010
    %1127 = vadd.xlane.f32.xlu0 %v1126
    %v1128 = vpop.xlane.xlu0 %1127
    %v1129 = vadd.f32 %v1011, %v1012
    %1130 = vadd.xlane.f32.xlu0 %v1129
    %v1131 = vpop.xlane.xlu0 %1130
    %v1132 = vadd.f32 %v1013, %v1014
    %1133 = vadd.xlane.f32.xlu0 %v1132
    %v1134 = vpop.xlane.xlu0 %1133
    %v1135 = vadd.f32 %v1015, %v1016
    %1136 = vadd.xlane.f32.xlu0 %v1135
    %v1137 = vpop.xlane.xlu0 %1136
    %v1138 = vadd.f32 %v1017, %v1018
    %1139 = vadd.xlane.f32.xlu0 %v1138
    %v1140 = vpop.xlane.xlu0 %1139
    %v1141 = vadd.f32 %v1019, %v1020
    %1142 = vadd.xlane.f32.xlu0 %v1141
    %v1143 = vpop.xlane.xlu0 %1142
    %v1144 = vadd.f32 %v1021, %v1022
    %1145 = vadd.xlane.f32.xlu0 %v1144
    %v1146 = vpop.xlane.xlu0 %1145
    %v1147 = vadd.f32 %v1023, %v1024
    %1148 = vadd.xlane.f32.xlu0 %v1147
    %v1149 = vpop.xlane.xlu0 %1148
    %v1150 = vadd.f32 %v1025, %v1026
    %1151 = vadd.xlane.f32.xlu0 %v1150
    %v1152 = vpop.xlane.xlu0 %1151
    %v1153 = vadd.f32 %v1027, %v1028
    %1154 = vadd.xlane.f32.xlu0 %v1153
    %v1155 = vpop.xlane.xlu0 %1154
    %v1156 = vadd.f32 %v1029, %v1030
    %1157 = vadd.xlane.f32.xlu0 %v1156
    %v1158 = vpop.xlane.xlu0 %1157
    %v1159 = vadd.f32 %v1095, %v1113
    %v1160 = vadd.f32 %v1096, %v1116
    %v1161 = vadd.f32 %v1097, %v1119
    %v1162 = vadd.f32 %v1098, %v1122
    %v1163 = vadd.f32 %v1099, %v1125
    %v1164 = vadd.f32 %v1100, %v1128
    %v1165 = vadd.f32 %v1101, %v1131
    %v1166 = vadd.f32 %v1102, %v1134
    %v1167 = vadd.f32 %v1103, %v1137
    %v1168 = vadd.f32 %v1104, %v1140
    %v1169 = vadd.f32 %v1105, %v1143
    %v1170 = vadd.f32 %v1106, %v1146
    %v1171 = vadd.f32 %v1107, %v1149
    %v1172 = vadd.f32 %v1108, %v1152
    %v1173 = vadd.f32 %v1109, %v1155
    %v1174 = vadd.f32 %v1110, %v1158
    %v1175 = vpack.c.bf16 %v1001, %v999
    %v1176 = vpack.c.bf16 %v1002, %v1000
    %v1177 = vpack.c.bf16 %v1005, %v1003
    %v1178 = vpack.c.bf16 %v1006, %v1004
    %v1179 = vpack.c.bf16 %v1009, %v1007
    %v1180 = vpack.c.bf16 %v1010, %v1008
    %v1181 = vpack.c.bf16 %v1013, %v1011
    %v1182 = vpack.c.bf16 %v1014, %v1012
    %v1183 = vpack.c.bf16 %v1017, %v1015
    %v1184 = vpack.c.bf16 %v1018, %v1016
    %v1185 = vpack.c.bf16 %v1021, %v1019
    %v1186 = vpack.c.bf16 %v1022, %v1020
    %v1187 = vpack.c.bf16 %v1025, %v1023
    %v1188 = vpack.c.bf16 %v1026, %v1024
    %v1189 = vpack.c.bf16 %v1029, %v1027
    %v1190 = vpack.c.bf16 %v1030, %v1028
    %v1223 = vunpack.c.l.b16 %v381
    %v1224 = vunpack.c.l.b16 %v382
    %v1225 = vunpack.c.l.b16 %v383
    %v1226 = vunpack.c.l.b16 %v384
    %v1227 = vunpack.c.l.b16 %v385
    %v1228 = vunpack.c.l.b16 %v386
    %v1229 = vunpack.c.l.b16 %v387
    %v1230 = vunpack.c.l.b16 %v388
    %v1231 = vunpack.c.l.b16 %v389
    %v1232 = vunpack.c.l.b16 %v390
    %v1233 = vunpack.c.l.b16 %v391
    %v1234 = vunpack.c.l.b16 %v392
    %v1235 = vunpack.c.l.b16 %v393
    %v1236 = vunpack.c.l.b16 %v394
    %v1237 = vunpack.c.l.b16 %v395
    %v1238 = vunpack.c.l.b16 %v396
    %v1239 = vunpack.c.l.b16 %v397
    %v1240 = vunpack.c.l.b16 %v398
    %v1241 = vunpack.c.l.b16 %v399
    %v1242 = vunpack.c.l.b16 %v400
    %v1243 = vunpack.c.l.b16 %v401
    %v1244 = vunpack.c.l.b16 %v402
    %v1245 = vunpack.c.l.b16 %v403
    %v1246 = vunpack.c.l.b16 %v404
    %v1247 = vunpack.c.l.b16 %v405
    %v1248 = vunpack.c.l.b16 %v406
    %v1249 = vunpack.c.l.b16 %v407
    %v1250 = vunpack.c.l.b16 %v408
    %v1251 = vunpack.c.l.b16 %v409
    %v1252 = vunpack.c.l.b16 %v410
    %v1253 = vunpack.c.l.b16 %v411
    %v1254 = vunpack.c.l.b16 %v412
    %v1255 = vpack.c.b16 %v1224, %v1223
    %v1256 = vpack.c.b16 %v1226, %v1225
    %v1257 = vpack.c.b16 %v1228, %v1227
    %v1258 = vpack.c.b16 %v1230, %v1229
    %v1259 = vpack.c.b16 %v1232, %v1231
    %v1260 = vpack.c.b16 %v1234, %v1233
    %v1261 = vpack.c.b16 %v1236, %v1235
    %v1262 = vpack.c.b16 %v1238, %v1237
    %v1263 = vpack.c.b16 %v1240, %v1239
    %v1264 = vpack.c.b16 %v1242, %v1241
    %v1265 = vpack.c.b16 %v1244, %v1243
    %v1266 = vpack.c.b16 %v1246, %v1245
    %v1267 = vpack.c.b16 %v1248, %v1247
    %v1268 = vpack.c.b16 %v1250, %v1249
    %v1269 = vpack.c.b16 %v1252, %v1251
    %v1270 = vpack.c.b16 %v1254, %v1253
    %1287 = vmatprep.subr.bf16.mxu0 0
    %1288 = vmatpush1.bf16.msra.mxu0 %v1255
    %1289 = vmatprep.subr.bf16.mxu0 0
    %1290 = vmatpush1.bf16.msra.mxu0 %v1256
    %1291 = vmatprep.subr.bf16.mxu0 0
    %1292 = vmatpush1.bf16.msra.mxu0 %v1257
    %1293 = vmatprep.subr.bf16.mxu0 0
    %1294 = vmatpush1.bf16.msra.mxu0 %v1258
    %1295 = vmatprep.subr.bf16.mxu0 0
    %1296 = vmatpush1.bf16.msra.mxu0 %v1259
    %1297 = vmatprep.subr.bf16.mxu0 0
    %1298 = vmatpush1.bf16.msra.mxu0 %v1260
    %1299 = vmatprep.subr.bf16.mxu0 0
    %1300 = vmatpush1.bf16.msra.mxu0 %v1261
    %1301 = vmatprep.subr.bf16.mxu0 0
    %1302 = vmatpush1.bf16.msra.mxu0 %v1262
    %1303 = vmatprep.subr.bf16.mxu0 0
    %1304 = vmatpush1.bf16.msra.mxu0 %v1263
    %1305 = vmatprep.subr.bf16.mxu0 0
    %1306 = vmatpush1.bf16.msra.mxu0 %v1264
    %1307 = vmatprep.subr.bf16.mxu0 0
    %1308 = vmatpush1.bf16.msra.mxu0 %v1265
    %1309 = vmatprep.subr.bf16.mxu0 0
    %1310 = vmatpush1.bf16.msra.mxu0 %v1266
    %1311 = vmatprep.subr.bf16.mxu0 0
    %1312 = vmatpush1.bf16.msra.mxu0 %v1267
    %1313 = vmatprep.subr.bf16.mxu0 0
    %1314 = vmatpush1.bf16.msra.mxu0 %v1268
    %1315 = vmatprep.subr.bf16.mxu0 0
    %1316 = vmatpush1.bf16.msra.mxu0 %v1269
    %1317 = vmatprep.subr.bf16.mxu0 0
    %1318 = vmatpush1.bf16.msra.mxu0 %v1270
    %1319 = vmatprep.mubr.bf16.mxu0 %v1176
    %1320 = vmatmul.mubr.bf16.gmra.mrb[0].mxu0 %v1175
    %v1321 = vpop.f32.mrb[0].mxu0
    %v1322 = vadd.f32 0.0, %v1321
    %v1323 = vpop.f32.mrb[0].mxu0
    %v1324 = vpop.f32.mrb[0].mxu0
    %v1325 = vadd.f32 0.0, %v1324
    %v1326 = vpop.f32.mrb[0].mxu0
    %1327 = vmatprep.mubr.bf16.mxu0 %v1178
    %1328 = vmatmul.mubr.bf16.gmra.mrb[0].mxu0 %v1177
    %v1329 = vpop.f32.mrb[0].mxu0
    %v1330 = vadd.f32 0.0, %v1329
    %v1331 = vpop.f32.mrb[0].mxu0
    %v1332 = vpop.f32.mrb[0].mxu0
    %v1333 = vadd.f32 0.0, %v1332
    %v1334 = vpop.f32.mrb[0].mxu0
    %1335 = vmatprep.mubr.bf16.mxu0 %v1180
    %1336 = vmatmul.mubr.bf16.gmra.mrb[0].mxu0 %v1179
    %v1337 = vpop.f32.mrb[0].mxu0
    %v1338 = vadd.f32 0.0, %v1337
    %v1339 = vpop.f32.mrb[0].mxu0
    %v1340 = vpop.f32.mrb[0].mxu0
    %v1341 = vadd.f32 0.0, %v1340
    %v1342 = vpop.f32.mrb[0].mxu0
    %1343 = vmatprep.mubr.bf16.mxu0 %v1182
    %1344 = vmatmul.mubr.bf16.gmra.mrb[0].mxu0 %v1181
    %v1345 = vpop.f32.mrb[0].mxu0
    %v1346 = vadd.f32 0.0, %v1345
    %v1347 = vpop.f32.mrb[0].mxu0
    %v1348 = vpop.f32.mrb[0].mxu0
    %v1349 = vadd.f32 0.0, %v1348
    %v1350 = vpop.f32.mrb[0].mxu0
    %1351 = vmatprep.mubr.bf16.mxu0 %v1184
    %1352 = vmatmul.mubr.bf16.gmra.mrb[0].mxu0 %v1183
    %v1353 = vpop.f32.mrb[0].mxu0
    %v1354 = vadd.f32 0.0, %v1353
    %v1355 = vpop.f32.mrb[0].mxu0
    %v1356 = vpop.f32.mrb[0].mxu0
    %v1357 = vadd.f32 0.0, %v1356
    %v1358 = vpop.f32.mrb[0].mxu0
    %1359 = vmatprep.mubr.bf16.mxu0 %v1186
    %1360 = vmatmul.mubr.bf16.gmra.mrb[0].mxu0 %v1185
    %v1361 = vpop.f32.mrb[0].mxu0
    %v1362 = vadd.f32 0.0, %v1361
    %v1363 = vpop.f32.mrb[0].mxu0
    %v1364 = vpop.f32.mrb[0].mxu0
    %v1365 = vadd.f32 0.0, %v1364
    %v1366 = vpop.f32.mrb[0].mxu0
    %1367 = vmatprep.mubr.bf16.mxu0 %v1188
    %1368 = vmatmul.mubr.bf16.gmra.mrb[0].mxu0 %v1187
    %v1369 = vpop.f32.mrb[0].mxu0
    %v1370 = vadd.f32 0.0, %v1369
    %v1371 = vpop.f32.mrb[0].mxu0
    %v1372 = vpop.f32.mrb[0].mxu0
    %v1373 = vadd.f32 0.0, %v1372
    %v1374 = vpop.f32.mrb[0].mxu0
    %1375 = vmatprep.mubr.bf16.mxu0 %v1190
    %1376 = vmatmul.mubr.bf16.gmra.mrb[0].mxu0 %v1189
    %v1377 = vpop.f32.mrb[0].mxu0
    %v1378 = vadd.f32 0.0, %v1377
    %v1379 = vpop.f32.mrb[0].mxu0
    %v1380 = vpop.f32.mrb[0].mxu0
    %v1381 = vadd.f32 0.0, %v1380
    %v1382 = vpop.f32.mrb[0].mxu0
    %1383 = vdwg.mxu0
    %v1384 = vld [vmem:[#allocation4] sm:$0xff]
    %v1385 = vld [vmem:[#allocation4 + $0x8] sm:$0xff]
    %v1386 = vld [vmem:[#allocation4 + $0x10] sm:$0xff]
    %v1387 = vld [vmem:[#allocation4 + $0x18] sm:$0xff]
    %v1388 = vld [vmem:[#allocation4 + $0x20] sm:$0xff]
    %v1389 = vld [vmem:[#allocation4 + $0x28] sm:$0xff]
    %v1390 = vld [vmem:[#allocation4 + $0x30] sm:$0xff]
    %v1391 = vld [vmem:[#allocation4 + $0x38] sm:$0xff]
    %v1392 = vld [vmem:[#allocation4 + $0x40] sm:$0xff]
    %v1393 = vld [vmem:[#allocation4 + $0x48] sm:$0xff]
    %v1394 = vld [vmem:[#allocation4 + $0x50] sm:$0xff]
    %v1395 = vld [vmem:[#allocation4 + $0x58] sm:$0xff]
    %v1396 = vld [vmem:[#allocation4 + $0x60] sm:$0xff]
    %v1397 = vld [vmem:[#allocation4 + $0x68] sm:$0xff]
    %v1398 = vld [vmem:[#allocation4 + $0x70] sm:$0xff]
    %v1399 = vld [vmem:[#allocation4 + $0x78] sm:$0xff]
    %1401 = vset.pattern.permute.xlu0 0
    %1402 = vperm.xlu0 %1401, %v1048
    %v1403 = vpop.permute.xlu0 %1402
    %1406 = vset.pattern.permute.xlu0 0
    %1407 = vperm.xlu0 %1406, %v1050
    %v1408 = vpop.permute.xlu0 %1407
    %1411 = vset.pattern.permute.xlu0 0
    %1412 = vperm.xlu0 %1411, %v1052
    %v1413 = vpop.permute.xlu0 %1412
    %1416 = vset.pattern.permute.xlu0 0
    %1417 = vperm.xlu0 %1416, %v1054
    %v1418 = vpop.permute.xlu0 %1417
    %1421 = vset.pattern.permute.xlu0 0
    %1422 = vperm.xlu0 %1421, %v1056
    %v1423 = vpop.permute.xlu0 %1422
    %1426 = vset.pattern.permute.xlu0 0
    %1427 = vperm.xlu0 %1426, %v1058
    %v1428 = vpop.permute.xlu0 %1427
    %1431 = vset.pattern.permute.xlu0 0
    %1432 = vperm.xlu0 %1431, %v1060
    %v1433 = vpop.permute.xlu0 %1432
    %1436 = vset.pattern.permute.xlu0 0
    %1437 = vperm.xlu0 %1436, %v1062
    %v1438 = vpop.permute.xlu0 %1437
    %1441 = vset.pattern.permute.xlu0 0
    %1442 = vperm.xlu0 %1441, %v1064
    %v1443 = vpop.permute.xlu0 %1442
    %1446 = vset.pattern.permute.xlu0 0
    %1447 = vperm.xlu0 %1446, %v1066
    %v1448 = vpop.permute.xlu0 %1447
    %1451 = vset.pattern.permute.xlu0 0
    %1452 = vperm.xlu0 %1451, %v1068
    %v1453 = vpop.permute.xlu0 %1452
    %1456 = vset.pattern.permute.xlu0 0
    %1457 = vperm.xlu0 %1456, %v1070
    %v1458 = vpop.permute.xlu0 %1457
    %1461 = vset.pattern.permute.xlu0 0
    %1462 = vperm.xlu0 %1461, %v1072
    %v1463 = vpop.permute.xlu0 %1462
    %1466 = vset.pattern.permute.xlu0 0
    %1467 = vperm.xlu0 %1466, %v1074
    %v1468 = vpop.permute.xlu0 %1467
    %1471 = vset.pattern.permute.xlu0 0
    %1472 = vperm.xlu0 %1471, %v1076
    %v1473 = vpop.permute.xlu0 %1472
    %1476 = vset.pattern.permute.xlu0 0
    %1477 = vperm.xlu0 %1476, %v1078
    %v1478 = vpop.permute.xlu0 %1477
    %v1480 = vmul.f32 %v1403, %v1384
    %v1481 = vmul.f32 %v1408, %v1385
    %v1482 = vmul.f32 %v1413, %v1386
    %v1483 = vmul.f32 %v1418, %v1387
    %v1484 = vmul.f32 %v1423, %v1388
    %v1485 = vmul.f32 %v1428, %v1389
    %v1486 = vmul.f32 %v1433, %v1390
    %v1487 = vmul.f32 %v1438, %v1391
    %v1488 = vmul.f32 %v1443, %v1392
    %v1489 = vmul.f32 %v1448, %v1393
    %v1490 = vmul.f32 %v1453, %v1394
    %v1491 = vmul.f32 %v1458, %v1395
    %v1492 = vmul.f32 %v1463, %v1396
    %v1493 = vmul.f32 %v1468, %v1397
    %v1494 = vmul.f32 %v1473, %v1398
    %v1495 = vmul.f32 %v1478, %v1399
    %v1496 = vadd.f32 %v1480, %v1322
    %v1497 = vadd.f32 %v1481, %v1325
    %v1498 = vadd.f32 %v1482, %v1330
    %v1499 = vadd.f32 %v1483, %v1333
    %v1500 = vadd.f32 %v1484, %v1338
    %v1501 = vadd.f32 %v1485, %v1341
    %v1502 = vadd.f32 %v1486, %v1346
    %v1503 = vadd.f32 %v1487, %v1349
    %v1504 = vadd.f32 %v1488, %v1354
    %v1505 = vadd.f32 %v1489, %v1357
    %v1506 = vadd.f32 %v1490, %v1362
    %v1507 = vadd.f32 %v1491, %v1365
    %v1508 = vadd.f32 %v1492, %v1370
    %v1509 = vadd.f32 %v1493, %v1373
    %v1510 = vadd.f32 %v1494, %v1378
    %v1511 = vadd.f32 %v1495, %v1381
    %1520 = vrot.lane.b32.xlu0 %v341, 120
    %v1521 = vpop.permute.xlu0 %1520
    %1522 = vrot.lane.b32.xlu0 %v342, 120
    %v1523 = vpop.permute.xlu0 %1522
    %1524 = vrot.lane.b32.xlu0 %v343, 120
    %v1525 = vpop.permute.xlu0 %1524
    %1526 = vrot.lane.b32.xlu0 %v344, 120
    %v1527 = vpop.permute.xlu0 %1526
    %1528 = vrot.lane.b32.xlu0 %v345, 120
    %v1529 = vpop.permute.xlu0 %1528
    %1530 = vrot.lane.b32.xlu0 %v346, 120
    %v1531 = vpop.permute.xlu0 %1530
    %1532 = vrot.lane.b32.xlu0 %v347, 120
    %v1533 = vpop.permute.xlu0 %1532
    %1534 = vrot.lane.b32.xlu0 %v348, 120
    %v1535 = vpop.permute.xlu0 %1534
    %1536 = vrot.lane.b32.xlu0 %v477, 120
    %v1537 = vpop.permute.xlu0 %1536
    %1538 = vrot.lane.b32.xlu0 %v478, 120
    %v1539 = vpop.permute.xlu0 %1538
    %1540 = vrot.lane.b32.xlu0 %v479, 120
    %v1541 = vpop.permute.xlu0 %1540
    %1542 = vrot.lane.b32.xlu0 %v480, 120
    %v1543 = vpop.permute.xlu0 %1542
    %1544 = vrot.lane.b32.xlu0 %v481, 120
    %v1545 = vpop.permute.xlu0 %1544
    %1546 = vrot.lane.b32.xlu0 %v482, 120
    %v1547 = vpop.permute.xlu0 %1546
    %1548 = vrot.lane.b32.xlu0 %v483, 120
    %v1549 = vpop.permute.xlu0 %1548
    %1550 = vrot.lane.b32.xlu0 %v484, 120
    %v1551 = vpop.permute.xlu0 %1550
    %1552 = vrot.lane.b32.xlu0 %v485, 120
    %v1553 = vpop.permute.xlu0 %1552
    %1554 = vrot.lane.b32.xlu0 %v486, 120
    %v1555 = vpop.permute.xlu0 %1554
    %1556 = vrot.lane.b32.xlu0 %v487, 120
    %v1557 = vpop.permute.xlu0 %1556
    %1558 = vrot.lane.b32.xlu0 %v488, 120
    %v1559 = vpop.permute.xlu0 %1558
    %1560 = vrot.lane.b32.xlu0 %v489, 120
    %v1561 = vpop.permute.xlu0 %1560
    %1562 = vrot.lane.b32.xlu0 %v490, 120
    %v1563 = vpop.permute.xlu0 %1562
    %1564 = vrot.lane.b32.xlu0 %v491, 120
    %v1565 = vpop.permute.xlu0 %1564
    %1566 = vrot.lane.b32.xlu0 %v492, 120
    %v1567 = vpop.permute.xlu0 %1566
    %v1569 = vsel %vm493, %v1521, 0
    %v1572 = vsel %vm493, %v1523, 0
    %v1575 = vsel %vm493, %v1525, 0
    %v1578 = vsel %vm493, %v1527, 0
    %v1581 = vsel %vm493, %v1529, 0
    %v1584 = vsel %vm493, %v1531, 0
    %v1587 = vsel %vm493, %v1533, 0
    %v1590 = vsel %vm493, %v1535, 0
    %v1593 = vsel %vm493, %v1537, 0
    %v1596 = vsel %vm493, %v1539, 0
    %v1599 = vsel %vm493, %v1541, 0
    %v1602 = vsel %vm493, %v1543, 0
    %v1605 = vsel %vm493, %v1545, 0
    %v1608 = vsel %vm493, %v1547, 0
    %v1611 = vsel %vm493, %v1549, 0
    %v1614 = vsel %vm493, %v1551, 0
    %v1617 = vsel %vm493, %v1553, 0
    %v1620 = vsel %vm493, %v1555, 0
    %v1623 = vsel %vm493, %v1557, 0
    %v1626 = vsel %vm493, %v1559, 0
    %v1629 = vsel %vm493, %v1561, 0
    %v1632 = vsel %vm493, %v1563, 0
    %v1635 = vsel %vm493, %v1565, 0
    %v1638 = vsel %vm493, %v1567, 0
    %1640 = vmatprep.subr.bf16.mxu0 0
    %1641 = vmatpush1.bf16.xpose.msra.mxu0 %v1593
    %1642 = vmatprep.subr.bf16.mxu0 0
    %1643 = vmatpush1.bf16.xpose.msra.mxu0 %v1596
    %1644 = vmatprep.subr.bf16.mxu0 0
    %1645 = vmatpush1.bf16.xpose.msra.mxu0 %v1599
    %1646 = vmatprep.subr.bf16.mxu0 0
    %1647 = vmatpush1.bf16.xpose.msra.mxu0 %v1602
    %1648 = vmatprep.subr.bf16.mxu0 0
    %1649 = vmatpush1.bf16.xpose.msra.mxu0 %v1605
    %1650 = vmatprep.subr.bf16.mxu0 0
    %1651 = vmatpush1.bf16.xpose.msra.mxu0 %v1608
    %1652 = vmatprep.subr.bf16.mxu0 0
    %1653 = vmatpush1.bf16.xpose.msra.mxu0 %v1611
    %1654 = vmatprep.subr.bf16.mxu0 0
    %1655 = vmatpush1.bf16.xpose.msra.mxu0 %v1614
    %1656 = vmatprep.subr.bf16.mxu0 0
    %1657 = vmatpush1.bf16.xpose.msra.mxu0 %v1617
    %1658 = vmatprep.subr.bf16.mxu0 0
    %1659 = vmatpush1.bf16.xpose.msra.mxu0 %v1620
    %1660 = vmatprep.subr.bf16.mxu0 0
    %1661 = vmatpush1.bf16.xpose.msra.mxu0 %v1623
    %1662 = vmatprep.subr.bf16.mxu0 0
    %1663 = vmatpush1.bf16.xpose.msra.mxu0 %v1626
    %1664 = vmatprep.subr.bf16.mxu0 0
    %1665 = vmatpush1.bf16.xpose.msra.mxu0 %v1629
    %1666 = vmatprep.subr.bf16.mxu0 0
    %1667 = vmatpush1.bf16.xpose.msra.mxu0 %v1632
    %1668 = vmatprep.subr.bf16.mxu0 0
    %1669 = vmatpush1.bf16.xpose.msra.mxu0 %v1635
    %1670 = vmatprep.subr.bf16.mxu0 0
    %1671 = vmatpush1.bf16.xpose.msra.mxu0 %v1638
    %1672 = vmatprep.mubr.bf16.mxu0 0
    %1673 = vmatmul.mubr.bf16.gmra.mrb[0].mxu0 %v1569
    %v1674 = vpop.f32.mrb[0].mxu0
    %v1675 = vadd.f32 0.0, %v1674
    %v1676 = vpop.f32.mrb[0].mxu0
    %v1677 = vadd.f32 0.0, %v1676
    %v1678 = vpop.f32.mrb[0].mxu0
    %v1679 = vadd.f32 0.0, %v1678
    %v1680 = vpop.f32.mrb[0].mxu0
    %v1681 = vadd.f32 0.0, %v1680
    %1682 = vmatprep.mubr.bf16.mxu0 0
    %1683 = vmatmul.mubr.bf16.gmra.mrb[0].mxu0 %v1572
    %v1684 = vpop.f32.mrb[0].mxu0
    %v1685 = vadd.f32 0.0, %v1684
    %v1686 = vpop.f32.mrb[0].mxu0
    %v1687 = vadd.f32 0.0, %v1686
    %v1688 = vpop.f32.mrb[0].mxu0
    %v1689 = vadd.f32 0.0, %v1688
    %v1690 = vpop.f32.mrb[0].mxu0
    %v1691 = vadd.f32 0.0, %v1690
    %1692 = vmatprep.mubr.bf16.mxu0 0
    %1693 = vmatmul.mubr.bf16.gmra.mrb[0].mxu0 %v1575
    %v1694 = vpop.f32.mrb[0].mxu0
    %v1695 = vadd.f32 0.0, %v1694
    %v1696 = vpop.f32.mrb[0].mxu0
    %v1697 = vadd.f32 0.0, %v1696
    %v1698 = vpop.f32.mrb[0].mxu0
    %v1699 = vadd.f32 0.0, %v1698
    %v1700 = vpop.f32.mrb[0].mxu0
    %v1701 = vadd.f32 0.0, %v1700
    %1702 = vmatprep.mubr.bf16.mxu0 0
    %1703 = vmatmul.mubr.bf16.gmra.mrb[0].mxu0 %v1578
    %v1704 = vpop.f32.mrb[0].mxu0
    %v1705 = vadd.f32 0.0, %v1704
    %v1706 = vpop.f32.mrb[0].mxu0
    %v1707 = vadd.f32 0.0, %v1706
    %v1708 = vpop.f32.mrb[0].mxu0
    %v1709 = vadd.f32 0.0, %v1708
    %v1710 = vpop.f32.mrb[0].mxu0
    %v1711 = vadd.f32 0.0, %v1710
    %1712 = vmatprep.mubr.bf16.mxu0 0
    %1713 = vmatmul.mubr.bf16.gmra.mrb[0].mxu0 %v1581
    %v1714 = vpop.f32.mrb[0].mxu0
    %v1715 = vadd.f32 0.0, %v1714
    %v1716 = vpop.f32.mrb[0].mxu0
    %v1717 = vadd.f32 0.0, %v1716
    %v1718 = vpop.f32.mrb[0].mxu0
    %v1719 = vadd.f32 0.0, %v1718
    %v1720 = vpop.f32.mrb[0].mxu0
    %v1721 = vadd.f32 0.0, %v1720
    %1722 = vmatprep.mubr.bf16.mxu0 0
    %1723 = vmatmul.mubr.bf16.gmra.mrb[0].mxu0 %v1584
    %v1724 = vpop.f32.mrb[0].mxu0
    %v1725 = vadd.f32 0.0, %v1724
    %v1726 = vpop.f32.mrb[0].mxu0
    %v1727 = vadd.f32 0.0, %v1726
    %v1728 = vpop.f32.mrb[0].mxu0
    %v1729 = vadd.f32 0.0, %v1728
    %v1730 = vpop.f32.mrb[0].mxu0
    %v1731 = vadd.f32 0.0, %v1730
    %1732 = vmatprep.mubr.bf16.mxu0 0
    %1733 = vmatmul.mubr.bf16.gmra.mrb[0].mxu0 %v1587
    %v1734 = vpop.f32.mrb[0].mxu0
    %v1735 = vadd.f32 0.0, %v1734
    %v1736 = vpop.f32.mrb[0].mxu0
    %v1737 = vadd.f32 0.0, %v1736
    %v1738 = vpop.f32.mrb[0].mxu0
    %v1739 = vadd.f32 0.0, %v1738
    %v1740 = vpop.f32.mrb[0].mxu0
    %v1741 = vadd.f32 0.0, %v1740
    %1742 = vmatprep.mubr.bf16.mxu0 0
    %1743 = vmatmul.mubr.bf16.gmra.mrb[0].mxu0 %v1590
    %v1744 = vpop.f32.mrb[0].mxu0
    %v1745 = vadd.f32 0.0, %v1744
    %v1746 = vpop.f32.mrb[0].mxu0
    %v1747 = vadd.f32 0.0, %v1746
    %v1748 = vpop.f32.mrb[0].mxu0
    %v1749 = vadd.f32 0.0, %v1748
    %v1750 = vpop.f32.mrb[0].mxu0
    %v1751 = vadd.f32 0.0, %v1750
    %1752 = vdwg.mxu0
    %v1753 = vmul.f32 %v1675, 0.35355338
    %v1754 = vmul.f32 %v1677, 0.35355338
    %v1755 = vmul.f32 %v1679, 0.35355338
    %v1756 = vmul.f32 %v1681, 0.35355338
    %v1757 = vmul.f32 %v1685, 0.35355338
    %v1758 = vmul.f32 %v1687, 0.35355338
    %v1759 = vmul.f32 %v1689, 0.35355338
    %v1760 = vmul.f32 %v1691, 0.35355338
    %v1761 = vmul.f32 %v1695, 0.35355338
    %v1762 = vmul.f32 %v1697, 0.35355338
    %v1763 = vmul.f32 %v1699, 0.35355338
    %v1764 = vmul.f32 %v1701, 0.35355338
    %v1765 = vmul.f32 %v1705, 0.35355338
    %v1766 = vmul.f32 %v1707, 0.35355338
    %v1767 = vmul.f32 %v1709, 0.35355338
    %v1768 = vmul.f32 %v1711, 0.35355338
    %v1769 = vmul.f32 %v1715, 0.35355338
    %v1770 = vmul.f32 %v1717, 0.35355338
    %v1771 = vmul.f32 %v1719, 0.35355338
    %v1772 = vmul.f32 %v1721, 0.35355338
    %v1773 = vmul.f32 %v1725, 0.35355338
    %v1774 = vmul.f32 %v1727, 0.35355338
    %v1775 = vmul.f32 %v1729, 0.35355338
    %v1776 = vmul.f32 %v1731, 0.35355338
    %v1777 = vmul.f32 %v1735, 0.35355338
    %v1778 = vmul.f32 %v1737, 0.35355338
    %v1779 = vmul.f32 %v1739, 0.35355338
    %v1780 = vmul.f32 %v1741, 0.35355338
    %v1781 = vmul.f32 %v1745, 0.35355338
    %v1782 = vmul.f32 %v1747, 0.35355338
    %v1783 = vmul.f32 %v1749, 0.35355338
    %v1784 = vmul.f32 %v1751, 0.35355338
    %v1785 = vsel %vm293, %v1753, -1e+30
    %v1786 = vsel %vm294, %v1754, -1e+30
    %v1787 = vsel %vm295, %v1755, -1e+30
    %v1788 = vsel %vm296, %v1756, -1e+30
    %v1789 = vsel %vm297, %v1757, -1e+30
    %v1790 = vsel %vm298, %v1758, -1e+30
    %v1791 = vsel %vm299, %v1759, -1e+30
    %v1792 = vsel %vm300, %v1760, -1e+30
    %v1793 = vsel %vm301, %v1761, -1e+30
    %v1794 = vsel %vm302, %v1762, -1e+30
    %v1795 = vsel %vm303, %v1763, -1e+30
    %v1796 = vsel %vm304, %v1764, -1e+30
    %v1797 = vsel %vm305, %v1765, -1e+30
    %v1798 = vsel %vm306, %v1766, -1e+30
    %v1799 = vsel %vm307, %v1767, -1e+30
    %v1800 = vsel %vm308, %v1768, -1e+30
    %v1801 = vsel %vm309, %v1769, -1e+30
    %v1802 = vsel %vm310, %v1770, -1e+30
    %v1803 = vsel %vm311, %v1771, -1e+30
    %v1804 = vsel %vm312, %v1772, -1e+30
    %v1805 = vsel %vm313, %v1773, -1e+30
    %v1806 = vsel %vm314, %v1774, -1e+30
    %v1807 = vsel %vm315, %v1775, -1e+30
    %v1808 = vsel %vm316, %v1776, -1e+30
    %v1809 = vsel %vm317, %v1777, -1e+30
    %v1810 = vsel %vm318, %v1778, -1e+30
    %v1811 = vsel %vm319, %v1779, -1e+30
    %v1812 = vsel %vm320, %v1780, -1e+30
    %v1813 = vsel %vm321, %v1781, -1e+30
    %v1814 = vsel %vm322, %v1782, -1e+30
    %v1815 = vsel %vm323, %v1783, -1e+30
    %v1816 = vsel %vm324, %v1784, -1e+30
    %v1817 = vmax.f32 %v1785, %v1786
    %1818 = vmax.xlane.f32.xlu0 %v1817
    %v1819 = vpop.xlane.xlu0 %1818
    %v1820 = vmax.f32 %v1787, %v1788
    %1821 = vmax.xlane.f32.xlu0 %v1820
    %v1822 = vpop.xlane.xlu0 %1821
    %v1823 = vmax.f32 %v1789, %v1790
    %1824 = vmax.xlane.f32.xlu0 %v1823
    %v1825 = vpop.xlane.xlu0 %1824
    %v1826 = vmax.f32 %v1791, %v1792
    %1827 = vmax.xlane.f32.xlu0 %v1826
    %v1828 = vpop.xlane.xlu0 %1827
    %v1829 = vmax.f32 %v1793, %v1794
    %1830 = vmax.xlane.f32.xlu0 %v1829
    %v1831 = vpop.xlane.xlu0 %1830
    %v1832 = vmax.f32 %v1795, %v1796
    %1833 = vmax.xlane.f32.xlu0 %v1832
    %v1834 = vpop.xlane.xlu0 %1833
    %v1835 = vmax.f32 %v1797, %v1798
    %1836 = vmax.xlane.f32.xlu0 %v1835
    %v1837 = vpop.xlane.xlu0 %1836
    %v1838 = vmax.f32 %v1799, %v1800
    %1839 = vmax.xlane.f32.xlu0 %v1838
    %v1840 = vpop.xlane.xlu0 %1839
    %v1841 = vmax.f32 %v1801, %v1802
    %1842 = vmax.xlane.f32.xlu0 %v1841
    %v1843 = vpop.xlane.xlu0 %1842
    %v1844 = vmax.f32 %v1803, %v1804
    %1845 = vmax.xlane.f32.xlu0 %v1844
    %v1846 = vpop.xlane.xlu0 %1845
    %v1847 = vmax.f32 %v1805, %v1806
    %1848 = vmax.xlane.f32.xlu0 %v1847
    %v1849 = vpop.xlane.xlu0 %1848
    %v1850 = vmax.f32 %v1807, %v1808
    %1851 = vmax.xlane.f32.xlu0 %v1850
    %v1852 = vpop.xlane.xlu0 %1851
    %v1853 = vmax.f32 %v1809, %v1810
    %1854 = vmax.xlane.f32.xlu0 %v1853
    %v1855 = vpop.xlane.xlu0 %1854
    %v1856 = vmax.f32 %v1811, %v1812
    %1857 = vmax.xlane.f32.xlu0 %v1856
    %v1858 = vpop.xlane.xlu0 %1857
    %v1859 = vmax.f32 %v1813, %v1814
    %1860 = vmax.xlane.f32.xlu0 %v1859
    %v1861 = vpop.xlane.xlu0 %1860
    %v1862 = vmax.f32 %v1815, %v1816
    %1863 = vmax.xlane.f32.xlu0 %v1862
    %v1864 = vpop.xlane.xlu0 %1863
    %v1865 = vmax.f32 %v743, %v1819
    %v1866 = vmax.f32 %v744, %v1822
    %v1867 = vmax.f32 %v745, %v1825
    %v1868 = vmax.f32 %v746, %v1828
    %v1869 = vmax.f32 %v747, %v1831
    %v1870 = vmax.f32 %v748, %v1834
    %v1871 = vmax.f32 %v749, %v1837
    %v1872 = vmax.f32 %v750, %v1840
    %v1873 = vmax.f32 %v751, %v1843
    %v1874 = vmax.f32 %v752, %v1846
    %v1875 = vmax.f32 %v753, %v1849
    %v1876 = vmax.f32 %v754, %v1852
    %v1877 = vmax.f32 %v755, %v1855
    %v1878 = vmax.f32 %v756, %v1858
    %v1879 = vmax.f32 %v757, %v1861
    %v1880 = vmax.f32 %v758, %v1864
    %1882 = vset.pattern.permute.xlu0 1
    %1883 = vperm.xlu0 %1882, %v1865
    %v1884 = vpop.permute.xlu0 %1883
    %1887 = vset.pattern.permute.xlu0 1
    %1888 = vperm.xlu0 %1887, %v1866
    %v1889 = vpop.permute.xlu0 %1888
    %1892 = vset.pattern.permute.xlu0 1
    %1893 = vperm.xlu0 %1892, %v1867
    %v1894 = vpop.permute.xlu0 %1893
    %1897 = vset.pattern.permute.xlu0 1
    %1898 = vperm.xlu0 %1897, %v1868
    %v1899 = vpop.permute.xlu0 %1898
    %1902 = vset.pattern.permute.xlu0 1
    %1903 = vperm.xlu0 %1902, %v1869
    %v1904 = vpop.permute.xlu0 %1903
    %1907 = vset.pattern.permute.xlu0 1
    %1908 = vperm.xlu0 %1907, %v1870
    %v1909 = vpop.permute.xlu0 %1908
    %1912 = vset.pattern.permute.xlu0 1
    %1913 = vperm.xlu0 %1912, %v1871
    %v1914 = vpop.permute.xlu0 %1913
    %1917 = vset.pattern.permute.xlu0 1
    %1918 = vperm.xlu0 %1917, %v1872
    %v1919 = vpop.permute.xlu0 %1918
    %1922 = vset.pattern.permute.xlu0 1
    %1923 = vperm.xlu0 %1922, %v1873
    %v1924 = vpop.permute.xlu0 %1923
    %1927 = vset.pattern.permute.xlu0 1
    %1928 = vperm.xlu0 %1927, %v1874
    %v1929 = vpop.permute.xlu0 %1928
    %1932 = vset.pattern.permute.xlu0 1
    %1933 = vperm.xlu0 %1932, %v1875
    %v1934 = vpop.permute.xlu0 %1933
    %1937 = vset.pattern.permute.xlu0 1
    %1938 = vperm.xlu0 %1937, %v1876
    %v1939 = vpop.permute.xlu0 %1938
    %1942 = vset.pattern.permute.xlu0 1
    %1943 = vperm.xlu0 %1942, %v1877
    %v1944 = vpop.permute.xlu0 %1943
    %1947 = vset.pattern.permute.xlu0 1
    %1948 = vperm.xlu0 %1947, %v1878
    %v1949 = vpop.permute.xlu0 %1948
    %1952 = vset.pattern.permute.xlu0 1
    %1953 = vperm.xlu0 %1952, %v1879
    %v1954 = vpop.permute.xlu0 %1953
    %1957 = vset.pattern.permute.xlu0 1
    %1958 = vperm.xlu0 %1957, %v1880
    %v1959 = vpop.permute.xlu0 %1958
    %v1961 = vsub.f32 %v1785, %v1884
    %v1962 = vsub.f32 %v1786, %v1884
    %v1963 = vsub.f32 %v1787, %v1889
    %v1964 = vsub.f32 %v1788, %v1889
    %v1965 = vsub.f32 %v1789, %v1894
    %v1966 = vsub.f32 %v1790, %v1894
    %v1967 = vsub.f32 %v1791, %v1899
    %v1968 = vsub.f32 %v1792, %v1899
    %v1969 = vsub.f32 %v1793, %v1904
    %v1970 = vsub.f32 %v1794, %v1904
    %v1971 = vsub.f32 %v1795, %v1909
    %v1972 = vsub.f32 %v1796, %v1909
    %v1973 = vsub.f32 %v1797, %v1914
    %v1974 = vsub.f32 %v1798, %v1914
    %v1975 = vsub.f32 %v1799, %v1919
    %v1976 = vsub.f32 %v1800, %v1919
    %v1977 = vsub.f32 %v1801, %v1924
    %v1978 = vsub.f32 %v1802, %v1924
    %v1979 = vsub.f32 %v1803, %v1929
    %v1980 = vsub.f32 %v1804, %v1929
    %v1981 = vsub.f32 %v1805, %v1934
    %v1982 = vsub.f32 %v1806, %v1934
    %v1983 = vsub.f32 %v1807, %v1939
    %v1984 = vsub.f32 %v1808, %v1939
    %v1985 = vsub.f32 %v1809, %v1944
    %v1986 = vsub.f32 %v1810, %v1944
    %v1987 = vsub.f32 %v1811, %v1949
    %v1988 = vsub.f32 %v1812, %v1949
    %v1989 = vsub.f32 %v1813, %v1954
    %v1990 = vsub.f32 %v1814, %v1954
    %v1991 = vsub.f32 %v1815, %v1959
    %v1992 = vsub.f32 %v1816, %v1959
    %v1993 = vmul.f32 %v1961, 1.442695
    %v1994 = vpow.pop %v1993
    %v1995 = vmul.f32 %v1962, 1.442695
    %v1996 = vpow.pop %v1995
    %v1997 = vmul.f32 %v1963, 1.442695
    %v1998 = vpow.pop %v1997
    %v1999 = vmul.f32 %v1964, 1.442695
    %v2000 = vpow.pop %v1999
    %v2001 = vmul.f32 %v1965, 1.442695
    %v2002 = vpow.pop %v2001
    %v2003 = vmul.f32 %v1966, 1.442695
    %v2004 = vpow.pop %v2003
    %v2005 = vmul.f32 %v1967, 1.442695
    %v2006 = vpow.pop %v2005
    %v2007 = vmul.f32 %v1968, 1.442695
    %v2008 = vpow.pop %v2007
    %v2009 = vmul.f32 %v1969, 1.442695
    %v2010 = vpow.pop %v2009
    %v2011 = vmul.f32 %v1970, 1.442695
    %v2012 = vpow.pop %v2011
    %v2013 = vmul.f32 %v1971, 1.442695
    %v2014 = vpow.pop %v2013
    %v2015 = vmul.f32 %v1972, 1.442695
    %v2016 = vpow.pop %v2015
    %v2017 = vmul.f32 %v1973, 1.442695
    %v2018 = vpow.pop %v2017
    %v2019 = vmul.f32 %v1974, 1.442695
    %v2020 = vpow.pop %v2019
    %v2021 = vmul.f32 %v1975, 1.442695
    %v2022 = vpow.pop %v2021
    %v2023 = vmul.f32 %v1976, 1.442695
    %v2024 = vpow.pop %v2023
    %v2025 = vmul.f32 %v1977, 1.442695
    %v2026 = vpow.pop %v2025
    %v2027 = vmul.f32 %v1978, 1.442695
    %v2028 = vpow.pop %v2027
    %v2029 = vmul.f32 %v1979, 1.442695
    %v2030 = vpow.pop %v2029
    %v2031 = vmul.f32 %v1980, 1.442695
    %v2032 = vpow.pop %v2031
    %v2033 = vmul.f32 %v1981, 1.442695
    %v2034 = vpow.pop %v2033
    %v2035 = vmul.f32 %v1982, 1.442695
    %v2036 = vpow.pop %v2035
    %v2037 = vmul.f32 %v1983, 1.442695
    %v2038 = vpow.pop %v2037
    %v2039 = vmul.f32 %v1984, 1.442695
    %v2040 = vpow.pop %v2039
    %v2041 = vmul.f32 %v1985, 1.442695
    %v2042 = vpow.pop %v2041
    %v2043 = vmul.f32 %v1986, 1.442695
    %v2044 = vpow.pop %v2043
    %v2045 = vmul.f32 %v1987, 1.442695
    %v2046 = vpow.pop %v2045
    %v2047 = vmul.f32 %v1988, 1.442695
    %v2048 = vpow.pop %v2047
    %v2049 = vmul.f32 %v1989, 1.442695
    %v2050 = vpow.pop %v2049
    %v2051 = vmul.f32 %v1990, 1.442695
    %v2052 = vpow.pop %v2051
    %v2053 = vmul.f32 %v1991, 1.442695
    %v2054 = vpow.pop %v2053
    %v2055 = vmul.f32 %v1992, 1.442695
    %v2056 = vpow.pop %v2055
    %v2057 = vsel %vm293, %v1994, 0.0
    %v2058 = vsel %vm294, %v1996, 0.0
    %v2059 = vsel %vm295, %v1998, 0.0
    %v2060 = vsel %vm296, %v2000, 0.0
    %v2061 = vsel %vm297, %v2002, 0.0
    %v2062 = vsel %vm298, %v2004, 0.0
    %v2063 = vsel %vm299, %v2006, 0.0
    %v2064 = vsel %vm300, %v2008, 0.0
    %v2065 = vsel %vm301, %v2010, 0.0
    %v2066 = vsel %vm302, %v2012, 0.0
    %v2067 = vsel %vm303, %v2014, 0.0
    %v2068 = vsel %vm304, %v2016, 0.0
    %v2069 = vsel %vm305, %v2018, 0.0
    %v2070 = vsel %vm306, %v2020, 0.0
    %v2071 = vsel %vm307, %v2022, 0.0
    %v2072 = vsel %vm308, %v2024, 0.0
    %v2073 = vsel %vm309, %v2026, 0.0
    %v2074 = vsel %vm310, %v2028, 0.0
    %v2075 = vsel %vm311, %v2030, 0.0
    %v2076 = vsel %vm312, %v2032, 0.0
    %v2077 = vsel %vm313, %v2034, 0.0
    %v2078 = vsel %vm314, %v2036, 0.0
    %v2079 = vsel %vm315, %v2038, 0.0
    %v2080 = vsel %vm316, %v2040, 0.0
    %v2081 = vsel %vm317, %v2042, 0.0
    %v2082 = vsel %vm318, %v2044, 0.0
    %v2083 = vsel %vm319, %v2046, 0.0
    %v2084 = vsel %vm320, %v2048, 0.0
    %v2085 = vsel %vm321, %v2050, 0.0
    %v2086 = vsel %vm322, %v2052, 0.0
    %v2087 = vsel %vm323, %v2054, 0.0
    %v2088 = vsel %vm324, %v2056, 0.0
    %v2089 = vsub.f32 %v743, %v1865
    %v2090 = vsub.f32 %v744, %v1866
    %v2091 = vsub.f32 %v745, %v1867
    %v2092 = vsub.f32 %v746, %v1868
    %v2093 = vsub.f32 %v747, %v1869
    %v2094 = vsub.f32 %v748, %v1870
    %v2095 = vsub.f32 %v749, %v1871
    %v2096 = vsub.f32 %v750, %v1872
    %v2097 = vsub.f32 %v751, %v1873
    %v2098 = vsub.f32 %v752, %v1874
    %v2099 = vsub.f32 %v753, %v1875
    %v2100 = vsub.f32 %v754, %v1876
    %v2101 = vsub.f32 %v755, %v1877
    %v2102 = vsub.f32 %v756, %v1878
    %v2103 = vsub.f32 %v757, %v1879
    %v2104 = vsub.f32 %v758, %v1880
    %v2105 = vmul.f32 %v2089, 1.442695
    %v2106 = vpow.pop %v2105
    %v2107 = vmul.f32 %v2090, 1.442695
    %v2108 = vpow.pop %v2107
    %v2109 = vmul.f32 %v2091, 1.442695
    %v2110 = vpow.pop %v2109
    %v2111 = vmul.f32 %v2092, 1.442695
    %v2112 = vpow.pop %v2111
    %v2113 = vmul.f32 %v2093, 1.442695
    %v2114 = vpow.pop %v2113
    %v2115 = vmul.f32 %v2094, 1.442695
    %v2116 = vpow.pop %v2115
    %v2117 = vmul.f32 %v2095, 1.442695
    %v2118 = vpow.pop %v2117
    %v2119 = vmul.f32 %v2096, 1.442695
    %v2120 = vpow.pop %v2119
    %v2121 = vmul.f32 %v2097, 1.442695
    %v2122 = vpow.pop %v2121
    %v2123 = vmul.f32 %v2098, 1.442695
    %v2124 = vpow.pop %v2123
    %v2125 = vmul.f32 %v2099, 1.442695
    %v2126 = vpow.pop %v2125
    %v2127 = vmul.f32 %v2100, 1.442695
    %v2128 = vpow.pop %v2127
    %v2129 = vmul.f32 %v2101, 1.442695
    %v2130 = vpow.pop %v2129
    %v2131 = vmul.f32 %v2102, 1.442695
    %v2132 = vpow.pop %v2131
    %v2133 = vmul.f32 %v2103, 1.442695
    %v2134 = vpow.pop %v2133
    %v2135 = vmul.f32 %v2104, 1.442695
    %v2136 = vpow.pop %v2135
    %v2137 = vmul.f32 %v2106, %v1079
    %v2138 = vmul.f32 %v2108, %v1080
    %v2139 = vmul.f32 %v2110, %v1081
    %v2140 = vmul.f32 %v2112, %v1082
    %v2141 = vmul.f32 %v2114, %v1083
    %v2142 = vmul.f32 %v2116, %v1084
    %v2143 = vmul.f32 %v2118, %v1085
    %v2144 = vmul.f32 %v2120, %v1086
    %v2145 = vmul.f32 %v2122, %v1087
    %v2146 = vmul.f32 %v2124, %v1088
    %v2147 = vmul.f32 %v2126, %v1089
    %v2148 = vmul.f32 %v2128, %v1090
    %v2149 = vmul.f32 %v2130, %v1091
    %v2150 = vmul.f32 %v2132, %v1092
    %v2151 = vmul.f32 %v2134, %v1093
    %v2152 = vmul.f32 %v2136, %v1094
    %v2153 = vadd.f32 %v2057, %v2058
    %2154 = vadd.xlane.f32.xlu0 %v2153
    %v2155 = vpop.xlane.xlu0 %2154
    %v2156 = vadd.f32 %v2059, %v2060
    %2157 = vadd.xlane.f32.xlu0 %v2156
    %v2158 = vpop.xlane.xlu0 %2157
    %v2159 = vadd.f32 %v2061, %v2062
    %2160 = vadd.xlane.f32.xlu0 %v2159
    %v2161 = vpop.xlane.xlu0 %2160
    %v2162 = vadd.f32 %v2063, %v2064
    %2163 = vadd.xlane.f32.xlu0 %v2162
    %v2164 = vpop.xlane.xlu0 %2163
    %v2165 = vadd.f32 %v2065, %v2066
    %2166 = vadd.xlane.f32.xlu0 %v2165
    %v2167 = vpop.xlane.xlu0 %2166
    %v2168 = vadd.f32 %v2067, %v2068
    %2169 = vadd.xlane.f32.xlu0 %v2168
    %v2170 = vpop.xlane.xlu0 %2169
    %v2171 = vadd.f32 %v2069, %v2070
    %2172 = vadd.xlane.f32.xlu0 %v2171
    %v2173 = vpop.xlane.xlu0 %2172
    %v2174 = vadd.f32 %v2071, %v2072
    %2175 = vadd.xlane.f32.xlu0 %v2174
    %v2176 = vpop.xlane.xlu0 %2175
    %v2177 = vadd.f32 %v2073, %v2074
    %2178 = vadd.xlane.f32.xlu0 %v2177
    %v2179 = vpop.xlane.xlu0 %2178
    %v2180 = vadd.f32 %v2075, %v2076
    %2181 = vadd.xlane.f32.xlu0 %v2180
    %v2182 = vpop.xlane.xlu0 %2181
    %v2183 = vadd.f32 %v2077, %v2078
    %2184 = vadd.xlane.f32.xlu0 %v2183
    %v2185 = vpop.xlane.xlu0 %2184
    %v2186 = vadd.f32 %v2079, %v2080
    %2187 = vadd.xlane.f32.xlu0 %v2186
    %v2188 = vpop.xlane.xlu0 %2187
    %v2189 = vadd.f32 %v2081, %v2082
    %2190 = vadd.xlane.f32.xlu0 %v2189
    %v2191 = vpop.xlane.xlu0 %2190
    %v2192 = vadd.f32 %v2083, %v2084
    %2193 = vadd.xlane.f32.xlu0 %v2192
    %v2194 = vpop.xlane.xlu0 %2193
    %v2195 = vadd.f32 %v2085, %v2086
    %2196 = vadd.xlane.f32.xlu0 %v2195
    %v2197 = vpop.xlane.xlu0 %2196
    %v2198 = vadd.f32 %v2087, %v2088
    %2199 = vadd.xlane.f32.xlu0 %v2198
    %v2200 = vpop.xlane.xlu0 %2199
    %v2201 = vadd.f32 %v2137, %v2155
    %v2202 = vadd.f32 %v2138, %v2158
    %v2203 = vadd.f32 %v2139, %v2161
    %v2204 = vadd.f32 %v2140, %v2164
    %v2205 = vadd.f32 %v2141, %v2167
    %v2206 = vadd.f32 %v2142, %v2170
    %v2207 = vadd.f32 %v2143, %v2173
    %v2208 = vadd.f32 %v2144, %v2176
    %v2209 = vadd.f32 %v2145, %v2179
    %v2210 = vadd.f32 %v2146, %v2182
    %v2211 = vadd.f32 %v2147, %v2185
    %v2212 = vadd.f32 %v2148, %v2188
    %v2213 = vadd.f32 %v2149, %v2191
    %v2214 = vadd.f32 %v2150, %v2194
    %v2215 = vadd.f32 %v2151, %v2197
    %v2216 = vadd.f32 %v2152, %v2200
    %v2217 = vpack.c.bf16 %v2059, %v2057
    %v2218 = vpack.c.bf16 %v2060, %v2058
    %v2219 = vpack.c.bf16 %v2063, %v2061
    %v2220 = vpack.c.bf16 %v2064, %v2062
    %v2221 = vpack.c.bf16 %v2067, %v2065
    %v2222 = vpack.c.bf16 %v2068, %v2066
    %v2223 = vpack.c.bf16 %v2071, %v2069
    %v2224 = vpack.c.bf16 %v2072, %v2070
    %v2225 = vpack.c.bf16 %v2075, %v2073
    %v2226 = vpack.c.bf16 %v2076, %v2074
    %v2227 = vpack.c.bf16 %v2079, %v2077
    %v2228 = vpack.c.bf16 %v2080, %v2078
    %v2229 = vpack.c.bf16 %v2083, %v2081
    %v2230 = vpack.c.bf16 %v2084, %v2082
    %v2231 = vpack.c.bf16 %v2087, %v2085
    %v2232 = vpack.c.bf16 %v2088, %v2086
    %2233 = vrot.lane.b32.xlu0 %v1255, 120
    %v2234 = vpop.permute.xlu0 %2233
    %2235 = vrot.lane.b32.xlu0 %v1256, 120
    %v2236 = vpop.permute.xlu0 %2235
    %2237 = vrot.lane.b32.xlu0 %v1257, 120
    %v2238 = vpop.permute.xlu0 %2237
    %2239 = vrot.lane.b32.xlu0 %v1258, 120
    %v2240 = vpop.permute.xlu0 %2239
    %2241 = vrot.lane.b32.xlu0 %v1259, 120
    %v2242 = vpop.permute.xlu0 %2241
    %2243 = vrot.lane.b32.xlu0 %v1260, 120
    %v2244 = vpop.permute.xlu0 %2243
    %2245 = vrot.lane.b32.xlu0 %v1261, 120
    %v2246 = vpop.permute.xlu0 %2245
    %2247 = vrot.lane.b32.xlu0 %v1262, 120
    %v2248 = vpop.permute.xlu0 %2247
    %2249 = vrot.lane.b32.xlu0 %v1263, 120
    %v2250 = vpop.permute.xlu0 %2249
    %2251 = vrot.lane.b32.xlu0 %v1264, 120
    %v2252 = vpop.permute.xlu0 %2251
    %2253 = vrot.lane.b32.xlu0 %v1265, 120
    %v2254 = vpop.permute.xlu0 %2253
    %2255 = vrot.lane.b32.xlu0 %v1266, 120
    %v2256 = vpop.permute.xlu0 %2255
    %2257 = vrot.lane.b32.xlu0 %v1267, 120
    %v2258 = vpop.permute.xlu0 %2257
    %2259 = vrot.lane.b32.xlu0 %v1268, 120
    %v2260 = vpop.permute.xlu0 %2259
    %2261 = vrot.lane.b32.xlu0 %v1269, 120
    %v2262 = vpop.permute.xlu0 %2261
    %2263 = vrot.lane.b32.xlu0 %v1270, 120
    %v2264 = vpop.permute.xlu0 %2263
    %2281 = vmatprep.subr.bf16.mxu0 0
    %2282 = vmatpush1.bf16.msra.mxu0 %v2234
    %2283 = vmatprep.subr.bf16.mxu0 0
    %2284 = vmatpush1.bf16.msra.mxu0 %v2236
    %2285 = vmatprep.subr.bf16.mxu0 0
    %2286 = vmatpush1.bf16.msra.mxu0 %v2238
    %2287 = vmatprep.subr.bf16.mxu0 0
    %2288 = vmatpush1.bf16.msra.mxu0 %v2240
    %2289 = vmatprep.subr.bf16.mxu0 0
    %2290 = vmatpush1.bf16.msra.mxu0 %v2242
    %2291 = vmatprep.subr.bf16.mxu0 0
    %2292 = vmatpush1.bf16.msra.mxu0 %v2244
    %2293 = vmatprep.subr.bf16.mxu0 0
    %2294 = vmatpush1.bf16.msra.mxu0 %v2246
    %2295 = vmatprep.subr.bf16.mxu0 0
    %2296 = vmatpush1.bf16.msra.mxu0 %v2248
    %2297 = vmatprep.subr.bf16.mxu0 0
    %2298 = vmatpush1.bf16.msra.mxu0 %v2250
    %2299 = vmatprep.subr.bf16.mxu0 0
    %2300 = vmatpush1.bf16.msra.mxu0 %v2252
    %2301 = vmatprep.subr.bf16.mxu0 0
    %2302 = vmatpush1.bf16.msra.mxu0 %v2254
    %2303 = vmatprep.subr.bf16.mxu0 0
    %2304 = vmatpush1.bf16.msra.mxu0 %v2256
    %2305 = vmatprep.subr.bf16.mxu0 0
    %2306 = vmatpush1.bf16.msra.mxu0 %v2258
    %2307 = vmatprep.subr.bf16.mxu0 0
    %2308 = vmatpush1.bf16.msra.mxu0 %v2260
    %2309 = vmatprep.subr.bf16.mxu0 0
    %2310 = vmatpush1.bf16.msra.mxu0 %v2262
    %2311 = vmatprep.subr.bf16.mxu0 0
    %2312 = vmatpush1.bf16.msra.mxu0 %v2264
    %2313 = vmatprep.mubr.bf16.mxu0 %v2218
    %2314 = vmatmul.mubr.bf16.gmra.mrb[0].mxu0 %v2217
    %v2315 = vpop.f32.mrb[0].mxu0
    %v2316 = vadd.f32 0.0, %v2315
    %v2317 = vpop.f32.mrb[0].mxu0
    %v2318 = vpop.f32.mrb[0].mxu0
    %v2319 = vadd.f32 0.0, %v2318
    %v2320 = vpop.f32.mrb[0].mxu0
    %2321 = vmatprep.mubr.bf16.mxu0 %v2220
    %2322 = vmatmul.mubr.bf16.gmra.mrb[0].mxu0 %v2219
    %v2323 = vpop.f32.mrb[0].mxu0
    %v2324 = vadd.f32 0.0, %v2323
    %v2325 = vpop.f32.mrb[0].mxu0
    %v2326 = vpop.f32.mrb[0].mxu0
    %v2327 = vadd.f32 0.0, %v2326
    %v2328 = vpop.f32.mrb[0].mxu0
    %2329 = vmatprep.mubr.bf16.mxu0 %v2222
    %2330 = vmatmul.mubr.bf16.gmra.mrb[0].mxu0 %v2221
    %v2331 = vpop.f32.mrb[0].mxu0
    %v2332 = vadd.f32 0.0, %v2331
    %v2333 = vpop.f32.mrb[0].mxu0
    %v2334 = vpop.f32.mrb[0].mxu0
    %v2335 = vadd.f32 0.0, %v2334
    %v2336 = vpop.f32.mrb[0].mxu0
    %2337 = vmatprep.mubr.bf16.mxu0 %v2224
    %2338 = vmatmul.mubr.bf16.gmra.mrb[0].mxu0 %v2223
    %v2339 = vpop.f32.mrb[0].mxu0
    %v2340 = vadd.f32 0.0, %v2339
    %v2341 = vpop.f32.mrb[0].mxu0
    %v2342 = vpop.f32.mrb[0].mxu0
    %v2343 = vadd.f32 0.0, %v2342
    %v2344 = vpop.f32.mrb[0].mxu0
    %2345 = vmatprep.mubr.bf16.mxu0 %v2226
    %2346 = vmatmul.mubr.bf16.gmra.mrb[0].mxu0 %v2225
    %v2347 = vpop.f32.mrb[0].mxu0
    %v2348 = vadd.f32 0.0, %v2347
    %v2349 = vpop.f32.mrb[0].mxu0
    %v2350 = vpop.f32.mrb[0].mxu0
    %v2351 = vadd.f32 0.0, %v2350
    %v2352 = vpop.f32.mrb[0].mxu0
    %2353 = vmatprep.mubr.bf16.mxu0 %v2228
    %2354 = vmatmul.mubr.bf16.gmra.mrb[0].mxu0 %v2227
    %v2355 = vpop.f32.mrb[0].mxu0
    %v2356 = vadd.f32 0.0, %v2355
    %v2357 = vpop.f32.mrb[0].mxu0
    %v2358 = vpop.f32.mrb[0].mxu0
    %v2359 = vadd.f32 0.0, %v2358
    %v2360 = vpop.f32.mrb[0].mxu0
    %2361 = vmatprep.mubr.bf16.mxu0 %v2230
    %2362 = vmatmul.mubr.bf16.gmra.mrb[0].mxu0 %v2229
    %v2363 = vpop.f32.mrb[0].mxu0
    %v2364 = vadd.f32 0.0, %v2363
    %v2365 = vpop.f32.mrb[0].mxu0
    %v2366 = vpop.f32.mrb[0].mxu0
    %v2367 = vadd.f32 0.0, %v2366
    %v2368 = vpop.f32.mrb[0].mxu0
    %2369 = vmatprep.mubr.bf16.mxu0 %v2232
    %2370 = vmatmul.mubr.bf16.gmra.mrb[0].mxu0 %v2231
    %v2371 = vpop.f32.mrb[0].mxu0
    %v2372 = vadd.f32 0.0, %v2371
    %v2373 = vpop.f32.mrb[0].mxu0
    %v2374 = vpop.f32.mrb[0].mxu0
    %v2375 = vadd.f32 0.0, %v2374
    %v2376 = vpop.f32.mrb[0].mxu0
    %2377 = vdwg.mxu0
    %2379 = vset.pattern.permute.xlu0 1
    %2380 = vperm.xlu0 %2379, %v2106
    %v2381 = vpop.permute.xlu0 %2380
    %2384 = vset.pattern.permute.xlu0 1
    %2385 = vperm.xlu0 %2384, %v2108
    %v2386 = vpop.permute.xlu0 %2385
    %2389 = vset.pattern.permute.xlu0 1
    %2390 = vperm.xlu0 %2389, %v2110
    %v2391 = vpop.permute.xlu0 %2390
    %2394 = vset.pattern.permute.xlu0 1
    %2395 = vperm.xlu0 %2394, %v2112
    %v2396 = vpop.permute.xlu0 %2395
    %2399 = vset.pattern.permute.xlu0 1
    %2400 = vperm.xlu0 %2399, %v2114
    %v2401 = vpop.permute.xlu0 %2400
    %2404 = vset.pattern.permute.xlu0 1
    %2405 = vperm.xlu0 %2404, %v2116
    %v2406 = vpop.permute.xlu0 %2405
    %2409 = vset.pattern.permute.xlu0 1
    %2410 = vperm.xlu0 %2409, %v2118
    %v2411 = vpop.permute.xlu0 %2410
    %2414 = vset.pattern.permute.xlu0 1
    %2415 = vperm.xlu0 %2414, %v2120
    %v2416 = vpop.permute.xlu0 %2415
    %2419 = vset.pattern.permute.xlu0 1
    %2420 = vperm.xlu0 %2419, %v2122
    %v2421 = vpop.permute.xlu0 %2420
    %2424 = vset.pattern.permute.xlu0 1
    %2425 = vperm.xlu0 %2424, %v2124
    %v2426 = vpop.permute.xlu0 %2425
    %2429 = vset.pattern.permute.xlu0 1
    %2430 = vperm.xlu0 %2429, %v2126
    %v2431 = vpop.permute.xlu0 %2430
    %2434 = vset.pattern.permute.xlu0 1
    %2435 = vperm.xlu0 %2434, %v2128
    %v2436 = vpop.permute.xlu0 %2435
    %2439 = vset.pattern.permute.xlu0 1
    %2440 = vperm.xlu0 %2439, %v2130
    %v2441 = vpop.permute.xlu0 %2440
    %2444 = vset.pattern.permute.xlu0 1
    %2445 = vperm.xlu0 %2444, %v2132
    %v2446 = vpop.permute.xlu0 %2445
    %2449 = vset.pattern.permute.xlu0 1
    %2450 = vperm.xlu0 %2449, %v2134
    %v2451 = vpop.permute.xlu0 %2450
    %2454 = vset.pattern.permute.xlu0 1
    %2455 = vperm.xlu0 %2454, %v2136
    %v2456 = vpop.permute.xlu0 %2455
    %v2458 = vmul.f32 %v2381, %v1384
    %v2459 = vmul.f32 %v2386, %v1385
    %v2460 = vmul.f32 %v2391, %v1386
    %v2461 = vmul.f32 %v2396, %v1387
    %v2462 = vmul.f32 %v2401, %v1388
    %v2463 = vmul.f32 %v2406, %v1389
    %v2464 = vmul.f32 %v2411, %v1390
    %v2465 = vmul.f32 %v2416, %v1391
    %v2466 = vmul.f32 %v2421, %v1392
    %v2467 = vmul.f32 %v2426, %v1393
    %v2468 = vmul.f32 %v2431, %v1394
    %v2469 = vmul.f32 %v2436, %v1395
    %v2470 = vmul.f32 %v2441, %v1396
    %v2471 = vmul.f32 %v2446, %v1397
    %v2472 = vmul.f32 %v2451, %v1398
    %v2473 = vmul.f32 %v2456, %v1399
    %2490 = vrot.lane.b32.xlu0 %v2316, 8
    %v2491 = vpop.permute.xlu0 %2490
    %2492 = vrot.lane.b32.xlu0 %v2319, 8
    %v2493 = vpop.permute.xlu0 %2492
    %2494 = vrot.lane.b32.xlu0 %v2324, 8
    %v2495 = vpop.permute.xlu0 %2494
    %2496 = vrot.lane.b32.xlu0 %v2327, 8
    %v2497 = vpop.permute.xlu0 %2496
    %2498 = vrot.lane.b32.xlu0 %v2332, 8
    %v2499 = vpop.permute.xlu0 %2498
    %2500 = vrot.lane.b32.xlu0 %v2335, 8
    %v2501 = vpop.permute.xlu0 %2500
    %2502 = vrot.lane.b32.xlu0 %v2340, 8
    %v2503 = vpop.permute.xlu0 %2502
    %2504 = vrot.lane.b32.xlu0 %v2343, 8
    %v2505 = vpop.permute.xlu0 %2504
    %2506 = vrot.lane.b32.xlu0 %v2348, 8
    %v2507 = vpop.permute.xlu0 %2506
    %2508 = vrot.lane.b32.xlu0 %v2351, 8
    %v2509 = vpop.permute.xlu0 %2508
    %2510 = vrot.lane.b32.xlu0 %v2356, 8
    %v2511 = vpop.permute.xlu0 %2510
    %2512 = vrot.lane.b32.xlu0 %v2359, 8
    %v2513 = vpop.permute.xlu0 %2512
    %2514 = vrot.lane.b32.xlu0 %v2364, 8
    %v2515 = vpop.permute.xlu0 %2514
    %2516 = vrot.lane.b32.xlu0 %v2367, 8
    %v2517 = vpop.permute.xlu0 %2516
    %2518 = vrot.lane.b32.xlu0 %v2372, 8
    %v2519 = vpop.permute.xlu0 %2518
    %2520 = vrot.lane.b32.xlu0 %v2375, 8
    %v2521 = vpop.permute.xlu0 %2520
    %v2538 = vadd.f32 %v2458, %v2491
    %v2539 = vadd.f32 %v2459, %v2493
    %v2540 = vadd.f32 %v2460, %v2495
    %v2541 = vadd.f32 %v2461, %v2497
    %v2542 = vadd.f32 %v2462, %v2499
    %v2543 = vadd.f32 %v2463, %v2501
    %v2544 = vadd.f32 %v2464, %v2503
    %v2545 = vadd.f32 %v2465, %v2505
    %v2546 = vadd.f32 %v2466, %v2507
    %v2547 = vadd.f32 %v2467, %v2509
    %v2548 = vadd.f32 %v2468, %v2511
    %v2549 = vadd.f32 %v2469, %v2513
    %v2550 = vadd.f32 %v2470, %v2515
    %v2551 = vadd.f32 %v2471, %v2517
    %v2552 = vadd.f32 %v2472, %v2519
    %v2553 = vadd.f32 %v2473, %v2521
    %v2554 = vsel %vm493, %v1496, %v2538
    %v2555 = vsel %vm493, %v1497, %v2539
    %v2556 = vsel %vm493, %v1498, %v2540
    %v2557 = vsel %vm493, %v1499, %v2541
    %v2558 = vsel %vm493, %v1500, %v2542
    %v2559 = vsel %vm493, %v1501, %v2543
    %v2560 = vsel %vm493, %v1502, %v2544
    %v2561 = vsel %vm493, %v1503, %v2545
    %v2562 = vsel %vm493, %v1504, %v2546
    %v2563 = vsel %vm493, %v1505, %v2547
    %v2564 = vsel %vm493, %v1506, %v2548
    %v2565 = vsel %vm493, %v1507, %v2549
    %v2566 = vsel %vm493, %v1508, %v2550
    %v2567 = vsel %vm493, %v1509, %v2551
    %v2568 = vsel %vm493, %v1510, %v2552
    %v2569 = vsel %vm493, %v1511, %v2553
    %vm2570 = vcmask 130048
    %2571 = vst.msk [vmem:[#allocation4] sm:$0xff] %vm2570, %v2554
    %2572 = vst.msk [vmem:[#allocation4 + $0x8] sm:$0xff] %vm2570, %v2555
    %2573 = vst.msk [vmem:[#allocation4 + $0x10] sm:$0xff] %vm2570, %v2556
    %2574 = vst.msk [vmem:[#allocation4 + $0x18] sm:$0xff] %vm2570, %v2557
    %2575 = vst.msk [vmem:[#allocation4 + $0x20] sm:$0xff] %vm2570, %v2558
    %2576 = vst.msk [vmem:[#allocation4 + $0x28] sm:$0xff] %vm2570, %v2559
    %2577 = vst.msk [vmem:[#allocation4 + $0x30] sm:$0xff] %vm2570, %v2560
    %2578 = vst.msk [vmem:[#allocation4 + $0x38] sm:$0xff] %vm2570, %v2561
    %2579 = vst.msk [vmem:[#allocation4 + $0x40] sm:$0xff] %vm2570, %v2562
    %2580 = vst.msk [vmem:[#allocation4 + $0x48] sm:$0xff] %vm2570, %v2563
    %2581 = vst.msk [vmem:[#allocation4 + $0x50] sm:$0xff] %vm2570, %v2564
    %2582 = vst.msk [vmem:[#allocation4 + $0x58] sm:$0xff] %vm2570, %v2565
    %2583 = vst.msk [vmem:[#allocation4 + $0x60] sm:$0xff] %vm2570, %v2566
    %2584 = vst.msk [vmem:[#allocation4 + $0x68] sm:$0xff] %vm2570, %v2567
    %2585 = vst.msk [vmem:[#allocation4 + $0x70] sm:$0xff] %vm2570, %v2568
    %2586 = vst.msk [vmem:[#allocation4 + $0x78] sm:$0xff] %vm2570, %v2569
    %vm2587 = vcmask 7168
    %v2588 = vsel %vm2587, %v807, %v1865
    %v2589 = vsel %vm2587, %v808, %v1866
    %v2590 = vsel %vm2587, %v809, %v1867
    %v2591 = vsel %vm2587, %v810, %v1868
    %v2592 = vsel %vm2587, %v811, %v1869
    %v2593 = vsel %vm2587, %v812, %v1870
    %v2594 = vsel %vm2587, %v813, %v1871
    %v2595 = vsel %vm2587, %v814, %v1872
    %v2596 = vsel %vm2587, %v815, %v1873
    %v2597 = vsel %vm2587, %v816, %v1874
    %v2598 = vsel %vm2587, %v817, %v1875
    %v2599 = vsel %vm2587, %v818, %v1876
    %v2600 = vsel %vm2587, %v819, %v1877
    %v2601 = vsel %vm2587, %v820, %v1878
    %v2602 = vsel %vm2587, %v821, %v1879
    %v2603 = vsel %vm2587, %v822, %v1880
    %vm2604 = vcmask 15360
    %2605 = vst.msk [vmem:[#allocation2] sm:$0xff] %vm2604, %v2588
    %2606 = vst.msk [vmem:[#allocation2 + $0x8] sm:$0xff] %vm2604, %v2589
    %2607 = vst.msk [vmem:[#allocation2 + $0x10] sm:$0xff] %vm2604, %v2590
    %2608 = vst.msk [vmem:[#allocation2 + $0x18] sm:$0xff] %vm2604, %v2591
    %2609 = vst.msk [vmem:[#allocation2 + $0x20] sm:$0xff] %vm2604, %v2592
    %2610 = vst.msk [vmem:[#allocation2 + $0x28] sm:$0xff] %vm2604, %v2593
    %2611 = vst.msk [vmem:[#allocation2 + $0x30] sm:$0xff] %vm2604, %v2594
    %2612 = vst.msk [vmem:[#allocation2 + $0x38] sm:$0xff] %vm2604, %v2595
    %2613 = vst.msk [vmem:[#allocation2 + $0x40] sm:$0xff] %vm2604, %v2596
    %2614 = vst.msk [vmem:[#allocation2 + $0x48] sm:$0xff] %vm2604, %v2597
    %2615 = vst.msk [vmem:[#allocation2 + $0x50] sm:$0xff] %vm2604, %v2598
    %2616 = vst.msk [vmem:[#allocation2 + $0x58] sm:$0xff] %vm2604, %v2599
    %2617 = vst.msk [vmem:[#allocation2 + $0x60] sm:$0xff] %vm2604, %v2600
    %2618 = vst.msk [vmem:[#allocation2 + $0x68] sm:$0xff] %vm2604, %v2601
    %2619 = vst.msk [vmem:[#allocation2 + $0x70] sm:$0xff] %vm2604, %v2602
    %2620 = vst.msk [vmem:[#allocation2 + $0x78] sm:$0xff] %vm2604, %v2603
    %v2621 = vsel %vm2587, %v1159, %v2201
    %v2622 = vsel %vm2587, %v1160, %v2202
    %v2623 = vsel %vm2587, %v1161, %v2203
    %v2624 = vsel %vm2587, %v1162, %v2204
    %v2625 = vsel %vm2587, %v1163, %v2205
    %v2626 = vsel %vm2587, %v1164, %v2206
    %v2627 = vsel %vm2587, %v1165, %v2207
    %v2628 = vsel %vm2587, %v1166, %v2208
    %v2629 = vsel %vm2587, %v1167, %v2209
    %v2630 = vsel %vm2587, %v1168, %v2210
    %v2631 = vsel %vm2587, %v1169, %v2211
    %v2632 = vsel %vm2587, %v1170, %v2212
    %v2633 = vsel %vm2587, %v1171, %v2213
    %v2634 = vsel %vm2587, %v1172, %v2214
    %v2635 = vsel %vm2587, %v1173, %v2215
    %v2636 = vsel %vm2587, %v1174, %v2216
    %2637 = vst.msk [vmem:[#allocation3] sm:$0xff] %vm2604, %v2621
    %2638 = vst.msk [vmem:[#allocation3 + $0x8] sm:$0xff] %vm2604, %v2622
    %2639 = vst.msk [vmem:[#allocation3 + $0x10] sm:$0xff] %vm2604, %v2623
    %2640 = vst.msk [vmem:[#allocation3 + $0x18] sm:$0xff] %vm2604, %v2624
    %2641 = vst.msk [vmem:[#allocation3 + $0x20] sm:$0xff] %vm2604, %v2625
    %2642 = vst.msk [vmem:[#allocation3 + $0x28] sm:$0xff] %vm2604, %v2626
    %2643 = vst.msk [vmem:[#allocation3 + $0x30] sm:$0xff] %vm2604, %v2627
    %2644 = vst.msk [vmem:[#allocation3 + $0x38] sm:$0xff] %vm2604, %v2628
    %2645 = vst.msk [vmem:[#allocation3 + $0x40] sm:$0xff] %vm2604, %v2629
    %2646 = vst.msk [vmem:[#allocation3 + $0x48] sm:$0xff] %vm2604, %v2630
    %2647 = vst.msk [vmem:[#allocation3 + $0x50] sm:$0xff] %vm2604, %v2631
    %2648 = vst.msk [vmem:[#allocation3 + $0x58] sm:$0xff] %vm2604, %v2632
    %2649 = vst.msk [vmem:[#allocation3 + $0x60] sm:$0xff] %vm2604, %v2633
    %2650 = vst.msk [vmem:[#allocation3 + $0x68] sm:$0xff] %vm2604, %v2634
    %2651 = vst.msk [vmem:[#allocation3 + $0x70] sm:$0xff] %vm2604, %v2635
    %2652 = vst.msk [vmem:[#allocation3 + $0x78] sm:$0xff] %vm2604, %v2636
  $region25: #{backbone_forward.16} parent=0 // pred_fallthru
    _
  // Predicated region
  $region26: #{backbone_forward.16} parent=0 // pred_check
    %p2653 = pneg %p190
  $region27: #{backbone_forward.16} parent=0 // pred_check_branch
    %2655 = sbr.rel (%p2653) target = $region29
  $region28: #{backbone_forward.16} parent=0 // pred_region
    %v2656 = vld [vmem:[#allocation3] sm:$0xff]
    %v2657 = vld [vmem:[#allocation3 + $0x8] sm:$0xff]
    %v2658 = vld [vmem:[#allocation3 + $0x10] sm:$0xff]
    %v2659 = vld [vmem:[#allocation3 + $0x18] sm:$0xff]
    %v2660 = vld [vmem:[#allocation3 + $0x20] sm:$0xff]
    %v2661 = vld [vmem:[#allocation3 + $0x28] sm:$0xff]
    %v2662 = vld [vmem:[#allocation3 + $0x30] sm:$0xff]
    %v2663 = vld [vmem:[#allocation3 + $0x38] sm:$0xff]
    %v2664 = vld [vmem:[#allocation3 + $0x40] sm:$0xff]
    %v2665 = vld [vmem:[#allocation3 + $0x48] sm:$0xff]
    %v2666 = vld [vmem:[#allocation3 + $0x50] sm:$0xff]
    %v2667 = vld [vmem:[#allocation3 + $0x58] sm:$0xff]
    %v2668 = vld [vmem:[#allocation3 + $0x60] sm:$0xff]
    %v2669 = vld [vmem:[#allocation3 + $0x68] sm:$0xff]
    %v2670 = vld [vmem:[#allocation3 + $0x70] sm:$0xff]
    %v2671 = vld [vmem:[#allocation3 + $0x78] sm:$0xff]
    %vm2672 = vcmp.eq.f32.partialorder %v2656, 0.0
    %vm2673 = vcmp.eq.f32.partialorder %v2657, 0.0
    %vm2674 = vcmp.eq.f32.partialorder %v2658, 0.0
    %vm2675 = vcmp.eq.f32.partialorder %v2659, 0.0
    %vm2676 = vcmp.eq.f32.partialorder %v2660, 0.0
    %vm2677 = vcmp.eq.f32.partialorder %v2661, 0.0
    %vm2678 = vcmp.eq.f32.partialorder %v2662, 0.0
    %vm2679 = vcmp.eq.f32.partialorder %v2663, 0.0
    %vm2680 = vcmp.eq.f32.partialorder %v2664, 0.0
    %vm2681 = vcmp.eq.f32.partialorder %v2665, 0.0
    %vm2682 = vcmp.eq.f32.partialorder %v2666, 0.0
    %vm2683 = vcmp.eq.f32.partialorder %v2667, 0.0
    %vm2684 = vcmp.eq.f32.partialorder %v2668, 0.0
    %vm2685 = vcmp.eq.f32.partialorder %v2669, 0.0
    %vm2686 = vcmp.eq.f32.partialorder %v2670, 0.0
    %vm2687 = vcmp.eq.f32.partialorder %v2671, 0.0
    %v2688 = vsel %vm2672, 1.0, %v2656
    %v2689 = vsel %vm2673, 1.0, %v2657
    %v2690 = vsel %vm2674, 1.0, %v2658
    %v2691 = vsel %vm2675, 1.0, %v2659
    %v2692 = vsel %vm2676, 1.0, %v2660
    %v2693 = vsel %vm2677, 1.0, %v2661
    %v2694 = vsel %vm2678, 1.0, %v2662
    %v2695 = vsel %vm2679, 1.0, %v2663
    %v2696 = vsel %vm2680, 1.0, %v2664
    %v2697 = vsel %vm2681, 1.0, %v2665
    %v2698 = vsel %vm2682, 1.0, %v2666
    %v2699 = vsel %vm2683, 1.0, %v2667
    %v2700 = vsel %vm2684, 1.0, %v2668
    %v2701 = vsel %vm2685, 1.0, %v2669
    %v2702 = vsel %vm2686, 1.0, %v2670
    %v2703 = vsel %vm2687, 1.0, %v2671
    %v2704 = vrcp.pop %v2688
    %v2705 = vrcp.pop %v2689
    %v2706 = vrcp.pop %v2690
    %v2707 = vrcp.pop %v2691
    %v2708 = vrcp.pop %v2692
    %v2709 = vrcp.pop %v2693
    %v2710 = vrcp.pop %v2694
    %v2711 = vrcp.pop %v2695
    %v2712 = vrcp.pop %v2696
    %v2713 = vrcp.pop %v2697
    %v2714 = vrcp.pop %v2698
    %v2715 = vrcp.pop %v2699
    %v2716 = vrcp.pop %v2700
    %v2717 = vrcp.pop %v2701
    %v2718 = vrcp.pop %v2702
    %v2719 = vrcp.pop %v2703
    %v2720 = vld [vmem:[#allocation4] sm:$0xff]
    %v2721 = vld [vmem:[#allocation4 + $0x8] sm:$0xff]
    %v2722 = vld [vmem:[#allocation4 + $0x10] sm:$0xff]
    %v2723 = vld [vmem:[#allocation4 + $0x18] sm:$0xff]
    %v2724 = vld [vmem:[#allocation4 + $0x20] sm:$0xff]
    %v2725 = vld [vmem:[#allocation4 + $0x28] sm:$0xff]
    %v2726 = vld [vmem:[#allocation4 + $0x30] sm:$0xff]
    %v2727 = vld [vmem:[#allocation4 + $0x38] sm:$0xff]
    %v2728 = vld [vmem:[#allocation4 + $0x40] sm:$0xff]
    %v2729 = vld [vmem:[#allocation4 + $0x48] sm:$0xff]
    %v2730 = vld [vmem:[#allocation4 + $0x50] sm:$0xff]
    %v2731 = vld [vmem:[#allocation4 + $0x58] sm:$0xff]
    %v2732 = vld [vmem:[#allocation4 + $0x60] sm:$0xff]
    %v2733 = vld [vmem:[#allocation4 + $0x68] sm:$0xff]
    %v2734 = vld [vmem:[#allocation4 + $0x70] sm:$0xff]
    %v2735 = vld [vmem:[#allocation4 + $0x78] sm:$0xff]
    %2737 = vset.pattern.permute.xlu0 0
    %2738 = vperm.xlu0 %2737, %v2704
    %v2739 = vpop.permute.xlu0 %2738
    %2742 = vset.pattern.permute.xlu0 0
    %2743 = vperm.xlu0 %2742, %v2705
    %v2744 = vpop.permute.xlu0 %2743
    %2747 = vset.pattern.permute.xlu0 0
    %2748 = vperm.xlu0 %2747, %v2706
    %v2749 = vpop.permute.xlu0 %2748
    %2752 = vset.pattern.permute.xlu0 0
    %2753 = vperm.xlu0 %2752, %v2707
    %v2754 = vpop.permute.xlu0 %2753
    %2757 = vset.pattern.permute.xlu0 0
    %2758 = vperm.xlu0 %2757, %v2708
    %v2759 = vpop.permute.xlu0 %2758
    %2762 = vset.pattern.permute.xlu0 0
    %2763 = vperm.xlu0 %2762, %v2709
    %v2764 = vpop.permute.xlu0 %2763
    %2767 = vset.pattern.permute.xlu0 0
    %2768 = vperm.xlu0 %2767, %v2710
    %v2769 = vpop.permute.xlu0 %2768
    %2772 = vset.pattern.permute.xlu0 0
    %2773 = vperm.xlu0 %2772, %v2711
    %v2774 = vpop.permute.xlu0 %2773
    %2777 = vset.pattern.permute.xlu0 0
    %2778 = vperm.xlu0 %2777, %v2712
    %v2779 = vpop.permute.xlu0 %2778
    %2782 = vset.pattern.permute.xlu0 0
    %2783 = vperm.xlu0 %2782, %v2713
    %v2784 = vpop.permute.xlu0 %2783
    %2787 = vset.pattern.permute.xlu0 0
    %2788 = vperm.xlu0 %2787, %v2714
    %v2789 = vpop.permute.xlu0 %2788
    %2792 = vset.pattern.permute.xlu0 0
    %2793 = vperm.xlu0 %2792, %v2715
    %v2794 = vpop.permute.xlu0 %2793
    %2797 = vset.pattern.permute.xlu0 0
    %2798 = vperm.xlu0 %2797, %v2716
    %v2799 = vpop.permute.xlu0 %2798
    %2802 = vset.pattern.permute.xlu0 0
    %2803 = vperm.xlu0 %2802, %v2717
    %v2804 = vpop.permute.xlu0 %2803
    %2807 = vset.pattern.permute.xlu0 0
    %2808 = vperm.xlu0 %2807, %v2718
    %v2809 = vpop.permute.xlu0 %2808
    %2812 = vset.pattern.permute.xlu0 0
    %2813 = vperm.xlu0 %2812, %v2719
    %v2814 = vpop.permute.xlu0 %2813
    %v2816 = vmul.f32 %v2720, %v2739
    %v2817 = vmul.f32 %v2721, %v2744
    %v2818 = vmul.f32 %v2722, %v2749
    %v2819 = vmul.f32 %v2723, %v2754
    %v2820 = vmul.f32 %v2724, %v2759
    %v2821 = vmul.f32 %v2725, %v2764
    %v2822 = vmul.f32 %v2726, %v2769
    %v2823 = vmul.f32 %v2727, %v2774
    %v2824 = vmul.f32 %v2728, %v2779
    %v2825 = vmul.f32 %v2729, %v2784
    %v2826 = vmul.f32 %v2730, %v2789
    %v2827 = vmul.f32 %v2731, %v2794
    %v2828 = vmul.f32 %v2732, %v2799
    %v2829 = vmul.f32 %v2733, %v2804
    %v2830 = vmul.f32 %v2734, %v2809
    %v2831 = vmul.f32 %v2735, %v2814
    %2832 = vset.pattern.permute.xlu0 1
    %2833 = vperm.xlu0 %2832, %v2704
    %v2834 = vpop.permute.xlu0 %2833
    %2836 = vset.pattern.permute.xlu0 1
    %2837 = vperm.xlu0 %2836, %v2705
    %v2838 = vpop.permute.xlu0 %2837
    %2840 = vset.pattern.permute.xlu0 1
    %2841 = vperm.xlu0 %2840, %v2706
    %v2842 = vpop.permute.xlu0 %2841
    %2844 = vset.pattern.permute.xlu0 1
    %2845 = vperm.xlu0 %2844, %v2707
    %v2846 = vpop.permute.xlu0 %2845
    %2848 = vset.pattern.permute.xlu0 1
    %2849 = vperm.xlu0 %2848, %v2708
    %v2850 = vpop.permute.xlu0 %2849
    %2852 = vset.pattern.permute.xlu0 1
    %2853 = vperm.xlu0 %2852, %v2709
    %v2854 = vpop.permute.xlu0 %2853
    %2856 = vset.pattern.permute.xlu0 1
    %2857 = vperm.xlu0 %2856, %v2710
    %v2858 = vpop.permute.xlu0 %2857
    %2860 = vset.pattern.permute.xlu0 1
    %2861 = vperm.xlu0 %2860, %v2711
    %v2862 = vpop.permute.xlu0 %2861
    %2864 = vset.pattern.permute.xlu0 1
    %2865 = vperm.xlu0 %2864, %v2712
    %v2866 = vpop.permute.xlu0 %2865
    %2868 = vset.pattern.permute.xlu0 1
    %2869 = vperm.xlu0 %2868, %v2713
    %v2870 = vpop.permute.xlu0 %2869
    %2872 = vset.pattern.permute.xlu0 1
    %2873 = vperm.xlu0 %2872, %v2714
    %v2874 = vpop.permute.xlu0 %2873
    %2876 = vset.pattern.permute.xlu0 1
    %2877 = vperm.xlu0 %2876, %v2715
    %v2878 = vpop.permute.xlu0 %2877
    %2880 = vset.pattern.permute.xlu0 1
    %2881 = vperm.xlu0 %2880, %v2716
    %v2882 = vpop.permute.xlu0 %2881
    %2884 = vset.pattern.permute.xlu0 1
    %2885 = vperm.xlu0 %2884, %v2717
    %v2886 = vpop.permute.xlu0 %2885
    %2888 = vset.pattern.permute.xlu0 1
    %2889 = vperm.xlu0 %2888, %v2718
    %v2890 = vpop.permute.xlu0 %2889
    %2892 = vset.pattern.permute.xlu0 1
    %2893 = vperm.xlu0 %2892, %v2719
    %v2894 = vpop.permute.xlu0 %2893
    %v2896 = vmul.f32 %v2720, %v2834
    %v2897 = vmul.f32 %v2721, %v2838
    %v2898 = vmul.f32 %v2722, %v2842
    %v2899 = vmul.f32 %v2723, %v2846
    %v2900 = vmul.f32 %v2724, %v2850
    %v2901 = vmul.f32 %v2725, %v2854
    %v2902 = vmul.f32 %v2726, %v2858
    %v2903 = vmul.f32 %v2727, %v2862
    %v2904 = vmul.f32 %v2728, %v2866
    %v2905 = vmul.f32 %v2729, %v2870
    %v2906 = vmul.f32 %v2730, %v2874
    %v2907 = vmul.f32 %v2731, %v2878
    %v2908 = vmul.f32 %v2732, %v2882
    %v2909 = vmul.f32 %v2733, %v2886
    %v2910 = vmul.f32 %v2734, %v2890
    %v2911 = vmul.f32 %v2735, %v2894
    %vm2912 = vcmask 64512
    %v2913 = vsel %vm2912, %v2816, %v2896
    %v2914 = vsel %vm2912, %v2817, %v2897
    %v2915 = vsel %vm2912, %v2818, %v2898
    %v2916 = vsel %vm2912, %v2819, %v2899
    %v2917 = vsel %vm2912, %v2820, %v2900
    %v2918 = vsel %vm2912, %v2821, %v2901
    %v2919 = vsel %vm2912, %v2822, %v2902
    %v2920 = vsel %vm2912, %v2823, %v2903
    %v2921 = vsel %vm2912, %v2824, %v2904
    %v2922 = vsel %vm2912, %v2825, %v2905
    %v2923 = vsel %vm2912, %v2826, %v2906
    %v2924 = vsel %vm2912, %v2827, %v2907
    %v2925 = vsel %vm2912, %v2828, %v2908
    %v2926 = vsel %vm2912, %v2829, %v2909
    %v2927 = vsel %vm2912, %v2830, %v2910
    %v2928 = vsel %vm2912, %v2831, %v2911
    %v2929 = vld [vmem:[%s2] sm:$0xff]
    %v2930 = vld [vmem:[%s2 + $0x8] sm:$0xff]
    %v2931 = vld [vmem:[%s2 + $0x10] sm:$0xff]
    %v2932 = vld [vmem:[%s2 + $0x18] sm:$0xff]
    %v2933 = vld [vmem:[%s2 + $0x20] sm:$0xff]
    %v2934 = vld [vmem:[%s2 + $0x28] sm:$0xff]
    %v2935 = vld [vmem:[%s2 + $0x30] sm:$0xff]
    %v2936 = vld [vmem:[%s2 + $0x38] sm:$0xff]
    %v2937 = vld [vmem:[%s2 + $0x40] sm:$0xff]
    %v2938 = vld [vmem:[%s2 + $0x48] sm:$0xff]
    %v2939 = vld [vmem:[%s2 + $0x50] sm:$0xff]
    %v2940 = vld [vmem:[%s2 + $0x58] sm:$0xff]
    %v2941 = vld [vmem:[%s2 + $0x60] sm:$0xff]
    %v2942 = vld [vmem:[%s2 + $0x68] sm:$0xff]
    %v2943 = vld [vmem:[%s2 + $0x70] sm:$0xff]
    %v2944 = vld [vmem:[%s2 + $0x78] sm:$0xff]
    %2961 = vrot.lane.b32.xlu0 %v2929, 80
    %v2962 = vpop.permute.xlu0 %2961
    %2963 = vrot.lane.b32.xlu0 %v2930, 80
    %v2964 = vpop.permute.xlu0 %2963
    %2965 = vrot.lane.b32.xlu0 %v2931, 80
    %v2966 = vpop.permute.xlu0 %2965
    %2967 = vrot.lane.b32.xlu0 %v2932, 80
    %v2968 = vpop.permute.xlu0 %2967
    %2969 = vrot.lane.b32.xlu0 %v2933, 80
    %v2970 = vpop.permute.xlu0 %2969
    %2971 = vrot.lane.b32.xlu0 %v2934, 80
    %v2972 = vpop.permute.xlu0 %2971
    %2973 = vrot.lane.b32.xlu0 %v2935, 80
    %v2974 = vpop.permute.xlu0 %2973
    %2975 = vrot.lane.b32.xlu0 %v2936, 80
    %v2976 = vpop.permute.xlu0 %2975
    %2977 = vrot.lane.b32.xlu0 %v2937, 80
    %v2978 = vpop.permute.xlu0 %2977
    %2979 = vrot.lane.b32.xlu0 %v2938, 80
    %v2980 = vpop.permute.xlu0 %2979
    %2981 = vrot.lane.b32.xlu0 %v2939, 80
    %v2982 = vpop.permute.xlu0 %2981
    %2983 = vrot.lane.b32.xlu0 %v2940, 80
    %v2984 = vpop.permute.xlu0 %2983
    %2985 = vrot.lane.b32.xlu0 %v2941, 80
    %v2986 = vpop.permute.xlu0 %2985
    %2987 = vrot.lane.b32.xlu0 %v2942, 80
    %v2988 = vpop.permute.xlu0 %2987
    %2989 = vrot.lane.b32.xlu0 %v2943, 80
    %v2990 = vpop.permute.xlu0 %2989
    %2991 = vrot.lane.b32.xlu0 %v2944, 80
    %v2992 = vpop.permute.xlu0 %2991
    %v3009 = vadd.f32 %v2913, %v2962
    %v3010 = vadd.f32 %v2914, %v2964
    %v3011 = vadd.f32 %v2915, %v2966
    %v3012 = vadd.f32 %v2916, %v2968
    %v3013 = vadd.f32 %v2917, %v2970
    %v3014 = vadd.f32 %v2918, %v2972
    %v3015 = vadd.f32 %v2919, %v2974
    %v3016 = vadd.f32 %v2920, %v2976
    %v3017 = vadd.f32 %v2921, %v2978
    %v3018 = vadd.f32 %v2922, %v2980
    %v3019 = vadd.f32 %v2923, %v2982
    %v3020 = vadd.f32 %v2924, %v2984
    %v3021 = vadd.f32 %v2925, %v2986
    %v3022 = vadd.f32 %v2926, %v2988
    %v3023 = vadd.f32 %v2927, %v2990
    %v3024 = vadd.f32 %v2928, %v2992
    %vm3025 = vcmask 130048
    %3026 = vst.msk [vmem:[%s6] sm:$0xff] %vm3025, %v3009
    %3027 = vst.msk [vmem:[%s6 + $0x8] sm:$0xff] %vm3025, %v3010
    %3028 = vst.msk [vmem:[%s6 + $0x10] sm:$0xff] %vm3025, %v3011
    %3029 = vst.msk [vmem:[%s6 + $0x18] sm:$0xff] %vm3025, %v3012
    %3030 = vst.msk [vmem:[%s6 + $0x20] sm:$0xff] %vm3025, %v3013
    %3031 = vst.msk [vmem:[%s6 + $0x28] sm:$0xff] %vm3025, %v3014
    %3032 = vst.msk [vmem:[%s6 + $0x30] sm:$0xff] %vm3025, %v3015
    %3033 = vst.msk [vmem:[%s6 + $0x38] sm:$0xff] %vm3025, %v3016
    %3034 = vst.msk [vmem:[%s6 + $0x40] sm:$0xff] %vm3025, %v3017
    %3035 = vst.msk [vmem:[%s6 + $0x48] sm:$0xff] %vm3025, %v3018
    %3036 = vst.msk [vmem:[%s6 + $0x50] sm:$0xff] %vm3025, %v3019
    %3037 = vst.msk [vmem:[%s6 + $0x58] sm:$0xff] %vm3025, %v3020
    %3038 = vst.msk [vmem:[%s6 + $0x60] sm:$0xff] %vm3025, %v3021
    %3039 = vst.msk [vmem:[%s6 + $0x68] sm:$0xff] %vm3025, %v3022
    %3040 = vst.msk [vmem:[%s6 + $0x70] sm:$0xff] %vm3025, %v3023
    %3041 = vst.msk [vmem:[%s6 + $0x78] sm:$0xff] %vm3025, %v3024
  $region29: #{backbone_forward.16} parent=0 // pred_fallthru
    _
  // Predicated region
  $region30: #{backbone_forward.16} parent=0 // pred_check
    _
  $region31: #{backbone_forward.16} parent=0 // pred_check_branch
    %3043 = sbr.rel (0) target = $region33
  $region32: #{backbone_forward.16} parent=0 // pred_region
    _
  $region33: #{backbone_forward.16} parent=0 // pred_fallthru
    _
  // Predicated region
  $region34: #{backbone_forward.16} parent=0 // pred_check
    _
  $region35: #{backbone_forward.16} parent=0 // pred_check_branch
    %3045 = sbr.rel (0) target = $region37
  $region36: #{backbone_forward.16} parent=0 // pred_region
    _
  $region37: #{backbone_forward.16} parent=0 // pred_fallthru
    _

// kernel: backbone_forward.23
$region0: #{backbone_forward.23}
  #allocation0 [shape = 'u32[]', space=smem, size = 0x4, offset = 0x4, fixed_abs, tag = 'smem constant byte address 0x4 - core index']
  #allocation1 [shape = 'u32[144,128]{1,0:T(1,128)}', space=vmem, size = 0x12000, scoped, tag = 'internal scratch']
  #allocation2 [shape = 'f32[1,2]{1,0:T(1,128)}', space=vmem, size = 0x200, scoped, tag = 'scratch operand']
  #allocation3 [shape = 'f32[1,2]{1,0:T(1,128)}', space=vmem, size = 0x200, scoped, tag = 'scratch operand']
  #allocation4 [shape = 'f32[16,2]{1,0:T(8,128)}', space=vmem, size = 0x2000, scoped, tag = 'scratch operand']
  #allocation5 [shape = 'f32[1,1]{1,0:T(1,128)S(1)}', space=vmem, size = 0x200, scoped, tag = 'scoped memory for backbone_forward.23']
  %s0 = inlined_call_operand.vmem [shape: f32[128,16], index: 0, kind: input, shape index: {}]
  %s1 = inlined_call_operand.vmem [shape: s32[128,1], index: 1, kind: input, shape index: {}]
  %s2 = inlined_call_operand.vmem [shape: bf16[16,16], index: 2, kind: input, shape index: {}]
  %s3 = inlined_call_operand.vmem [shape: f32[1,16], index: 3, kind: input, shape index: {}]
  %s4 = inlined_call_operand.vmem [shape: bf16[16,16], index: 4, kind: input, shape index: {}]
  %s5 = inlined_call_operand.vmem [shape: f32[1,16], index: 5, kind: input, shape index: {}]
  %s6 = inlined_call_operand.vmem [shape: bf16[16,16], index: 6, kind: input, shape index: {}]
  %s7 = inlined_call_operand.vmem [shape: f32[1,16], index: 7, kind: input, shape index: {}]
  %s8 = inlined_call_operand.vmem [shape: f32[1,16], index: 8, kind: input, shape index: {}]
  %s9 = inlined_call_operand.<no memory space> [shape: f32[1,1], index: 9, kind: input, shape index: {}]
  %s10 = inlined_call_operand.vmem [shape: f32[16,2], index: 10, kind: output, shape index: {}]
  %s11 = sld [smem:[#allocation0]]
  $region58: #{backbone_forward.23} parent=0
    _
  %s13 = ssub.s32 1, %s11
  %s14 = scalar_select 0, %s13, %s11
  %v15 = vstv %s9
  %16 = vst [vmem:[#allocation5] sm:$0x1] %v15
  // Predicated region
  $region2: #{backbone_forward.23} parent=0 // pred_check
    _
  $region3: #{backbone_forward.23} parent=0 // pred_check_branch
    %18 = sbr.rel (0) target = $region5
  $region4: #{backbone_forward.23} parent=0 // pred_region
    _
  $region5: #{backbone_forward.23} parent=0 // pred_fallthru
    _
  // Predicated region
  $region6: #{backbone_forward.23} parent=0 // pred_check
    _
  $region7: #{backbone_forward.23} parent=0 // pred_check_branch
    %20 = sbr.rel (0) target = $region9
  $region8: #{backbone_forward.23} parent=0 // pred_region
    _
  $region9: #{backbone_forward.23} parent=0 // pred_fallthru
    _
  // Predicated region
  $region10: #{backbone_forward.23} parent=0 // pred_check
    _
  $region11: #{backbone_forward.23} parent=0 // pred_check_branch
    %22 = sbr.rel (0) target = $region13
  $region12: #{backbone_forward.23} parent=0 // pred_region
    _
  $region13: #{backbone_forward.23} parent=0 // pred_fallthru
    _
  // Predicated region
  $region14: #{backbone_forward.23} parent=0 // pred_check
    _
  $region15: #{backbone_forward.23} parent=0 // pred_check_branch
    %24 = sbr.rel (0) target = $region17
  $region16: #{backbone_forward.23} parent=0 // pred_region
    _
  $region17: #{backbone_forward.23} parent=0 // pred_fallthru
    _
  // Predicated region
  $region18: #{backbone_forward.23} parent=0 // pred_check
    _
  $region19: #{backbone_forward.23} parent=0 // pred_check_branch
    %26 = sbr.rel (0) target = $region21
  $region20: #{backbone_forward.23} parent=0 // pred_region
    _
  $region21: #{backbone_forward.23} parent=0 // pred_fallthru
    _
  // Predicated region
  $region22: #{backbone_forward.23} parent=0 // pred_check
    _
  $region23: #{backbone_forward.23} parent=0 // pred_check_branch
    %28 = sbr.rel (0) target = $region25
  $region24: #{backbone_forward.23} parent=0 // pred_region
    _
  $region25: #{backbone_forward.23} parent=0 // pred_fallthru
    _
  // Predicated region
  $region26: #{backbone_forward.23} parent=0 // pred_check
    _
  $region27: #{backbone_forward.23} parent=0 // pred_check_branch
    %30 = sbr.rel (0) target = $region29
  $region28: #{backbone_forward.23} parent=0 // pred_region
    _
  $region29: #{backbone_forward.23} parent=0 // pred_fallthru
    _
  // Predicated region
  $region30: #{backbone_forward.23} parent=0 // pred_check
    _
  $region31: #{backbone_forward.23} parent=0 // pred_check_branch
    %32 = sbr.rel (0) target = $region33
  $region32: #{backbone_forward.23} parent=0 // pred_region
    _
  $region33: #{backbone_forward.23} parent=0 // pred_fallthru
    _
  // Predicated region
  $region34: #{backbone_forward.23} parent=0 // pred_check
    _
  $region35: #{backbone_forward.23} parent=0 // pred_check_branch
    %34 = sbr.rel (0) target = $region37
  $region36: #{backbone_forward.23} parent=0 // pred_region
    _
  $region37: #{backbone_forward.23} parent=0 // pred_fallthru
    _
  // Predicated region
  $region38: #{backbone_forward.23} parent=0 // pred_check
    _
  $region39: #{backbone_forward.23} parent=0 // pred_check_branch
    %36 = sbr.rel (0) target = $region41
  $region40: #{backbone_forward.23} parent=0 // pred_region
    _
  $region41: #{backbone_forward.23} parent=0 // pred_fallthru
    _
  %p38 = scmp.eq.s32.totalorder 0, 0
  // Predicated region
  $region42: #{backbone_forward.23} parent=0 // pred_check
    %p39 = pneg %p38
  $region43: #{backbone_forward.23} parent=0 // pred_check_branch
    %41 = sbr.rel (%p39) target = $region45
  $region44: #{backbone_forward.23} parent=0 // pred_region
    %vm42 = vcmask 8192
    %43 = vst.msk [vmem:[#allocation2] sm:$0x1] %vm42, -1e+30
    %44 = vst.msk [vmem:[#allocation3] sm:$0x1] %vm42, 0.0
    %vm45 = vcmask 15360
    %46 = vst.msk [vmem:[#allocation4] sm:$0xff] %vm45, 0.0
    %47 = vst.msk [vmem:[#allocation4 + $0x8] sm:$0xff] %vm45, 0.0
  $region45: #{backbone_forward.23} parent=0 // pred_fallthru
    _
  %v48 = vld [vmem:[%s0] sm:$0xff]
  %v49 = vld [vmem:[%s0 + $0x8] sm:$0xff]
  %v50 = vld [vmem:[%s0 + $0x10] sm:$0xff]
  %v51 = vld [vmem:[%s0 + $0x18] sm:$0xff]
  %v52 = vld [vmem:[%s0 + $0x20] sm:$0xff]
  %v53 = vld [vmem:[%s0 + $0x28] sm:$0xff]
  %v54 = vld [vmem:[%s0 + $0x30] sm:$0xff]
  %v55 = vld [vmem:[%s0 + $0x38] sm:$0xff]
  %v56 = vld [vmem:[%s0 + $0x40] sm:$0xff]
  %v57 = vld [vmem:[%s0 + $0x48] sm:$0xff]
  %v58 = vld [vmem:[%s0 + $0x50] sm:$0xff]
  %v59 = vld [vmem:[%s0 + $0x58] sm:$0xff]
  %v60 = vld [vmem:[%s0 + $0x60] sm:$0xff]
  %v61 = vld [vmem:[%s0 + $0x68] sm:$0xff]
  %v62 = vld [vmem:[%s0 + $0x70] sm:$0xff]
  %v63 = vld [vmem:[%s0 + $0x78] sm:$0xff]
  %v64 = vpack.c.bf16 %v49, %v48
  %v65 = vpack.c.bf16 %v51, %v50
  %v66 = vpack.c.bf16 %v53, %v52
  %v67 = vpack.c.bf16 %v55, %v54
  %v68 = vpack.c.bf16 %v57, %v56
  %v69 = vpack.c.bf16 %v59, %v58
  %v70 = vpack.c.bf16 %v61, %v60
  %v71 = vpack.c.bf16 %v63, %v62
  %v72 = vld [vmem:[%s2] sm:$0xf]
  %v73 = vld [vmem:[%s2 + $0x4] sm:$0xf]
  %v74 = vld [vmem:[%s3] sm:$0x1]
  %v76 = vlaneseq
  %v77 = vshrl.u32 %v76, 7
  %v78 = vsub.s32 0, %v77
  %v79 = vrot.slane %v74, %v78
  %v83 = vunpack.c.l.b16 %v72
  %v84 = vunpack.c.l.b16 %v73
  %v85 = vpack.c.b16 %v84, %v83
  %vm87 = vcmask 130048
  %v89 = vsel %vm87, %v64, 0
  %v92 = vsel %vm87, %v65, 0
  %v95 = vsel %vm87, %v66, 0
  %v98 = vsel %vm87, %v67, 0
  %v101 = vsel %vm87, %v68, 0
  %v104 = vsel %vm87, %v69, 0
  %v107 = vsel %vm87, %v70, 0
  %v110 = vsel %vm87, %v71, 0
  %112 = vmatprep.subr.bf16.mxu0 0
  %113 = vmatpush1.bf16.msra.mxu0 %v85
  %114 = vmatprep.subr.bf16.mxu0 0
  %115 = vmatpush1.bf16.msra.mxu0 0
  %116 = vmatprep.subr.bf16.mxu0 0
  %117 = vmatpush1.bf16.msra.mxu0 0
  %118 = vmatprep.subr.bf16.mxu0 0
  %119 = vmatpush1.bf16.msra.mxu0 0
  %120 = vmatprep.subr.bf16.mxu0 0
  %121 = vmatpush1.bf16.msra.mxu0 0
  %122 = vmatprep.subr.bf16.mxu0 0
  %123 = vmatpush1.bf16.msra.mxu0 0
  %124 = vmatprep.subr.bf16.mxu0 0
  %125 = vmatpush1.bf16.msra.mxu0 0
  %126 = vmatprep.subr.bf16.mxu0 0
  %127 = vmatpush1.bf16.msra.mxu0 0
  %128 = vmatprep.subr.bf16.mxu0 0
  %129 = vmatpush1.bf16.msra.mxu0 0
  %130 = vmatprep.subr.bf16.mxu0 0
  %131 = vmatpush1.bf16.msra.mxu0 0
  %132 = vmatprep.subr.bf16.mxu0 0
  %133 = vmatpush1.bf16.msra.mxu0 0
  %134 = vmatprep.subr.bf16.mxu0 0
  %135 = vmatpush1.bf16.msra.mxu0 0
  %136 = vmatprep.subr.bf16.mxu0 0
  %137 = vmatpush1.bf16.msra.mxu0 0
  %138 = vmatprep.subr.bf16.mxu0 0
  %139 = vmatpush1.bf16.msra.mxu0 0
  %140 = vmatprep.subr.bf16.mxu0 0
  %141 = vmatpush1.bf16.msra.mxu0 0
  %142 = vmatprep.subr.bf16.mxu0 0
  %143 = vmatpush1.bf16.msra.mxu0 0
  %144 = vmatprep.mubr.bf16.mxu0 0
  %145 = vmatmul.mubr.bf16.gmra.mrb[0].mxu0 %v89
  %v146 = vpop.f32.mrb[0].mxu0
  %v147 = vadd.f32 %v79, %v146
  %v148 = vpop.f32.mrb[0].mxu0
  %v149 = vpop.f32.mrb[0].mxu0
  %v150 = vadd.f32 %v79, %v149
  %v151 = vpop.f32.mrb[0].mxu0
  %152 = vmatprep.mubr.bf16.mxu0 0
  %153 = vmatmul.mubr.bf16.gmra.mrb[0].mxu0 %v92
  %v154 = vpop.f32.mrb[0].mxu0
  %v155 = vadd.f32 %v79, %v154
  %v156 = vpop.f32.mrb[0].mxu0
  %v157 = vpop.f32.mrb[0].mxu0
  %v158 = vadd.f32 %v79, %v157
  %v159 = vpop.f32.mrb[0].mxu0
  %160 = vmatprep.mubr.bf16.mxu0 0
  %161 = vmatmul.mubr.bf16.gmra.mrb[0].mxu0 %v95
  %v162 = vpop.f32.mrb[0].mxu0
  %v163 = vadd.f32 %v79, %v162
  %v164 = vpop.f32.mrb[0].mxu0
  %v165 = vpop.f32.mrb[0].mxu0
  %v166 = vadd.f32 %v79, %v165
  %v167 = vpop.f32.mrb[0].mxu0
  %168 = vmatprep.mubr.bf16.mxu0 0
  %169 = vmatmul.mubr.bf16.gmra.mrb[0].mxu0 %v98
  %v170 = vpop.f32.mrb[0].mxu0
  %v171 = vadd.f32 %v79, %v170
  %v172 = vpop.f32.mrb[0].mxu0
  %v173 = vpop.f32.mrb[0].mxu0
  %v174 = vadd.f32 %v79, %v173
  %v175 = vpop.f32.mrb[0].mxu0
  %176 = vmatprep.mubr.bf16.mxu0 0
  %177 = vmatmul.mubr.bf16.gmra.mrb[0].mxu0 %v101
  %v178 = vpop.f32.mrb[0].mxu0
  %v179 = vadd.f32 %v79, %v178
  %v180 = vpop.f32.mrb[0].mxu0
  %v181 = vpop.f32.mrb[0].mxu0
  %v182 = vadd.f32 %v79, %v181
  %v183 = vpop.f32.mrb[0].mxu0
  %184 = vmatprep.mubr.bf16.mxu0 0
  %185 = vmatmul.mubr.bf16.gmra.mrb[0].mxu0 %v104
  %v186 = vpop.f32.mrb[0].mxu0
  %v187 = vadd.f32 %v79, %v186
  %v188 = vpop.f32.mrb[0].mxu0
  %v189 = vpop.f32.mrb[0].mxu0
  %v190 = vadd.f32 %v79, %v189
  %v191 = vpop.f32.mrb[0].mxu0
  %192 = vmatprep.mubr.bf16.mxu0 0
  %193 = vmatmul.mubr.bf16.gmra.mrb[0].mxu0 %v107
  %v194 = vpop.f32.mrb[0].mxu0
  %v195 = vadd.f32 %v79, %v194
  %v196 = vpop.f32.mrb[0].mxu0
  %v197 = vpop.f32.mrb[0].mxu0
  %v198 = vadd.f32 %v79, %v197
  %v199 = vpop.f32.mrb[0].mxu0
  %200 = vmatprep.mubr.bf16.mxu0 0
  %201 = vmatmul.mubr.bf16.gmra.mrb[0].mxu0 %v110
  %v202 = vpop.f32.mrb[0].mxu0
  %v203 = vadd.f32 %v79, %v202
  %v204 = vpop.f32.mrb[0].mxu0
  %v205 = vpop.f32.mrb[0].mxu0
  %v206 = vadd.f32 %v79, %v205
  %v207 = vpop.f32.mrb[0].mxu0
  %208 = vdwg.mxu0
  %vm209 = vcmp.ge.f32.partialorder %v147, 0.0
  %vm210 = vcmp.ge.f32.partialorder %v150, 0.0
  %vm211 = vcmp.ge.f32.partialorder %v155, 0.0
  %vm212 = vcmp.ge.f32.partialorder %v158, 0.0
  %vm213 = vcmp.ge.f32.partialorder %v163, 0.0
  %vm214 = vcmp.ge.f32.partialorder %v166, 0.0
  %vm215 = vcmp.ge.f32.partialorder %v171, 0.0
  %vm216 = vcmp.ge.f32.partialorder %v174, 0.0
  %vm217 = vcmp.ge.f32.partialorder %v179, 0.0
  %vm218 = vcmp.ge.f32.partialorder %v182, 0.0
  %vm219 = vcmp.ge.f32.partialorder %v187, 0.0
  %vm220 = vcmp.ge.f32.partialorder %v190, 0.0
  %vm221 = vcmp.ge.f32.partialorder %v195, 0.0
  %vm222 = vcmp.ge.f32.partialorder %v198, 0.0
  %vm223 = vcmp.ge.f32.partialorder %v203, 0.0
  %vm224 = vcmp.ge.f32.partialorder %v206, 0.0
  %v225 = vmul.f32 %v147, 0.01
  %v226 = vmul.f32 %v150, 0.01
  %v227 = vmul.f32 %v155, 0.01
  %v228 = vmul.f32 %v158, 0.01
  %v229 = vmul.f32 %v163, 0.01
  %v230 = vmul.f32 %v166, 0.01
  %v231 = vmul.f32 %v171, 0.01
  %v232 = vmul.f32 %v174, 0.01
  %v233 = vmul.f32 %v179, 0.01
  %v234 = vmul.f32 %v182, 0.01
  %v235 = vmul.f32 %v187, 0.01
  %v236 = vmul.f32 %v190, 0.01
  %v237 = vmul.f32 %v195, 0.01
  %v238 = vmul.f32 %v198, 0.01
  %v239 = vmul.f32 %v203, 0.01
  %v240 = vmul.f32 %v206, 0.01
  %v241 = vsel %vm209, %v147, %v225
  %v242 = vsel %vm210, %v150, %v226
  %v243 = vsel %vm211, %v155, %v227
  %v244 = vsel %vm212, %v158, %v228
  %v245 = vsel %vm213, %v163, %v229
  %v246 = vsel %vm214, %v166, %v230
  %v247 = vsel %vm215, %v171, %v231
  %v248 = vsel %vm216, %v174, %v232
  %v249 = vsel %vm217, %v179, %v233
  %v250 = vsel %vm218, %v182, %v234
  %v251 = vsel %vm219, %v187, %v235
  %v252 = vsel %vm220, %v190, %v236
  %v253 = vsel %vm221, %v195, %v237
  %v254 = vsel %vm222, %v198, %v238
  %v255 = vsel %vm223, %v203, %v239
  %v256 = vsel %vm224, %v206, %v240
  %v257 = vpack.c.bf16 %v242, %v241
  %v258 = vpack.c.bf16 %v244, %v243
  %v259 = vpack.c.bf16 %v246, %v245
  %v260 = vpack.c.bf16 %v248, %v247
  %v261 = vpack.c.bf16 %v250, %v249
  %v262 = vpack.c.bf16 %v252, %v251
  %v263 = vpack.c.bf16 %v254, %v253
  %v264 = vpack.c.bf16 %v256, %v255
  %v265 = vld [vmem:[%s4] sm:$0xf]
  %v266 = vld [vmem:[%s4 + $0x4] sm:$0xf]
  %v267 = vld [vmem:[%s5] sm:$0x1]
  %v269 = vlaneseq
  %v270 = vshrl.u32 %v269, 7
  %v271 = vsub.s32 0, %v270
  %v272 = vrot.slane %v267, %v271
  %v276 = vunpack.c.l.b16 %v265
  %v277 = vunpack.c.l.b16 %v266
  %v278 = vpack.c.b16 %v277, %v276
  %v281 = vsel %vm87, %v257, 0
  %v284 = vsel %vm87, %v258, 0
  %v287 = vsel %vm87, %v259, 0
  %v290 = vsel %vm87, %v260, 0
  %v293 = vsel %vm87, %v261, 0
  %v296 = vsel %vm87, %v262, 0
  %v299 = vsel %vm87, %v263, 0
  %v302 = vsel %vm87, %v264, 0
  %304 = vmatprep.subr.bf16.mxu0 0
  %305 = vmatpush1.bf16.msra.mxu0 %v278
  %306 = vmatprep.subr.bf16.mxu0 0
  %307 = vmatpush1.bf16.msra.mxu0 0
  %308 = vmatprep.subr.bf16.mxu0 0
  %309 = vmatpush1.bf16.msra.mxu0 0
  %310 = vmatprep.subr.bf16.mxu0 0
  %311 = vmatpush1.bf16.msra.mxu0 0
  %312 = vmatprep.subr.bf16.mxu0 0
  %313 = vmatpush1.bf16.msra.mxu0 0
  %314 = vmatprep.subr.bf16.mxu0 0
  %315 = vmatpush1.bf16.msra.mxu0 0
  %316 = vmatprep.subr.bf16.mxu0 0
  %317 = vmatpush1.bf16.msra.mxu0 0
  %318 = vmatprep.subr.bf16.mxu0 0
  %319 = vmatpush1.bf16.msra.mxu0 0
  %320 = vmatprep.subr.bf16.mxu0 0
  %321 = vmatpush1.bf16.msra.mxu0 0
  %322 = vmatprep.subr.bf16.mxu0 0
  %323 = vmatpush1.bf16.msra.mxu0 0
  %324 = vmatprep.subr.bf16.mxu0 0
  %325 = vmatpush1.bf16.msra.mxu0 0
  %326 = vmatprep.subr.bf16.mxu0 0
  %327 = vmatpush1.bf16.msra.mxu0 0
  %328 = vmatprep.subr.bf16.mxu0 0
  %329 = vmatpush1.bf16.msra.mxu0 0
  %330 = vmatprep.subr.bf16.mxu0 0
  %331 = vmatpush1.bf16.msra.mxu0 0
  %332 = vmatprep.subr.bf16.mxu0 0
  %333 = vmatpush1.bf16.msra.mxu0 0
  %334 = vmatprep.subr.bf16.mxu0 0
  %335 = vmatpush1.bf16.msra.mxu0 0
  %336 = vmatprep.mubr.bf16.mxu0 0
  %337 = vmatmul.mubr.bf16.gmra.mrb[0].mxu0 %v281
  %v338 = vpop.f32.mrb[0].mxu0
  %v339 = vadd.f32 %v272, %v338
  %v340 = vpop.f32.mrb[0].mxu0
  %v341 = vpop.f32.mrb[0].mxu0
  %v342 = vadd.f32 %v272, %v341
  %v343 = vpop.f32.mrb[0].mxu0
  %344 = vmatprep.mubr.bf16.mxu0 0
  %345 = vmatmul.mubr.bf16.gmra.mrb[0].mxu0 %v284
  %v346 = vpop.f32.mrb[0].mxu0
  %v347 = vadd.f32 %v272, %v346
  %v348 = vpop.f32.mrb[0].mxu0
  %v349 = vpop.f32.mrb[0].mxu0
  %v350 = vadd.f32 %v272, %v349
  %v351 = vpop.f32.mrb[0].mxu0
  %352 = vmatprep.mubr.bf16.mxu0 0
  %353 = vmatmul.mubr.bf16.gmra.mrb[0].mxu0 %v287
  %v354 = vpop.f32.mrb[0].mxu0
  %v355 = vadd.f32 %v272, %v354
  %v356 = vpop.f32.mrb[0].mxu0
  %v357 = vpop.f32.mrb[0].mxu0
  %v358 = vadd.f32 %v272, %v357
  %v359 = vpop.f32.mrb[0].mxu0
  %360 = vmatprep.mubr.bf16.mxu0 0
  %361 = vmatmul.mubr.bf16.gmra.mrb[0].mxu0 %v290
  %v362 = vpop.f32.mrb[0].mxu0
  %v363 = vadd.f32 %v272, %v362
  %v364 = vpop.f32.mrb[0].mxu0
  %v365 = vpop.f32.mrb[0].mxu0
  %v366 = vadd.f32 %v272, %v365
  %v367 = vpop.f32.mrb[0].mxu0
  %368 = vmatprep.mubr.bf16.mxu0 0
  %369 = vmatmul.mubr.bf16.gmra.mrb[0].mxu0 %v293
  %v370 = vpop.f32.mrb[0].mxu0
  %v371 = vadd.f32 %v272, %v370
  %v372 = vpop.f32.mrb[0].mxu0
  %v373 = vpop.f32.mrb[0].mxu0
  %v374 = vadd.f32 %v272, %v373
  %v375 = vpop.f32.mrb[0].mxu0
  %376 = vmatprep.mubr.bf16.mxu0 0
  %377 = vmatmul.mubr.bf16.gmra.mrb[0].mxu0 %v296
  %v378 = vpop.f32.mrb[0].mxu0
  %v379 = vadd.f32 %v272, %v378
  %v380 = vpop.f32.mrb[0].mxu0
  %v381 = vpop.f32.mrb[0].mxu0
  %v382 = vadd.f32 %v272, %v381
  %v383 = vpop.f32.mrb[0].mxu0
  %384 = vmatprep.mubr.bf16.mxu0 0
  %385 = vmatmul.mubr.bf16.gmra.mrb[0].mxu0 %v299
  %v386 = vpop.f32.mrb[0].mxu0
  %v387 = vadd.f32 %v272, %v386
  %v388 = vpop.f32.mrb[0].mxu0
  %v389 = vpop.f32.mrb[0].mxu0
  %v390 = vadd.f32 %v272, %v389
  %v391 = vpop.f32.mrb[0].mxu0
  %392 = vmatprep.mubr.bf16.mxu0 0
  %393 = vmatmul.mubr.bf16.gmra.mrb[0].mxu0 %v302
  %v394 = vpop.f32.mrb[0].mxu0
  %v395 = vadd.f32 %v272, %v394
  %v396 = vpop.f32.mrb[0].mxu0
  %v397 = vpop.f32.mrb[0].mxu0
  %v398 = vadd.f32 %v272, %v397
  %v399 = vpop.f32.mrb[0].mxu0
  %400 = vdwg.mxu0
  %vm401 = vcmp.ge.f32.partialorder %v339, 0.0
  %vm402 = vcmp.ge.f32.partialorder %v342, 0.0
  %vm403 = vcmp.ge.f32.partialorder %v347, 0.0
  %vm404 = vcmp.ge.f32.partialorder %v350, 0.0
  %vm405 = vcmp.ge.f32.partialorder %v355, 0.0
  %vm406 = vcmp.ge.f32.partialorder %v358, 0.0
  %vm407 = vcmp.ge.f32.partialorder %v363, 0.0
  %vm408 = vcmp.ge.f32.partialorder %v366, 0.0
  %vm409 = vcmp.ge.f32.partialorder %v371, 0.0
  %vm410 = vcmp.ge.f32.partialorder %v374, 0.0
  %vm411 = vcmp.ge.f32.partialorder %v379, 0.0
  %vm412 = vcmp.ge.f32.partialorder %v382, 0.0
  %vm413 = vcmp.ge.f32.partialorder %v387, 0.0
  %vm414 = vcmp.ge.f32.partialorder %v390, 0.0
  %vm415 = vcmp.ge.f32.partialorder %v395, 0.0
  %vm416 = vcmp.ge.f32.partialorder %v398, 0.0
  %v417 = vmul.f32 %v339, 0.01
  %v418 = vmul.f32 %v342, 0.01
  %v419 = vmul.f32 %v347, 0.01
  %v420 = vmul.f32 %v350, 0.01
  %v421 = vmul.f32 %v355, 0.01
  %v422 = vmul.f32 %v358, 0.01
  %v423 = vmul.f32 %v363, 0.01
  %v424 = vmul.f32 %v366, 0.01
  %v425 = vmul.f32 %v371, 0.01
  %v426 = vmul.f32 %v374, 0.01
  %v427 = vmul.f32 %v379, 0.01
  %v428 = vmul.f32 %v382, 0.01
  %v429 = vmul.f32 %v387, 0.01
  %v430 = vmul.f32 %v390, 0.01
  %v431 = vmul.f32 %v395, 0.01
  %v432 = vmul.f32 %v398, 0.01
  %v433 = vsel %vm401, %v339, %v417
  %v434 = vsel %vm402, %v342, %v418
  %v435 = vsel %vm403, %v347, %v419
  %v436 = vsel %vm404, %v350, %v420
  %v437 = vsel %vm405, %v355, %v421
  %v438 = vsel %vm406, %v358, %v422
  %v439 = vsel %vm407, %v363, %v423
  %v440 = vsel %vm408, %v366, %v424
  %v441 = vsel %vm409, %v371, %v425
  %v442 = vsel %vm410, %v374, %v426
  %v443 = vsel %vm411, %v379, %v427
  %v444 = vsel %vm412, %v382, %v428
  %v445 = vsel %vm413, %v387, %v429
  %v446 = vsel %vm414, %v390, %v430
  %v447 = vsel %vm415, %v395, %v431
  %v448 = vsel %vm416, %v398, %v432
  %v449 = vpack.c.bf16 %v434, %v433
  %v450 = vpack.c.bf16 %v436, %v435
  %v451 = vpack.c.bf16 %v438, %v437
  %v452 = vpack.c.bf16 %v440, %v439
  %v453 = vpack.c.bf16 %v442, %v441
  %v454 = vpack.c.bf16 %v444, %v443
  %v455 = vpack.c.bf16 %v446, %v445
  %v456 = vpack.c.bf16 %v448, %v447
  %v457 = vld [vmem:[%s6] sm:$0xf]
  %v458 = vld [vmem:[%s6 + $0x4] sm:$0xf]
  %v459 = vld [vmem:[%s7] sm:$0x1]
  %v461 = vlaneseq
  %v462 = vshrl.u32 %v461, 7
  %v463 = vsub.s32 0, %v462
  %v464 = vrot.slane %v459, %v463
  %v468 = vunpack.c.l.b16 %v457
  %v469 = vunpack.c.l.b16 %v458
  %v470 = vpack.c.b16 %v469, %v468
  %v473 = vsel %vm87, %v449, 0
  %v476 = vsel %vm87, %v450, 0
  %v479 = vsel %vm87, %v451, 0
  %v482 = vsel %vm87, %v452, 0
  %v485 = vsel %vm87, %v453, 0
  %v488 = vsel %vm87, %v454, 0
  %v491 = vsel %vm87, %v455, 0
  %v494 = vsel %vm87, %v456, 0
  %496 = vmatprep.subr.bf16.mxu0 0
  %497 = vmatpush1.bf16.msra.mxu0 %v470
  %498 = vmatprep.subr.bf16.mxu0 0
  %499 = vmatpush1.bf16.msra.mxu0 0
  %500 = vmatprep.subr.bf16.mxu0 0
  %501 = vmatpush1.bf16.msra.mxu0 0
  %502 = vmatprep.subr.bf16.mxu0 0
  %503 = vmatpush1.bf16.msra.mxu0 0
  %504 = vmatprep.subr.bf16.mxu0 0
  %505 = vmatpush1.bf16.msra.mxu0 0
  %506 = vmatprep.subr.bf16.mxu0 0
  %507 = vmatpush1.bf16.msra.mxu0 0
  %508 = vmatprep.subr.bf16.mxu0 0
  %509 = vmatpush1.bf16.msra.mxu0 0
  %510 = vmatprep.subr.bf16.mxu0 0
  %511 = vmatpush1.bf16.msra.mxu0 0
  %512 = vmatprep.subr.bf16.mxu0 0
  %513 = vmatpush1.bf16.msra.mxu0 0
  %514 = vmatprep.subr.bf16.mxu0 0
  %515 = vmatpush1.bf16.msra.mxu0 0
  %516 = vmatprep.subr.bf16.mxu0 0
  %517 = vmatpush1.bf16.msra.mxu0 0
  %518 = vmatprep.subr.bf16.mxu0 0
  %519 = vmatpush1.bf16.msra.mxu0 0
  %520 = vmatprep.subr.bf16.mxu0 0
  %521 = vmatpush1.bf16.msra.mxu0 0
  %522 = vmatprep.subr.bf16.mxu0 0
  %523 = vmatpush1.bf16.msra.mxu0 0
  %524 = vmatprep.subr.bf16.mxu0 0
  %525 = vmatpush1.bf16.msra.mxu0 0
  %526 = vmatprep.subr.bf16.mxu0 0
  %527 = vmatpush1.bf16.msra.mxu0 0
  %528 = vmatprep.mubr.bf16.mxu0 0
  %529 = vmatmul.mubr.bf16.gmra.mrb[0].mxu0 %v473
  %v530 = vpop.f32.mrb[0].mxu0
  %v531 = vadd.f32 %v464, %v530
  %v532 = vpop.f32.mrb[0].mxu0
  %v533 = vpop.f32.mrb[0].mxu0
  %v534 = vadd.f32 %v464, %v533
  %v535 = vpop.f32.mrb[0].mxu0
  %536 = vmatprep.mubr.bf16.mxu0 0
  %537 = vmatmul.mubr.bf16.gmra.mrb[0].mxu0 %v476
  %v538 = vpop.f32.mrb[0].mxu0
  %v539 = vadd.f32 %v464, %v538
  %v540 = vpop.f32.mrb[0].mxu0
  %v541 = vpop.f32.mrb[0].mxu0
  %v542 = vadd.f32 %v464, %v541
  %v543 = vpop.f32.mrb[0].mxu0
  %544 = vmatprep.mubr.bf16.mxu0 0
  %545 = vmatmul.mubr.bf16.gmra.mrb[0].mxu0 %v479
  %v546 = vpop.f32.mrb[0].mxu0
  %v547 = vadd.f32 %v464, %v546
  %v548 = vpop.f32.mrb[0].mxu0
  %v549 = vpop.f32.mrb[0].mxu0
  %v550 = vadd.f32 %v464, %v549
  %v551 = vpop.f32.mrb[0].mxu0
  %552 = vmatprep.mubr.bf16.mxu0 0
  %553 = vmatmul.mubr.bf16.gmra.mrb[0].mxu0 %v482
  %v554 = vpop.f32.mrb[0].mxu0
  %v555 = vadd.f32 %v464, %v554
  %v556 = vpop.f32.mrb[0].mxu0
  %v557 = vpop.f32.mrb[0].mxu0
  %v558 = vadd.f32 %v464, %v557
  %v559 = vpop.f32.mrb[0].mxu0
  %560 = vmatprep.mubr.bf16.mxu0 0
  %561 = vmatmul.mubr.bf16.gmra.mrb[0].mxu0 %v485
  %v562 = vpop.f32.mrb[0].mxu0
  %v563 = vadd.f32 %v464, %v562
  %v564 = vpop.f32.mrb[0].mxu0
  %v565 = vpop.f32.mrb[0].mxu0
  %v566 = vadd.f32 %v464, %v565
  %v567 = vpop.f32.mrb[0].mxu0
  %568 = vmatprep.mubr.bf16.mxu0 0
  %569 = vmatmul.mubr.bf16.gmra.mrb[0].mxu0 %v488
  %v570 = vpop.f32.mrb[0].mxu0
  %v571 = vadd.f32 %v464, %v570
  %v572 = vpop.f32.mrb[0].mxu0
  %v573 = vpop.f32.mrb[0].mxu0
  %v574 = vadd.f32 %v464, %v573
  %v575 = vpop.f32.mrb[0].mxu0
  %576 = vmatprep.mubr.bf16.mxu0 0
  %577 = vmatmul.mubr.bf16.gmra.mrb[0].mxu0 %v491
  %v578 = vpop.f32.mrb[0].mxu0
  %v579 = vadd.f32 %v464, %v578
  %v580 = vpop.f32.mrb[0].mxu0
  %v581 = vpop.f32.mrb[0].mxu0
  %v582 = vadd.f32 %v464, %v581
  %v583 = vpop.f32.mrb[0].mxu0
  %584 = vmatprep.mubr.bf16.mxu0 0
  %585 = vmatmul.mubr.bf16.gmra.mrb[0].mxu0 %v494
  %v586 = vpop.f32.mrb[0].mxu0
  %v587 = vadd.f32 %v464, %v586
  %v588 = vpop.f32.mrb[0].mxu0
  %v589 = vpop.f32.mrb[0].mxu0
  %v590 = vadd.f32 %v464, %v589
  %v591 = vpop.f32.mrb[0].mxu0
  %592 = vdwg.mxu0
  %vm593 = vcmp.ge.f32.partialorder %v531, 0.0
  %vm594 = vcmp.ge.f32.partialorder %v534, 0.0
  %vm595 = vcmp.ge.f32.partialorder %v539, 0.0
  %vm596 = vcmp.ge.f32.partialorder %v542, 0.0
  %vm597 = vcmp.ge.f32.partialorder %v547, 0.0
  %vm598 = vcmp.ge.f32.partialorder %v550, 0.0
  %vm599 = vcmp.ge.f32.partialorder %v555, 0.0
  %vm600 = vcmp.ge.f32.partialorder %v558, 0.0
  %vm601 = vcmp.ge.f32.partialorder %v563, 0.0
  %vm602 = vcmp.ge.f32.partialorder %v566, 0.0
  %vm603 = vcmp.ge.f32.partialorder %v571, 0.0
  %vm604 = vcmp.ge.f32.partialorder %v574, 0.0
  %vm605 = vcmp.ge.f32.partialorder %v579, 0.0
  %vm606 = vcmp.ge.f32.partialorder %v582, 0.0
  %vm607 = vcmp.ge.f32.partialorder %v587, 0.0
  %vm608 = vcmp.ge.f32.partialorder %v590, 0.0
  %v609 = vmul.f32 %v531, 0.01
  %v610 = vmul.f32 %v534, 0.01
  %v611 = vmul.f32 %v539, 0.01
  %v612 = vmul.f32 %v542, 0.01
  %v613 = vmul.f32 %v547, 0.01
  %v614 = vmul.f32 %v550, 0.01
  %v615 = vmul.f32 %v555, 0.01
  %v616 = vmul.f32 %v558, 0.01
  %v617 = vmul.f32 %v563, 0.01
  %v618 = vmul.f32 %v566, 0.01
  %v619 = vmul.f32 %v571, 0.01
  %v620 = vmul.f32 %v574, 0.01
  %v621 = vmul.f32 %v579, 0.01
  %v622 = vmul.f32 %v582, 0.01
  %v623 = vmul.f32 %v587, 0.01
  %v624 = vmul.f32 %v590, 0.01
  %v625 = vsel %vm593, %v531, %v609
  %v626 = vsel %vm594, %v534, %v610
  %v627 = vsel %vm595, %v539, %v611
  %v628 = vsel %vm596, %v542, %v612
  %v629 = vsel %vm597, %v547, %v613
  %v630 = vsel %vm598, %v550, %v614
  %v631 = vsel %vm599, %v555, %v615
  %v632 = vsel %vm600, %v558, %v616
  %v633 = vsel %vm601, %v563, %v617
  %v634 = vsel %vm602, %v566, %v618
  %v635 = vsel %vm603, %v571, %v619
  %v636 = vsel %vm604, %v574, %v620
  %v637 = vsel %vm605, %v579, %v621
  %v638 = vsel %vm606, %v582, %v622
  %v639 = vsel %vm607, %v587, %v623
  %v640 = vsel %vm608, %v590, %v624
  %v641 = vld [vmem:[%s8] sm:$0x1]
  %v643 = vlaneseq
  %v644 = vshrl.u32 %v643, 7
  %v645 = vsub.s32 0, %v644
  %v646 = vrot.slane %v641, %v645
  %v648 = vmul.f32 %v625, %v646
  %v649 = vmul.f32 %v626, %v646
  %v650 = vmul.f32 %v627, %v646
  %v651 = vmul.f32 %v628, %v646
  %v652 = vmul.f32 %v629, %v646
  %v653 = vmul.f32 %v630, %v646
  %v654 = vmul.f32 %v631, %v646
  %v655 = vmul.f32 %v632, %v646
  %v656 = vmul.f32 %v633, %v646
  %v657 = vmul.f32 %v634, %v646
  %v658 = vmul.f32 %v635, %v646
  %v659 = vmul.f32 %v636, %v646
  %v660 = vmul.f32 %v637, %v646
  %v661 = vmul.f32 %v638, %v646
  %v662 = vmul.f32 %v639, %v646
  %v663 = vmul.f32 %v640, %v646
  %v664 = vsel %vm87, %v648, 0.0
  %665 = vadd.xlane.f32.xlu0 %v664
  %v666 = vpop.xlane.xlu0 %665
  %v667 = vsel %vm87, %v649, 0.0
  %668 = vadd.xlane.f32.xlu0 %v667
  %v669 = vpop.xlane.xlu0 %668
  %v670 = vsel %vm87, %v650, 0.0
  %671 = vadd.xlane.f32.xlu0 %v670
  %v672 = vpop.xlane.xlu0 %671
  %v673 = vsel %vm87, %v651, 0.0
  %674 = vadd.xlane.f32.xlu0 %v673
  %v675 = vpop.xlane.xlu0 %674
  %v676 = vsel %vm87, %v652, 0.0
  %677 = vadd.xlane.f32.xlu0 %v676
  %v678 = vpop.xlane.xlu0 %677
  %v679 = vsel %vm87, %v653, 0.0
  %680 = vadd.xlane.f32.xlu0 %v679
  %v681 = vpop.xlane.xlu0 %680
  %v682 = vsel %vm87, %v654, 0.0
  %683 = vadd.xlane.f32.xlu0 %v682
  %v684 = vpop.xlane.xlu0 %683
  %v685 = vsel %vm87, %v655, 0.0
  %686 = vadd.xlane.f32.xlu0 %v685
  %v687 = vpop.xlane.xlu0 %686
  %v688 = vsel %vm87, %v656, 0.0
  %689 = vadd.xlane.f32.xlu0 %v688
  %v690 = vpop.xlane.xlu0 %689
  %v691 = vsel %vm87, %v657, 0.0
  %692 = vadd.xlane.f32.xlu0 %v691
  %v693 = vpop.xlane.xlu0 %692
  %v694 = vsel %vm87, %v658, 0.0
  %695 = vadd.xlane.f32.xlu0 %v694
  %v696 = vpop.xlane.xlu0 %695
  %v697 = vsel %vm87, %v659, 0.0
  %698 = vadd.xlane.f32.xlu0 %v697
  %v699 = vpop.xlane.xlu0 %698
  %v700 = vsel %vm87, %v660, 0.0
  %701 = vadd.xlane.f32.xlu0 %v700
  %v702 = vpop.xlane.xlu0 %701
  %v703 = vsel %vm87, %v661, 0.0
  %704 = vadd.xlane.f32.xlu0 %v703
  %v705 = vpop.xlane.xlu0 %704
  %v706 = vsel %vm87, %v662, 0.0
  %707 = vadd.xlane.f32.xlu0 %v706
  %v708 = vpop.xlane.xlu0 %707
  %v709 = vsel %vm87, %v663, 0.0
  %710 = vadd.xlane.f32.xlu0 %v709
  %v711 = vpop.xlane.xlu0 %710
  %v712 = vld [vmem:[#allocation5] sm:$0x1]
  %v714 = vlaneseq
  %v715 = vshrl.u32 %v714, 7
  %v716 = vsub.s32 0, %v715
  %v717 = vrot.slane %v712, %v716
  %v719 = vadd.f32 %v666, %v717
  %v720 = vadd.f32 %v669, %v717
  %v721 = vadd.f32 %v672, %v717
  %v722 = vadd.f32 %v675, %v717
  %v723 = vadd.f32 %v678, %v717
  %v724 = vadd.f32 %v681, %v717
  %v725 = vadd.f32 %v684, %v717
  %v726 = vadd.f32 %v687, %v717
  %v727 = vadd.f32 %v690, %v717
  %v728 = vadd.f32 %v693, %v717
  %v729 = vadd.f32 %v696, %v717
  %v730 = vadd.f32 %v699, %v717
  %v731 = vadd.f32 %v702, %v717
  %v732 = vadd.f32 %v705, %v717
  %v733 = vadd.f32 %v708, %v717
  %v734 = vadd.f32 %v711, %v717
  %v735 = vlaneseq
  %v736 = vand.u32 %v735, 127
  %v737 = vld [vmem:[%s1] sm:$0xff]
  %v738 = vld [vmem:[%s1 + $0x8] sm:$0xff]
  %v739 = vld [vmem:[%s1 + $0x10] sm:$0xff]
  %v740 = vld [vmem:[%s1 + $0x18] sm:$0xff]
  %v741 = vld [vmem:[%s1 + $0x20] sm:$0xff]
  %v742 = vld [vmem:[%s1 + $0x28] sm:$0xff]
  %v743 = vld [vmem:[%s1 + $0x30] sm:$0xff]
  %v744 = vld [vmem:[%s1 + $0x38] sm:$0xff]
  %v745 = vld [vmem:[%s1 + $0x40] sm:$0xff]
  %v746 = vld [vmem:[%s1 + $0x48] sm:$0xff]
  %v747 = vld [vmem:[%s1 + $0x50] sm:$0xff]
  %v748 = vld [vmem:[%s1 + $0x58] sm:$0xff]
  %v749 = vld [vmem:[%s1 + $0x60] sm:$0xff]
  %v750 = vld [vmem:[%s1 + $0x68] sm:$0xff]
  %v751 = vld [vmem:[%s1 + $0x70] sm:$0xff]
  %v752 = vld [vmem:[%s1 + $0x78] sm:$0xff]
  %753 = vset.pattern.permute.xlu0 0
  %754 = vperm.xlu0 %753, %v737
  %v755 = vpop.permute.xlu0 %754
  %756 = vset.pattern.permute.xlu0 0
  %757 = vperm.xlu0 %756, %v738
  %v758 = vpop.permute.xlu0 %757
  %759 = vset.pattern.permute.xlu0 0
  %760 = vperm.xlu0 %759, %v739
  %v761 = vpop.permute.xlu0 %760
  %762 = vset.pattern.permute.xlu0 0
  %763 = vperm.xlu0 %762, %v740
  %v764 = vpop.permute.xlu0 %763
  %765 = vset.pattern.permute.xlu0 0
  %766 = vperm.xlu0 %765, %v741
  %v767 = vpop.permute.xlu0 %766
  %768 = vset.pattern.permute.xlu0 0
  %769 = vperm.xlu0 %768, %v742
  %v770 = vpop.permute.xlu0 %769
  %771 = vset.pattern.permute.xlu0 0
  %772 = vperm.xlu0 %771, %v743
  %v773 = vpop.permute.xlu0 %772
  %774 = vset.pattern.permute.xlu0 0
  %775 = vperm.xlu0 %774, %v744
  %v776 = vpop.permute.xlu0 %775
  %777 = vset.pattern.permute.xlu0 0
  %778 = vperm.xlu0 %777, %v745
  %v779 = vpop.permute.xlu0 %778
  %780 = vset.pattern.permute.xlu0 0
  %781 = vperm.xlu0 %780, %v746
  %v782 = vpop.permute.xlu0 %781
  %783 = vset.pattern.permute.xlu0 0
  %784 = vperm.xlu0 %783, %v747
  %v785 = vpop.permute.xlu0 %784
  %786 = vset.pattern.permute.xlu0 0
  %787 = vperm.xlu0 %786, %v748
  %v788 = vpop.permute.xlu0 %787
  %789 = vset.pattern.permute.xlu0 0
  %790 = vperm.xlu0 %789, %v749
  %v791 = vpop.permute.xlu0 %790
  %792 = vset.pattern.permute.xlu0 0
  %793 = vperm.xlu0 %792, %v750
  %v794 = vpop.permute.xlu0 %793
  %795 = vset.pattern.permute.xlu0 0
  %796 = vperm.xlu0 %795, %v751
  %v797 = vpop.permute.xlu0 %796
  %798 = vset.pattern.permute.xlu0 0
  %799 = vperm.xlu0 %798, %v752
  %v800 = vpop.permute.xlu0 %799
  %vm801 = vcmp.eq.s32.totalorder %v755, %v736
  %vm802 = vcmp.eq.s32.totalorder %v758, %v736
  %vm803 = vcmp.eq.s32.totalorder %v761, %v736
  %vm804 = vcmp.eq.s32.totalorder %v764, %v736
  %vm805 = vcmp.eq.s32.totalorder %v767, %v736
  %vm806 = vcmp.eq.s32.totalorder %v770, %v736
  %vm807 = vcmp.eq.s32.totalorder %v773, %v736
  %vm808 = vcmp.eq.s32.totalorder %v776, %v736
  %vm809 = vcmp.eq.s32.totalorder %v779, %v736
  %vm810 = vcmp.eq.s32.totalorder %v782, %v736
  %vm811 = vcmp.eq.s32.totalorder %v785, %v736
  %vm812 = vcmp.eq.s32.totalorder %v788, %v736
  %vm813 = vcmp.eq.s32.totalorder %v791, %v736
  %vm814 = vcmp.eq.s32.totalorder %v794, %v736
  %vm815 = vcmp.eq.s32.totalorder %v797, %v736
  %vm816 = vcmp.eq.s32.totalorder %v800, %v736
  %818 = vset.pattern.permute.xlu0 0
  %819 = vperm.xlu0 %818, %v719
  %v820 = vpop.permute.xlu0 %819
  %823 = vset.pattern.permute.xlu0 0
  %824 = vperm.xlu0 %823, %v720
  %v825 = vpop.permute.xlu0 %824
  %828 = vset.pattern.permute.xlu0 0
  %829 = vperm.xlu0 %828, %v721
  %v830 = vpop.permute.xlu0 %829
  %833 = vset.pattern.permute.xlu0 0
  %834 = vperm.xlu0 %833, %v722
  %v835 = vpop.permute.xlu0 %834
  %838 = vset.pattern.permute.xlu0 0
  %839 = vperm.xlu0 %838, %v723
  %v840 = vpop.permute.xlu0 %839
  %843 = vset.pattern.permute.xlu0 0
  %844 = vperm.xlu0 %843, %v724
  %v845 = vpop.permute.xlu0 %844
  %848 = vset.pattern.permute.xlu0 0
  %849 = vperm.xlu0 %848, %v725
  %v850 = vpop.permute.xlu0 %849
  %853 = vset.pattern.permute.xlu0 0
  %854 = vperm.xlu0 %853, %v726
  %v855 = vpop.permute.xlu0 %854
  %858 = vset.pattern.permute.xlu0 0
  %859 = vperm.xlu0 %858, %v727
  %v860 = vpop.permute.xlu0 %859
  %863 = vset.pattern.permute.xlu0 0
  %864 = vperm.xlu0 %863, %v728
  %v865 = vpop.permute.xlu0 %864
  %868 = vset.pattern.permute.xlu0 0
  %869 = vperm.xlu0 %868, %v729
  %v870 = vpop.permute.xlu0 %869
  %873 = vset.pattern.permute.xlu0 0
  %874 = vperm.xlu0 %873, %v730
  %v875 = vpop.permute.xlu0 %874
  %878 = vset.pattern.permute.xlu0 0
  %879 = vperm.xlu0 %878, %v731
  %v880 = vpop.permute.xlu0 %879
  %883 = vset.pattern.permute.xlu0 0
  %884 = vperm.xlu0 %883, %v732
  %v885 = vpop.permute.xlu0 %884
  %888 = vset.pattern.permute.xlu0 0
  %889 = vperm.xlu0 %888, %v733
  %v890 = vpop.permute.xlu0 %889
  %893 = vset.pattern.permute.xlu0 0
  %894 = vperm.xlu0 %893, %v734
  %v895 = vpop.permute.xlu0 %894
  %v897 = vsel %vm801, %v820, -1e+30
  %v898 = vsel %vm802, %v825, -1e+30
  %v899 = vsel %vm803, %v830, -1e+30
  %v900 = vsel %vm804, %v835, -1e+30
  %v901 = vsel %vm805, %v840, -1e+30
  %v902 = vsel %vm806, %v845, -1e+30
  %v903 = vsel %vm807, %v850, -1e+30
  %v904 = vsel %vm808, %v855, -1e+30
  %v905 = vsel %vm809, %v860, -1e+30
  %v906 = vsel %vm810, %v865, -1e+30
  %v907 = vsel %vm811, %v870, -1e+30
  %v908 = vsel %vm812, %v875, -1e+30
  %v909 = vsel %vm813, %v880, -1e+30
  %v910 = vsel %vm814, %v885, -1e+30
  %v911 = vsel %vm815, %v890, -1e+30
  %v912 = vsel %vm816, %v895, -1e+30
  %v913 = vld [vmem:[#allocation2] sm:$0x1]
  %vm914 = vcmask 15360
  %v915 = vsel %vm914, %v897, -inf
  %v916 = vsel %vm914, %v898, -inf
  %v917 = vsel %vm914, %v899, -inf
  %v918 = vsel %vm914, %v900, -inf
  %v919 = vsel %vm914, %v901, -inf
  %v920 = vmax.f32 %v915, %v919
  %v921 = vsel %vm914, %v902, -inf
  %v922 = vmax.f32 %v916, %v921
  %v923 = vsel %vm914, %v903, -inf
  %v924 = vmax.f32 %v917, %v923
  %v925 = vsel %vm914, %v904, -inf
  %v926 = vmax.f32 %v918, %v925
  %v927 = vsel %vm914, %v905, -inf
  %v928 = vmax.f32 %v920, %v927
  %v929 = vsel %vm914, %v906, -inf
  %v930 = vmax.f32 %v922, %v929
  %v931 = vsel %vm914, %v907, -inf
  %v932 = vmax.f32 %v924, %v931
  %v933 = vsel %vm914, %v908, -inf
  %v934 = vmax.f32 %v926, %v933
  %v935 = vsel %vm914, %v909, -inf
  %v936 = vmax.f32 %v928, %v935
  %v937 = vsel %vm914, %v910, -inf
  %v938 = vmax.f32 %v930, %v937
  %v939 = vsel %vm914, %v911, -inf
  %v940 = vmax.f32 %v932, %v939
  %v941 = vsel %vm914, %v912, -inf
  %v942 = vmax.f32 %v934, %v941
  %v943 = vmax.f32 %v936, %v938
  %v944 = vmax.f32 %v940, %v942
  %v945 = vmax.f32 %v943, %v944
  %v946 = vrot.slane %v945, 4
  %v947 = vmax.f32 %v945, %v946
  %v948 = vrot.slane %v947, 2
  %v949 = vmax.f32 %v947, %v948
  %v950 = vrot.slane %v949, 1
  %v951 = vmax.f32 %v949, %v950
  %v952 = vmax.f32 %v913, %v951
  %v954 = vlaneseq
  %v955 = vshrl.u32 %v954, 7
  %v956 = vsub.s32 0, %v955
  %v957 = vrot.slane %v952, %v956
  %v959 = vsub.f32 %v897, %v957
  %v960 = vsub.f32 %v898, %v957
  %v961 = vsub.f32 %v899, %v957
  %v962 = vsub.f32 %v900, %v957
  %v963 = vsub.f32 %v901, %v957
  %v964 = vsub.f32 %v902, %v957
  %v965 = vsub.f32 %v903, %v957
  %v966 = vsub.f32 %v904, %v957
  %v967 = vsub.f32 %v905, %v957
  %v968 = vsub.f32 %v906, %v957
  %v969 = vsub.f32 %v907, %v957
  %v970 = vsub.f32 %v908, %v957
  %v971 = vsub.f32 %v909, %v957
  %v972 = vsub.f32 %v910, %v957
  %v973 = vsub.f32 %v911, %v957
  %v974 = vsub.f32 %v912, %v957
  %v975 = vmul.f32 %v959, 1.442695
  %v976 = vpow.pop %v975
  %v977 = vmul.f32 %v960, 1.442695
  %v978 = vpow.pop %v977
  %v979 = vmul.f32 %v961, 1.442695
  %v980 = vpow.pop %v979
  %v981 = vmul.f32 %v962, 1.442695
  %v982 = vpow.pop %v981
  %v983 = vmul.f32 %v963, 1.442695
  %v984 = vpow.pop %v983
  %v985 = vmul.f32 %v964, 1.442695
  %v986 = vpow.pop %v985
  %v987 = vmul.f32 %v965, 1.442695
  %v988 = vpow.pop %v987
  %v989 = vmul.f32 %v966, 1.442695
  %v990 = vpow.pop %v989
  %v991 = vmul.f32 %v967, 1.442695
  %v992 = vpow.pop %v991
  %v993 = vmul.f32 %v968, 1.442695
  %v994 = vpow.pop %v993
  %v995 = vmul.f32 %v969, 1.442695
  %v996 = vpow.pop %v995
  %v997 = vmul.f32 %v970, 1.442695
  %v998 = vpow.pop %v997
  %v999 = vmul.f32 %v971, 1.442695
  %v1000 = vpow.pop %v999
  %v1001 = vmul.f32 %v972, 1.442695
  %v1002 = vpow.pop %v1001
  %v1003 = vmul.f32 %v973, 1.442695
  %v1004 = vpow.pop %v1003
  %v1005 = vmul.f32 %v974, 1.442695
  %v1006 = vpow.pop %v1005
  %v1007 = vsel %vm801, %v976, 0.0
  %v1008 = vsel %vm802, %v978, 0.0
  %v1009 = vsel %vm803, %v980, 0.0
  %v1010 = vsel %vm804, %v982, 0.0
  %v1011 = vsel %vm805, %v984, 0.0
  %v1012 = vsel %vm806, %v986, 0.0
  %v1013 = vsel %vm807, %v988, 0.0
  %v1014 = vsel %vm808, %v990, 0.0
  %v1015 = vsel %vm809, %v992, 0.0
  %v1016 = vsel %vm810, %v994, 0.0
  %v1017 = vsel %vm811, %v996, 0.0
  %v1018 = vsel %vm812, %v998, 0.0
  %v1019 = vsel %vm813, %v1000, 0.0
  %v1020 = vsel %vm814, %v1002, 0.0
  %v1021 = vsel %vm815, %v1004, 0.0
  %v1022 = vsel %vm816, %v1006, 0.0
  %v1023 = vsub.f32 %v913, %v952
  %v1024 = vmul.f32 %v1023, 1.442695
  %v1025 = vpow.pop %v1024
  %v1026 = vld [vmem:[#allocation3] sm:$0x1]
  %v1027 = vmul.f32 %v1025, %v1026
  %v1028 = vsel %vm914, %v1007, 0.0
  %v1029 = vsel %vm914, %v1008, 0.0
  %v1030 = vadd.f32 %v1028, %v1029
  %v1031 = vsel %vm914, %v1009, 0.0
  %v1032 = vadd.f32 %v1030, %v1031
  %v1033 = vsel %vm914, %v1010, 0.0
  %v1034 = vadd.f32 %v1032, %v1033
  %v1035 = vsel %vm914, %v1011, 0.0
  %v1036 = vadd.f32 %v1034, %v1035
  %v1037 = vsel %vm914, %v1012, 0.0
  %v1038 = vadd.f32 %v1036, %v1037
  %v1039 = vsel %vm914, %v1013, 0.0
  %v1040 = vadd.f32 %v1038, %v1039
  %v1041 = vsel %vm914, %v1014, 0.0
  %v1042 = vadd.f32 %v1040, %v1041
  %v1043 = vsel %vm914, %v1015, 0.0
  %v1044 = vadd.f32 %v1042, %v1043
  %v1045 = vsel %vm914, %v1016, 0.0
  %v1046 = vadd.f32 %v1044, %v1045
  %v1047 = vsel %vm914, %v1017, 0.0
  %v1048 = vadd.f32 %v1046, %v1047
  %v1049 = vsel %vm914, %v1018, 0.0
  %v1050 = vadd.f32 %v1048, %v1049
  %v1051 = vsel %vm914, %v1019, 0.0
  %v1052 = vadd.f32 %v1050, %v1051
  %v1053 = vsel %vm914, %v1020, 0.0
  %v1054 = vadd.f32 %v1052, %v1053
  %v1055 = vsel %vm914, %v1021, 0.0
  %v1056 = vadd.f32 %v1054, %v1055
  %v1057 = vsel %vm914, %v1022, 0.0
  %v1058 = vadd.f32 %v1056, %v1057
  %v1059 = vrot.slane %v1058, 4
  %v1060 = vadd.f32 %v1058, %v1059
  %v1061 = vrot.slane %v1060, 2
  %v1062 = vadd.f32 %v1060, %v1061
  %v1063 = vrot.slane %v1062, 1
  %v1064 = vadd.f32 %v1062, %v1063
  %v1065 = vadd.f32 %v1027, %v1064
  %vm1066 = vcmask 8192
  %1067 = vst.msk [vmem:[#allocation3] sm:$0x1] %vm1066, %v1065
  %v1068 = vpack.c.bf16 %v1008, %v1007
  %v1069 = vpack.c.bf16 %v1010, %v1009
  %v1070 = vpack.c.bf16 %v1012, %v1011
  %v1071 = vpack.c.bf16 %v1014, %v1013
  %v1072 = vpack.c.bf16 %v1016, %v1015
  %v1073 = vpack.c.bf16 %v1018, %v1017
  %v1074 = vpack.c.bf16 %v1020, %v1019
  %v1075 = vpack.c.bf16 %v1022, %v1021
  %1076 = vxpose.xlu0.c.b16.start [1/8] %v64, 128
  %1077 = vxpose.xlu0.c.b16.cont [2/8] %v65, 128
  %1078 = vxpose.xlu0.c.b16.cont [3/8] %v66, 128
  %1079 = vxpose.xlu0.c.b16.cont [4/8] %v67, 128
  %1080 = vxpose.xlu0.c.b16.cont [5/8] %v68, 128
  %1081 = vxpose.xlu0.c.b16.cont [6/8] %v69, 128
  %1082 = vxpose.xlu0.c.b16.cont [7/8] %v70, 128
  %1083 = vxpose.xlu0.c.b16.end [8/8] %v71, 128
  %v1084 = vpop.trf.xlu0
  %v1085 = vpop.trf.xlu0
  %v1086 = vpop.trf.xlu0
  %v1087 = vpop.trf.xlu0
  %v1088 = vpop.trf.xlu0
  %v1089 = vpop.trf.xlu0
  %v1090 = vpop.trf.xlu0
  %v1091 = vpop.trf.xlu0
  %1092 = vmatprep.subr.bf16.mxu0 0
  %1093 = vmatpush1.bf16.msra.mxu0 %v1068
  %1094 = vmatprep.subr.bf16.mxu0 0
  %1095 = vmatpush1.bf16.msra.mxu0 %v1069
  %1096 = vmatprep.subr.bf16.mxu0 0
  %1097 = vmatpush1.bf16.msra.mxu0 %v1070
  %1098 = vmatprep.subr.bf16.mxu0 0
  %1099 = vmatpush1.bf16.msra.mxu0 %v1071
  %1100 = vmatprep.subr.bf16.mxu0 0
  %1101 = vmatpush1.bf16.msra.mxu0 %v1072
  %1102 = vmatprep.subr.bf16.mxu0 0
  %1103 = vmatpush1.bf16.msra.mxu0 %v1073
  %1104 = vmatprep.subr.bf16.mxu0 0
  %1105 = vmatpush1.bf16.msra.mxu0 %v1074
  %1106 = vmatprep.subr.bf16.mxu0 0
  %1107 = vmatpush1.bf16.msra.mxu0 %v1075
  %1108 = vmatprep.subr.bf16.mxu0 0
  %1109 = vmatpush1.bf16.msra.mxu0 0
  %1110 = vmatprep.subr.bf16.mxu0 0
  %1111 = vmatpush1.bf16.msra.mxu0 0
  %1112 = vmatprep.subr.bf16.mxu0 0
  %1113 = vmatpush1.bf16.msra.mxu0 0
  %1114 = vmatprep.subr.bf16.mxu0 0
  %1115 = vmatpush1.bf16.msra.mxu0 0
  %1116 = vmatprep.subr.bf16.mxu0 0
  %1117 = vmatpush1.bf16.msra.mxu0 0
  %1118 = vmatprep.subr.bf16.mxu0 0
  %1119 = vmatpush1.bf16.msra.mxu0 0
  %1120 = vmatprep.subr.bf16.mxu0 0
  %1121 = vmatpush1.bf16.msra.mxu0 0
  %1122 = vmatprep.subr.bf16.mxu0 0
  %1123 = vmatpush1.bf16.msra.mxu0 0
  %1124 = vmatprep.mubr.bf16.mxu0 0
  %1125 = vmatmul.mubr.bf16.gmra.mrb[0].mxu0 %v1084
  %v1126 = vpop.f32.mrb[0].mxu0
  %v1127 = vadd.f32 0.0, %v1126
  %v1128 = vpop.f32.mrb[0].mxu0
  %v1129 = vpop.f32.mrb[0].mxu0
  %v1130 = vadd.f32 0.0, %v1129
  %v1131 = vpop.f32.mrb[0].mxu0
  %1132 = vdwg.mxu0
  %v1133 = vld [vmem:[#allocation4] sm:$0xff]
  %v1134 = vld [vmem:[#allocation4 + $0x8] sm:$0xff]
  %v1136 = vlaneseq
  %v1137 = vshrl.u32 %v1136, 7
  %v1138 = vsub.s32 0, %v1137
  %v1139 = vrot.slane %v1025, %v1138
  %v1141 = vmul.f32 %v1139, %v1133
  %v1142 = vmul.f32 %v1139, %v1134
  %v1143 = vadd.f32 %v1141, %v1127
  %v1144 = vadd.f32 %v1142, %v1130
  %1145 = vst.msk [vmem:[#allocation4] sm:$0xff] %vm914, %v1143
  %1146 = vst.msk [vmem:[#allocation4 + $0x8] sm:$0xff] %vm914, %v1144
  %1147 = vst.msk [vmem:[#allocation2] sm:$0x1] %vm1066, %v952
  // Predicated region
  $region46: #{backbone_forward.23} parent=0 // pred_check
    %p1148 = pneg %p38
  $region47: #{backbone_forward.23} parent=0 // pred_check_branch
    %1150 = sbr.rel (%p1148) target = $region49
  $region48: #{backbone_forward.23} parent=0 // pred_region
    %v1151 = vld [vmem:[#allocation3] sm:$0x1]
    %vm1152 = vcmp.eq.f32.partialorder %v1151, 0.0
    %v1153 = vsel %vm1152, 1.0, %v1151
    %v1154 = vrcp.pop %v1153
    %v1155 = vld [vmem:[#allocation4] sm:$0xff]
    %v1156 = vld [vmem:[#allocation4 + $0x8] sm:$0xff]
    %v1158 = vlaneseq
    %v1159 = vshrl.u32 %v1158, 7
    %v1160 = vsub.s32 0, %v1159
    %v1161 = vrot.slane %v1154, %v1160
    %v1163 = vmul.f32 %v1155, %v1161
    %v1164 = vmul.f32 %v1156, %v1161
    %1165 = vst.msk [vmem:[%s10] sm:$0xff] %vm914, %v1163
    %1166 = vst.msk [vmem:[%s10 + $0x8] sm:$0xff] %vm914, %v1164
  $region49: #{backbone_forward.23} parent=0 // pred_fallthru
    _
  // Predicated region
  $region50: #{backbone_forward.23} parent=0 // pred_check
    _
  $region51: #{backbone_forward.23} parent=0 // pred_check_branch
    %1168 = sbr.rel (0) target = $region53
  $region52: #{backbone_forward.23} parent=0 // pred_region
    _
  $region53: #{backbone_forward.23} parent=0 // pred_fallthru
    _
  // Predicated region
  $region54: #{backbone_forward.23} parent=0 // pred_check
    _
  $region55: #{backbone_forward.23} parent=0 // pred_check_branch
    %1170 = sbr.rel (0) target = $region57
  $region56: #{backbone_forward.23} parent=0 // pred_region
    _
  $region57: #{backbone_forward.23} parent=0 // pred_fallthru
    _

// kernel: backbone_forward.19
$region0: #{backbone_forward.19}
  #allocation0 [shape = 'u32[]', space=smem, size = 0x4, offset = 0x4, fixed_abs, tag = 'smem constant byte address 0x4 - core index']
  #allocation1 [shape = 'u32[144,128]{1,0:T(1,128)}', space=vmem, size = 0x12000, scoped, tag = 'internal scratch']
  #allocation2 [shape = 'f32[128,2]{1,0:T(8,128)}', space=vmem, size = 0x10000, scoped, tag = 'scratch operand']
  #allocation3 [shape = 'f32[128,2]{1,0:T(8,128)}', space=vmem, size = 0x10000, scoped, tag = 'scratch operand']
  #allocation4 [shape = 'f32[128,16]{1,0:T(8,128)}', space=vmem, size = 0x10000, scoped, tag = 'scratch operand']
  #allocation5 [shape = 's32[1]{0}', space=sflag, size = 0x4, scoped, tag = 'scoped memory for backbone_forward.19']
  #allocation6 [shape = 's32[1]{0:T(128)S(6)}', space=smem, size = 0x200, scoped, tag = 'prefetched SMEM operand 0']
  #allocation7 [shape = 's32[1]{0:T(128)S(6)}', space=smem, size = 0x200, scoped, tag = 'prefetched SMEM operand 1']
  %s0 = inlined_call_operand.<no memory space> [shape: s32[1], index: 0, kind: input, shape index: {}]
  %s1 = inlined_call_operand.<no memory space> [shape: s32[1], index: 1, kind: input, shape index: {}]
  %s2 = inlined_call_operand.vmem [shape: f32[128,64], index: 2, kind: input, shape index: {}]
  %s3 = inlined_call_operand.vmem [shape: bf16[256,16], index: 3, kind: input, shape index: {}]
  %s4 = inlined_call_operand.vmem [shape: bf16[256,16], index: 4, kind: input, shape index: {}]
  %s5 = inlined_call_operand.vmem [shape: s32[1,256], index: 5, kind: input, shape index: {}]
  %s6 = inlined_call_operand.vmem [shape: f32[128,16], index: 6, kind: input, shape index: {}]
  %s7 = inlined_call_operand.vmem [shape: f32[128,16], index: 7, kind: output, shape index: {}]
  %s8 = sld [smem:[#allocation0]]
  $region42: #{backbone_forward.19} parent=0
    _
  %s10 = ssub.s32 1, %s8
  %s11 = scalar_select 0, %s10, %s8
  %12 = sst [smem:[#allocation6]] %s0
  %13 = sst [smem:[#allocation7]] %s1
  // Predicated region
  $region2: #{backbone_forward.19} parent=0 // pred_check
    _
  $region3: #{backbone_forward.19} parent=0 // pred_check_branch
    %15 = sbr.rel (0) target = $region5
  $region4: #{backbone_forward.19} parent=0 // pred_region
    _
  $region5: #{backbone_forward.19} parent=0 // pred_fallthru
    _
  // Predicated region
  $region6: #{backbone_forward.19} parent=0 // pred_check
    _
  $region7: #{backbone_forward.19} parent=0 // pred_check_branch
    %17 = sbr.rel (0) target = $region9
  $region8: #{backbone_forward.19} parent=0 // pred_region
    %s18 = sld [smem:[#allocation7]]
    %p19 = scmp.gt.s32.totalorder %s18, 0
    %s20 = sld [smem:[#allocation6]]
    %s21 = ssub.s32 %s18, 1
    %p22 = scmp.lt.s32.totalorder 0, %s21
    %s23 = scalar_select %p22, 0, %s21
    %s24 = sadd.s32 %s20, %s23
    %s25 = scalar_select %p19, %s24, 0
    %s26 = smul.u32 32, %s25
    %p27 = scmp.lt.s32.totalorder %s26, 31
    %s28 = scalar_select %p27, %s26, 31
    %s29 = smul.addr %s28, 4
    %s30 = scalar_lea.vmem %s3, %s29
    %s31 = sld [smem:[#allocation7]]
    %p32 = scmp.gt.s32.totalorder %s31, 0
    %s33 = sld [smem:[#allocation6]]
    %s34 = ssub.s32 %s31, 1
    %p35 = scmp.lt.s32.totalorder 0, %s34
    %s36 = scalar_select %p35, 0, %s34
    %s37 = sadd.s32 %s33, %s36
    %s38 = scalar_select %p32, %s37, 0
    %s39 = smul.u32 32, %s38
  $region9: #{backbone_forward.19} parent=0 // pred_fallthru
    _
  // Predicated region
  $region10: #{backbone_forward.19} parent=0 // pred_check
    _
  $region11: #{backbone_forward.19} parent=0 // pred_check_branch
    %41 = sbr.rel (0) target = $region13
  $region12: #{backbone_forward.19} parent=0 // pred_region
    %s42 = sld [smem:[#allocation7]]
    %p43 = scmp.gt.s32.totalorder %s42, 0
    %s44 = sld [smem:[#allocation6]]
    %s45 = ssub.s32 %s42, 1
    %p46 = scmp.lt.s32.totalorder 0, %s45
    %s47 = scalar_select %p46, 0, %s45
    %s48 = sadd.s32 %s44, %s47
    %s49 = scalar_select %p43, %s48, 0
    %s50 = smul.u32 32, %s49
    %p51 = scmp.lt.s32.totalorder %s50, 31
    %s52 = scalar_select %p51, %s50, 31
    %s53 = smul.addr %s52, 4
    %s54 = scalar_lea.vmem %s4, %s53
    %s55 = sld [smem:[#allocation7]]
    %p56 = scmp.gt.s32.totalorder %s55, 0
    %s57 = sld [smem:[#allocation6]]
    %s58 = ssub.s32 %s55, 1
    %p59 = scmp.lt.s32.totalorder 0, %s58
    %s60 = scalar_select %p59, 0, %s58
    %s61 = sadd.s32 %s57, %s60
    %s62 = scalar_select %p56, %s61, 0
    %s63 = smul.u32 32, %s62
  $region13: #{backbone_forward.19} parent=0 // pred_fallthru
    _
  // Predicated region
  $region14: #{backbone_forward.19} parent=0 // pred_check
    _
  $region15: #{backbone_forward.19} parent=0 // pred_check_branch
    %65 = sbr.rel (0) target = $region17
  $region16: #{backbone_forward.19} parent=0 // pred_region
    %s66 = sld [smem:[#allocation7]]
    %p67 = scmp.gt.s32.totalorder %s66, 0
    %s68 = sld [smem:[#allocation6]]
    %s69 = ssub.s32 %s66, 1
    %p70 = scmp.lt.s32.totalorder 0, %s69
    %s71 = scalar_select %p70, 0, %s69
    %s72 = sadd.s32 %s68, %s71
    %s73 = scalar_select %p67, %s72, 0
    %s74 = smul.u32 2, %s73
    %p75 = scmp.lt.s32.totalorder %s74, 1
    %s76 = scalar_select %p75, %s74, 1
    %s77 = scalar_lea.vmem %s5, %s76
    %s78 = sld [smem:[#allocation7]]
    %p79 = scmp.gt.s32.totalorder %s78, 0
    %s80 = sld [smem:[#allocation6]]
    %s81 = ssub.s32 %s78, 1
    %p82 = scmp.lt.s32.totalorder 0, %s81
    %s83 = scalar_select %p82, 0, %s81
    %s84 = sadd.s32 %s80, %s83
    %s85 = scalar_select %p79, %s84, 0
    %s86 = smul.u32 2, %s85
  $region17: #{backbone_forward.19} parent=0 // pred_fallthru
    _
  // Predicated region
  $region18: #{backbone_forward.19} parent=0 // pred_check
    _
  $region19: #{backbone_forward.19} parent=0 // pred_check_branch
    %88 = sbr.rel (0) target = $region21
  $region20: #{backbone_forward.19} parent=0 // pred_region
    _
  $region21: #{backbone_forward.19} parent=0 // pred_fallthru
    _
  %s89 = sld [smem:[#allocation7]]
  %p90 = scmp.gt.s32.totalorder %s89, 0
  %s91 = sld [smem:[#allocation6]]
  %s92 = ssub.s32 %s89, 1
  %p93 = scmp.lt.s32.totalorder 0, %s92
  %s94 = scalar_select %p93, 0, %s92
  %s95 = sadd.s32 %s91, %s94
  %s96 = scalar_select %p90, %s95, 0
  %s97 = smul.u32 32, %s96
  %p98 = scmp.lt.s32.totalorder %s97, 31
  %s99 = scalar_select %p98, %s97, 31
  %s100 = smul.addr %s99, 4
  %s101 = scalar_lea.vmem %s3, %s100
  %s102 = sld [smem:[#allocation7]]
  %p103 = scmp.gt.s32.totalorder %s102, 0
  %s104 = sld [smem:[#allocation6]]
  %s105 = ssub.s32 %s102, 1
  %p106 = scmp.lt.s32.totalorder 0, %s105
  %s107 = scalar_select %p106, 0, %s105
  %s108 = sadd.s32 %s104, %s107
  %s109 = scalar_select %p103, %s108, 0
  %s110 = smul.u32 32, %s109
  %p111 = scmp.lt.s32.totalorder %s110, 31
  %s112 = scalar_select %p111, %s110, 31
  %s113 = smul.addr %s112, 4
  %s114 = scalar_lea.vmem %s4, %s113
  %s115 = sld [smem:[#allocation7]]
  %p116 = scmp.gt.s32.totalorder %s115, 0
  %s117 = sld [smem:[#allocation6]]
  %s118 = ssub.s32 %s115, 1
  %p119 = scmp.lt.s32.totalorder 0, %s118
  %s120 = scalar_select %p119, 0, %s118
  %s121 = sadd.s32 %s117, %s120
  %s122 = scalar_select %p116, %s121, 0
  %s123 = smul.u32 2, %s122
  %p124 = scmp.lt.s32.totalorder %s123, 1
  %s125 = scalar_select %p124, %s123, 1
  %s126 = scalar_lea.vmem %s5, %s125
  %s127 = sld [smem:[#allocation7]]
  %p128 = scmp.gt.s32.totalorder %s127, 0
  %s129 = sld [smem:[#allocation6]]
  %s130 = ssub.s32 %s127, 1
  %p131 = scmp.lt.s32.totalorder 0, %s130
  %s132 = scalar_select %p131, 0, %s130
  %s133 = sadd.s32 %s129, %s132
  %s134 = scalar_select %p128, %s133, 0
  %s135 = smul.u32 32, %s134
  %p136 = scmp.lt.s32.totalorder %s135, 31
  %s137 = scalar_select %p136, %s135, 31
  %s138 = smul.addr %s137, 4
  %s139 = scalar_lea.vmem %s3, %s138
  %s140 = sld [smem:[#allocation7]]
  %p141 = scmp.gt.s32.totalorder %s140, 0
  %s142 = sld [smem:[#allocation6]]
  %s143 = ssub.s32 %s140, 1
  %p144 = scmp.lt.s32.totalorder 0, %s143
  %s145 = scalar_select %p144, 0, %s143
  %s146 = sadd.s32 %s142, %s145
  %s147 = scalar_select %p141, %s146, 0
  %s148 = smul.u32 32, %s147
  %s149 = sld [smem:[#allocation7]]
  %p150 = scmp.gt.s32.totalorder %s149, 0
  %s151 = sld [smem:[#allocation6]]
  %s152 = ssub.s32 %s149, 1
  %p153 = scmp.lt.s32.totalorder 0, %s152
  %s154 = scalar_select %p153, 0, %s152
  %s155 = sadd.s32 %s151, %s154
  %s156 = scalar_select %p150, %s155, 0
  %s157 = smul.u32 32, %s156
  %p158 = scmp.lt.s32.totalorder %s157, 31
  %s159 = scalar_select %p158, %s157, 31
  %s160 = smul.addr %s159, 4
  %s161 = scalar_lea.vmem %s4, %s160
  %s162 = sld [smem:[#allocation7]]
  %p163 = scmp.gt.s32.totalorder %s162, 0
  %s164 = sld [smem:[#allocation6]]
  %s165 = ssub.s32 %s162, 1
  %p166 = scmp.lt.s32.totalorder 0, %s165
  %s167 = scalar_select %p166, 0, %s165
  %s168 = sadd.s32 %s164, %s167
  %s169 = scalar_select %p163, %s168, 0
  %s170 = smul.u32 32, %s169
  %s171 = sld [smem:[#allocation7]]
  %p172 = scmp.gt.s32.totalorder %s171, 0
  %s173 = sld [smem:[#allocation6]]
  %s174 = ssub.s32 %s171, 1
  %p175 = scmp.lt.s32.totalorder 0, %s174
  %s176 = scalar_select %p175, 0, %s174
  %s177 = sadd.s32 %s173, %s176
  %s178 = scalar_select %p172, %s177, 0
  %s179 = smul.u32 2, %s178
  %p180 = scmp.lt.s32.totalorder %s179, 1
  %s181 = scalar_select %p180, %s179, 1
  %s182 = scalar_lea.vmem %s5, %s181
  %s183 = sld [smem:[#allocation7]]
  %p184 = scmp.gt.s32.totalorder %s183, 0
  %s185 = sld [smem:[#allocation6]]
  %s186 = ssub.s32 %s183, 1
  %p187 = scmp.lt.s32.totalorder 0, %s186
  %s188 = scalar_select %p187, 0, %s186
  %s189 = sadd.s32 %s185, %s188
  %s190 = scalar_select %p184, %s189, 0
  %s191 = smul.u32 2, %s190
  %p193 = scmp.eq.s32.totalorder 0, 0
  // Predicated region
  $region22: #{backbone_forward.19} parent=0 // pred_check
    %p194 = pneg %p193
  $region23: #{backbone_forward.19} parent=0 // pred_check_branch
    %196 = sbr.rel (%p194) target = $region25
  $region24: #{backbone_forward.19} parent=0 // pred_region
    %vm197 = vcmask 15360
    %198 = vst.msk [vmem:[#allocation2] sm:$0xff] %vm197, -1e+30
    %199 = vst.msk [vmem:[#allocation2 + $0x8] sm:$0xff] %vm197, -1e+30
    %200 = vst.msk [vmem:[#allocation2 + $0x10] sm:$0xff] %vm197, -1e+30
    %201 = vst.msk [vmem:[#allocation2 + $0x18] sm:$0xff] %vm197, -1e+30
    %202 = vst.msk [vmem:[#allocation2 + $0x20] sm:$0xff] %vm197, -1e+30
    %203 = vst.msk [vmem:[#allocation2 + $0x28] sm:$0xff] %vm197, -1e+30
    %204 = vst.msk [vmem:[#allocation2 + $0x30] sm:$0xff] %vm197, -1e+30
    %205 = vst.msk [vmem:[#allocation2 + $0x38] sm:$0xff] %vm197, -1e+30
    %206 = vst.msk [vmem:[#allocation2 + $0x40] sm:$0xff] %vm197, -1e+30
    %207 = vst.msk [vmem:[#allocation2 + $0x48] sm:$0xff] %vm197, -1e+30
    %208 = vst.msk [vmem:[#allocation2 + $0x50] sm:$0xff] %vm197, -1e+30
    %209 = vst.msk [vmem:[#allocation2 + $0x58] sm:$0xff] %vm197, -1e+30
    %210 = vst.msk [vmem:[#allocation2 + $0x60] sm:$0xff] %vm197, -1e+30
    %211 = vst.msk [vmem:[#allocation2 + $0x68] sm:$0xff] %vm197, -1e+30
    %212 = vst.msk [vmem:[#allocation2 + $0x70] sm:$0xff] %vm197, -1e+30
    %213 = vst.msk [vmem:[#allocation2 + $0x78] sm:$0xff] %vm197, -1e+30
    %214 = vst.msk [vmem:[#allocation3] sm:$0xff] %vm197, 0.0
    %215 = vst.msk [vmem:[#allocation3 + $0x8] sm:$0xff] %vm197, 0.0
    %216 = vst.msk [vmem:[#allocation3 + $0x10] sm:$0xff] %vm197, 0.0
    %217 = vst.msk [vmem:[#allocation3 + $0x18] sm:$0xff] %vm197, 0.0
    %218 = vst.msk [vmem:[#allocation3 + $0x20] sm:$0xff] %vm197, 0.0
    %219 = vst.msk [vmem:[#allocation3 + $0x28] sm:$0xff] %vm197, 0.0
    %220 = vst.msk [vmem:[#allocation3 + $0x30] sm:$0xff] %vm197, 0.0
    %221 = vst.msk [vmem:[#allocation3 + $0x38] sm:$0xff] %vm197, 0.0
    %222 = vst.msk [vmem:[#allocation3 + $0x40] sm:$0xff] %vm197, 0.0
    %223 = vst.msk [vmem:[#allocation3 + $0x48] sm:$0xff] %vm197, 0.0
    %224 = vst.msk [vmem:[#allocation3 + $0x50] sm:$0xff] %vm197, 0.0
    %225 = vst.msk [vmem:[#allocation3 + $0x58] sm:$0xff] %vm197, 0.0
    %226 = vst.msk [vmem:[#allocation3 + $0x60] sm:$0xff] %vm197, 0.0
    %227 = vst.msk [vmem:[#allocation3 + $0x68] sm:$0xff] %vm197, 0.0
    %228 = vst.msk [vmem:[#allocation3 + $0x70] sm:$0xff] %vm197, 0.0
    %229 = vst.msk [vmem:[#allocation3 + $0x78] sm:$0xff] %vm197, 0.0
    %vm230 = vcmask 130048
    %231 = vst.msk [vmem:[#allocation4] sm:$0xff] %vm230, 0.0
    %232 = vst.msk [vmem:[#allocation4 + $0x8] sm:$0xff] %vm230, 0.0
    %233 = vst.msk [vmem:[#allocation4 + $0x10] sm:$0xff] %vm230, 0.0
    %234 = vst.msk [vmem:[#allocation4 + $0x18] sm:$0xff] %vm230, 0.0
    %235 = vst.msk [vmem:[#allocation4 + $0x20] sm:$0xff] %vm230, 0.0
    %236 = vst.msk [vmem:[#allocation4 + $0x28] sm:$0xff] %vm230, 0.0
    %237 = vst.msk [vmem:[#allocation4 + $0x30] sm:$0xff] %vm230, 0.0
    %238 = vst.msk [vmem:[#allocation4 + $0x38] sm:$0xff] %vm230, 0.0
    %239 = vst.msk [vmem:[#allocation4 + $0x40] sm:$0xff] %vm230, 0.0
    %240 = vst.msk [vmem:[#allocation4 + $0x48] sm:$0xff] %vm230, 0.0
    %241 = vst.msk [vmem:[#allocation4 + $0x50] sm:$0xff] %vm230, 0.0
    %242 = vst.msk [vmem:[#allocation4 + $0x58] sm:$0xff] %vm230, 0.0
    %243 = vst.msk [vmem:[#allocation4 + $0x60] sm:$0xff] %vm230, 0.0
    %244 = vst.msk [vmem:[#allocation4 + $0x68] sm:$0xff] %vm230, 0.0
    %245 = vst.msk [vmem:[#allocation4 + $0x70] sm:$0xff] %vm230, 0.0
    %246 = vst.msk [vmem:[#allocation4 + $0x78] sm:$0xff] %vm230, 0.0
  $region25: #{backbone_forward.19} parent=0 // pred_fallthru
    _
  %s247 = sld [smem:[#allocation7]]
  %p248 = scmp.lt.s32.totalorder 0, %s247
  // Predicated region
  $region26: #{backbone_forward.19} parent=0 // pred_check
    %p249 = pneg %p248
  $region27: #{backbone_forward.19} parent=0 // pred_check_branch
    %251 = sbr.rel (%p249) target = $region29
  $region28: #{backbone_forward.19} parent=0 // pred_region
    %s252 = smul.u32 0, 128
    %v253 = vlaneseq
    %v254 = vshrl.u32 %v253, 7
    %v255 = vadd.s32 %v254, 8
    %v256 = vadd.s32 %v254, 16
    %v257 = vadd.s32 %v254, 24
    %v258 = vadd.s32 %v254, 32
    %v259 = vadd.s32 %v254, 40
    %v260 = vadd.s32 %v254, 48
    %v261 = vadd.s32 %v254, 56
    %v262 = vadd.s32 %v254, 64
    %v263 = vadd.s32 %v254, 72
    %v264 = vadd.s32 %v254, 80
    %v265 = vadd.s32 %v254, 88
    %v266 = vadd.s32 %v254, 96
    %v267 = vadd.s32 %v254, 104
    %v268 = vadd.s32 %v254, 112
    %v269 = vadd.s32 %v254, 120
    %v270 = vstv %s252
    %v271 = vadd.s32 %v270, %v254
    %v272 = vadd.s32 %v270, %v255
    %v273 = vadd.s32 %v270, %v256
    %v274 = vadd.s32 %v270, %v257
    %v275 = vadd.s32 %v270, %v258
    %v276 = vadd.s32 %v270, %v259
    %v277 = vadd.s32 %v270, %v260
    %v278 = vadd.s32 %v270, %v261
    %v279 = vadd.s32 %v270, %v262
    %v280 = vadd.s32 %v270, %v263
    %v281 = vadd.s32 %v270, %v264
    %v282 = vadd.s32 %v270, %v265
    %v283 = vadd.s32 %v270, %v266
    %v284 = vadd.s32 %v270, %v267
    %v285 = vadd.s32 %v270, %v268
    %v286 = vadd.s32 %v270, %v269
    %v287 = vld [vmem:[%s182] sm:$0x3]
    %v288 = vlaneseq
    %v289 = vshrl.u32 %v288, 7
    %v290 = vsub.s32 0, %v289
    %v291 = vrot.slane %v287, %v290
    %v292 = vlaneseq
    %v293 = vshrl.u32 %v292, 7
    %v294 = vsub.s32 1, %v293
    %v295 = vrot.slane %v287, %v294
    %vm296 = vcmp.eq.s32.totalorder %v291, %v271
    %vm297 = vcmp.eq.s32.totalorder %v295, %v271
    %vm298 = vcmp.eq.s32.totalorder %v291, %v272
    %vm299 = vcmp.eq.s32.totalorder %v295, %v272
    %vm300 = vcmp.eq.s32.totalorder %v291, %v273
    %vm301 = vcmp.eq.s32.totalorder %v295, %v273
    %vm302 = vcmp.eq.s32.totalorder %v291, %v274
    %vm303 = vcmp.eq.s32.totalorder %v295, %v274
    %vm304 = vcmp.eq.s32.totalorder %v291, %v275
    %vm305 = vcmp.eq.s32.totalorder %v295, %v275
    %vm306 = vcmp.eq.s32.totalorder %v291, %v276
    %vm307 = vcmp.eq.s32.totalorder %v295, %v276
    %vm308 = vcmp.eq.s32.totalorder %v291, %v277
    %vm309 = vcmp.eq.s32.totalorder %v295, %v277
    %vm310 = vcmp.eq.s32.totalorder %v291, %v278
    %vm311 = vcmp.eq.s32.totalorder %v295, %v278
    %vm312 = vcmp.eq.s32.totalorder %v291, %v279
    %vm313 = vcmp.eq.s32.totalorder %v295, %v279
    %vm314 = vcmp.eq.s32.totalorder %v291, %v280
    %vm315 = vcmp.eq.s32.totalorder %v295, %v280
    %vm316 = vcmp.eq.s32.totalorder %v291, %v281
    %vm317 = vcmp.eq.s32.totalorder %v295, %v281
    %vm318 = vcmp.eq.s32.totalorder %v291, %v282
    %vm319 = vcmp.eq.s32.totalorder %v295, %v282
    %vm320 = vcmp.eq.s32.totalorder %v291, %v283
    %vm321 = vcmp.eq.s32.totalorder %v295, %v283
    %vm322 = vcmp.eq.s32.totalorder %v291, %v284
    %vm323 = vcmp.eq.s32.totalorder %v295, %v284
    %vm324 = vcmp.eq.s32.totalorder %v291, %v285
    %vm325 = vcmp.eq.s32.totalorder %v295, %v285
    %vm326 = vcmp.eq.s32.totalorder %v291, %v286
    %vm327 = vcmp.eq.s32.totalorder %v295, %v286
    %v328 = vld [vmem:[%s2] sm:$0xff]
    %v329 = vld [vmem:[%s2 + $0x8] sm:$0xff]
    %v330 = vld [vmem:[%s2 + $0x10] sm:$0xff]
    %v331 = vld [vmem:[%s2 + $0x18] sm:$0xff]
    %v332 = vld [vmem:[%s2 + $0x20] sm:$0xff]
    %v333 = vld [vmem:[%s2 + $0x28] sm:$0xff]
    %v334 = vld [vmem:[%s2 + $0x30] sm:$0xff]
    %v335 = vld [vmem:[%s2 + $0x38] sm:$0xff]
    %v336 = vld [vmem:[%s2 + $0x40] sm:$0xff]
    %v337 = vld [vmem:[%s2 + $0x48] sm:$0xff]
    %v338 = vld [vmem:[%s2 + $0x50] sm:$0xff]
    %v339 = vld [vmem:[%s2 + $0x58] sm:$0xff]
    %v340 = vld [vmem:[%s2 + $0x60] sm:$0xff]
    %v341 = vld [vmem:[%s2 + $0x68] sm:$0xff]
    %v342 = vld [vmem:[%s2 + $0x70] sm:$0xff]
    %v343 = vld [vmem:[%s2 + $0x78] sm:$0xff]
    %v344 = vpack.c.bf16 %v329, %v328
    %v345 = vpack.c.bf16 %v331, %v330
    %v346 = vpack.c.bf16 %v333, %v332
    %v347 = vpack.c.bf16 %v335, %v334
    %v348 = vpack.c.bf16 %v337, %v336
    %v349 = vpack.c.bf16 %v339, %v338
    %v350 = vpack.c.bf16 %v341, %v340
    %v351 = vpack.c.bf16 %v343, %v342
    %v352 = vld [vmem:[%s139] sm:$0xf]
    %v353 = vld [vmem:[%s139 + $0x4] sm:$0xf]
    %v354 = vld [vmem:[%s139 + $0x8] sm:$0xf]
    %v355 = vld [vmem:[%s139 + $0xc] sm:$0xf]
    %v356 = vld [vmem:[%s139 + $0x10] sm:$0xf]
    %v357 = vld [vmem:[%s139 + $0x14] sm:$0xf]
    %v358 = vld [vmem:[%s139 + $0x18] sm:$0xf]
    %v359 = vld [vmem:[%s139 + $0x1c] sm:$0xf]
    %v360 = vld [vmem:[%s139 + $0x20] sm:$0xf]
    %v361 = vld [vmem:[%s139 + $0x24] sm:$0xf]
    %v362 = vld [vmem:[%s139 + $0x28] sm:$0xf]
    %v363 = vld [vmem:[%s139 + $0x2c] sm:$0xf]
    %v364 = vld [vmem:[%s139 + $0x30] sm:$0xf]
    %v365 = vld [vmem:[%s139 + $0x34] sm:$0xf]
    %v366 = vld [vmem:[%s139 + $0x38] sm:$0xf]
    %v367 = vld [vmem:[%s139 + $0x3c] sm:$0xf]
    %v368 = vld [vmem:[%s139 + $0x40] sm:$0xf]
    %v369 = vld [vmem:[%s139 + $0x44] sm:$0xf]
    %v370 = vld [vmem:[%s139 + $0x48] sm:$0xf]
    %v371 = vld [vmem:[%s139 + $0x4c] sm:$0xf]
    %v372 = vld [vmem:[%s139 + $0x50] sm:$0xf]
    %v373 = vld [vmem:[%s139 + $0x54] sm:$0xf]
    %v374 = vld [vmem:[%s139 + $0x58] sm:$0xf]
    %v375 = vld [vmem:[%s139 + $0x5c] sm:$0xf]
    %v376 = vld [vmem:[%s139 + $0x60] sm:$0xf]
    %v377 = vld [vmem:[%s139 + $0x64] sm:$0xf]
    %v378 = vld [vmem:[%s139 + $0x68] sm:$0xf]
    %v379 = vld [vmem:[%s139 + $0x6c] sm:$0xf]
    %v380 = vld [vmem:[%s139 + $0x70] sm:$0xf]
    %v381 = vld [vmem:[%s139 + $0x74] sm:$0xf]
    %v382 = vld [vmem:[%s139 + $0x78] sm:$0xf]
    %v383 = vld [vmem:[%s139 + $0x7c] sm:$0xf]
    %v384 = vld [vmem:[%s161] sm:$0xf]
    %v385 = vld [vmem:[%s161 + $0x4] sm:$0xf]
    %v386 = vld [vmem:[%s161 + $0x8] sm:$0xf]
    %v387 = vld [vmem:[%s161 + $0xc] sm:$0xf]
    %v388 = vld [vmem:[%s161 + $0x10] sm:$0xf]
    %v389 = vld [vmem:[%s161 + $0x14] sm:$0xf]
    %v390 = vld [vmem:[%s161 + $0x18] sm:$0xf]
    %v391 = vld [vmem:[%s161 + $0x1c] sm:$0xf]
    %v392 = vld [vmem:[%s161 + $0x20] sm:$0xf]
    %v393 = vld [vmem:[%s161 + $0x24] sm:$0xf]
    %v394 = vld [vmem:[%s161 + $0x28] sm:$0xf]
    %v395 = vld [vmem:[%s161 + $0x2c] sm:$0xf]
    %v396 = vld [vmem:[%s161 + $0x30] sm:$0xf]
    %v397 = vld [vmem:[%s161 + $0x34] sm:$0xf]
    %v398 = vld [vmem:[%s161 + $0x38] sm:$0xf]
    %v399 = vld [vmem:[%s161 + $0x3c] sm:$0xf]
    %v400 = vld [vmem:[%s161 + $0x40] sm:$0xf]
    %v401 = vld [vmem:[%s161 + $0x44] sm:$0xf]
    %v402 = vld [vmem:[%s161 + $0x48] sm:$0xf]
    %v403 = vld [vmem:[%s161 + $0x4c] sm:$0xf]
    %v404 = vld [vmem:[%s161 + $0x50] sm:$0xf]
    %v405 = vld [vmem:[%s161 + $0x54] sm:$0xf]
    %v406 = vld [vmem:[%s161 + $0x58] sm:$0xf]
    %v407 = vld [vmem:[%s161 + $0x5c] sm:$0xf]
    %v408 = vld [vmem:[%s161 + $0x60] sm:$0xf]
    %v409 = vld [vmem:[%s161 + $0x64] sm:$0xf]
    %v410 = vld [vmem:[%s161 + $0x68] sm:$0xf]
    %v411 = vld [vmem:[%s161 + $0x6c] sm:$0xf]
    %v412 = vld [vmem:[%s161 + $0x70] sm:$0xf]
    %v413 = vld [vmem:[%s161 + $0x74] sm:$0xf]
    %v414 = vld [vmem:[%s161 + $0x78] sm:$0xf]
    %v415 = vld [vmem:[%s161 + $0x7c] sm:$0xf]
    %v448 = vunpack.c.l.b16 %v352
    %v449 = vunpack.c.l.b16 %v353
    %v450 = vunpack.c.l.b16 %v354
    %v451 = vunpack.c.l.b16 %v355
    %v452 = vunpack.c.l.b16 %v356
    %v453 = vunpack.c.l.b16 %v357
    %v454 = vunpack.c.l.b16 %v358
    %v455 = vunpack.c.l.b16 %v359
    %v456 = vunpack.c.l.b16 %v360
    %v457 = vunpack.c.l.b16 %v361
    %v458 = vunpack.c.l.b16 %v362
    %v459 = vunpack.c.l.b16 %v363
    %v460 = vunpack.c.l.b16 %v364
    %v461 = vunpack.c.l.b16 %v365
    %v462 = vunpack.c.l.b16 %v366
    %v463 = vunpack.c.l.b16 %v367
    %v464 = vunpack.c.l.b16 %v368
    %v465 = vunpack.c.l.b16 %v369
    %v466 = vunpack.c.l.b16 %v370
    %v467 = vunpack.c.l.b16 %v371
    %v468 = vunpack.c.l.b16 %v372
    %v469 = vunpack.c.l.b16 %v373
    %v470 = vunpack.c.l.b16 %v374
    %v471 = vunpack.c.l.b16 %v375
    %v472 = vunpack.c.l.b16 %v376
    %v473 = vunpack.c.l.b16 %v377
    %v474 = vunpack.c.l.b16 %v378
    %v475 = vunpack.c.l.b16 %v379
    %v476 = vunpack.c.l.b16 %v380
    %v477 = vunpack.c.l.b16 %v381
    %v478 = vunpack.c.l.b16 %v382
    %v479 = vunpack.c.l.b16 %v383
    %v480 = vpack.c.b16 %v449, %v448
    %v481 = vpack.c.b16 %v451, %v450
    %v482 = vpack.c.b16 %v453, %v452
    %v483 = vpack.c.b16 %v455, %v454
    %v484 = vpack.c.b16 %v457, %v456
    %v485 = vpack.c.b16 %v459, %v458
    %v486 = vpack.c.b16 %v461, %v460
    %v487 = vpack.c.b16 %v463, %v462
    %v488 = vpack.c.b16 %v465, %v464
    %v489 = vpack.c.b16 %v467, %v466
    %v490 = vpack.c.b16 %v469, %v468
    %v491 = vpack.c.b16 %v471, %v470
    %v492 = vpack.c.b16 %v473, %v472
    %v493 = vpack.c.b16 %v475, %v474
    %v494 = vpack.c.b16 %v477, %v476
    %v495 = vpack.c.b16 %v479, %v478
    %vm496 = vcmask 64512
    %v498 = vsel %vm496, %v344, 0
    %v501 = vsel %vm496, %v345, 0
    %v504 = vsel %vm496, %v346, 0
    %v507 = vsel %vm496, %v347, 0
    %v510 = vsel %vm496, %v348, 0
    %v513 = vsel %vm496, %v349, 0
    %v516 = vsel %vm496, %v350, 0
    %v519 = vsel %vm496, %v351, 0
    %v522 = vsel %vm496, %v480, 0
    %v525 = vsel %vm496, %v481, 0
    %v528 = vsel %vm496, %v482, 0
    %v531 = vsel %vm496, %v483, 0
    %v534 = vsel %vm496, %v484, 0
    %v537 = vsel %vm496, %v485, 0
    %v540 = vsel %vm496, %v486, 0
    %v543 = vsel %vm496, %v487, 0
    %v546 = vsel %vm496, %v488, 0
    %v549 = vsel %vm496, %v489, 0
    %v552 = vsel %vm496, %v490, 0
    %v555 = vsel %vm496, %v491, 0
    %v558 = vsel %vm496, %v492, 0
    %v561 = vsel %vm496, %v493, 0
    %v564 = vsel %vm496, %v494, 0
    %v567 = vsel %vm496, %v495, 0
    %569 = vmatprep.subr.bf16.mxu0 0
    %570 = vmatpush1.bf16.xpose.msra.mxu0 %v522
    %571 = vmatprep.subr.bf16.mxu0 0
    %572 = vmatpush1.bf16.xpose.msra.mxu0 %v525
    %573 = vmatprep.subr.bf16.mxu0 0
    %574 = vmatpush1.bf16.xpose.msra.mxu0 %v528
    %575 = vmatprep.subr.bf16.mxu0 0
    %576 = vmatpush1.bf16.xpose.msra.mxu0 %v531
    %577 = vmatprep.subr.bf16.mxu0 0
    %578 = vmatpush1.bf16.xpose.msra.mxu0 %v534
    %579 = vmatprep.subr.bf16.mxu0 0
    %580 = vmatpush1.bf16.xpose.msra.mxu0 %v537
    %581 = vmatprep.subr.bf16.mxu0 0
    %582 = vmatpush1.bf16.xpose.msra.mxu0 %v540
    %583 = vmatprep.subr.bf16.mxu0 0
    %584 = vmatpush1.bf16.xpose.msra.mxu0 %v543
    %585 = vmatprep.subr.bf16.mxu0 0
    %586 = vmatpush1.bf16.xpose.msra.mxu0 %v546
    %587 = vmatprep.subr.bf16.mxu0 0
    %588 = vmatpush1.bf16.xpose.msra.mxu0 %v549
    %589 = vmatprep.subr.bf16.mxu0 0
    %590 = vmatpush1.bf16.xpose.msra.mxu0 %v552
    %591 = vmatprep.subr.bf16.mxu0 0
    %592 = vmatpush1.bf16.xpose.msra.mxu0 %v555
    %593 = vmatprep.subr.bf16.mxu0 0
    %594 = vmatpush1.bf16.xpose.msra.mxu0 %v558
    %595 = vmatprep.subr.bf16.mxu0 0
    %596 = vmatpush1.bf16.xpose.msra.mxu0 %v561
    %597 = vmatprep.subr.bf16.mxu0 0
    %598 = vmatpush1.bf16.xpose.msra.mxu0 %v564
    %599 = vmatprep.subr.bf16.mxu0 0
    %600 = vmatpush1.bf16.xpose.msra.mxu0 %v567
    %601 = vmatprep.mubr.bf16.mxu0 0
    %602 = vmatmul.mubr.bf16.gmra.mrb[0].mxu0 %v498
    %v603 = vpop.f32.mrb[0].mxu0
    %v604 = vadd.f32 0.0, %v603
    %v605 = vpop.f32.mrb[0].mxu0
    %v606 = vadd.f32 0.0, %v605
    %v607 = vpop.f32.mrb[0].mxu0
    %v608 = vadd.f32 0.0, %v607
    %v609 = vpop.f32.mrb[0].mxu0
    %v610 = vadd.f32 0.0, %v609
    %611 = vmatprep.mubr.bf16.mxu0 0
    %612 = vmatmul.mubr.bf16.gmra.mrb[0].mxu0 %v501
    %v613 = vpop.f32.mrb[0].mxu0
    %v614 = vadd.f32 0.0, %v613
    %v615 = vpop.f32.mrb[0].mxu0
    %v616 = vadd.f32 0.0, %v615
    %v617 = vpop.f32.mrb[0].mxu0
    %v618 = vadd.f32 0.0, %v617
    %v619 = vpop.f32.mrb[0].mxu0
    %v620 = vadd.f32 0.0, %v619
    %621 = vmatprep.mubr.bf16.mxu0 0
    %622 = vmatmul.mubr.bf16.gmra.mrb[0].mxu0 %v504
    %v623 = vpop.f32.mrb[0].mxu0
    %v624 = vadd.f32 0.0, %v623
    %v625 = vpop.f32.mrb[0].mxu0
    %v626 = vadd.f32 0.0, %v625
    %v627 = vpop.f32.mrb[0].mxu0
    %v628 = vadd.f32 0.0, %v627
    %v629 = vpop.f32.mrb[0].mxu0
    %v630 = vadd.f32 0.0, %v629
    %631 = vmatprep.mubr.bf16.mxu0 0
    %632 = vmatmul.mubr.bf16.gmra.mrb[0].mxu0 %v507
    %v633 = vpop.f32.mrb[0].mxu0
    %v634 = vadd.f32 0.0, %v633
    %v635 = vpop.f32.mrb[0].mxu0
    %v636 = vadd.f32 0.0, %v635
    %v637 = vpop.f32.mrb[0].mxu0
    %v638 = vadd.f32 0.0, %v637
    %v639 = vpop.f32.mrb[0].mxu0
    %v640 = vadd.f32 0.0, %v639
    %641 = vmatprep.mubr.bf16.mxu0 0
    %642 = vmatmul.mubr.bf16.gmra.mrb[0].mxu0 %v510
    %v643 = vpop.f32.mrb[0].mxu0
    %v644 = vadd.f32 0.0, %v643
    %v645 = vpop.f32.mrb[0].mxu0
    %v646 = vadd.f32 0.0, %v645
    %v647 = vpop.f32.mrb[0].mxu0
    %v648 = vadd.f32 0.0, %v647
    %v649 = vpop.f32.mrb[0].mxu0
    %v650 = vadd.f32 0.0, %v649
    %651 = vmatprep.mubr.bf16.mxu0 0
    %652 = vmatmul.mubr.bf16.gmra.mrb[0].mxu0 %v513
    %v653 = vpop.f32.mrb[0].mxu0
    %v654 = vadd.f32 0.0, %v653
    %v655 = vpop.f32.mrb[0].mxu0
    %v656 = vadd.f32 0.0, %v655
    %v657 = vpop.f32.mrb[0].mxu0
    %v658 = vadd.f32 0.0, %v657
    %v659 = vpop.f32.mrb[0].mxu0
    %v660 = vadd.f32 0.0, %v659
    %661 = vmatprep.mubr.bf16.mxu0 0
    %662 = vmatmul.mubr.bf16.gmra.mrb[0].mxu0 %v516
    %v663 = vpop.f32.mrb[0].mxu0
    %v664 = vadd.f32 0.0, %v663
    %v665 = vpop.f32.mrb[0].mxu0
    %v666 = vadd.f32 0.0, %v665
    %v667 = vpop.f32.mrb[0].mxu0
    %v668 = vadd.f32 0.0, %v667
    %v669 = vpop.f32.mrb[0].mxu0
    %v670 = vadd.f32 0.0, %v669
    %671 = vmatprep.mubr.bf16.mxu0 0
    %672 = vmatmul.mubr.bf16.gmra.mrb[0].mxu0 %v519
    %v673 = vpop.f32.mrb[0].mxu0
    %v674 = vadd.f32 0.0, %v673
    %v675 = vpop.f32.mrb[0].mxu0
    %v676 = vadd.f32 0.0, %v675
    %v677 = vpop.f32.mrb[0].mxu0
    %v678 = vadd.f32 0.0, %v677
    %v679 = vpop.f32.mrb[0].mxu0
    %v680 = vadd.f32 0.0, %v679
    %681 = vdwg.mxu0
    %v682 = vmul.f32 %v604, 0.35355338
    %v683 = vmul.f32 %v606, 0.35355338
    %v684 = vmul.f32 %v608, 0.35355338
    %v685 = vmul.f32 %v610, 0.35355338
    %v686 = vmul.f32 %v614, 0.35355338
    %v687 = vmul.f32 %v616, 0.35355338
    %v688 = vmul.f32 %v618, 0.35355338
    %v689 = vmul.f32 %v620, 0.35355338
    %v690 = vmul.f32 %v624, 0.35355338
    %v691 = vmul.f32 %v626, 0.35355338
    %v692 = vmul.f32 %v628, 0.35355338
    %v693 = vmul.f32 %v630, 0.35355338
    %v694 = vmul.f32 %v634, 0.35355338
    %v695 = vmul.f32 %v636, 0.35355338
    %v696 = vmul.f32 %v638, 0.35355338
    %v697 = vmul.f32 %v640, 0.35355338
    %v698 = vmul.f32 %v644, 0.35355338
    %v699 = vmul.f32 %v646, 0.35355338
    %v700 = vmul.f32 %v648, 0.35355338
    %v701 = vmul.f32 %v650, 0.35355338
    %v702 = vmul.f32 %v654, 0.35355338
    %v703 = vmul.f32 %v656, 0.35355338
    %v704 = vmul.f32 %v658, 0.35355338
    %v705 = vmul.f32 %v660, 0.35355338
    %v706 = vmul.f32 %v664, 0.35355338
    %v707 = vmul.f32 %v666, 0.35355338
    %v708 = vmul.f32 %v668, 0.35355338
    %v709 = vmul.f32 %v670, 0.35355338
    %v710 = vmul.f32 %v674, 0.35355338
    %v711 = vmul.f32 %v676, 0.35355338
    %v712 = vmul.f32 %v678, 0.35355338
    %v713 = vmul.f32 %v680, 0.35355338
    %v714 = vsel %vm296, %v682, -1e+30
    %v715 = vsel %vm297, %v683, -1e+30
    %v716 = vsel %vm298, %v684, -1e+30
    %v717 = vsel %vm299, %v685, -1e+30
    %v718 = vsel %vm300, %v686, -1e+30
    %v719 = vsel %vm301, %v687, -1e+30
    %v720 = vsel %vm302, %v688, -1e+30
    %v721 = vsel %vm303, %v689, -1e+30
    %v722 = vsel %vm304, %v690, -1e+30
    %v723 = vsel %vm305, %v691, -1e+30
    %v724 = vsel %vm306, %v692, -1e+30
    %v725 = vsel %vm307, %v693, -1e+30
    %v726 = vsel %vm308, %v694, -1e+30
    %v727 = vsel %vm309, %v695, -1e+30
    %v728 = vsel %vm310, %v696, -1e+30
    %v729 = vsel %vm311, %v697, -1e+30
    %v730 = vsel %vm312, %v698, -1e+30
    %v731 = vsel %vm313, %v699, -1e+30
    %v732 = vsel %vm314, %v700, -1e+30
    %v733 = vsel %vm315, %v701, -1e+30
    %v734 = vsel %vm316, %v702, -1e+30
    %v735 = vsel %vm317, %v703, -1e+30
    %v736 = vsel %vm318, %v704, -1e+30
    %v737 = vsel %vm319, %v705, -1e+30
    %v738 = vsel %vm320, %v706, -1e+30
    %v739 = vsel %vm321, %v707, -1e+30
    %v740 = vsel %vm322, %v708, -1e+30
    %v741 = vsel %vm323, %v709, -1e+30
    %v742 = vsel %vm324, %v710, -1e+30
    %v743 = vsel %vm325, %v711, -1e+30
    %v744 = vsel %vm326, %v712, -1e+30
    %v745 = vsel %vm327, %v713, -1e+30
    %v746 = vld [vmem:[#allocation2] sm:$0xff]
    %v747 = vld [vmem:[#allocation2 + $0x8] sm:$0xff]
    %v748 = vld [vmem:[#allocation2 + $0x10] sm:$0xff]
    %v749 = vld [vmem:[#allocation2 + $0x18] sm:$0xff]
    %v750 = vld [vmem:[#allocation2 + $0x20] sm:$0xff]
    %v751 = vld [vmem:[#allocation2 + $0x28] sm:$0xff]
    %v752 = vld [vmem:[#allocation2 + $0x30] sm:$0xff]
    %v753 = vld [vmem:[#allocation2 + $0x38] sm:$0xff]
    %v754 = vld [vmem:[#allocation2 + $0x40] sm:$0xff]
    %v755 = vld [vmem:[#allocation2 + $0x48] sm:$0xff]
    %v756 = vld [vmem:[#allocation2 + $0x50] sm:$0xff]
    %v757 = vld [vmem:[#allocation2 + $0x58] sm:$0xff]
    %v758 = vld [vmem:[#allocation2 + $0x60] sm:$0xff]
    %v759 = vld [vmem:[#allocation2 + $0x68] sm:$0xff]
    %v760 = vld [vmem:[#allocation2 + $0x70] sm:$0xff]
    %v761 = vld [vmem:[#allocation2 + $0x78] sm:$0xff]
    %v762 = vmax.f32 %v714, %v715
    %763 = vmax.xlane.f32.xlu0 %v762
    %v764 = vpop.xlane.xlu0 %763
    %v765 = vmax.f32 %v716, %v717
    %766 = vmax.xlane.f32.xlu0 %v765
    %v767 = vpop.xlane.xlu0 %766
    %v768 = vmax.f32 %v718, %v719
    %769 = vmax.xlane.f32.xlu0 %v768
    %v770 = vpop.xlane.xlu0 %769
    %v771 = vmax.f32 %v720, %v721
    %772 = vmax.xlane.f32.xlu0 %v771
    %v773 = vpop.xlane.xlu0 %772
    %v774 = vmax.f32 %v722, %v723
    %775 = vmax.xlane.f32.xlu0 %v774
    %v776 = vpop.xlane.xlu0 %775
    %v777 = vmax.f32 %v724, %v725
    %778 = vmax.xlane.f32.xlu0 %v777
    %v779 = vpop.xlane.xlu0 %778
    %v780 = vmax.f32 %v726, %v727
    %781 = vmax.xlane.f32.xlu0 %v780
    %v782 = vpop.xlane.xlu0 %781
    %v783 = vmax.f32 %v728, %v729
    %784 = vmax.xlane.f32.xlu0 %v783
    %v785 = vpop.xlane.xlu0 %784
    %v786 = vmax.f32 %v730, %v731
    %787 = vmax.xlane.f32.xlu0 %v786
    %v788 = vpop.xlane.xlu0 %787
    %v789 = vmax.f32 %v732, %v733
    %790 = vmax.xlane.f32.xlu0 %v789
    %v791 = vpop.xlane.xlu0 %790
    %v792 = vmax.f32 %v734, %v735
    %793 = vmax.xlane.f32.xlu0 %v792
    %v794 = vpop.xlane.xlu0 %793
    %v795 = vmax.f32 %v736, %v737
    %796 = vmax.xlane.f32.xlu0 %v795
    %v797 = vpop.xlane.xlu0 %796
    %v798 = vmax.f32 %v738, %v739
    %799 = vmax.xlane.f32.xlu0 %v798
    %v800 = vpop.xlane.xlu0 %799
    %v801 = vmax.f32 %v740, %v741
    %802 = vmax.xlane.f32.xlu0 %v801
    %v803 = vpop.xlane.xlu0 %802
    %v804 = vmax.f32 %v742, %v743
    %805 = vmax.xlane.f32.xlu0 %v804
    %v806 = vpop.xlane.xlu0 %805
    %v807 = vmax.f32 %v744, %v745
    %808 = vmax.xlane.f32.xlu0 %v807
    %v809 = vpop.xlane.xlu0 %808
    %v810 = vmax.f32 %v746, %v764
    %v811 = vmax.f32 %v747, %v767
    %v812 = vmax.f32 %v748, %v770
    %v813 = vmax.f32 %v749, %v773
    %v814 = vmax.f32 %v750, %v776
    %v815 = vmax.f32 %v751, %v779
    %v816 = vmax.f32 %v752, %v782
    %v817 = vmax.f32 %v753, %v785
    %v818 = vmax.f32 %v754, %v788
    %v819 = vmax.f32 %v755, %v791
    %v820 = vmax.f32 %v756, %v794
    %v821 = vmax.f32 %v757, %v797
    %v822 = vmax.f32 %v758, %v800
    %v823 = vmax.f32 %v759, %v803
    %v824 = vmax.f32 %v760, %v806
    %v825 = vmax.f32 %v761, %v809
    %827 = vset.pattern.permute.xlu0 0
    %828 = vperm.xlu0 %827, %v810
    %v829 = vpop.permute.xlu0 %828
    %832 = vset.pattern.permute.xlu0 0
    %833 = vperm.xlu0 %832, %v811
    %v834 = vpop.permute.xlu0 %833
    %837 = vset.pattern.permute.xlu0 0
    %838 = vperm.xlu0 %837, %v812
    %v839 = vpop.permute.xlu0 %838
    %842 = vset.pattern.permute.xlu0 0
    %843 = vperm.xlu0 %842, %v813
    %v844 = vpop.permute.xlu0 %843
    %847 = vset.pattern.permute.xlu0 0
    %848 = vperm.xlu0 %847, %v814
    %v849 = vpop.permute.xlu0 %848
    %852 = vset.pattern.permute.xlu0 0
    %853 = vperm.xlu0 %852, %v815
    %v854 = vpop.permute.xlu0 %853
    %857 = vset.pattern.permute.xlu0 0
    %858 = vperm.xlu0 %857, %v816
    %v859 = vpop.permute.xlu0 %858
    %862 = vset.pattern.permute.xlu0 0
    %863 = vperm.xlu0 %862, %v817
    %v864 = vpop.permute.xlu0 %863
    %867 = vset.pattern.permute.xlu0 0
    %868 = vperm.xlu0 %867, %v818
    %v869 = vpop.permute.xlu0 %868
    %872 = vset.pattern.permute.xlu0 0
    %873 = vperm.xlu0 %872, %v819
    %v874 = vpop.permute.xlu0 %873
    %877 = vset.pattern.permute.xlu0 0
    %878 = vperm.xlu0 %877, %v820
    %v879 = vpop.permute.xlu0 %878
    %882 = vset.pattern.permute.xlu0 0
    %883 = vperm.xlu0 %882, %v821
    %v884 = vpop.permute.xlu0 %883
    %887 = vset.pattern.permute.xlu0 0
    %888 = vperm.xlu0 %887, %v822
    %v889 = vpop.permute.xlu0 %888
    %892 = vset.pattern.permute.xlu0 0
    %893 = vperm.xlu0 %892, %v823
    %v894 = vpop.permute.xlu0 %893
    %897 = vset.pattern.permute.xlu0 0
    %898 = vperm.xlu0 %897, %v824
    %v899 = vpop.permute.xlu0 %898
    %902 = vset.pattern.permute.xlu0 0
    %903 = vperm.xlu0 %902, %v825
    %v904 = vpop.permute.xlu0 %903
    %v906 = vsub.f32 %v714, %v829
    %v907 = vsub.f32 %v715, %v829
    %v908 = vsub.f32 %v716, %v834
    %v909 = vsub.f32 %v717, %v834
    %v910 = vsub.f32 %v718, %v839
    %v911 = vsub.f32 %v719, %v839
    %v912 = vsub.f32 %v720, %v844
    %v913 = vsub.f32 %v721, %v844
    %v914 = vsub.f32 %v722, %v849
    %v915 = vsub.f32 %v723, %v849
    %v916 = vsub.f32 %v724, %v854
    %v917 = vsub.f32 %v725, %v854
    %v918 = vsub.f32 %v726, %v859
    %v919 = vsub.f32 %v727, %v859
    %v920 = vsub.f32 %v728, %v864
    %v921 = vsub.f32 %v729, %v864
    %v922 = vsub.f32 %v730, %v869
    %v923 = vsub.f32 %v731, %v869
    %v924 = vsub.f32 %v732, %v874
    %v925 = vsub.f32 %v733, %v874
    %v926 = vsub.f32 %v734, %v879
    %v927 = vsub.f32 %v735, %v879
    %v928 = vsub.f32 %v736, %v884
    %v929 = vsub.f32 %v737, %v884
    %v930 = vsub.f32 %v738, %v889
    %v931 = vsub.f32 %v739, %v889
    %v932 = vsub.f32 %v740, %v894
    %v933 = vsub.f32 %v741, %v894
    %v934 = vsub.f32 %v742, %v899
    %v935 = vsub.f32 %v743, %v899
    %v936 = vsub.f32 %v744, %v904
    %v937 = vsub.f32 %v745, %v904
    %v938 = vmul.f32 %v906, 1.442695
    %v939 = vpow.pop %v938
    %v940 = vmul.f32 %v907, 1.442695
    %v941 = vpow.pop %v940
    %v942 = vmul.f32 %v908, 1.442695
    %v943 = vpow.pop %v942
    %v944 = vmul.f32 %v909, 1.442695
    %v945 = vpow.pop %v944
    %v946 = vmul.f32 %v910, 1.442695
    %v947 = vpow.pop %v946
    %v948 = vmul.f32 %v911, 1.442695
    %v949 = vpow.pop %v948
    %v950 = vmul.f32 %v912, 1.442695
    %v951 = vpow.pop %v950
    %v952 = vmul.f32 %v913, 1.442695
    %v953 = vpow.pop %v952
    %v954 = vmul.f32 %v914, 1.442695
    %v955 = vpow.pop %v954
    %v956 = vmul.f32 %v915, 1.442695
    %v957 = vpow.pop %v956
    %v958 = vmul.f32 %v916, 1.442695
    %v959 = vpow.pop %v958
    %v960 = vmul.f32 %v917, 1.442695
    %v961 = vpow.pop %v960
    %v962 = vmul.f32 %v918, 1.442695
    %v963 = vpow.pop %v962
    %v964 = vmul.f32 %v919, 1.442695
    %v965 = vpow.pop %v964
    %v966 = vmul.f32 %v920, 1.442695
    %v967 = vpow.pop %v966
    %v968 = vmul.f32 %v921, 1.442695
    %v969 = vpow.pop %v968
    %v970 = vmul.f32 %v922, 1.442695
    %v971 = vpow.pop %v970
    %v972 = vmul.f32 %v923, 1.442695
    %v973 = vpow.pop %v972
    %v974 = vmul.f32 %v924, 1.442695
    %v975 = vpow.pop %v974
    %v976 = vmul.f32 %v925, 1.442695
    %v977 = vpow.pop %v976
    %v978 = vmul.f32 %v926, 1.442695
    %v979 = vpow.pop %v978
    %v980 = vmul.f32 %v927, 1.442695
    %v981 = vpow.pop %v980
    %v982 = vmul.f32 %v928, 1.442695
    %v983 = vpow.pop %v982
    %v984 = vmul.f32 %v929, 1.442695
    %v985 = vpow.pop %v984
    %v986 = vmul.f32 %v930, 1.442695
    %v987 = vpow.pop %v986
    %v988 = vmul.f32 %v931, 1.442695
    %v989 = vpow.pop %v988
    %v990 = vmul.f32 %v932, 1.442695
    %v991 = vpow.pop %v990
    %v992 = vmul.f32 %v933, 1.442695
    %v993 = vpow.pop %v992
    %v994 = vmul.f32 %v934, 1.442695
    %v995 = vpow.pop %v994
    %v996 = vmul.f32 %v935, 1.442695
    %v997 = vpow.pop %v996
    %v998 = vmul.f32 %v936, 1.442695
    %v999 = vpow.pop %v998
    %v1000 = vmul.f32 %v937, 1.442695
    %v1001 = vpow.pop %v1000
    %v1002 = vsel %vm296, %v939, 0.0
    %v1003 = vsel %vm297, %v941, 0.0
    %v1004 = vsel %vm298, %v943, 0.0
    %v1005 = vsel %vm299, %v945, 0.0
    %v1006 = vsel %vm300, %v947, 0.0
    %v1007 = vsel %vm301, %v949, 0.0
    %v1008 = vsel %vm302, %v951, 0.0
    %v1009 = vsel %vm303, %v953, 0.0
    %v1010 = vsel %vm304, %v955, 0.0
    %v1011 = vsel %vm305, %v957, 0.0
    %v1012 = vsel %vm306, %v959, 0.0
    %v1013 = vsel %vm307, %v961, 0.0
    %v1014 = vsel %vm308, %v963, 0.0
    %v1015 = vsel %vm309, %v965, 0.0
    %v1016 = vsel %vm310, %v967, 0.0
    %v1017 = vsel %vm311, %v969, 0.0
    %v1018 = vsel %vm312, %v971, 0.0
    %v1019 = vsel %vm313, %v973, 0.0
    %v1020 = vsel %vm314, %v975, 0.0
    %v1021 = vsel %vm315, %v977, 0.0
    %v1022 = vsel %vm316, %v979, 0.0
    %v1023 = vsel %vm317, %v981, 0.0
    %v1024 = vsel %vm318, %v983, 0.0
    %v1025 = vsel %vm319, %v985, 0.0
    %v1026 = vsel %vm320, %v987, 0.0
    %v1027 = vsel %vm321, %v989, 0.0
    %v1028 = vsel %vm322, %v991, 0.0
    %v1029 = vsel %vm323, %v993, 0.0
    %v1030 = vsel %vm324, %v995, 0.0
    %v1031 = vsel %vm325, %v997, 0.0
    %v1032 = vsel %vm326, %v999, 0.0
    %v1033 = vsel %vm327, %v1001, 0.0
    %v1034 = vsub.f32 %v746, %v810
    %v1035 = vsub.f32 %v747, %v811
    %v1036 = vsub.f32 %v748, %v812
    %v1037 = vsub.f32 %v749, %v813
    %v1038 = vsub.f32 %v750, %v814
    %v1039 = vsub.f32 %v751, %v815
    %v1040 = vsub.f32 %v752, %v816
    %v1041 = vsub.f32 %v753, %v817
    %v1042 = vsub.f32 %v754, %v818
    %v1043 = vsub.f32 %v755, %v819
    %v1044 = vsub.f32 %v756, %v820
    %v1045 = vsub.f32 %v757, %v821
    %v1046 = vsub.f32 %v758, %v822
    %v1047 = vsub.f32 %v759, %v823
    %v1048 = vsub.f32 %v760, %v824
    %v1049 = vsub.f32 %v761, %v825
    %v1050 = vmul.f32 %v1034, 1.442695
    %v1051 = vpow.pop %v1050
    %v1052 = vmul.f32 %v1035, 1.442695
    %v1053 = vpow.pop %v1052
    %v1054 = vmul.f32 %v1036, 1.442695
    %v1055 = vpow.pop %v1054
    %v1056 = vmul.f32 %v1037, 1.442695
    %v1057 = vpow.pop %v1056
    %v1058 = vmul.f32 %v1038, 1.442695
    %v1059 = vpow.pop %v1058
    %v1060 = vmul.f32 %v1039, 1.442695
    %v1061 = vpow.pop %v1060
    %v1062 = vmul.f32 %v1040, 1.442695
    %v1063 = vpow.pop %v1062
    %v1064 = vmul.f32 %v1041, 1.442695
    %v1065 = vpow.pop %v1064
    %v1066 = vmul.f32 %v1042, 1.442695
    %v1067 = vpow.pop %v1066
    %v1068 = vmul.f32 %v1043, 1.442695
    %v1069 = vpow.pop %v1068
    %v1070 = vmul.f32 %v1044, 1.442695
    %v1071 = vpow.pop %v1070
    %v1072 = vmul.f32 %v1045, 1.442695
    %v1073 = vpow.pop %v1072
    %v1074 = vmul.f32 %v1046, 1.442695
    %v1075 = vpow.pop %v1074
    %v1076 = vmul.f32 %v1047, 1.442695
    %v1077 = vpow.pop %v1076
    %v1078 = vmul.f32 %v1048, 1.442695
    %v1079 = vpow.pop %v1078
    %v1080 = vmul.f32 %v1049, 1.442695
    %v1081 = vpow.pop %v1080
    %v1082 = vld [vmem:[#allocation3] sm:$0xff]
    %v1083 = vld [vmem:[#allocation3 + $0x8] sm:$0xff]
    %v1084 = vld [vmem:[#allocation3 + $0x10] sm:$0xff]
    %v1085 = vld [vmem:[#allocation3 + $0x18] sm:$0xff]
    %v1086 = vld [vmem:[#allocation3 + $0x20] sm:$0xff]
    %v1087 = vld [vmem:[#allocation3 + $0x28] sm:$0xff]
    %v1088 = vld [vmem:[#allocation3 + $0x30] sm:$0xff]
    %v1089 = vld [vmem:[#allocation3 + $0x38] sm:$0xff]
    %v1090 = vld [vmem:[#allocation3 + $0x40] sm:$0xff]
    %v1091 = vld [vmem:[#allocation3 + $0x48] sm:$0xff]
    %v1092 = vld [vmem:[#allocation3 + $0x50] sm:$0xff]
    %v1093 = vld [vmem:[#allocation3 + $0x58] sm:$0xff]
    %v1094 = vld [vmem:[#allocation3 + $0x60] sm:$0xff]
    %v1095 = vld [vmem:[#allocation3 + $0x68] sm:$0xff]
    %v1096 = vld [vmem:[#allocation3 + $0x70] sm:$0xff]
    %v1097 = vld [vmem:[#allocation3 + $0x78] sm:$0xff]
    %v1098 = vmul.f32 %v1051, %v1082
    %v1099 = vmul.f32 %v1053, %v1083
    %v1100 = vmul.f32 %v1055, %v1084
    %v1101 = vmul.f32 %v1057, %v1085
    %v1102 = vmul.f32 %v1059, %v1086
    %v1103 = vmul.f32 %v1061, %v1087
    %v1104 = vmul.f32 %v1063, %v1088
    %v1105 = vmul.f32 %v1065, %v1089
    %v1106 = vmul.f32 %v1067, %v1090
    %v1107 = vmul.f32 %v1069, %v1091
    %v1108 = vmul.f32 %v1071, %v1092
    %v1109 = vmul.f32 %v1073, %v1093
    %v1110 = vmul.f32 %v1075, %v1094
    %v1111 = vmul.f32 %v1077, %v1095
    %v1112 = vmul.f32 %v1079, %v1096
    %v1113 = vmul.f32 %v1081, %v1097
    %v1114 = vadd.f32 %v1002, %v1003
    %1115 = vadd.xlane.f32.xlu0 %v1114
    %v1116 = vpop.xlane.xlu0 %1115
    %v1117 = vadd.f32 %v1004, %v1005
    %1118 = vadd.xlane.f32.xlu0 %v1117
    %v1119 = vpop.xlane.xlu0 %1118
    %v1120 = vadd.f32 %v1006, %v1007
    %1121 = vadd.xlane.f32.xlu0 %v1120
    %v1122 = vpop.xlane.xlu0 %1121
    %v1123 = vadd.f32 %v1008, %v1009
    %1124 = vadd.xlane.f32.xlu0 %v1123
    %v1125 = vpop.xlane.xlu0 %1124
    %v1126 = vadd.f32 %v1010, %v1011
    %1127 = vadd.xlane.f32.xlu0 %v1126
    %v1128 = vpop.xlane.xlu0 %1127
    %v1129 = vadd.f32 %v1012, %v1013
    %1130 = vadd.xlane.f32.xlu0 %v1129
    %v1131 = vpop.xlane.xlu0 %1130
    %v1132 = vadd.f32 %v1014, %v1015
    %1133 = vadd.xlane.f32.xlu0 %v1132
    %v1134 = vpop.xlane.xlu0 %1133
    %v1135 = vadd.f32 %v1016, %v1017
    %1136 = vadd.xlane.f32.xlu0 %v1135
    %v1137 = vpop.xlane.xlu0 %1136
    %v1138 = vadd.f32 %v1018, %v1019
    %1139 = vadd.xlane.f32.xlu0 %v1138
    %v1140 = vpop.xlane.xlu0 %1139
    %v1141 = vadd.f32 %v1020, %v1021
    %1142 = vadd.xlane.f32.xlu0 %v1141
    %v1143 = vpop.xlane.xlu0 %1142
    %v1144 = vadd.f32 %v1022, %v1023
    %1145 = vadd.xlane.f32.xlu0 %v1144
    %v1146 = vpop.xlane.xlu0 %1145
    %v1147 = vadd.f32 %v1024, %v1025
    %1148 = vadd.xlane.f32.xlu0 %v1147
    %v1149 = vpop.xlane.xlu0 %1148
    %v1150 = vadd.f32 %v1026, %v1027
    %1151 = vadd.xlane.f32.xlu0 %v1150
    %v1152 = vpop.xlane.xlu0 %1151
    %v1153 = vadd.f32 %v1028, %v1029
    %1154 = vadd.xlane.f32.xlu0 %v1153
    %v1155 = vpop.xlane.xlu0 %1154
    %v1156 = vadd.f32 %v1030, %v1031
    %1157 = vadd.xlane.f32.xlu0 %v1156
    %v1158 = vpop.xlane.xlu0 %1157
    %v1159 = vadd.f32 %v1032, %v1033
    %1160 = vadd.xlane.f32.xlu0 %v1159
    %v1161 = vpop.xlane.xlu0 %1160
    %v1162 = vadd.f32 %v1098, %v1116
    %v1163 = vadd.f32 %v1099, %v1119
    %v1164 = vadd.f32 %v1100, %v1122
    %v1165 = vadd.f32 %v1101, %v1125
    %v1166 = vadd.f32 %v1102, %v1128
    %v1167 = vadd.f32 %v1103, %v1131
    %v1168 = vadd.f32 %v1104, %v1134
    %v1169 = vadd.f32 %v1105, %v1137
    %v1170 = vadd.f32 %v1106, %v1140
    %v1171 = vadd.f32 %v1107, %v1143
    %v1172 = vadd.f32 %v1108, %v1146
    %v1173 = vadd.f32 %v1109, %v1149
    %v1174 = vadd.f32 %v1110, %v1152
    %v1175 = vadd.f32 %v1111, %v1155
    %v1176 = vadd.f32 %v1112, %v1158
    %v1177 = vadd.f32 %v1113, %v1161
    %v1178 = vpack.c.bf16 %v1004, %v1002
    %v1179 = vpack.c.bf16 %v1005, %v1003
    %v1180 = vpack.c.bf16 %v1008, %v1006
    %v1181 = vpack.c.bf16 %v1009, %v1007
    %v1182 = vpack.c.bf16 %v1012, %v1010
    %v1183 = vpack.c.bf16 %v1013, %v1011
    %v1184 = vpack.c.bf16 %v1016, %v1014
    %v1185 = vpack.c.bf16 %v1017, %v1015
    %v1186 = vpack.c.bf16 %v1020, %v1018
    %v1187 = vpack.c.bf16 %v1021, %v1019
    %v1188 = vpack.c.bf16 %v1024, %v1022
    %v1189 = vpack.c.bf16 %v1025, %v1023
    %v1190 = vpack.c.bf16 %v1028, %v1026
    %v1191 = vpack.c.bf16 %v1029, %v1027
    %v1192 = vpack.c.bf16 %v1032, %v1030
    %v1193 = vpack.c.bf16 %v1033, %v1031
    %v1226 = vunpack.c.l.b16 %v384
    %v1227 = vunpack.c.l.b16 %v385
    %v1228 = vunpack.c.l.b16 %v386
    %v1229 = vunpack.c.l.b16 %v387
    %v1230 = vunpack.c.l.b16 %v388
    %v1231 = vunpack.c.l.b16 %v389
    %v1232 = vunpack.c.l.b16 %v390
    %v1233 = vunpack.c.l.b16 %v391
    %v1234 = vunpack.c.l.b16 %v392
    %v1235 = vunpack.c.l.b16 %v393
    %v1236 = vunpack.c.l.b16 %v394
    %v1237 = vunpack.c.l.b16 %v395
    %v1238 = vunpack.c.l.b16 %v396
    %v1239 = vunpack.c.l.b16 %v397
    %v1240 = vunpack.c.l.b16 %v398
    %v1241 = vunpack.c.l.b16 %v399
    %v1242 = vunpack.c.l.b16 %v400
    %v1243 = vunpack.c.l.b16 %v401
    %v1244 = vunpack.c.l.b16 %v402
    %v1245 = vunpack.c.l.b16 %v403
    %v1246 = vunpack.c.l.b16 %v404
    %v1247 = vunpack.c.l.b16 %v405
    %v1248 = vunpack.c.l.b16 %v406
    %v1249 = vunpack.c.l.b16 %v407
    %v1250 = vunpack.c.l.b16 %v408
    %v1251 = vunpack.c.l.b16 %v409
    %v1252 = vunpack.c.l.b16 %v410
    %v1253 = vunpack.c.l.b16 %v411
    %v1254 = vunpack.c.l.b16 %v412
    %v1255 = vunpack.c.l.b16 %v413
    %v1256 = vunpack.c.l.b16 %v414
    %v1257 = vunpack.c.l.b16 %v415
    %v1258 = vpack.c.b16 %v1227, %v1226
    %v1259 = vpack.c.b16 %v1229, %v1228
    %v1260 = vpack.c.b16 %v1231, %v1230
    %v1261 = vpack.c.b16 %v1233, %v1232
    %v1262 = vpack.c.b16 %v1235, %v1234
    %v1263 = vpack.c.b16 %v1237, %v1236
    %v1264 = vpack.c.b16 %v1239, %v1238
    %v1265 = vpack.c.b16 %v1241, %v1240
    %v1266 = vpack.c.b16 %v1243, %v1242
    %v1267 = vpack.c.b16 %v1245, %v1244
    %v1268 = vpack.c.b16 %v1247, %v1246
    %v1269 = vpack.c.b16 %v1249, %v1248
    %v1270 = vpack.c.b16 %v1251, %v1250
    %v1271 = vpack.c.b16 %v1253, %v1252
    %v1272 = vpack.c.b16 %v1255, %v1254
    %v1273 = vpack.c.b16 %v1257, %v1256
    %1290 = vmatprep.subr.bf16.mxu0 0
    %1291 = vmatpush1.bf16.msra.mxu0 %v1258
    %1292 = vmatprep.subr.bf16.mxu0 0
    %1293 = vmatpush1.bf16.msra.mxu0 %v1259
    %1294 = vmatprep.subr.bf16.mxu0 0
    %1295 = vmatpush1.bf16.msra.mxu0 %v1260
    %1296 = vmatprep.subr.bf16.mxu0 0
    %1297 = vmatpush1.bf16.msra.mxu0 %v1261
    %1298 = vmatprep.subr.bf16.mxu0 0
    %1299 = vmatpush1.bf16.msra.mxu0 %v1262
    %1300 = vmatprep.subr.bf16.mxu0 0
    %1301 = vmatpush1.bf16.msra.mxu0 %v1263
    %1302 = vmatprep.subr.bf16.mxu0 0
    %1303 = vmatpush1.bf16.msra.mxu0 %v1264
    %1304 = vmatprep.subr.bf16.mxu0 0
    %1305 = vmatpush1.bf16.msra.mxu0 %v1265
    %1306 = vmatprep.subr.bf16.mxu0 0
    %1307 = vmatpush1.bf16.msra.mxu0 %v1266
    %1308 = vmatprep.subr.bf16.mxu0 0
    %1309 = vmatpush1.bf16.msra.mxu0 %v1267
    %1310 = vmatprep.subr.bf16.mxu0 0
    %1311 = vmatpush1.bf16.msra.mxu0 %v1268
    %1312 = vmatprep.subr.bf16.mxu0 0
    %1313 = vmatpush1.bf16.msra.mxu0 %v1269
    %1314 = vmatprep.subr.bf16.mxu0 0
    %1315 = vmatpush1.bf16.msra.mxu0 %v1270
    %1316 = vmatprep.subr.bf16.mxu0 0
    %1317 = vmatpush1.bf16.msra.mxu0 %v1271
    %1318 = vmatprep.subr.bf16.mxu0 0
    %1319 = vmatpush1.bf16.msra.mxu0 %v1272
    %1320 = vmatprep.subr.bf16.mxu0 0
    %1321 = vmatpush1.bf16.msra.mxu0 %v1273
    %1322 = vmatprep.mubr.bf16.mxu0 %v1179
    %1323 = vmatmul.mubr.bf16.gmra.mrb[0].mxu0 %v1178
    %v1324 = vpop.f32.mrb[0].mxu0
    %v1325 = vadd.f32 0.0, %v1324
    %v1326 = vpop.f32.mrb[0].mxu0
    %v1327 = vpop.f32.mrb[0].mxu0
    %v1328 = vadd.f32 0.0, %v1327
    %v1329 = vpop.f32.mrb[0].mxu0
    %1330 = vmatprep.mubr.bf16.mxu0 %v1181
    %1331 = vmatmul.mubr.bf16.gmra.mrb[0].mxu0 %v1180
    %v1332 = vpop.f32.mrb[0].mxu0
    %v1333 = vadd.f32 0.0, %v1332
    %v1334 = vpop.f32.mrb[0].mxu0
    %v1335 = vpop.f32.mrb[0].mxu0
    %v1336 = vadd.f32 0.0, %v1335
    %v1337 = vpop.f32.mrb[0].mxu0
    %1338 = vmatprep.mubr.bf16.mxu0 %v1183
    %1339 = vmatmul.mubr.bf16.gmra.mrb[0].mxu0 %v1182
    %v1340 = vpop.f32.mrb[0].mxu0
    %v1341 = vadd.f32 0.0, %v1340
    %v1342 = vpop.f32.mrb[0].mxu0
    %v1343 = vpop.f32.mrb[0].mxu0
    %v1344 = vadd.f32 0.0, %v1343
    %v1345 = vpop.f32.mrb[0].mxu0
    %1346 = vmatprep.mubr.bf16.mxu0 %v1185
    %1347 = vmatmul.mubr.bf16.gmra.mrb[0].mxu0 %v1184
    %v1348 = vpop.f32.mrb[0].mxu0
    %v1349 = vadd.f32 0.0, %v1348
    %v1350 = vpop.f32.mrb[0].mxu0
    %v1351 = vpop.f32.mrb[0].mxu0
    %v1352 = vadd.f32 0.0, %v1351
    %v1353 = vpop.f32.mrb[0].mxu0
    %1354 = vmatprep.mubr.bf16.mxu0 %v1187
    %1355 = vmatmul.mubr.bf16.gmra.mrb[0].mxu0 %v1186
    %v1356 = vpop.f32.mrb[0].mxu0
    %v1357 = vadd.f32 0.0, %v1356
    %v1358 = vpop.f32.mrb[0].mxu0
    %v1359 = vpop.f32.mrb[0].mxu0
    %v1360 = vadd.f32 0.0, %v1359
    %v1361 = vpop.f32.mrb[0].mxu0
    %1362 = vmatprep.mubr.bf16.mxu0 %v1189
    %1363 = vmatmul.mubr.bf16.gmra.mrb[0].mxu0 %v1188
    %v1364 = vpop.f32.mrb[0].mxu0
    %v1365 = vadd.f32 0.0, %v1364
    %v1366 = vpop.f32.mrb[0].mxu0
    %v1367 = vpop.f32.mrb[0].mxu0
    %v1368 = vadd.f32 0.0, %v1367
    %v1369 = vpop.f32.mrb[0].mxu0
    %1370 = vmatprep.mubr.bf16.mxu0 %v1191
    %1371 = vmatmul.mubr.bf16.gmra.mrb[0].mxu0 %v1190
    %v1372 = vpop.f32.mrb[0].mxu0
    %v1373 = vadd.f32 0.0, %v1372
    %v1374 = vpop.f32.mrb[0].mxu0
    %v1375 = vpop.f32.mrb[0].mxu0
    %v1376 = vadd.f32 0.0, %v1375
    %v1377 = vpop.f32.mrb[0].mxu0
    %1378 = vmatprep.mubr.bf16.mxu0 %v1193
    %1379 = vmatmul.mubr.bf16.gmra.mrb[0].mxu0 %v1192
    %v1380 = vpop.f32.mrb[0].mxu0
    %v1381 = vadd.f32 0.0, %v1380
    %v1382 = vpop.f32.mrb[0].mxu0
    %v1383 = vpop.f32.mrb[0].mxu0
    %v1384 = vadd.f32 0.0, %v1383
    %v1385 = vpop.f32.mrb[0].mxu0
    %1386 = vdwg.mxu0
    %v1387 = vld [vmem:[#allocation4] sm:$0xff]
    %v1388 = vld [vmem:[#allocation4 + $0x8] sm:$0xff]
    %v1389 = vld [vmem:[#allocation4 + $0x10] sm:$0xff]
    %v1390 = vld [vmem:[#allocation4 + $0x18] sm:$0xff]
    %v1391 = vld [vmem:[#allocation4 + $0x20] sm:$0xff]
    %v1392 = vld [vmem:[#allocation4 + $0x28] sm:$0xff]
    %v1393 = vld [vmem:[#allocation4 + $0x30] sm:$0xff]
    %v1394 = vld [vmem:[#allocation4 + $0x38] sm:$0xff]
    %v1395 = vld [vmem:[#allocation4 + $0x40] sm:$0xff]
    %v1396 = vld [vmem:[#allocation4 + $0x48] sm:$0xff]
    %v1397 = vld [vmem:[#allocation4 + $0x50] sm:$0xff]
    %v1398 = vld [vmem:[#allocation4 + $0x58] sm:$0xff]
    %v1399 = vld [vmem:[#allocation4 + $0x60] sm:$0xff]
    %v1400 = vld [vmem:[#allocation4 + $0x68] sm:$0xff]
    %v1401 = vld [vmem:[#allocation4 + $0x70] sm:$0xff]
    %v1402 = vld [vmem:[#allocation4 + $0x78] sm:$0xff]
    %1404 = vset.pattern.permute.xlu0 0
    %1405 = vperm.xlu0 %1404, %v1051
    %v1406 = vpop.permute.xlu0 %1405
    %1409 = vset.pattern.permute.xlu0 0
    %1410 = vperm.xlu0 %1409, %v1053
    %v1411 = vpop.permute.xlu0 %1410
    %1414 = vset.pattern.permute.xlu0 0
    %1415 = vperm.xlu0 %1414, %v1055
    %v1416 = vpop.permute.xlu0 %1415
    %1419 = vset.pattern.permute.xlu0 0
    %1420 = vperm.xlu0 %1419, %v1057
    %v1421 = vpop.permute.xlu0 %1420
    %1424 = vset.pattern.permute.xlu0 0
    %1425 = vperm.xlu0 %1424, %v1059
    %v1426 = vpop.permute.xlu0 %1425
    %1429 = vset.pattern.permute.xlu0 0
    %1430 = vperm.xlu0 %1429, %v1061
    %v1431 = vpop.permute.xlu0 %1430
    %1434 = vset.pattern.permute.xlu0 0
    %1435 = vperm.xlu0 %1434, %v1063
    %v1436 = vpop.permute.xlu0 %1435
    %1439 = vset.pattern.permute.xlu0 0
    %1440 = vperm.xlu0 %1439, %v1065
    %v1441 = vpop.permute.xlu0 %1440
    %1444 = vset.pattern.permute.xlu0 0
    %1445 = vperm.xlu0 %1444, %v1067
    %v1446 = vpop.permute.xlu0 %1445
    %1449 = vset.pattern.permute.xlu0 0
    %1450 = vperm.xlu0 %1449, %v1069
    %v1451 = vpop.permute.xlu0 %1450
    %1454 = vset.pattern.permute.xlu0 0
    %1455 = vperm.xlu0 %1454, %v1071
    %v1456 = vpop.permute.xlu0 %1455
    %1459 = vset.pattern.permute.xlu0 0
    %1460 = vperm.xlu0 %1459, %v1073
    %v1461 = vpop.permute.xlu0 %1460
    %1464 = vset.pattern.permute.xlu0 0
    %1465 = vperm.xlu0 %1464, %v1075
    %v1466 = vpop.permute.xlu0 %1465
    %1469 = vset.pattern.permute.xlu0 0
    %1470 = vperm.xlu0 %1469, %v1077
    %v1471 = vpop.permute.xlu0 %1470
    %1474 = vset.pattern.permute.xlu0 0
    %1475 = vperm.xlu0 %1474, %v1079
    %v1476 = vpop.permute.xlu0 %1475
    %1479 = vset.pattern.permute.xlu0 0
    %1480 = vperm.xlu0 %1479, %v1081
    %v1481 = vpop.permute.xlu0 %1480
    %v1483 = vmul.f32 %v1406, %v1387
    %v1484 = vmul.f32 %v1411, %v1388
    %v1485 = vmul.f32 %v1416, %v1389
    %v1486 = vmul.f32 %v1421, %v1390
    %v1487 = vmul.f32 %v1426, %v1391
    %v1488 = vmul.f32 %v1431, %v1392
    %v1489 = vmul.f32 %v1436, %v1393
    %v1490 = vmul.f32 %v1441, %v1394
    %v1491 = vmul.f32 %v1446, %v1395
    %v1492 = vmul.f32 %v1451, %v1396
    %v1493 = vmul.f32 %v1456, %v1397
    %v1494 = vmul.f32 %v1461, %v1398
    %v1495 = vmul.f32 %v1466, %v1399
    %v1496 = vmul.f32 %v1471, %v1400
    %v1497 = vmul.f32 %v1476, %v1401
    %v1498 = vmul.f32 %v1481, %v1402
    %v1499 = vadd.f32 %v1483, %v1325
    %v1500 = vadd.f32 %v1484, %v1328
    %v1501 = vadd.f32 %v1485, %v1333
    %v1502 = vadd.f32 %v1486, %v1336
    %v1503 = vadd.f32 %v1487, %v1341
    %v1504 = vadd.f32 %v1488, %v1344
    %v1505 = vadd.f32 %v1489, %v1349
    %v1506 = vadd.f32 %v1490, %v1352
    %v1507 = vadd.f32 %v1491, %v1357
    %v1508 = vadd.f32 %v1492, %v1360
    %v1509 = vadd.f32 %v1493, %v1365
    %v1510 = vadd.f32 %v1494, %v1368
    %v1511 = vadd.f32 %v1495, %v1373
    %v1512 = vadd.f32 %v1496, %v1376
    %v1513 = vadd.f32 %v1497, %v1381
    %v1514 = vadd.f32 %v1498, %v1384
    %1523 = vrot.lane.b32.xlu0 %v344, 120
    %v1524 = vpop.permute.xlu0 %1523
    %1525 = vrot.lane.b32.xlu0 %v345, 120
    %v1526 = vpop.permute.xlu0 %1525
    %1527 = vrot.lane.b32.xlu0 %v346, 120
    %v1528 = vpop.permute.xlu0 %1527
    %1529 = vrot.lane.b32.xlu0 %v347, 120
    %v1530 = vpop.permute.xlu0 %1529
    %1531 = vrot.lane.b32.xlu0 %v348, 120
    %v1532 = vpop.permute.xlu0 %1531
    %1533 = vrot.lane.b32.xlu0 %v349, 120
    %v1534 = vpop.permute.xlu0 %1533
    %1535 = vrot.lane.b32.xlu0 %v350, 120
    %v1536 = vpop.permute.xlu0 %1535
    %1537 = vrot.lane.b32.xlu0 %v351, 120
    %v1538 = vpop.permute.xlu0 %1537
    %1539 = vrot.lane.b32.xlu0 %v480, 120
    %v1540 = vpop.permute.xlu0 %1539
    %1541 = vrot.lane.b32.xlu0 %v481, 120
    %v1542 = vpop.permute.xlu0 %1541
    %1543 = vrot.lane.b32.xlu0 %v482, 120
    %v1544 = vpop.permute.xlu0 %1543
    %1545 = vrot.lane.b32.xlu0 %v483, 120
    %v1546 = vpop.permute.xlu0 %1545
    %1547 = vrot.lane.b32.xlu0 %v484, 120
    %v1548 = vpop.permute.xlu0 %1547
    %1549 = vrot.lane.b32.xlu0 %v485, 120
    %v1550 = vpop.permute.xlu0 %1549
    %1551 = vrot.lane.b32.xlu0 %v486, 120
    %v1552 = vpop.permute.xlu0 %1551
    %1553 = vrot.lane.b32.xlu0 %v487, 120
    %v1554 = vpop.permute.xlu0 %1553
    %1555 = vrot.lane.b32.xlu0 %v488, 120
    %v1556 = vpop.permute.xlu0 %1555
    %1557 = vrot.lane.b32.xlu0 %v489, 120
    %v1558 = vpop.permute.xlu0 %1557
    %1559 = vrot.lane.b32.xlu0 %v490, 120
    %v1560 = vpop.permute.xlu0 %1559
    %1561 = vrot.lane.b32.xlu0 %v491, 120
    %v1562 = vpop.permute.xlu0 %1561
    %1563 = vrot.lane.b32.xlu0 %v492, 120
    %v1564 = vpop.permute.xlu0 %1563
    %1565 = vrot.lane.b32.xlu0 %v493, 120
    %v1566 = vpop.permute.xlu0 %1565
    %1567 = vrot.lane.b32.xlu0 %v494, 120
    %v1568 = vpop.permute.xlu0 %1567
    %1569 = vrot.lane.b32.xlu0 %v495, 120
    %v1570 = vpop.permute.xlu0 %1569
    %v1572 = vsel %vm496, %v1524, 0
    %v1575 = vsel %vm496, %v1526, 0
    %v1578 = vsel %vm496, %v1528, 0
    %v1581 = vsel %vm496, %v1530, 0
    %v1584 = vsel %vm496, %v1532, 0
    %v1587 = vsel %vm496, %v1534, 0
    %v1590 = vsel %vm496, %v1536, 0
    %v1593 = vsel %vm496, %v1538, 0
    %v1596 = vsel %vm496, %v1540, 0
    %v1599 = vsel %vm496, %v1542, 0
    %v1602 = vsel %vm496, %v1544, 0
    %v1605 = vsel %vm496, %v1546, 0
    %v1608 = vsel %vm496, %v1548, 0
    %v1611 = vsel %vm496, %v1550, 0
    %v1614 = vsel %vm496, %v1552, 0
    %v1617 = vsel %vm496, %v1554, 0
    %v1620 = vsel %vm496, %v1556, 0
    %v1623 = vsel %vm496, %v1558, 0
    %v1626 = vsel %vm496, %v1560, 0
    %v1629 = vsel %vm496, %v1562, 0
    %v1632 = vsel %vm496, %v1564, 0
    %v1635 = vsel %vm496, %v1566, 0
    %v1638 = vsel %vm496, %v1568, 0
    %v1641 = vsel %vm496, %v1570, 0
    %1643 = vmatprep.subr.bf16.mxu0 0
    %1644 = vmatpush1.bf16.xpose.msra.mxu0 %v1596
    %1645 = vmatprep.subr.bf16.mxu0 0
    %1646 = vmatpush1.bf16.xpose.msra.mxu0 %v1599
    %1647 = vmatprep.subr.bf16.mxu0 0
    %1648 = vmatpush1.bf16.xpose.msra.mxu0 %v1602
    %1649 = vmatprep.subr.bf16.mxu0 0
    %1650 = vmatpush1.bf16.xpose.msra.mxu0 %v1605
    %1651 = vmatprep.subr.bf16.mxu0 0
    %1652 = vmatpush1.bf16.xpose.msra.mxu0 %v1608
    %1653 = vmatprep.subr.bf16.mxu0 0
    %1654 = vmatpush1.bf16.xpose.msra.mxu0 %v1611
    %1655 = vmatprep.subr.bf16.mxu0 0
    %1656 = vmatpush1.bf16.xpose.msra.mxu0 %v1614
    %1657 = vmatprep.subr.bf16.mxu0 0
    %1658 = vmatpush1.bf16.xpose.msra.mxu0 %v1617
    %1659 = vmatprep.subr.bf16.mxu0 0
    %1660 = vmatpush1.bf16.xpose.msra.mxu0 %v1620
    %1661 = vmatprep.subr.bf16.mxu0 0
    %1662 = vmatpush1.bf16.xpose.msra.mxu0 %v1623
    %1663 = vmatprep.subr.bf16.mxu0 0
    %1664 = vmatpush1.bf16.xpose.msra.mxu0 %v1626
    %1665 = vmatprep.subr.bf16.mxu0 0
    %1666 = vmatpush1.bf16.xpose.msra.mxu0 %v1629
    %1667 = vmatprep.subr.bf16.mxu0 0
    %1668 = vmatpush1.bf16.xpose.msra.mxu0 %v1632
    %1669 = vmatprep.subr.bf16.mxu0 0
    %1670 = vmatpush1.bf16.xpose.msra.mxu0 %v1635
    %1671 = vmatprep.subr.bf16.mxu0 0
    %1672 = vmatpush1.bf16.xpose.msra.mxu0 %v1638
    %1673 = vmatprep.subr.bf16.mxu0 0
    %1674 = vmatpush1.bf16.xpose.msra.mxu0 %v1641
    %1675 = vmatprep.mubr.bf16.mxu0 0
    %1676 = vmatmul.mubr.bf16.gmra.mrb[0].mxu0 %v1572
    %v1677 = vpop.f32.mrb[0].mxu0
    %v1678 = vadd.f32 0.0, %v1677
    %v1679 = vpop.f32.mrb[0].mxu0
    %v1680 = vadd.f32 0.0, %v1679
    %v1681 = vpop.f32.mrb[0].mxu0
    %v1682 = vadd.f32 0.0, %v1681
    %v1683 = vpop.f32.mrb[0].mxu0
    %v1684 = vadd.f32 0.0, %v1683
    %1685 = vmatprep.mubr.bf16.mxu0 0
    %1686 = vmatmul.mubr.bf16.gmra.mrb[0].mxu0 %v1575
    %v1687 = vpop.f32.mrb[0].mxu0
    %v1688 = vadd.f32 0.0, %v1687
    %v1689 = vpop.f32.mrb[0].mxu0
    %v1690 = vadd.f32 0.0, %v1689
    %v1691 = vpop.f32.mrb[0].mxu0
    %v1692 = vadd.f32 0.0, %v1691
    %v1693 = vpop.f32.mrb[0].mxu0
    %v1694 = vadd.f32 0.0, %v1693
    %1695 = vmatprep.mubr.bf16.mxu0 0
    %1696 = vmatmul.mubr.bf16.gmra.mrb[0].mxu0 %v1578
    %v1697 = vpop.f32.mrb[0].mxu0
    %v1698 = vadd.f32 0.0, %v1697
    %v1699 = vpop.f32.mrb[0].mxu0
    %v1700 = vadd.f32 0.0, %v1699
    %v1701 = vpop.f32.mrb[0].mxu0
    %v1702 = vadd.f32 0.0, %v1701
    %v1703 = vpop.f32.mrb[0].mxu0
    %v1704 = vadd.f32 0.0, %v1703
    %1705 = vmatprep.mubr.bf16.mxu0 0
    %1706 = vmatmul.mubr.bf16.gmra.mrb[0].mxu0 %v1581
    %v1707 = vpop.f32.mrb[0].mxu0
    %v1708 = vadd.f32 0.0, %v1707
    %v1709 = vpop.f32.mrb[0].mxu0
    %v1710 = vadd.f32 0.0, %v1709
    %v1711 = vpop.f32.mrb[0].mxu0
    %v1712 = vadd.f32 0.0, %v1711
    %v1713 = vpop.f32.mrb[0].mxu0
    %v1714 = vadd.f32 0.0, %v1713
    %1715 = vmatprep.mubr.bf16.mxu0 0
    %1716 = vmatmul.mubr.bf16.gmra.mrb[0].mxu0 %v1584
    %v1717 = vpop.f32.mrb[0].mxu0
    %v1718 = vadd.f32 0.0, %v1717
    %v1719 = vpop.f32.mrb[0].mxu0
    %v1720 = vadd.f32 0.0, %v1719
    %v1721 = vpop.f32.mrb[0].mxu0
    %v1722 = vadd.f32 0.0, %v1721
    %v1723 = vpop.f32.mrb[0].mxu0
    %v1724 = vadd.f32 0.0, %v1723
    %1725 = vmatprep.mubr.bf16.mxu0 0
    %1726 = vmatmul.mubr.bf16.gmra.mrb[0].mxu0 %v1587
    %v1727 = vpop.f32.mrb[0].mxu0
    %v1728 = vadd.f32 0.0, %v1727
    %v1729 = vpop.f32.mrb[0].mxu0
    %v1730 = vadd.f32 0.0, %v1729
    %v1731 = vpop.f32.mrb[0].mxu0
    %v1732 = vadd.f32 0.0, %v1731
    %v1733 = vpop.f32.mrb[0].mxu0
    %v1734 = vadd.f32 0.0, %v1733
    %1735 = vmatprep.mubr.bf16.mxu0 0
    %1736 = vmatmul.mubr.bf16.gmra.mrb[0].mxu0 %v1590
    %v1737 = vpop.f32.mrb[0].mxu0
    %v1738 = vadd.f32 0.0, %v1737
    %v1739 = vpop.f32.mrb[0].mxu0
    %v1740 = vadd.f32 0.0, %v1739
    %v1741 = vpop.f32.mrb[0].mxu0
    %v1742 = vadd.f32 0.0, %v1741
    %v1743 = vpop.f32.mrb[0].mxu0
    %v1744 = vadd.f32 0.0, %v1743
    %1745 = vmatprep.mubr.bf16.mxu0 0
    %1746 = vmatmul.mubr.bf16.gmra.mrb[0].mxu0 %v1593
    %v1747 = vpop.f32.mrb[0].mxu0
    %v1748 = vadd.f32 0.0, %v1747
    %v1749 = vpop.f32.mrb[0].mxu0
    %v1750 = vadd.f32 0.0, %v1749
    %v1751 = vpop.f32.mrb[0].mxu0
    %v1752 = vadd.f32 0.0, %v1751
    %v1753 = vpop.f32.mrb[0].mxu0
    %v1754 = vadd.f32 0.0, %v1753
    %1755 = vdwg.mxu0
    %v1756 = vmul.f32 %v1678, 0.35355338
    %v1757 = vmul.f32 %v1680, 0.35355338
    %v1758 = vmul.f32 %v1682, 0.35355338
    %v1759 = vmul.f32 %v1684, 0.35355338
    %v1760 = vmul.f32 %v1688, 0.35355338
    %v1761 = vmul.f32 %v1690, 0.35355338
    %v1762 = vmul.f32 %v1692, 0.35355338
    %v1763 = vmul.f32 %v1694, 0.35355338
    %v1764 = vmul.f32 %v1698, 0.35355338
    %v1765 = vmul.f32 %v1700, 0.35355338
    %v1766 = vmul.f32 %v1702, 0.35355338
    %v1767 = vmul.f32 %v1704, 0.35355338
    %v1768 = vmul.f32 %v1708, 0.35355338
    %v1769 = vmul.f32 %v1710, 0.35355338
    %v1770 = vmul.f32 %v1712, 0.35355338
    %v1771 = vmul.f32 %v1714, 0.35355338
    %v1772 = vmul.f32 %v1718, 0.35355338
    %v1773 = vmul.f32 %v1720, 0.35355338
    %v1774 = vmul.f32 %v1722, 0.35355338
    %v1775 = vmul.f32 %v1724, 0.35355338
    %v1776 = vmul.f32 %v1728, 0.35355338
    %v1777 = vmul.f32 %v1730, 0.35355338
    %v1778 = vmul.f32 %v1732, 0.35355338
    %v1779 = vmul.f32 %v1734, 0.35355338
    %v1780 = vmul.f32 %v1738, 0.35355338
    %v1781 = vmul.f32 %v1740, 0.35355338
    %v1782 = vmul.f32 %v1742, 0.35355338
    %v1783 = vmul.f32 %v1744, 0.35355338
    %v1784 = vmul.f32 %v1748, 0.35355338
    %v1785 = vmul.f32 %v1750, 0.35355338
    %v1786 = vmul.f32 %v1752, 0.35355338
    %v1787 = vmul.f32 %v1754, 0.35355338
    %v1788 = vsel %vm296, %v1756, -1e+30
    %v1789 = vsel %vm297, %v1757, -1e+30
    %v1790 = vsel %vm298, %v1758, -1e+30
    %v1791 = vsel %vm299, %v1759, -1e+30
    %v1792 = vsel %vm300, %v1760, -1e+30
    %v1793 = vsel %vm301, %v1761, -1e+30
    %v1794 = vsel %vm302, %v1762, -1e+30
    %v1795 = vsel %vm303, %v1763, -1e+30
    %v1796 = vsel %vm304, %v1764, -1e+30
    %v1797 = vsel %vm305, %v1765, -1e+30
    %v1798 = vsel %vm306, %v1766, -1e+30
    %v1799 = vsel %vm307, %v1767, -1e+30
    %v1800 = vsel %vm308, %v1768, -1e+30
    %v1801 = vsel %vm309, %v1769, -1e+30
    %v1802 = vsel %vm310, %v1770, -1e+30
    %v1803 = vsel %vm311, %v1771, -1e+30
    %v1804 = vsel %vm312, %v1772, -1e+30
    %v1805 = vsel %vm313, %v1773, -1e+30
    %v1806 = vsel %vm314, %v1774, -1e+30
    %v1807 = vsel %vm315, %v1775, -1e+30
    %v1808 = vsel %vm316, %v1776, -1e+30
    %v1809 = vsel %vm317, %v1777, -1e+30
    %v1810 = vsel %vm318, %v1778, -1e+30
    %v1811 = vsel %vm319, %v1779, -1e+30
    %v1812 = vsel %vm320, %v1780, -1e+30
    %v1813 = vsel %vm321, %v1781, -1e+30
    %v1814 = vsel %vm322, %v1782, -1e+30
    %v1815 = vsel %vm323, %v1783, -1e+30
    %v1816 = vsel %vm324, %v1784, -1e+30
    %v1817 = vsel %vm325, %v1785, -1e+30
    %v1818 = vsel %vm326, %v1786, -1e+30
    %v1819 = vsel %vm327, %v1787, -1e+30
    %v1820 = vmax.f32 %v1788, %v1789
    %1821 = vmax.xlane.f32.xlu0 %v1820
    %v1822 = vpop.xlane.xlu0 %1821
    %v1823 = vmax.f32 %v1790, %v1791
    %1824 = vmax.xlane.f32.xlu0 %v1823
    %v1825 = vpop.xlane.xlu0 %1824
    %v1826 = vmax.f32 %v1792, %v1793
    %1827 = vmax.xlane.f32.xlu0 %v1826
    %v1828 = vpop.xlane.xlu0 %1827
    %v1829 = vmax.f32 %v1794, %v1795
    %1830 = vmax.xlane.f32.xlu0 %v1829
    %v1831 = vpop.xlane.xlu0 %1830
    %v1832 = vmax.f32 %v1796, %v1797
    %1833 = vmax.xlane.f32.xlu0 %v1832
    %v1834 = vpop.xlane.xlu0 %1833
    %v1835 = vmax.f32 %v1798, %v1799
    %1836 = vmax.xlane.f32.xlu0 %v1835
    %v1837 = vpop.xlane.xlu0 %1836
    %v1838 = vmax.f32 %v1800, %v1801
    %1839 = vmax.xlane.f32.xlu0 %v1838
    %v1840 = vpop.xlane.xlu0 %1839
    %v1841 = vmax.f32 %v1802, %v1803
    %1842 = vmax.xlane.f32.xlu0 %v1841
    %v1843 = vpop.xlane.xlu0 %1842
    %v1844 = vmax.f32 %v1804, %v1805
    %1845 = vmax.xlane.f32.xlu0 %v1844
    %v1846 = vpop.xlane.xlu0 %1845
    %v1847 = vmax.f32 %v1806, %v1807
    %1848 = vmax.xlane.f32.xlu0 %v1847
    %v1849 = vpop.xlane.xlu0 %1848
    %v1850 = vmax.f32 %v1808, %v1809
    %1851 = vmax.xlane.f32.xlu0 %v1850
    %v1852 = vpop.xlane.xlu0 %1851
    %v1853 = vmax.f32 %v1810, %v1811
    %1854 = vmax.xlane.f32.xlu0 %v1853
    %v1855 = vpop.xlane.xlu0 %1854
    %v1856 = vmax.f32 %v1812, %v1813
    %1857 = vmax.xlane.f32.xlu0 %v1856
    %v1858 = vpop.xlane.xlu0 %1857
    %v1859 = vmax.f32 %v1814, %v1815
    %1860 = vmax.xlane.f32.xlu0 %v1859
    %v1861 = vpop.xlane.xlu0 %1860
    %v1862 = vmax.f32 %v1816, %v1817
    %1863 = vmax.xlane.f32.xlu0 %v1862
    %v1864 = vpop.xlane.xlu0 %1863
    %v1865 = vmax.f32 %v1818, %v1819
    %1866 = vmax.xlane.f32.xlu0 %v1865
    %v1867 = vpop.xlane.xlu0 %1866
    %v1868 = vmax.f32 %v746, %v1822
    %v1869 = vmax.f32 %v747, %v1825
    %v1870 = vmax.f32 %v748, %v1828
    %v1871 = vmax.f32 %v749, %v1831
    %v1872 = vmax.f32 %v750, %v1834
    %v1873 = vmax.f32 %v751, %v1837
    %v1874 = vmax.f32 %v752, %v1840
    %v1875 = vmax.f32 %v753, %v1843
    %v1876 = vmax.f32 %v754, %v1846
    %v1877 = vmax.f32 %v755, %v1849
    %v1878 = vmax.f32 %v756, %v1852
    %v1879 = vmax.f32 %v757, %v1855
    %v1880 = vmax.f32 %v758, %v1858
    %v1881 = vmax.f32 %v759, %v1861
    %v1882 = vmax.f32 %v760, %v1864
    %v1883 = vmax.f32 %v761, %v1867
    %1885 = vset.pattern.permute.xlu0 1
    %1886 = vperm.xlu0 %1885, %v1868
    %v1887 = vpop.permute.xlu0 %1886
    %1890 = vset.pattern.permute.xlu0 1
    %1891 = vperm.xlu0 %1890, %v1869
    %v1892 = vpop.permute.xlu0 %1891
    %1895 = vset.pattern.permute.xlu0 1
    %1896 = vperm.xlu0 %1895, %v1870
    %v1897 = vpop.permute.xlu0 %1896
    %1900 = vset.pattern.permute.xlu0 1
    %1901 = vperm.xlu0 %1900, %v1871
    %v1902 = vpop.permute.xlu0 %1901
    %1905 = vset.pattern.permute.xlu0 1
    %1906 = vperm.xlu0 %1905, %v1872
    %v1907 = vpop.permute.xlu0 %1906
    %1910 = vset.pattern.permute.xlu0 1
    %1911 = vperm.xlu0 %1910, %v1873
    %v1912 = vpop.permute.xlu0 %1911
    %1915 = vset.pattern.permute.xlu0 1
    %1916 = vperm.xlu0 %1915, %v1874
    %v1917 = vpop.permute.xlu0 %1916
    %1920 = vset.pattern.permute.xlu0 1
    %1921 = vperm.xlu0 %1920, %v1875
    %v1922 = vpop.permute.xlu0 %1921
    %1925 = vset.pattern.permute.xlu0 1
    %1926 = vperm.xlu0 %1925, %v1876
    %v1927 = vpop.permute.xlu0 %1926
    %1930 = vset.pattern.permute.xlu0 1
    %1931 = vperm.xlu0 %1930, %v1877
    %v1932 = vpop.permute.xlu0 %1931
    %1935 = vset.pattern.permute.xlu0 1
    %1936 = vperm.xlu0 %1935, %v1878
    %v1937 = vpop.permute.xlu0 %1936
    %1940 = vset.pattern.permute.xlu0 1
    %1941 = vperm.xlu0 %1940, %v1879
    %v1942 = vpop.permute.xlu0 %1941
    %1945 = vset.pattern.permute.xlu0 1
    %1946 = vperm.xlu0 %1945, %v1880
    %v1947 = vpop.permute.xlu0 %1946
    %1950 = vset.pattern.permute.xlu0 1
    %1951 = vperm.xlu0 %1950, %v1881
    %v1952 = vpop.permute.xlu0 %1951
    %1955 = vset.pattern.permute.xlu0 1
    %1956 = vperm.xlu0 %1955, %v1882
    %v1957 = vpop.permute.xlu0 %1956
    %1960 = vset.pattern.permute.xlu0 1
    %1961 = vperm.xlu0 %1960, %v1883
    %v1962 = vpop.permute.xlu0 %1961
    %v1964 = vsub.f32 %v1788, %v1887
    %v1965 = vsub.f32 %v1789, %v1887
    %v1966 = vsub.f32 %v1790, %v1892
    %v1967 = vsub.f32 %v1791, %v1892
    %v1968 = vsub.f32 %v1792, %v1897
    %v1969 = vsub.f32 %v1793, %v1897
    %v1970 = vsub.f32 %v1794, %v1902
    %v1971 = vsub.f32 %v1795, %v1902
    %v1972 = vsub.f32 %v1796, %v1907
    %v1973 = vsub.f32 %v1797, %v1907
    %v1974 = vsub.f32 %v1798, %v1912
    %v1975 = vsub.f32 %v1799, %v1912
    %v1976 = vsub.f32 %v1800, %v1917
    %v1977 = vsub.f32 %v1801, %v1917
    %v1978 = vsub.f32 %v1802, %v1922
    %v1979 = vsub.f32 %v1803, %v1922
    %v1980 = vsub.f32 %v1804, %v1927
    %v1981 = vsub.f32 %v1805, %v1927
    %v1982 = vsub.f32 %v1806, %v1932
    %v1983 = vsub.f32 %v1807, %v1932
    %v1984 = vsub.f32 %v1808, %v1937
    %v1985 = vsub.f32 %v1809, %v1937
    %v1986 = vsub.f32 %v1810, %v1942
    %v1987 = vsub.f32 %v1811, %v1942
    %v1988 = vsub.f32 %v1812, %v1947
    %v1989 = vsub.f32 %v1813, %v1947
    %v1990 = vsub.f32 %v1814, %v1952
    %v1991 = vsub.f32 %v1815, %v1952
    %v1992 = vsub.f32 %v1816, %v1957
    %v1993 = vsub.f32 %v1817, %v1957
    %v1994 = vsub.f32 %v1818, %v1962
    %v1995 = vsub.f32 %v1819, %v1962
    %v1996 = vmul.f32 %v1964, 1.442695
    %v1997 = vpow.pop %v1996
    %v1998 = vmul.f32 %v1965, 1.442695
    %v1999 = vpow.pop %v1998
    %v2000 = vmul.f32 %v1966, 1.442695
    %v2001 = vpow.pop %v2000
    %v2002 = vmul.f32 %v1967, 1.442695
    %v2003 = vpow.pop %v2002
    %v2004 = vmul.f32 %v1968, 1.442695
    %v2005 = vpow.pop %v2004
    %v2006 = vmul.f32 %v1969, 1.442695
    %v2007 = vpow.pop %v2006
    %v2008 = vmul.f32 %v1970, 1.442695
    %v2009 = vpow.pop %v2008
    %v2010 = vmul.f32 %v1971, 1.442695
    %v2011 = vpow.pop %v2010
    %v2012 = vmul.f32 %v1972, 1.442695
    %v2013 = vpow.pop %v2012
    %v2014 = vmul.f32 %v1973, 1.442695
    %v2015 = vpow.pop %v2014
    %v2016 = vmul.f32 %v1974, 1.442695
    %v2017 = vpow.pop %v2016
    %v2018 = vmul.f32 %v1975, 1.442695
    %v2019 = vpow.pop %v2018
    %v2020 = vmul.f32 %v1976, 1.442695
    %v2021 = vpow.pop %v2020
    %v2022 = vmul.f32 %v1977, 1.442695
    %v2023 = vpow.pop %v2022
    %v2024 = vmul.f32 %v1978, 1.442695
    %v2025 = vpow.pop %v2024
    %v2026 = vmul.f32 %v1979, 1.442695
    %v2027 = vpow.pop %v2026
    %v2028 = vmul.f32 %v1980, 1.442695
    %v2029 = vpow.pop %v2028
    %v2030 = vmul.f32 %v1981, 1.442695
    %v2031 = vpow.pop %v2030
    %v2032 = vmul.f32 %v1982, 1.442695
    %v2033 = vpow.pop %v2032
    %v2034 = vmul.f32 %v1983, 1.442695
    %v2035 = vpow.pop %v2034
    %v2036 = vmul.f32 %v1984, 1.442695
    %v2037 = vpow.pop %v2036
    %v2038 = vmul.f32 %v1985, 1.442695
    %v2039 = vpow.pop %v2038
    %v2040 = vmul.f32 %v1986, 1.442695
    %v2041 = vpow.pop %v2040
    %v2042 = vmul.f32 %v1987, 1.442695
    %v2043 = vpow.pop %v2042
    %v2044 = vmul.f32 %v1988, 1.442695
    %v2045 = vpow.pop %v2044
    %v2046 = vmul.f32 %v1989, 1.442695
    %v2047 = vpow.pop %v2046
    %v2048 = vmul.f32 %v1990, 1.442695
    %v2049 = vpow.pop %v2048
    %v2050 = vmul.f32 %v1991, 1.442695
    %v2051 = vpow.pop %v2050
    %v2052 = vmul.f32 %v1992, 1.442695
    %v2053 = vpow.pop %v2052
    %v2054 = vmul.f32 %v1993, 1.442695
    %v2055 = vpow.pop %v2054
    %v2056 = vmul.f32 %v1994, 1.442695
    %v2057 = vpow.pop %v2056
    %v2058 = vmul.f32 %v1995, 1.442695
    %v2059 = vpow.pop %v2058
    %v2060 = vsel %vm296, %v1997, 0.0
    %v2061 = vsel %vm297, %v1999, 0.0
    %v2062 = vsel %vm298, %v2001, 0.0
    %v2063 = vsel %vm299, %v2003, 0.0
    %v2064 = vsel %vm300, %v2005, 0.0
    %v2065 = vsel %vm301, %v2007, 0.0
    %v2066 = vsel %vm302, %v2009, 0.0
    %v2067 = vsel %vm303, %v2011, 0.0
    %v2068 = vsel %vm304, %v2013, 0.0
    %v2069 = vsel %vm305, %v2015, 0.0
    %v2070 = vsel %vm306, %v2017, 0.0
    %v2071 = vsel %vm307, %v2019, 0.0
    %v2072 = vsel %vm308, %v2021, 0.0
    %v2073 = vsel %vm309, %v2023, 0.0
    %v2074 = vsel %vm310, %v2025, 0.0
    %v2075 = vsel %vm311, %v2027, 0.0
    %v2076 = vsel %vm312, %v2029, 0.0
    %v2077 = vsel %vm313, %v2031, 0.0
    %v2078 = vsel %vm314, %v2033, 0.0
    %v2079 = vsel %vm315, %v2035, 0.0
    %v2080 = vsel %vm316, %v2037, 0.0
    %v2081 = vsel %vm317, %v2039, 0.0
    %v2082 = vsel %vm318, %v2041, 0.0
    %v2083 = vsel %vm319, %v2043, 0.0
    %v2084 = vsel %vm320, %v2045, 0.0
    %v2085 = vsel %vm321, %v2047, 0.0
    %v2086 = vsel %vm322, %v2049, 0.0
    %v2087 = vsel %vm323, %v2051, 0.0
    %v2088 = vsel %vm324, %v2053, 0.0
    %v2089 = vsel %vm325, %v2055, 0.0
    %v2090 = vsel %vm326, %v2057, 0.0
    %v2091 = vsel %vm327, %v2059, 0.0
    %v2092 = vsub.f32 %v746, %v1868
    %v2093 = vsub.f32 %v747, %v1869
    %v2094 = vsub.f32 %v748, %v1870
    %v2095 = vsub.f32 %v749, %v1871
    %v2096 = vsub.f32 %v750, %v1872
    %v2097 = vsub.f32 %v751, %v1873
    %v2098 = vsub.f32 %v752, %v1874
    %v2099 = vsub.f32 %v753, %v1875
    %v2100 = vsub.f32 %v754, %v1876
    %v2101 = vsub.f32 %v755, %v1877
    %v2102 = vsub.f32 %v756, %v1878
    %v2103 = vsub.f32 %v757, %v1879
    %v2104 = vsub.f32 %v758, %v1880
    %v2105 = vsub.f32 %v759, %v1881
    %v2106 = vsub.f32 %v760, %v1882
    %v2107 = vsub.f32 %v761, %v1883
    %v2108 = vmul.f32 %v2092, 1.442695
    %v2109 = vpow.pop %v2108
    %v2110 = vmul.f32 %v2093, 1.442695
    %v2111 = vpow.pop %v2110
    %v2112 = vmul.f32 %v2094, 1.442695
    %v2113 = vpow.pop %v2112
    %v2114 = vmul.f32 %v2095, 1.442695
    %v2115 = vpow.pop %v2114
    %v2116 = vmul.f32 %v2096, 1.442695
    %v2117 = vpow.pop %v2116
    %v2118 = vmul.f32 %v2097, 1.442695
    %v2119 = vpow.pop %v2118
    %v2120 = vmul.f32 %v2098, 1.442695
    %v2121 = vpow.pop %v2120
    %v2122 = vmul.f32 %v2099, 1.442695
    %v2123 = vpow.pop %v2122
    %v2124 = vmul.f32 %v2100, 1.442695
    %v2125 = vpow.pop %v2124
    %v2126 = vmul.f32 %v2101, 1.442695
    %v2127 = vpow.pop %v2126
    %v2128 = vmul.f32 %v2102, 1.442695
    %v2129 = vpow.pop %v2128
    %v2130 = vmul.f32 %v2103, 1.442695
    %v2131 = vpow.pop %v2130
    %v2132 = vmul.f32 %v2104, 1.442695
    %v2133 = vpow.pop %v2132
    %v2134 = vmul.f32 %v2105, 1.442695
    %v2135 = vpow.pop %v2134
    %v2136 = vmul.f32 %v2106, 1.442695
    %v2137 = vpow.pop %v2136
    %v2138 = vmul.f32 %v2107, 1.442695
    %v2139 = vpow.pop %v2138
    %v2140 = vmul.f32 %v2109, %v1082
    %v2141 = vmul.f32 %v2111, %v1083
    %v2142 = vmul.f32 %v2113, %v1084
    %v2143 = vmul.f32 %v2115, %v1085
    %v2144 = vmul.f32 %v2117, %v1086
    %v2145 = vmul.f32 %v2119, %v1087
    %v2146 = vmul.f32 %v2121, %v1088
    %v2147 = vmul.f32 %v2123, %v1089
    %v2148 = vmul.f32 %v2125, %v1090
    %v2149 = vmul.f32 %v2127, %v1091
    %v2150 = vmul.f32 %v2129, %v1092
    %v2151 = vmul.f32 %v2131, %v1093
    %v2152 = vmul.f32 %v2133, %v1094
    %v2153 = vmul.f32 %v2135, %v1095
    %v2154 = vmul.f32 %v2137, %v1096
    %v2155 = vmul.f32 %v2139, %v1097
    %v2156 = vadd.f32 %v2060, %v2061
    %2157 = vadd.xlane.f32.xlu0 %v2156
    %v2158 = vpop.xlane.xlu0 %2157
    %v2159 = vadd.f32 %v2062, %v2063
    %2160 = vadd.xlane.f32.xlu0 %v2159
    %v2161 = vpop.xlane.xlu0 %2160
    %v2162 = vadd.f32 %v2064, %v2065
    %2163 = vadd.xlane.f32.xlu0 %v2162
    %v2164 = vpop.xlane.xlu0 %2163
    %v2165 = vadd.f32 %v2066, %v2067
    %2166 = vadd.xlane.f32.xlu0 %v2165
    %v2167 = vpop.xlane.xlu0 %2166
    %v2168 = vadd.f32 %v2068, %v2069
    %2169 = vadd.xlane.f32.xlu0 %v2168
    %v2170 = vpop.xlane.xlu0 %2169
    %v2171 = vadd.f32 %v2070, %v2071
    %2172 = vadd.xlane.f32.xlu0 %v2171
    %v2173 = vpop.xlane.xlu0 %2172
    %v2174 = vadd.f32 %v2072, %v2073
    %2175 = vadd.xlane.f32.xlu0 %v2174
    %v2176 = vpop.xlane.xlu0 %2175
    %v2177 = vadd.f32 %v2074, %v2075
    %2178 = vadd.xlane.f32.xlu0 %v2177
    %v2179 = vpop.xlane.xlu0 %2178
    %v2180 = vadd.f32 %v2076, %v2077
    %2181 = vadd.xlane.f32.xlu0 %v2180
    %v2182 = vpop.xlane.xlu0 %2181
    %v2183 = vadd.f32 %v2078, %v2079
    %2184 = vadd.xlane.f32.xlu0 %v2183
    %v2185 = vpop.xlane.xlu0 %2184
    %v2186 = vadd.f32 %v2080, %v2081
    %2187 = vadd.xlane.f32.xlu0 %v2186
    %v2188 = vpop.xlane.xlu0 %2187
    %v2189 = vadd.f32 %v2082, %v2083
    %2190 = vadd.xlane.f32.xlu0 %v2189
    %v2191 = vpop.xlane.xlu0 %2190
    %v2192 = vadd.f32 %v2084, %v2085
    %2193 = vadd.xlane.f32.xlu0 %v2192
    %v2194 = vpop.xlane.xlu0 %2193
    %v2195 = vadd.f32 %v2086, %v2087
    %2196 = vadd.xlane.f32.xlu0 %v2195
    %v2197 = vpop.xlane.xlu0 %2196
    %v2198 = vadd.f32 %v2088, %v2089
    %2199 = vadd.xlane.f32.xlu0 %v2198
    %v2200 = vpop.xlane.xlu0 %2199
    %v2201 = vadd.f32 %v2090, %v2091
    %2202 = vadd.xlane.f32.xlu0 %v2201
    %v2203 = vpop.xlane.xlu0 %2202
    %v2204 = vadd.f32 %v2140, %v2158
    %v2205 = vadd.f32 %v2141, %v2161
    %v2206 = vadd.f32 %v2142, %v2164
    %v2207 = vadd.f32 %v2143, %v2167
    %v2208 = vadd.f32 %v2144, %v2170
    %v2209 = vadd.f32 %v2145, %v2173
    %v2210 = vadd.f32 %v2146, %v2176
    %v2211 = vadd.f32 %v2147, %v2179
    %v2212 = vadd.f32 %v2148, %v2182
    %v2213 = vadd.f32 %v2149, %v2185
    %v2214 = vadd.f32 %v2150, %v2188
    %v2215 = vadd.f32 %v2151, %v2191
    %v2216 = vadd.f32 %v2152, %v2194
    %v2217 = vadd.f32 %v2153, %v2197
    %v2218 = vadd.f32 %v2154, %v2200
    %v2219 = vadd.f32 %v2155, %v2203
    %v2220 = vpack.c.bf16 %v2062, %v2060
    %v2221 = vpack.c.bf16 %v2063, %v2061
    %v2222 = vpack.c.bf16 %v2066, %v2064
    %v2223 = vpack.c.bf16 %v2067, %v2065
    %v2224 = vpack.c.bf16 %v2070, %v2068
    %v2225 = vpack.c.bf16 %v2071, %v2069
    %v2226 = vpack.c.bf16 %v2074, %v2072
    %v2227 = vpack.c.bf16 %v2075, %v2073
    %v2228 = vpack.c.bf16 %v2078, %v2076
    %v2229 = vpack.c.bf16 %v2079, %v2077
    %v2230 = vpack.c.bf16 %v2082, %v2080
    %v2231 = vpack.c.bf16 %v2083, %v2081
    %v2232 = vpack.c.bf16 %v2086, %v2084
    %v2233 = vpack.c.bf16 %v2087, %v2085
    %v2234 = vpack.c.bf16 %v2090, %v2088
    %v2235 = vpack.c.bf16 %v2091, %v2089
    %2236 = vrot.lane.b32.xlu0 %v1258, 120
    %v2237 = vpop.permute.xlu0 %2236
    %2238 = vrot.lane.b32.xlu0 %v1259, 120
    %v2239 = vpop.permute.xlu0 %2238
    %2240 = vrot.lane.b32.xlu0 %v1260, 120
    %v2241 = vpop.permute.xlu0 %2240
    %2242 = vrot.lane.b32.xlu0 %v1261, 120
    %v2243 = vpop.permute.xlu0 %2242
    %2244 = vrot.lane.b32.xlu0 %v1262, 120
    %v2245 = vpop.permute.xlu0 %2244
    %2246 = vrot.lane.b32.xlu0 %v1263, 120
    %v2247 = vpop.permute.xlu0 %2246
    %2248 = vrot.lane.b32.xlu0 %v1264, 120
    %v2249 = vpop.permute.xlu0 %2248
    %2250 = vrot.lane.b32.xlu0 %v1265, 120
    %v2251 = vpop.permute.xlu0 %2250
    %2252 = vrot.lane.b32.xlu0 %v1266, 120
    %v2253 = vpop.permute.xlu0 %2252
    %2254 = vrot.lane.b32.xlu0 %v1267, 120
    %v2255 = vpop.permute.xlu0 %2254
    %2256 = vrot.lane.b32.xlu0 %v1268, 120
    %v2257 = vpop.permute.xlu0 %2256
    %2258 = vrot.lane.b32.xlu0 %v1269, 120
    %v2259 = vpop.permute.xlu0 %2258
    %2260 = vrot.lane.b32.xlu0 %v1270, 120
    %v2261 = vpop.permute.xlu0 %2260
    %2262 = vrot.lane.b32.xlu0 %v1271, 120
    %v2263 = vpop.permute.xlu0 %2262
    %2264 = vrot.lane.b32.xlu0 %v1272, 120
    %v2265 = vpop.permute.xlu0 %2264
    %2266 = vrot.lane.b32.xlu0 %v1273, 120
    %v2267 = vpop.permute.xlu0 %2266
    %2284 = vmatprep.subr.bf16.mxu0 0
    %2285 = vmatpush1.bf16.msra.mxu0 %v2237
    %2286 = vmatprep.subr.bf16.mxu0 0
    %2287 = vmatpush1.bf16.msra.mxu0 %v2239
    %2288 = vmatprep.subr.bf16.mxu0 0
    %2289 = vmatpush1.bf16.msra.mxu0 %v2241
    %2290 = vmatprep.subr.bf16.mxu0 0
    %2291 = vmatpush1.bf16.msra.mxu0 %v2243
    %2292 = vmatprep.subr.bf16.mxu0 0
    %2293 = vmatpush1.bf16.msra.mxu0 %v2245
    %2294 = vmatprep.subr.bf16.mxu0 0
    %2295 = vmatpush1.bf16.msra.mxu0 %v2247
    %2296 = vmatprep.subr.bf16.mxu0 0
    %2297 = vmatpush1.bf16.msra.mxu0 %v2249
    %2298 = vmatprep.subr.bf16.mxu0 0
    %2299 = vmatpush1.bf16.msra.mxu0 %v2251
    %2300 = vmatprep.subr.bf16.mxu0 0
    %2301 = vmatpush1.bf16.msra.mxu0 %v2253
    %2302 = vmatprep.subr.bf16.mxu0 0
    %2303 = vmatpush1.bf16.msra.mxu0 %v2255
    %2304 = vmatprep.subr.bf16.mxu0 0
    %2305 = vmatpush1.bf16.msra.mxu0 %v2257
    %2306 = vmatprep.subr.bf16.mxu0 0
    %2307 = vmatpush1.bf16.msra.mxu0 %v2259
    %2308 = vmatprep.subr.bf16.mxu0 0
    %2309 = vmatpush1.bf16.msra.mxu0 %v2261
    %2310 = vmatprep.subr.bf16.mxu0 0
    %2311 = vmatpush1.bf16.msra.mxu0 %v2263
    %2312 = vmatprep.subr.bf16.mxu0 0
    %2313 = vmatpush1.bf16.msra.mxu0 %v2265
    %2314 = vmatprep.subr.bf16.mxu0 0
    %2315 = vmatpush1.bf16.msra.mxu0 %v2267
    %2316 = vmatprep.mubr.bf16.mxu0 %v2221
    %2317 = vmatmul.mubr.bf16.gmra.mrb[0].mxu0 %v2220
    %v2318 = vpop.f32.mrb[0].mxu0
    %v2319 = vadd.f32 0.0, %v2318
    %v2320 = vpop.f32.mrb[0].mxu0
    %v2321 = vpop.f32.mrb[0].mxu0
    %v2322 = vadd.f32 0.0, %v2321
    %v2323 = vpop.f32.mrb[0].mxu0
    %2324 = vmatprep.mubr.bf16.mxu0 %v2223
    %2325 = vmatmul.mubr.bf16.gmra.mrb[0].mxu0 %v2222
    %v2326 = vpop.f32.mrb[0].mxu0
    %v2327 = vadd.f32 0.0, %v2326
    %v2328 = vpop.f32.mrb[0].mxu0
    %v2329 = vpop.f32.mrb[0].mxu0
    %v2330 = vadd.f32 0.0, %v2329
    %v2331 = vpop.f32.mrb[0].mxu0
    %2332 = vmatprep.mubr.bf16.mxu0 %v2225
    %2333 = vmatmul.mubr.bf16.gmra.mrb[0].mxu0 %v2224
    %v2334 = vpop.f32.mrb[0].mxu0
    %v2335 = vadd.f32 0.0, %v2334
    %v2336 = vpop.f32.mrb[0].mxu0
    %v2337 = vpop.f32.mrb[0].mxu0
    %v2338 = vadd.f32 0.0, %v2337
    %v2339 = vpop.f32.mrb[0].mxu0
    %2340 = vmatprep.mubr.bf16.mxu0 %v2227
    %2341 = vmatmul.mubr.bf16.gmra.mrb[0].mxu0 %v2226
    %v2342 = vpop.f32.mrb[0].mxu0
    %v2343 = vadd.f32 0.0, %v2342
    %v2344 = vpop.f32.mrb[0].mxu0
    %v2345 = vpop.f32.mrb[0].mxu0
    %v2346 = vadd.f32 0.0, %v2345
    %v2347 = vpop.f32.mrb[0].mxu0
    %2348 = vmatprep.mubr.bf16.mxu0 %v2229
    %2349 = vmatmul.mubr.bf16.gmra.mrb[0].mxu0 %v2228
    %v2350 = vpop.f32.mrb[0].mxu0
    %v2351 = vadd.f32 0.0, %v2350
    %v2352 = vpop.f32.mrb[0].mxu0
    %v2353 = vpop.f32.mrb[0].mxu0
    %v2354 = vadd.f32 0.0, %v2353
    %v2355 = vpop.f32.mrb[0].mxu0
    %2356 = vmatprep.mubr.bf16.mxu0 %v2231
    %2357 = vmatmul.mubr.bf16.gmra.mrb[0].mxu0 %v2230
    %v2358 = vpop.f32.mrb[0].mxu0
    %v2359 = vadd.f32 0.0, %v2358
    %v2360 = vpop.f32.mrb[0].mxu0
    %v2361 = vpop.f32.mrb[0].mxu0
    %v2362 = vadd.f32 0.0, %v2361
    %v2363 = vpop.f32.mrb[0].mxu0
    %2364 = vmatprep.mubr.bf16.mxu0 %v2233
    %2365 = vmatmul.mubr.bf16.gmra.mrb[0].mxu0 %v2232
    %v2366 = vpop.f32.mrb[0].mxu0
    %v2367 = vadd.f32 0.0, %v2366
    %v2368 = vpop.f32.mrb[0].mxu0
    %v2369 = vpop.f32.mrb[0].mxu0
    %v2370 = vadd.f32 0.0, %v2369
    %v2371 = vpop.f32.mrb[0].mxu0
    %2372 = vmatprep.mubr.bf16.mxu0 %v2235
    %2373 = vmatmul.mubr.bf16.gmra.mrb[0].mxu0 %v2234
    %v2374 = vpop.f32.mrb[0].mxu0
    %v2375 = vadd.f32 0.0, %v2374
    %v2376 = vpop.f32.mrb[0].mxu0
    %v2377 = vpop.f32.mrb[0].mxu0
    %v2378 = vadd.f32 0.0, %v2377
    %v2379 = vpop.f32.mrb[0].mxu0
    %2380 = vdwg.mxu0
    %2382 = vset.pattern.permute.xlu0 1
    %2383 = vperm.xlu0 %2382, %v2109
    %v2384 = vpop.permute.xlu0 %2383
    %2387 = vset.pattern.permute.xlu0 1
    %2388 = vperm.xlu0 %2387, %v2111
    %v2389 = vpop.permute.xlu0 %2388
    %2392 = vset.pattern.permute.xlu0 1
    %2393 = vperm.xlu0 %2392, %v2113
    %v2394 = vpop.permute.xlu0 %2393
    %2397 = vset.pattern.permute.xlu0 1
    %2398 = vperm.xlu0 %2397, %v2115
    %v2399 = vpop.permute.xlu0 %2398
    %2402 = vset.pattern.permute.xlu0 1
    %2403 = vperm.xlu0 %2402, %v2117
    %v2404 = vpop.permute.xlu0 %2403
    %2407 = vset.pattern.permute.xlu0 1
    %2408 = vperm.xlu0 %2407, %v2119
    %v2409 = vpop.permute.xlu0 %2408
    %2412 = vset.pattern.permute.xlu0 1
    %2413 = vperm.xlu0 %2412, %v2121
    %v2414 = vpop.permute.xlu0 %2413
    %2417 = vset.pattern.permute.xlu0 1
    %2418 = vperm.xlu0 %2417, %v2123
    %v2419 = vpop.permute.xlu0 %2418
    %2422 = vset.pattern.permute.xlu0 1
    %2423 = vperm.xlu0 %2422, %v2125
    %v2424 = vpop.permute.xlu0 %2423
    %2427 = vset.pattern.permute.xlu0 1
    %2428 = vperm.xlu0 %2427, %v2127
    %v2429 = vpop.permute.xlu0 %2428
    %2432 = vset.pattern.permute.xlu0 1
    %2433 = vperm.xlu0 %2432, %v2129
    %v2434 = vpop.permute.xlu0 %2433
    %2437 = vset.pattern.permute.xlu0 1
    %2438 = vperm.xlu0 %2437, %v2131
    %v2439 = vpop.permute.xlu0 %2438
    %2442 = vset.pattern.permute.xlu0 1
    %2443 = vperm.xlu0 %2442, %v2133
    %v2444 = vpop.permute.xlu0 %2443
    %2447 = vset.pattern.permute.xlu0 1
    %2448 = vperm.xlu0 %2447, %v2135
    %v2449 = vpop.permute.xlu0 %2448
    %2452 = vset.pattern.permute.xlu0 1
    %2453 = vperm.xlu0 %2452, %v2137
    %v2454 = vpop.permute.xlu0 %2453
    %2457 = vset.pattern.permute.xlu0 1
    %2458 = vperm.xlu0 %2457, %v2139
    %v2459 = vpop.permute.xlu0 %2458
    %v2461 = vmul.f32 %v2384, %v1387
    %v2462 = vmul.f32 %v2389, %v1388
    %v2463 = vmul.f32 %v2394, %v1389
    %v2464 = vmul.f32 %v2399, %v1390
    %v2465 = vmul.f32 %v2404, %v1391
    %v2466 = vmul.f32 %v2409, %v1392
    %v2467 = vmul.f32 %v2414, %v1393
    %v2468 = vmul.f32 %v2419, %v1394
    %v2469 = vmul.f32 %v2424, %v1395
    %v2470 = vmul.f32 %v2429, %v1396
    %v2471 = vmul.f32 %v2434, %v1397
    %v2472 = vmul.f32 %v2439, %v1398
    %v2473 = vmul.f32 %v2444, %v1399
    %v2474 = vmul.f32 %v2449, %v1400
    %v2475 = vmul.f32 %v2454, %v1401
    %v2476 = vmul.f32 %v2459, %v1402
    %2493 = vrot.lane.b32.xlu0 %v2319, 8
    %v2494 = vpop.permute.xlu0 %2493
    %2495 = vrot.lane.b32.xlu0 %v2322, 8
    %v2496 = vpop.permute.xlu0 %2495
    %2497 = vrot.lane.b32.xlu0 %v2327, 8
    %v2498 = vpop.permute.xlu0 %2497
    %2499 = vrot.lane.b32.xlu0 %v2330, 8
    %v2500 = vpop.permute.xlu0 %2499
    %2501 = vrot.lane.b32.xlu0 %v2335, 8
    %v2502 = vpop.permute.xlu0 %2501
    %2503 = vrot.lane.b32.xlu0 %v2338, 8
    %v2504 = vpop.permute.xlu0 %2503
    %2505 = vrot.lane.b32.xlu0 %v2343, 8
    %v2506 = vpop.permute.xlu0 %2505
    %2507 = vrot.lane.b32.xlu0 %v2346, 8
    %v2508 = vpop.permute.xlu0 %2507
    %2509 = vrot.lane.b32.xlu0 %v2351, 8
    %v2510 = vpop.permute.xlu0 %2509
    %2511 = vrot.lane.b32.xlu0 %v2354, 8
    %v2512 = vpop.permute.xlu0 %2511
    %2513 = vrot.lane.b32.xlu0 %v2359, 8
    %v2514 = vpop.permute.xlu0 %2513
    %2515 = vrot.lane.b32.xlu0 %v2362, 8
    %v2516 = vpop.permute.xlu0 %2515
    %2517 = vrot.lane.b32.xlu0 %v2367, 8
    %v2518 = vpop.permute.xlu0 %2517
    %2519 = vrot.lane.b32.xlu0 %v2370, 8
    %v2520 = vpop.permute.xlu0 %2519
    %2521 = vrot.lane.b32.xlu0 %v2375, 8
    %v2522 = vpop.permute.xlu0 %2521
    %2523 = vrot.lane.b32.xlu0 %v2378, 8
    %v2524 = vpop.permute.xlu0 %2523
    %v2541 = vadd.f32 %v2461, %v2494
    %v2542 = vadd.f32 %v2462, %v2496
    %v2543 = vadd.f32 %v2463, %v2498
    %v2544 = vadd.f32 %v2464, %v2500
    %v2545 = vadd.f32 %v2465, %v2502
    %v2546 = vadd.f32 %v2466, %v2504
    %v2547 = vadd.f32 %v2467, %v2506
    %v2548 = vadd.f32 %v2468, %v2508
    %v2549 = vadd.f32 %v2469, %v2510
    %v2550 = vadd.f32 %v2470, %v2512
    %v2551 = vadd.f32 %v2471, %v2514
    %v2552 = vadd.f32 %v2472, %v2516
    %v2553 = vadd.f32 %v2473, %v2518
    %v2554 = vadd.f32 %v2474, %v2520
    %v2555 = vadd.f32 %v2475, %v2522
    %v2556 = vadd.f32 %v2476, %v2524
    %v2557 = vsel %vm496, %v1499, %v2541
    %v2558 = vsel %vm496, %v1500, %v2542
    %v2559 = vsel %vm496, %v1501, %v2543
    %v2560 = vsel %vm496, %v1502, %v2544
    %v2561 = vsel %vm496, %v1503, %v2545
    %v2562 = vsel %vm496, %v1504, %v2546
    %v2563 = vsel %vm496, %v1505, %v2547
    %v2564 = vsel %vm496, %v1506, %v2548
    %v2565 = vsel %vm496, %v1507, %v2549
    %v2566 = vsel %vm496, %v1508, %v2550
    %v2567 = vsel %vm496, %v1509, %v2551
    %v2568 = vsel %vm496, %v1510, %v2552
    %v2569 = vsel %vm496, %v1511, %v2553
    %v2570 = vsel %vm496, %v1512, %v2554
    %v2571 = vsel %vm496, %v1513, %v2555
    %v2572 = vsel %vm496, %v1514, %v2556
    %vm2573 = vcmask 130048
    %2574 = vst.msk [vmem:[#allocation4] sm:$0xff] %vm2573, %v2557
    %2575 = vst.msk [vmem:[#allocation4 + $0x8] sm:$0xff] %vm2573, %v2558
    %2576 = vst.msk [vmem:[#allocation4 + $0x10] sm:$0xff] %vm2573, %v2559
    %2577 = vst.msk [vmem:[#allocation4 + $0x18] sm:$0xff] %vm2573, %v2560
    %2578 = vst.msk [vmem:[#allocation4 + $0x20] sm:$0xff] %vm2573, %v2561
    %2579 = vst.msk [vmem:[#allocation4 + $0x28] sm:$0xff] %vm2573, %v2562
    %2580 = vst.msk [vmem:[#allocation4 + $0x30] sm:$0xff] %vm2573, %v2563
    %2581 = vst.msk [vmem:[#allocation4 + $0x38] sm:$0xff] %vm2573, %v2564
    %2582 = vst.msk [vmem:[#allocation4 + $0x40] sm:$0xff] %vm2573, %v2565
    %2583 = vst.msk [vmem:[#allocation4 + $0x48] sm:$0xff] %vm2573, %v2566
    %2584 = vst.msk [vmem:[#allocation4 + $0x50] sm:$0xff] %vm2573, %v2567
    %2585 = vst.msk [vmem:[#allocation4 + $0x58] sm:$0xff] %vm2573, %v2568
    %2586 = vst.msk [vmem:[#allocation4 + $0x60] sm:$0xff] %vm2573, %v2569
    %2587 = vst.msk [vmem:[#allocation4 + $0x68] sm:$0xff] %vm2573, %v2570
    %2588 = vst.msk [vmem:[#allocation4 + $0x70] sm:$0xff] %vm2573, %v2571
    %2589 = vst.msk [vmem:[#allocation4 + $0x78] sm:$0xff] %vm2573, %v2572
    %vm2590 = vcmask 7168
    %v2591 = vsel %vm2590, %v810, %v1868
    %v2592 = vsel %vm2590, %v811, %v1869
    %v2593 = vsel %vm2590, %v812, %v1870
    %v2594 = vsel %vm2590, %v813, %v1871
    %v2595 = vsel %vm2590, %v814, %v1872
    %v2596 = vsel %vm2590, %v815, %v1873
    %v2597 = vsel %vm2590, %v816, %v1874
    %v2598 = vsel %vm2590, %v817, %v1875
    %v2599 = vsel %vm2590, %v818, %v1876
    %v2600 = vsel %vm2590, %v819, %v1877
    %v2601 = vsel %vm2590, %v820, %v1878
    %v2602 = vsel %vm2590, %v821, %v1879
    %v2603 = vsel %vm2590, %v822, %v1880
    %v2604 = vsel %vm2590, %v823, %v1881
    %v2605 = vsel %vm2590, %v824, %v1882
    %v2606 = vsel %vm2590, %v825, %v1883
    %vm2607 = vcmask 15360
    %2608 = vst.msk [vmem:[#allocation2] sm:$0xff] %vm2607, %v2591
    %2609 = vst.msk [vmem:[#allocation2 + $0x8] sm:$0xff] %vm2607, %v2592
    %2610 = vst.msk [vmem:[#allocation2 + $0x10] sm:$0xff] %vm2607, %v2593
    %2611 = vst.msk [vmem:[#allocation2 + $0x18] sm:$0xff] %vm2607, %v2594
    %2612 = vst.msk [vmem:[#allocation2 + $0x20] sm:$0xff] %vm2607, %v2595
    %2613 = vst.msk [vmem:[#allocation2 + $0x28] sm:$0xff] %vm2607, %v2596
    %2614 = vst.msk [vmem:[#allocation2 + $0x30] sm:$0xff] %vm2607, %v2597
    %2615 = vst.msk [vmem:[#allocation2 + $0x38] sm:$0xff] %vm2607, %v2598
    %2616 = vst.msk [vmem:[#allocation2 + $0x40] sm:$0xff] %vm2607, %v2599
    %2617 = vst.msk [vmem:[#allocation2 + $0x48] sm:$0xff] %vm2607, %v2600
    %2618 = vst.msk [vmem:[#allocation2 + $0x50] sm:$0xff] %vm2607, %v2601
    %2619 = vst.msk [vmem:[#allocation2 + $0x58] sm:$0xff] %vm2607, %v2602
    %2620 = vst.msk [vmem:[#allocation2 + $0x60] sm:$0xff] %vm2607, %v2603
    %2621 = vst.msk [vmem:[#allocation2 + $0x68] sm:$0xff] %vm2607, %v2604
    %2622 = vst.msk [vmem:[#allocation2 + $0x70] sm:$0xff] %vm2607, %v2605
    %2623 = vst.msk [vmem:[#allocation2 + $0x78] sm:$0xff] %vm2607, %v2606
    %v2624 = vsel %vm2590, %v1162, %v2204
    %v2625 = vsel %vm2590, %v1163, %v2205
    %v2626 = vsel %vm2590, %v1164, %v2206
    %v2627 = vsel %vm2590, %v1165, %v2207
    %v2628 = vsel %vm2590, %v1166, %v2208
    %v2629 = vsel %vm2590, %v1167, %v2209
    %v2630 = vsel %vm2590, %v1168, %v2210
    %v2631 = vsel %vm2590, %v1169, %v2211
    %v2632 = vsel %vm2590, %v1170, %v2212
    %v2633 = vsel %vm2590, %v1171, %v2213
    %v2634 = vsel %vm2590, %v1172, %v2214
    %v2635 = vsel %vm2590, %v1173, %v2215
    %v2636 = vsel %vm2590, %v1174, %v2216
    %v2637 = vsel %vm2590, %v1175, %v2217
    %v2638 = vsel %vm2590, %v1176, %v2218
    %v2639 = vsel %vm2590, %v1177, %v2219
    %2640 = vst.msk [vmem:[#allocation3] sm:$0xff] %vm2607, %v2624
    %2641 = vst.msk [vmem:[#allocation3 + $0x8] sm:$0xff] %vm2607, %v2625
    %2642 = vst.msk [vmem:[#allocation3 + $0x10] sm:$0xff] %vm2607, %v2626
    %2643 = vst.msk [vmem:[#allocation3 + $0x18] sm:$0xff] %vm2607, %v2627
    %2644 = vst.msk [vmem:[#allocation3 + $0x20] sm:$0xff] %vm2607, %v2628
    %2645 = vst.msk [vmem:[#allocation3 + $0x28] sm:$0xff] %vm2607, %v2629
    %2646 = vst.msk [vmem:[#allocation3 + $0x30] sm:$0xff] %vm2607, %v2630
    %2647 = vst.msk [vmem:[#allocation3 + $0x38] sm:$0xff] %vm2607, %v2631
    %2648 = vst.msk [vmem:[#allocation3 + $0x40] sm:$0xff] %vm2607, %v2632
    %2649 = vst.msk [vmem:[#allocation3 + $0x48] sm:$0xff] %vm2607, %v2633
    %2650 = vst.msk [vmem:[#allocation3 + $0x50] sm:$0xff] %vm2607, %v2634
    %2651 = vst.msk [vmem:[#allocation3 + $0x58] sm:$0xff] %vm2607, %v2635
    %2652 = vst.msk [vmem:[#allocation3 + $0x60] sm:$0xff] %vm2607, %v2636
    %2653 = vst.msk [vmem:[#allocation3 + $0x68] sm:$0xff] %vm2607, %v2637
    %2654 = vst.msk [vmem:[#allocation3 + $0x70] sm:$0xff] %vm2607, %v2638
    %2655 = vst.msk [vmem:[#allocation3 + $0x78] sm:$0xff] %vm2607, %v2639
  $region29: #{backbone_forward.19} parent=0 // pred_fallthru
    _
  // Predicated region
  $region30: #{backbone_forward.19} parent=0 // pred_check
    %p2656 = pneg %p193
  $region31: #{backbone_forward.19} parent=0 // pred_check_branch
    %2658 = sbr.rel (%p2656) target = $region33
  $region32: #{backbone_forward.19} parent=0 // pred_region
    %v2659 = vld [vmem:[#allocation3] sm:$0xff]
    %v2660 = vld [vmem:[#allocation3 + $0x8] sm:$0xff]
    %v2661 = vld [vmem:[#allocation3 + $0x10] sm:$0xff]
    %v2662 = vld [vmem:[#allocation3 + $0x18] sm:$0xff]
    %v2663 = vld [vmem:[#allocation3 + $0x20] sm:$0xff]
    %v2664 = vld [vmem:[#allocation3 + $0x28] sm:$0xff]
    %v2665 = vld [vmem:[#allocation3 + $0x30] sm:$0xff]
    %v2666 = vld [vmem:[#allocation3 + $0x38] sm:$0xff]
    %v2667 = vld [vmem:[#allocation3 + $0x40] sm:$0xff]
    %v2668 = vld [vmem:[#allocation3 + $0x48] sm:$0xff]
    %v2669 = vld [vmem:[#allocation3 + $0x50] sm:$0xff]
    %v2670 = vld [vmem:[#allocation3 + $0x58] sm:$0xff]
    %v2671 = vld [vmem:[#allocation3 + $0x60] sm:$0xff]
    %v2672 = vld [vmem:[#allocation3 + $0x68] sm:$0xff]
    %v2673 = vld [vmem:[#allocation3 + $0x70] sm:$0xff]
    %v2674 = vld [vmem:[#allocation3 + $0x78] sm:$0xff]
    %vm2675 = vcmp.eq.f32.partialorder %v2659, 0.0
    %vm2676 = vcmp.eq.f32.partialorder %v2660, 0.0
    %vm2677 = vcmp.eq.f32.partialorder %v2661, 0.0
    %vm2678 = vcmp.eq.f32.partialorder %v2662, 0.0
    %vm2679 = vcmp.eq.f32.partialorder %v2663, 0.0
    %vm2680 = vcmp.eq.f32.partialorder %v2664, 0.0
    %vm2681 = vcmp.eq.f32.partialorder %v2665, 0.0
    %vm2682 = vcmp.eq.f32.partialorder %v2666, 0.0
    %vm2683 = vcmp.eq.f32.partialorder %v2667, 0.0
    %vm2684 = vcmp.eq.f32.partialorder %v2668, 0.0
    %vm2685 = vcmp.eq.f32.partialorder %v2669, 0.0
    %vm2686 = vcmp.eq.f32.partialorder %v2670, 0.0
    %vm2687 = vcmp.eq.f32.partialorder %v2671, 0.0
    %vm2688 = vcmp.eq.f32.partialorder %v2672, 0.0
    %vm2689 = vcmp.eq.f32.partialorder %v2673, 0.0
    %vm2690 = vcmp.eq.f32.partialorder %v2674, 0.0
    %v2691 = vsel %vm2675, 1.0, %v2659
    %v2692 = vsel %vm2676, 1.0, %v2660
    %v2693 = vsel %vm2677, 1.0, %v2661
    %v2694 = vsel %vm2678, 1.0, %v2662
    %v2695 = vsel %vm2679, 1.0, %v2663
    %v2696 = vsel %vm2680, 1.0, %v2664
    %v2697 = vsel %vm2681, 1.0, %v2665
    %v2698 = vsel %vm2682, 1.0, %v2666
    %v2699 = vsel %vm2683, 1.0, %v2667
    %v2700 = vsel %vm2684, 1.0, %v2668
    %v2701 = vsel %vm2685, 1.0, %v2669
    %v2702 = vsel %vm2686, 1.0, %v2670
    %v2703 = vsel %vm2687, 1.0, %v2671
    %v2704 = vsel %vm2688, 1.0, %v2672
    %v2705 = vsel %vm2689, 1.0, %v2673
    %v2706 = vsel %vm2690, 1.0, %v2674
    %v2707 = vrcp.pop %v2691
    %v2708 = vrcp.pop %v2692
    %v2709 = vrcp.pop %v2693
    %v2710 = vrcp.pop %v2694
    %v2711 = vrcp.pop %v2695
    %v2712 = vrcp.pop %v2696
    %v2713 = vrcp.pop %v2697
    %v2714 = vrcp.pop %v2698
    %v2715 = vrcp.pop %v2699
    %v2716 = vrcp.pop %v2700
    %v2717 = vrcp.pop %v2701
    %v2718 = vrcp.pop %v2702
    %v2719 = vrcp.pop %v2703
    %v2720 = vrcp.pop %v2704
    %v2721 = vrcp.pop %v2705
    %v2722 = vrcp.pop %v2706
    %v2723 = vld [vmem:[#allocation4] sm:$0xff]
    %v2724 = vld [vmem:[#allocation4 + $0x8] sm:$0xff]
    %v2725 = vld [vmem:[#allocation4 + $0x10] sm:$0xff]
    %v2726 = vld [vmem:[#allocation4 + $0x18] sm:$0xff]
    %v2727 = vld [vmem:[#allocation4 + $0x20] sm:$0xff]
    %v2728 = vld [vmem:[#allocation4 + $0x28] sm:$0xff]
    %v2729 = vld [vmem:[#allocation4 + $0x30] sm:$0xff]
    %v2730 = vld [vmem:[#allocation4 + $0x38] sm:$0xff]
    %v2731 = vld [vmem:[#allocation4 + $0x40] sm:$0xff]
    %v2732 = vld [vmem:[#allocation4 + $0x48] sm:$0xff]
    %v2733 = vld [vmem:[#allocation4 + $0x50] sm:$0xff]
    %v2734 = vld [vmem:[#allocation4 + $0x58] sm:$0xff]
    %v2735 = vld [vmem:[#allocation4 + $0x60] sm:$0xff]
    %v2736 = vld [vmem:[#allocation4 + $0x68] sm:$0xff]
    %v2737 = vld [vmem:[#allocation4 + $0x70] sm:$0xff]
    %v2738 = vld [vmem:[#allocation4 + $0x78] sm:$0xff]
    %2740 = vset.pattern.permute.xlu0 0
    %2741 = vperm.xlu0 %2740, %v2707
    %v2742 = vpop.permute.xlu0 %2741
    %2745 = vset.pattern.permute.xlu0 0
    %2746 = vperm.xlu0 %2745, %v2708
    %v2747 = vpop.permute.xlu0 %2746
    %2750 = vset.pattern.permute.xlu0 0
    %2751 = vperm.xlu0 %2750, %v2709
    %v2752 = vpop.permute.xlu0 %2751
    %2755 = vset.pattern.permute.xlu0 0
    %2756 = vperm.xlu0 %2755, %v2710
    %v2757 = vpop.permute.xlu0 %2756
    %2760 = vset.pattern.permute.xlu0 0
    %2761 = vperm.xlu0 %2760, %v2711
    %v2762 = vpop.permute.xlu0 %2761
    %2765 = vset.pattern.permute.xlu0 0
    %2766 = vperm.xlu0 %2765, %v2712
    %v2767 = vpop.permute.xlu0 %2766
    %2770 = vset.pattern.permute.xlu0 0
    %2771 = vperm.xlu0 %2770, %v2713
    %v2772 = vpop.permute.xlu0 %2771
    %2775 = vset.pattern.permute.xlu0 0
    %2776 = vperm.xlu0 %2775, %v2714
    %v2777 = vpop.permute.xlu0 %2776
    %2780 = vset.pattern.permute.xlu0 0
    %2781 = vperm.xlu0 %2780, %v2715
    %v2782 = vpop.permute.xlu0 %2781
    %2785 = vset.pattern.permute.xlu0 0
    %2786 = vperm.xlu0 %2785, %v2716
    %v2787 = vpop.permute.xlu0 %2786
    %2790 = vset.pattern.permute.xlu0 0
    %2791 = vperm.xlu0 %2790, %v2717
    %v2792 = vpop.permute.xlu0 %2791
    %2795 = vset.pattern.permute.xlu0 0
    %2796 = vperm.xlu0 %2795, %v2718
    %v2797 = vpop.permute.xlu0 %2796
    %2800 = vset.pattern.permute.xlu0 0
    %2801 = vperm.xlu0 %2800, %v2719
    %v2802 = vpop.permute.xlu0 %2801
    %2805 = vset.pattern.permute.xlu0 0
    %2806 = vperm.xlu0 %2805, %v2720
    %v2807 = vpop.permute.xlu0 %2806
    %2810 = vset.pattern.permute.xlu0 0
    %2811 = vperm.xlu0 %2810, %v2721
    %v2812 = vpop.permute.xlu0 %2811
    %2815 = vset.pattern.permute.xlu0 0
    %2816 = vperm.xlu0 %2815, %v2722
    %v2817 = vpop.permute.xlu0 %2816
    %v2819 = vmul.f32 %v2723, %v2742
    %v2820 = vmul.f32 %v2724, %v2747
    %v2821 = vmul.f32 %v2725, %v2752
    %v2822 = vmul.f32 %v2726, %v2757
    %v2823 = vmul.f32 %v2727, %v2762
    %v2824 = vmul.f32 %v2728, %v2767
    %v2825 = vmul.f32 %v2729, %v2772
    %v2826 = vmul.f32 %v2730, %v2777
    %v2827 = vmul.f32 %v2731, %v2782
    %v2828 = vmul.f32 %v2732, %v2787
    %v2829 = vmul.f32 %v2733, %v2792
    %v2830 = vmul.f32 %v2734, %v2797
    %v2831 = vmul.f32 %v2735, %v2802
    %v2832 = vmul.f32 %v2736, %v2807
    %v2833 = vmul.f32 %v2737, %v2812
    %v2834 = vmul.f32 %v2738, %v2817
    %2835 = vset.pattern.permute.xlu0 1
    %2836 = vperm.xlu0 %2835, %v2707
    %v2837 = vpop.permute.xlu0 %2836
    %2839 = vset.pattern.permute.xlu0 1
    %2840 = vperm.xlu0 %2839, %v2708
    %v2841 = vpop.permute.xlu0 %2840
    %2843 = vset.pattern.permute.xlu0 1
    %2844 = vperm.xlu0 %2843, %v2709
    %v2845 = vpop.permute.xlu0 %2844
    %2847 = vset.pattern.permute.xlu0 1
    %2848 = vperm.xlu0 %2847, %v2710
    %v2849 = vpop.permute.xlu0 %2848
    %2851 = vset.pattern.permute.xlu0 1
    %2852 = vperm.xlu0 %2851, %v2711
    %v2853 = vpop.permute.xlu0 %2852
    %2855 = vset.pattern.permute.xlu0 1
    %2856 = vperm.xlu0 %2855, %v2712
    %v2857 = vpop.permute.xlu0 %2856
    %2859 = vset.pattern.permute.xlu0 1
    %2860 = vperm.xlu0 %2859, %v2713
    %v2861 = vpop.permute.xlu0 %2860
    %2863 = vset.pattern.permute.xlu0 1
    %2864 = vperm.xlu0 %2863, %v2714
    %v2865 = vpop.permute.xlu0 %2864
    %2867 = vset.pattern.permute.xlu0 1
    %2868 = vperm.xlu0 %2867, %v2715
    %v2869 = vpop.permute.xlu0 %2868
    %2871 = vset.pattern.permute.xlu0 1
    %2872 = vperm.xlu0 %2871, %v2716
    %v2873 = vpop.permute.xlu0 %2872
    %2875 = vset.pattern.permute.xlu0 1
    %2876 = vperm.xlu0 %2875, %v2717
    %v2877 = vpop.permute.xlu0 %2876
    %2879 = vset.pattern.permute.xlu0 1
    %2880 = vperm.xlu0 %2879, %v2718
    %v2881 = vpop.permute.xlu0 %2880
    %2883 = vset.pattern.permute.xlu0 1
    %2884 = vperm.xlu0 %2883, %v2719
    %v2885 = vpop.permute.xlu0 %2884
    %2887 = vset.pattern.permute.xlu0 1
    %2888 = vperm.xlu0 %2887, %v2720
    %v2889 = vpop.permute.xlu0 %2888
    %2891 = vset.pattern.permute.xlu0 1
    %2892 = vperm.xlu0 %2891, %v2721
    %v2893 = vpop.permute.xlu0 %2892
    %2895 = vset.pattern.permute.xlu0 1
    %2896 = vperm.xlu0 %2895, %v2722
    %v2897 = vpop.permute.xlu0 %2896
    %v2899 = vmul.f32 %v2723, %v2837
    %v2900 = vmul.f32 %v2724, %v2841
    %v2901 = vmul.f32 %v2725, %v2845
    %v2902 = vmul.f32 %v2726, %v2849
    %v2903 = vmul.f32 %v2727, %v2853
    %v2904 = vmul.f32 %v2728, %v2857
    %v2905 = vmul.f32 %v2729, %v2861
    %v2906 = vmul.f32 %v2730, %v2865
    %v2907 = vmul.f32 %v2731, %v2869
    %v2908 = vmul.f32 %v2732, %v2873
    %v2909 = vmul.f32 %v2733, %v2877
    %v2910 = vmul.f32 %v2734, %v2881
    %v2911 = vmul.f32 %v2735, %v2885
    %v2912 = vmul.f32 %v2736, %v2889
    %v2913 = vmul.f32 %v2737, %v2893
    %v2914 = vmul.f32 %v2738, %v2897
    %vm2915 = vcmask 64512
    %v2916 = vsel %vm2915, %v2819, %v2899
    %v2917 = vsel %vm2915, %v2820, %v2900
    %v2918 = vsel %vm2915, %v2821, %v2901
    %v2919 = vsel %vm2915, %v2822, %v2902
    %v2920 = vsel %vm2915, %v2823, %v2903
    %v2921 = vsel %vm2915, %v2824, %v2904
    %v2922 = vsel %vm2915, %v2825, %v2905
    %v2923 = vsel %vm2915, %v2826, %v2906
    %v2924 = vsel %vm2915, %v2827, %v2907
    %v2925 = vsel %vm2915, %v2828, %v2908
    %v2926 = vsel %vm2915, %v2829, %v2909
    %v2927 = vsel %vm2915, %v2830, %v2910
    %v2928 = vsel %vm2915, %v2831, %v2911
    %v2929 = vsel %vm2915, %v2832, %v2912
    %v2930 = vsel %vm2915, %v2833, %v2913
    %v2931 = vsel %vm2915, %v2834, %v2914
    %v2932 = vld [vmem:[%s2] sm:$0xff]
    %v2933 = vld [vmem:[%s2 + $0x8] sm:$0xff]
    %v2934 = vld [vmem:[%s2 + $0x10] sm:$0xff]
    %v2935 = vld [vmem:[%s2 + $0x18] sm:$0xff]
    %v2936 = vld [vmem:[%s2 + $0x20] sm:$0xff]
    %v2937 = vld [vmem:[%s2 + $0x28] sm:$0xff]
    %v2938 = vld [vmem:[%s2 + $0x30] sm:$0xff]
    %v2939 = vld [vmem:[%s2 + $0x38] sm:$0xff]
    %v2940 = vld [vmem:[%s2 + $0x40] sm:$0xff]
    %v2941 = vld [vmem:[%s2 + $0x48] sm:$0xff]
    %v2942 = vld [vmem:[%s2 + $0x50] sm:$0xff]
    %v2943 = vld [vmem:[%s2 + $0x58] sm:$0xff]
    %v2944 = vld [vmem:[%s2 + $0x60] sm:$0xff]
    %v2945 = vld [vmem:[%s2 + $0x68] sm:$0xff]
    %v2946 = vld [vmem:[%s2 + $0x70] sm:$0xff]
    %v2947 = vld [vmem:[%s2 + $0x78] sm:$0xff]
    %2964 = vrot.lane.b32.xlu0 %v2932, 80
    %v2965 = vpop.permute.xlu0 %2964
    %2966 = vrot.lane.b32.xlu0 %v2933, 80
    %v2967 = vpop.permute.xlu0 %2966
    %2968 = vrot.lane.b32.xlu0 %v2934, 80
    %v2969 = vpop.permute.xlu0 %2968
    %2970 = vrot.lane.b32.xlu0 %v2935, 80
    %v2971 = vpop.permute.xlu0 %2970
    %2972 = vrot.lane.b32.xlu0 %v2936, 80
    %v2973 = vpop.permute.xlu0 %2972
    %2974 = vrot.lane.b32.xlu0 %v2937, 80
    %v2975 = vpop.permute.xlu0 %2974
    %2976 = vrot.lane.b32.xlu0 %v2938, 80
    %v2977 = vpop.permute.xlu0 %2976
    %2978 = vrot.lane.b32.xlu0 %v2939, 80
    %v2979 = vpop.permute.xlu0 %2978
    %2980 = vrot.lane.b32.xlu0 %v2940, 80
    %v2981 = vpop.permute.xlu0 %2980
    %2982 = vrot.lane.b32.xlu0 %v2941, 80
    %v2983 = vpop.permute.xlu0 %2982
    %2984 = vrot.lane.b32.xlu0 %v2942, 80
    %v2985 = vpop.permute.xlu0 %2984
    %2986 = vrot.lane.b32.xlu0 %v2943, 80
    %v2987 = vpop.permute.xlu0 %2986
    %2988 = vrot.lane.b32.xlu0 %v2944, 80
    %v2989 = vpop.permute.xlu0 %2988
    %2990 = vrot.lane.b32.xlu0 %v2945, 80
    %v2991 = vpop.permute.xlu0 %2990
    %2992 = vrot.lane.b32.xlu0 %v2946, 80
    %v2993 = vpop.permute.xlu0 %2992
    %2994 = vrot.lane.b32.xlu0 %v2947, 80
    %v2995 = vpop.permute.xlu0 %2994
    %v3012 = vadd.f32 %v2916, %v2965
    %v3013 = vadd.f32 %v2917, %v2967
    %v3014 = vadd.f32 %v2918, %v2969
    %v3015 = vadd.f32 %v2919, %v2971
    %v3016 = vadd.f32 %v2920, %v2973
    %v3017 = vadd.f32 %v2921, %v2975
    %v3018 = vadd.f32 %v2922, %v2977
    %v3019 = vadd.f32 %v2923, %v2979
    %v3020 = vadd.f32 %v2924, %v2981
    %v3021 = vadd.f32 %v2925, %v2983
    %v3022 = vadd.f32 %v2926, %v2985
    %v3023 = vadd.f32 %v2927, %v2987
    %v3024 = vadd.f32 %v2928, %v2989
    %v3025 = vadd.f32 %v2929, %v2991
    %v3026 = vadd.f32 %v2930, %v2993
    %v3027 = vadd.f32 %v2931, %v2995
    %v3028 = vld [vmem:[%s6] sm:$0xff]
    %v3029 = vld [vmem:[%s6 + $0x8] sm:$0xff]
    %v3030 = vld [vmem:[%s6 + $0x10] sm:$0xff]
    %v3031 = vld [vmem:[%s6 + $0x18] sm:$0xff]
    %v3032 = vld [vmem:[%s6 + $0x20] sm:$0xff]
    %v3033 = vld [vmem:[%s6 + $0x28] sm:$0xff]
    %v3034 = vld [vmem:[%s6 + $0x30] sm:$0xff]
    %v3035 = vld [vmem:[%s6 + $0x38] sm:$0xff]
    %v3036 = vld [vmem:[%s6 + $0x40] sm:$0xff]
    %v3037 = vld [vmem:[%s6 + $0x48] sm:$0xff]
    %v3038 = vld [vmem:[%s6 + $0x50] sm:$0xff]
    %v3039 = vld [vmem:[%s6 + $0x58] sm:$0xff]
    %v3040 = vld [vmem:[%s6 + $0x60] sm:$0xff]
    %v3041 = vld [vmem:[%s6 + $0x68] sm:$0xff]
    %v3042 = vld [vmem:[%s6 + $0x70] sm:$0xff]
    %v3043 = vld [vmem:[%s6 + $0x78] sm:$0xff]
    %v3044 = vadd.f32 %v3012, %v3028
    %v3045 = vadd.f32 %v3013, %v3029
    %v3046 = vadd.f32 %v3014, %v3030
    %v3047 = vadd.f32 %v3015, %v3031
    %v3048 = vadd.f32 %v3016, %v3032
    %v3049 = vadd.f32 %v3017, %v3033
    %v3050 = vadd.f32 %v3018, %v3034
    %v3051 = vadd.f32 %v3019, %v3035
    %v3052 = vadd.f32 %v3020, %v3036
    %v3053 = vadd.f32 %v3021, %v3037
    %v3054 = vadd.f32 %v3022, %v3038
    %v3055 = vadd.f32 %v3023, %v3039
    %v3056 = vadd.f32 %v3024, %v3040
    %v3057 = vadd.f32 %v3025, %v3041
    %v3058 = vadd.f32 %v3026, %v3042
    %v3059 = vadd.f32 %v3027, %v3043
    %vm3060 = vcmask 130048
    %3061 = vst.msk [vmem:[%s7] sm:$0xff] %vm3060, %v3044
    %3062 = vst.msk [vmem:[%s7 + $0x8] sm:$0xff] %vm3060, %v3045
    %3063 = vst.msk [vmem:[%s7 + $0x10] sm:$0xff] %vm3060, %v3046
    %3064 = vst.msk [vmem:[%s7 + $0x18] sm:$0xff] %vm3060, %v3047
    %3065 = vst.msk [vmem:[%s7 + $0x20] sm:$0xff] %vm3060, %v3048
    %3066 = vst.msk [vmem:[%s7 + $0x28] sm:$0xff] %vm3060, %v3049
    %3067 = vst.msk [vmem:[%s7 + $0x30] sm:$0xff] %vm3060, %v3050
    %3068 = vst.msk [vmem:[%s7 + $0x38] sm:$0xff] %vm3060, %v3051
    %3069 = vst.msk [vmem:[%s7 + $0x40] sm:$0xff] %vm3060, %v3052
    %3070 = vst.msk [vmem:[%s7 + $0x48] sm:$0xff] %vm3060, %v3053
    %3071 = vst.msk [vmem:[%s7 + $0x50] sm:$0xff] %vm3060, %v3054
    %3072 = vst.msk [vmem:[%s7 + $0x58] sm:$0xff] %vm3060, %v3055
    %3073 = vst.msk [vmem:[%s7 + $0x60] sm:$0xff] %vm3060, %v3056
    %3074 = vst.msk [vmem:[%s7 + $0x68] sm:$0xff] %vm3060, %v3057
    %3075 = vst.msk [vmem:[%s7 + $0x70] sm:$0xff] %vm3060, %v3058
    %3076 = vst.msk [vmem:[%s7 + $0x78] sm:$0xff] %vm3060, %v3059
  $region33: #{backbone_forward.19} parent=0 // pred_fallthru
    _
  // Predicated region
  $region34: #{backbone_forward.19} parent=0 // pred_check
    _
  $region35: #{backbone_forward.19} parent=0 // pred_check_branch
    %3078 = sbr.rel (0) target = $region37
  $region36: #{backbone_forward.19} parent=0 // pred_region
    _
  $region37: #{backbone_forward.19} parent=0 // pred_fallthru
    _
  // Predicated region
  $region38: #{backbone_forward.19} parent=0 // pred_check
    _
  $region39: #{backbone_forward.19} parent=0 // pred_check_branch
    %3080 = sbr.rel (0) target = $region41
  $region40: #{backbone_forward.19} parent=0 // pred_region
    _
  $region41: #{backbone_forward.19} parent=0 // pred_fallthru
    _

</llo_original>
